<compile_context>
chip_gen: v6e
topology: v6e:2x2x1
jax: 0.10.0
libtpu: 0.0.40
codegen_flags: <defaults>
</compile_context>

<pallas_src>
import jax
import jax.numpy as jnp
from jax import lax
from jax.experimental import pallas as pl
from jax.experimental.pallas import tpu as pltpu

NUM_CLASSES = 10
IN_DIM = 784                       # flattened image
CAT_DIM = IN_DIM + NUM_CLASSES     # 794
H1, H2, H3 = 1024, 512, 256
OUT_DIM = 1
MIN_TILE_B = 128                   # sublane/MXU friendly minimum
MAX_TILE_B = 512                   # sweep range 256-512 per review


def _leaky_relu(x, slope=0.2):
    return jnp.where(x > 0, x, slope * x)


def _round_up(a, m):
    return ((a + m - 1) // m) * m


def _pick_tile_b(batch):
    """Largest tile <= MAX_TILE_B that still leaves >= 2 grid steps (when batch allows)."""
    t = pl.cdiv(batch, 2 * MIN_TILE_B) * MIN_TILE_B
    return int(min(MAX_TILE_B, max(MIN_TILE_B, t)))


def disc_kernel(x_ref, lab_ref,
                w1a_ref, w1b_ref,
                w2_ref, b2_ref,
                w3_ref, b3_ref,
                w4t_ref, b4_ref,
                out_ref):
    x = x_ref[...]                       # (TB, 784) bf16
    labels = lab_ref[...]                # (TB, 1)   i32
    tb = x.shape[0]

    # ---- Linear(794 -> 1024): cat + Embedding + b1 folded --------------------
    class_iota = lax.broadcasted_iota(jnp.int32, (tb, NUM_CLASSES), 1)
    onehot = (labels == class_iota).astype(jnp.float32)            # exact 0/1
    h = jnp.dot(x, w1a_ref[...], preferred_element_type=jnp.float32)
    h = h + jnp.dot(onehot, w1b_ref[...], preferred_element_type=jnp.float32)
    h = _leaky_relu(h)
    # TODO(synk): nn.Dropout(0.3) is identity (eval mode); training-mode RNG masking not implemented.

    # ---- Linear(1024 -> 512) --------------------------------------------------
    h = _leaky_relu(
        jnp.dot(h.astype(jnp.bfloat16), w2_ref[...], preferred_element_type=jnp.float32)
        + b2_ref[...])

    # ---- Linear(512 -> 256) ---------------------------------------------------
    h = _leaky_relu(
        jnp.dot(h.astype(jnp.bfloat16), w3_ref[...], preferred_element_type=jnp.float32)
        + b3_ref[...])

    # ---- Linear(256 -> 1) + Sigmoid, emitted lane-dense as a (1, TB) row ------
    h_t = jnp.transpose(h).astype(jnp.bfloat16)          # (256, TB), aligned XLU transpose
    o = jnp.dot(w4t_ref[...], h_t, preferred_element_type=jnp.float32)   # (1, TB)
    o = jax.nn.sigmoid(o + b4_ref[...])
    out_ref[...] = o.reshape(1, 1, tb)


def prepare_params(params):
    """One-time weight prep, hoisted out of the per-call path (perf review item)."""
    w1 = params["w1"].astype(jnp.float32)
    # Embedding + cat + b1 fold; kept in f32 so the label/bias contribution is exact.
    w1b_eff = (jnp.dot(params["emb"].astype(jnp.float32), w1[IN_DIM:],
                       precision=lax.Precision.HIGHEST)
               + params["b1"].astype(jnp.float32)[None, :])           # (10, 1024) f32
    return {
        "w1a": w1[:IN_DIM].astype(jnp.bfloat16),                       # (784, 1024)
        "w1b_eff": w1b_eff,                                            # (10, 1024) f32
        "w2": params["w2"].astype(jnp.bfloat16),                       # (1024, 512)
        "b2": params["b2"].reshape(1, H2).astype(jnp.float32),
        "w3": params["w3"].astype(jnp.bfloat16),                       # (512, 256)
        "b3": params["b3"].reshape(1, H3).astype(jnp.float32),
        "w4t": jnp.transpose(params["w4"]).astype(jnp.bfloat16),       # (1, 256)
        "b4": params["b4"].reshape(1, OUT_DIM).astype(jnp.float32),    # (1, 1)
    }


def conditional_discriminator(x, labels, prepared, *, tile_b=None):
    B = x.shape[0]
    if tile_b is None:
        tile_b = _pick_tile_b(B)
    b_pad = _round_up(B, tile_b)
    pad = b_pad - B
    n_tiles = b_pad // tile_b

    x_p = jnp.pad(x.astype(jnp.bfloat16), ((0, pad), (0, 0)))
    lab_p = jnp.pad(labels.reshape(B, 1).astype(jnp.int32), ((0, pad), (0, 0)))

    moving = lambda i: (i, 0)     # batch-tiled arrays
    resident = lambda i: (0, 0)   # weights/biases: constant block -> never re-DMA'd

    in_specs = [
        pl.BlockSpec((tile_b, IN_DIM), moving),
        pl.BlockSpec((tile_b, 1), moving),
        pl.BlockSpec((IN_DIM, H1), resident),
        pl.BlockSpec((NUM_CLASSES, H1), resident),
        pl.BlockSpec((H1, H2), resident),
        pl.BlockSpec((1, H2), resident),
        pl.BlockSpec((H2, H3), resident),
        pl.BlockSpec((1, H3), resident),
        pl.BlockSpec((1, H3), resident),
        pl.BlockSpec((1, OUT_DIM), resident),
    ]
    # Lane-dense output: one (1, tile_b) row per grid step.
    out_spec = pl.BlockSpec((1, 1, tile_b), lambda i: (i, 0, 0))

    flops = 2 * b_pad * (IN_DIM * H1 + NUM_CLASSES * H1 + H1 * H2 + H2 * H3 + H3 * OUT_DIM)
    weight_bytes = (2 * (IN_DIM * H1 + H1 * H2 + H2 * H3 + H3 * OUT_DIM)
                    + 4 * (NUM_CLASSES * H1 + H2 + H3 + OUT_DIM))
    bytes_accessed = weight_bytes + b_pad * (IN_DIM * 2 + 4 + OUT_DIM * 4)
    cost = pl.CostEstimate(flops=flops,
                           transcendentals=b_pad * OUT_DIM,
                           bytes_accessed=bytes_accessed)

    out = pl.pallas_call(
        disc_kernel,
        out_shape=jax.ShapeDtypeStruct((n_tiles, 1, tile_b), jnp.float32),
        grid=(n_tiles,),
        in_specs=in_specs,
        out_specs=out_spec,
        compiler_params=pltpu.CompilerParams(
            dimension_semantics=("parallel",),
            vmem_limit_bytes=32 * 1024 * 1024),
        cost_estimate=cost,
    )(x_p, lab_p,
      prepared["w1a"], prepared["w1b_eff"],
      prepared["w2"], prepared["b2"],
      prepared["w3"], prepared["b3"],
      prepared["w4t"], prepared["b4"])

    return out.reshape(b_pad, OUT_DIM)[:B]


def init_params(key):
    """Deterministic init matching the PyTorch layer shapes (uniform +-1/sqrt(fan_in))."""
    ks = jax.random.split(key, 9)

    def unif(k, shape, fan_in):
        bound = 1.0 / float(fan_in) ** 0.5
        return jax.random.uniform(k, shape, jnp.float32, -bound, bound)

    return {
        "emb": jax.random.normal(ks[0], (NUM_CLASSES, NUM_CLASSES), jnp.float32),
        "w1": unif(ks[1], (CAT_DIM, H1), CAT_DIM),
        "b1": unif(ks[2], (H1,), CAT_DIM),
        "w2": unif(ks[3], (H1, H2), H1),
        "b2": unif(ks[4], (H2,), H1),
        "w3": unif(ks[5], (H2, H3), H2),
        "b3": unif(ks[6], (H3,), H2),
        "w4": unif(ks[7], (H3, OUT_DIM), H3),
        "b4": unif(ks[8], (OUT_DIM,), H3),
    }


def reference_forward_kernel_path(x, labels, p):
    """Mirrors the kernel's numerics: bf16 weights on the MXU with f32 accumulation,
    exact-f32 embedding/cat/b1 fold."""
    w1 = p["w1"].astype(jnp.float32)
    table = (jnp.dot(p["emb"].astype(jnp.float32), w1[IN_DIM:],
                     precision=lax.Precision.HIGHEST)
             + p["b1"].astype(jnp.float32)[None, :])
    h = (jnp.dot(x.astype(jnp.bfloat16), w1[:IN_DIM].astype(jnp.bfloat16),
                 preferred_element_type=jnp.float32) + table[labels])
    h = _leaky_relu(h)
    h = _leaky_relu(jnp.dot(h.astype(jnp.bfloat16), p["w2"].astype(jnp.bfloat16),
                            preferred_element_type=jnp.float32) + p["b2"])
    h = _leaky_relu(jnp.dot(h.astype(jnp.bfloat16), p["w3"].astype(jnp.bfloat16),
                            preferred_element_type=jnp.float32) + p["b3"])
    return jax.nn.sigmoid(jnp.dot(h.astype(jnp.bfloat16), p["w4"].astype(jnp.bfloat16),
                                  preferred_element_type=jnp.float32) + p["b4"])


def reference_forward(x, labels, p):
    """Pure-f32 reference mirroring the PyTorch module (eval mode)."""
    hp = lax.Precision.HIGHEST
    c = p["emb"][labels]
    h = jnp.concatenate([x, c], axis=1)
    h = _leaky_relu(jnp.dot(h, p["w1"], precision=hp) + p["b1"])
    h = _leaky_relu(jnp.dot(h, p["w2"], precision=hp) + p["b2"])
    h = _leaky_relu(jnp.dot(h, p["w3"], precision=hp) + p["b3"])
    return jax.nn.sigmoid(jnp.dot(h, p["w4"], precision=hp) + p["b4"])


if __name__ == "__main__":
    key = jax.random.PRNGKey(0)
    kp, kx, kl = jax.random.split(key, 3)

    # B chosen to exercise the batch grid (2 tiles of 128) and the pad path.
    B = 200
    params = init_params(kp)
    x = jax.random.normal(kx, (B, IN_DIM), jnp.float32)
    labels = jax.random.randint(kl, (B,), 0, NUM_CLASSES)

    prepared = prepare_params(params)            # one-time weight prep (hoisted)
    fwd = jax.jit(conditional_discriminator)

    out = jax.block_until_ready(fwd(x, labels, prepared))
    assert out.shape == (B, OUT_DIM)

    # Tight check vs a reference that mirrors the kernel's bf16/f32 path.
    ref_k = reference_forward_kernel_path(x, labels, params)
    assert jnp.allclose(out, ref_k, atol=2e-3, rtol=2e-3), "mismatch vs kernel-path reference"

    # Loose check vs the full-f32 reference (bf16 weight quantization error only).
    ref_f32 = reference_forward(x, labels, params)
    assert jnp.allclose(out, ref_f32, atol=5e-2, rtol=5e-2), "mismatch vs f32 reference"

    print("KERNEL_OK")
</pallas_src>

<mosaic_0001>
module attributes {stable_mosaic.version = 11 : i64} {
  func.func @disc_kernel(%arg0: i32, %arg1: memref<128x784xbf16, #tpu.memory_space<vmem>>, %arg2: memref<128x1xi32, #tpu.memory_space<vmem>>, %arg3: memref<784x1024xbf16, #tpu.memory_space<vmem>>, %arg4: memref<10x1024xf32, #tpu.memory_space<vmem>>, %arg5: memref<1024x512xbf16, #tpu.memory_space<vmem>>, %arg6: memref<1x512xf32, #tpu.memory_space<vmem>>, %arg7: memref<512x256xbf16, #tpu.memory_space<vmem>>, %arg8: memref<1x256xf32, #tpu.memory_space<vmem>>, %arg9: memref<1x256xbf16, #tpu.memory_space<vmem>>, %arg10: memref<1x1xf32, #tpu.memory_space<vmem>>, %arg11: memref<1x1x128xf32, #tpu.memory_space<vmem>>) attributes {dimension_semantics = [#tpu.dimension_semantics<parallel>], iteration_bounds = array<i64: 2>, scalar_prefetch = 0 : i64, scratch_operands = 0 : i64, tpu.core_type = #tpu.core_type<tc>, window_params = [{transform_indices = @transform_0, window_bounds = array<i64: 128, 784>}, {transform_indices = @transform_1, window_bounds = array<i64: 128, 1>}, {pipeline_mode = #tpu.pipeline_mode<synchronous>, transform_indices = @transform_2, window_bounds = array<i64: 784, 1024>}, {pipeline_mode = #tpu.pipeline_mode<synchronous>, transform_indices = @transform_3, window_bounds = array<i64: 10, 1024>}, {pipeline_mode = #tpu.pipeline_mode<synchronous>, transform_indices = @transform_4, window_bounds = array<i64: 1024, 512>}, {pipeline_mode = #tpu.pipeline_mode<synchronous>, transform_indices = @transform_5, window_bounds = array<i64: 1, 512>}, {pipeline_mode = #tpu.pipeline_mode<synchronous>, transform_indices = @transform_6, window_bounds = array<i64: 512, 256>}, {pipeline_mode = #tpu.pipeline_mode<synchronous>, transform_indices = @transform_7, window_bounds = array<i64: 1, 256>}, {pipeline_mode = #tpu.pipeline_mode<synchronous>, transform_indices = @transform_8, window_bounds = array<i64: 1, 256>}, {pipeline_mode = #tpu.pipeline_mode<synchronous>, transform_indices = @transform_9, window_bounds = array<i64: 1, 1>}, {transform_indices = @transform_10, window_bounds = array<i64: 1, 1, 128>}]} {
    %c0 = arith.constant 0 : index
    %c0_0 = arith.constant 0 : index
    %0 = vector.load %arg1[%c0, %c0_0] : memref<128x784xbf16, #tpu.memory_space<vmem>>, vector<128x784xbf16>
    %c0_1 = arith.constant 0 : index
    %c0_2 = arith.constant 0 : index
    %1 = vector.load %arg2[%c0_1, %c0_2] : memref<128x1xi32, #tpu.memory_space<vmem>>, vector<128x1xi32>
    %2 = tpu.iota {dimensions = array<i32: 1>} : vector<128x10xi32>
    %3 = vector.broadcast %1 : vector<128x1xi32> to vector<128x10xi32>
    %4 = arith.cmpi eq, %3, %2 : vector<128x10xi32>
    %5 = arith.extui %4 : vector<128x10xi1> to vector<128x10xi32>
    %6 = arith.sitofp %5 : vector<128x10xi32> to vector<128x10xf32>
    %c0_3 = arith.constant 0 : index
    %c0_4 = arith.constant 0 : index
    %7 = vector.load %arg3[%c0_3, %c0_4] : memref<784x1024xbf16, #tpu.memory_space<vmem>>, vector<784x1024xbf16>
    %cst = arith.constant dense<0.000000e+00> : vector<128x1024xf32>
    %8 = tpu.matmul %0, %7, %cst {dimension_numbers = #tpu.dot_dimension_numbers<[1], [0], [0], [1], [0, 0, 1, 1], [], []>} : vector<128x784xbf16>, vector<784x1024xbf16>, vector<128x1024xf32> -> vector<128x1024xf32>
    %c0_5 = arith.constant 0 : index
    %c0_6 = arith.constant 0 : index
    %9 = vector.load %arg4[%c0_5, %c0_6] : memref<10x1024xf32, #tpu.memory_space<vmem>>, vector<10x1024xf32>
    %cst_7 = arith.constant dense<0.000000e+00> : vector<128x1024xf32>
    %10 = tpu.matmul %6, %9, %cst_7 {dimension_numbers = #tpu.dot_dimension_numbers<[1], [0], [0], [1], [0, 0, 1, 1], [], []>} : vector<128x10xf32>, vector<10x1024xf32>, vector<128x1024xf32> -> vector<128x1024xf32>
    %11 = arith.addf %8, %10 : vector<128x1024xf32>
    %cst_8 = arith.constant 0.000000e+00 : f32
    %12 = vector.broadcast %cst_8 : f32 to vector<128x1024xf32>
    %13 = arith.cmpf ogt, %11, %12 : vector<128x1024xf32>
    %cst_9 = arith.constant 2.000000e-01 : f32
    %14 = vector.broadcast %cst_9 : f32 to vector<128x1024xf32>
    %15 = arith.mulf %14, %11 : vector<128x1024xf32>
    %16 = arith.select %13, %11, %15 : vector<128x1024xi1>, vector<128x1024xf32>
    %17 = arith.truncf %16 : vector<128x1024xf32> to vector<128x1024xbf16>
    %c0_10 = arith.constant 0 : index
    %c0_11 = arith.constant 0 : index
    %18 = vector.load %arg5[%c0_10, %c0_11] : memref<1024x512xbf16, #tpu.memory_space<vmem>>, vector<1024x512xbf16>
    %cst_12 = arith.constant dense<0.000000e+00> : vector<128x512xf32>
    %19 = tpu.matmul %17, %18, %cst_12 {dimension_numbers = #tpu.dot_dimension_numbers<[1], [0], [0], [1], [0, 0, 1, 1], [], []>} : vector<128x1024xbf16>, vector<1024x512xbf16>, vector<128x512xf32> -> vector<128x512xf32>
    %c0_13 = arith.constant 0 : index
    %c0_14 = arith.constant 0 : index
    %20 = vector.load %arg6[%c0_13, %c0_14] : memref<1x512xf32, #tpu.memory_space<vmem>>, vector<1x512xf32>
    %21 = vector.broadcast %20 : vector<1x512xf32> to vector<128x512xf32>
    %22 = arith.addf %19, %21 : vector<128x512xf32>
    %cst_15 = arith.constant 0.000000e+00 : f32
    %23 = vector.broadcast %cst_15 : f32 to vector<128x512xf32>
    %24 = arith.cmpf ogt, %22, %23 : vector<128x512xf32>
    %cst_16 = arith.constant 2.000000e-01 : f32
    %25 = vector.broadcast %cst_16 : f32 to vector<128x512xf32>
    %26 = arith.mulf %25, %22 : vector<128x512xf32>
    %27 = arith.select %24, %22, %26 : vector<128x512xi1>, vector<128x512xf32>
    %28 = arith.truncf %27 : vector<128x512xf32> to vector<128x512xbf16>
    %c0_17 = arith.constant 0 : index
    %c0_18 = arith.constant 0 : index
    %29 = vector.load %arg7[%c0_17, %c0_18] : memref<512x256xbf16, #tpu.memory_space<vmem>>, vector<512x256xbf16>
    %cst_19 = arith.constant dense<0.000000e+00> : vector<128x256xf32>
    %30 = tpu.matmul %28, %29, %cst_19 {dimension_numbers = #tpu.dot_dimension_numbers<[1], [0], [0], [1], [0, 0, 1, 1], [], []>} : vector<128x512xbf16>, vector<512x256xbf16>, vector<128x256xf32> -> vector<128x256xf32>
    %c0_20 = arith.constant 0 : index
    %c0_21 = arith.constant 0 : index
    %31 = vector.load %arg8[%c0_20, %c0_21] : memref<1x256xf32, #tpu.memory_space<vmem>>, vector<1x256xf32>
    %32 = vector.broadcast %31 : vector<1x256xf32> to vector<128x256xf32>
    %33 = arith.addf %30, %32 : vector<128x256xf32>
    %cst_22 = arith.constant 0.000000e+00 : f32
    %34 = vector.broadcast %cst_22 : f32 to vector<128x256xf32>
    %35 = arith.cmpf ogt, %33, %34 : vector<128x256xf32>
    %cst_23 = arith.constant 2.000000e-01 : f32
    %36 = vector.broadcast %cst_23 : f32 to vector<128x256xf32>
    %37 = arith.mulf %36, %33 : vector<128x256xf32>
    %38 = arith.select %35, %33, %37 : vector<128x256xi1>, vector<128x256xf32>
    %39 = tpu.transpose %38, [1, 0] : vector<128x256xf32> -> vector<256x128xf32>
    %40 = arith.truncf %39 : vector<256x128xf32> to vector<256x128xbf16>
    %c0_24 = arith.constant 0 : index
    %c0_25 = arith.constant 0 : index
    %41 = vector.load %arg9[%c0_24, %c0_25] : memref<1x256xbf16, #tpu.memory_space<vmem>>, vector<1x256xbf16>
    %cst_26 = arith.constant dense<0.000000e+00> : vector<1x128xf32>
    %42 = tpu.matmul %41, %40, %cst_26 {dimension_numbers = #tpu.dot_dimension_numbers<[1], [0], [0], [1], [0, 0, 1, 1], [], []>} : vector<1x256xbf16>, vector<256x128xbf16>, vector<1x128xf32> -> vector<1x128xf32>
    %c0_27 = arith.constant 0 : index
    %c0_28 = arith.constant 0 : index
    %43 = vector.load %arg10[%c0_27, %c0_28] : memref<1x1xf32, #tpu.memory_space<vmem>>, vector<1x1xf32>
    %44 = vector.broadcast %43 : vector<1x1xf32> to vector<1x128xf32>
    %45 = arith.addf %42, %44 : vector<1x128xf32>
    %46 = arith.negf %45 : vector<1x128xf32>
    %47 = math.exp %46 : vector<1x128xf32>
    %cst_29 = arith.constant 1.000000e+00 : f32
    %48 = vector.broadcast %cst_29 : f32 to vector<1x128xf32>
    %49 = arith.addf %48, %47 : vector<1x128xf32>
    %50 = arith.divf %48, %49 : vector<1x128xf32>
    %51 = vector.shape_cast %50 : vector<1x128xf32> to vector<1x1x128xf32>
    %c0_30 = arith.constant 0 : index
    %c0_31 = arith.constant 0 : index
    %c0_32 = arith.constant 0 : index
    %52 = vector.load %arg11[%c0_30, %c0_31, %c0_32] : memref<1x1x128xf32, #tpu.memory_space<vmem>>, vector<1x1x128xf32>
    tpu.vector_store %arg11[%c0_30, %c0_31, %c0_32], %51 {strides = array<i32>} : memref<1x1x128xf32, #tpu.memory_space<vmem>>, vector<1x1x128xf32>,
    return
  }
  func.func @transform_0(%arg0: i32) -> (i32, i32) {
    %c0_i32 = arith.constant 0 : i32
    %c0_i32_0 = arith.constant 0 : i32
    return %arg0, %c0_i32 : i32, i32
  }
  func.func @transform_1(%arg0: i32) -> (i32, i32) {
    %c0_i32 = arith.constant 0 : i32
    %c0_i32_0 = arith.constant 0 : i32
    return %arg0, %c0_i32 : i32, i32
  }
  func.func @transform_2(%arg0: i32) -> (i32, i32) {
    %c0_i32 = arith.constant 0 : i32
    %c0_i32_0 = arith.constant 0 : i32
    %c0_i32_1 = arith.constant 0 : i32
    return %c0_i32, %c0_i32_0 : i32, i32
  }
  func.func @transform_3(%arg0: i32) -> (i32, i32) {
    %c0_i32 = arith.constant 0 : i32
    %c0_i32_0 = arith.constant 0 : i32
    %c0_i32_1 = arith.constant 0 : i32
    return %c0_i32, %c0_i32_0 : i32, i32
  }
  func.func @transform_4(%arg0: i32) -> (i32, i32) {
    %c0_i32 = arith.constant 0 : i32
    %c0_i32_0 = arith.constant 0 : i32
    %c0_i32_1 = arith.constant 0 : i32
    return %c0_i32, %c0_i32_0 : i32, i32
  }
  func.func @transform_5(%arg0: i32) -> (i32, i32) {
    %c0_i32 = arith.constant 0 : i32
    %c0_i32_0 = arith.constant 0 : i32
    %c0_i32_1 = arith.constant 0 : i32
    return %c0_i32, %c0_i32_0 : i32, i32
  }
  func.func @transform_6(%arg0: i32) -> (i32, i32) {
    %c0_i32 = arith.constant 0 : i32
    %c0_i32_0 = arith.constant 0 : i32
    %c0_i32_1 = arith.constant 0 : i32
    return %c0_i32, %c0_i32_0 : i32, i32
  }
  func.func @transform_7(%arg0: i32) -> (i32, i32) {
    %c0_i32 = arith.constant 0 : i32
    %c0_i32_0 = arith.constant 0 : i32
    %c0_i32_1 = arith.constant 0 : i32
    return %c0_i32, %c0_i32_0 : i32, i32
  }
  func.func @transform_8(%arg0: i32) -> (i32, i32) {
    %c0_i32 = arith.constant 0 : i32
    %c0_i32_0 = arith.constant 0 : i32
    %c0_i32_1 = arith.constant 0 : i32
    return %c0_i32, %c0_i32_0 : i32, i32
  }
  func.func @transform_9(%arg0: i32) -> (i32, i32) {
    %c0_i32 = arith.constant 0 : i32
    %c0_i32_0 = arith.constant 0 : i32
    %c0_i32_1 = arith.constant 0 : i32
    return %c0_i32, %c0_i32_0 : i32, i32
  }
  func.func @transform_10(%arg0: i32) -> (i32, i32, i32) {
    %c0_i32 = arith.constant 0 : i32
    %c0_i32_0 = arith.constant 0 : i32
    %c0_i32_1 = arith.constant 0 : i32
    return %arg0, %c0_i32, %c0_i32_0 : i32, i32, i32
  }
}

</mosaic_0001>

<llo_original>
// kernel: conditional_discriminator.1
$region0: #{conditional_discriminator.1}
  #allocation0 [shape = 'u32[]', space=smem, size = 0x4, offset = 0x4, fixed_abs, tag = 'smem constant byte address 0x4 - core index']
  #allocation1 [shape = 'u32[144,128]{1,0:T(1,128)}', space=vmem, size = 0x12000, scoped, tag = 'internal scratch']
  #allocation2 [shape = 'f32[1,1]{1,0:T(1,128)S(1)}', space=vmem, size = 0x200, scoped, tag = 'scoped memory for conditional_discriminator.1']
  %s0 = inlined_call_operand.vmem [shape: bf16[256,784], index: 0, kind: input, shape index: {}]
  %s1 = inlined_call_operand.vmem [shape: s32[256,1], index: 1, kind: input, shape index: {}]
  %s2 = inlined_call_operand.vmem [shape: bf16[784,1024], index: 2, kind: input, shape index: {}]
  %s3 = inlined_call_operand.vmem [shape: f32[10,1024], index: 3, kind: input, shape index: {}]
  %s4 = inlined_call_operand.hbm [shape: bf16[1024,512], index: 4, kind: input, shape index: {}]
  %s5 = inlined_call_operand.vmem [shape: f32[1,512], index: 5, kind: input, shape index: {}]
  %s6 = inlined_call_operand.vmem [shape: bf16[512,256], index: 6, kind: input, shape index: {}]
  %s7 = inlined_call_operand.vmem [shape: f32[1,256], index: 7, kind: input, shape index: {}]
  %s8 = inlined_call_operand.vmem [shape: bf16[1,256], index: 8, kind: input, shape index: {}]
  %s9 = inlined_call_operand.<no memory space> [shape: f32[1,1], index: 9, kind: input, shape index: {}]
  %s10 = inlined_call_operand.hbm [shape: f32[2,1,128], index: 10, kind: output, shape index: {}]
  %s11 = sld [smem:[#allocation0]]
  $region77: #{conditional_discriminator.1} parent=0
    _
  %s13 = ssub.s32 1, %s11
  %s14 = scalar_select 0, %s13, %s11
  %v15 = vstv %s9
  %16 = vst [vmem:[#allocation2] sm:$0x1] %v15
  $region1: #{conditional_discriminator.1} parent=0
    #allocation3 [shape = 'u8[1048576]{0}', space=vmem, size = 0x100000, scoped, tag = 'input window, operand 4, single buffered']
    #allocation4 [shape = 's32[2]{0}', space=sflag, size = 0x8, scoped, tag = 'scoped memory for conditional_discriminator.1']
    #allocation5 [shape = 's32[2]{0}', space=sflag, size = 0x8, scoped, tag = 'scoped memory for conditional_discriminator.1']
    #allocation6 [shape = 'u8[1024]{0}', space=vmem, size = 0x400, scoped, tag = 'output window, operand 0']
    %17 = vsyncpa [#allocation4], 0
    %18 = vsyncpa [#allocation5], 0
    %s19 = scalar_lea.sflag [#allocation5], 1
    %20 = vsyncpa %s19, 0
    loop: start=0, step=1, limit=4
    $region2: #{conditional_discriminator.1} parent=1 // loop_pre_header
      _
    $region3: #{conditional_discriminator.1} parent=1 // loop_header
      %s22 = sphi 0, %s26
      %p23 = scmp.ge.s32.totalorder %s22, 4
      %s32 = sphi 0, %s34
      %s35 = sphi 0, %s32
      %s36 = sphi 0, %s35
      %s52 = sphi 0, %s36
      %s58 = sphi 0, %s60
      %s61 = sphi 0, %s58
      %s62 = sphi 0, %s61
      %s78 = sphi 0, %s62
      %s82 = sphi 0, %s82
      %s84 = sphi 0, %s82
      %s85 = sphi 0, %s84
      %s99 = sphi 0, %s85
      %s103 = sphi 0, %s103
      %s105 = sphi 0, %s103
      %s106 = sphi 0, %s105
      %s120 = sphi 0, %s106
      %s124 = sphi 0, %s124
      %s126 = sphi 0, %s124
      %s127 = sphi 0, %s126
      %s141 = sphi 0, %s127
      %s145 = sphi 0, %s145
      %s147 = sphi 0, %s145
      %s148 = sphi 0, %s147
      %s162 = sphi 0, %s148
      %s166 = sphi 0, %s166
      %s168 = sphi 0, %s166
      %s169 = sphi 0, %s168
      %s183 = sphi 0, %s169
      %s187 = sphi 0, %s187
      %s189 = sphi 0, %s187
      %s190 = sphi 0, %s189
      %s204 = sphi 0, %s190
      %s208 = sphi 0, %s208
      %s210 = sphi 0, %s208
      %s211 = sphi 0, %s210
      %s225 = sphi 0, %s211
      %s229 = sphi 0, %s229
      %s231 = sphi 0, %s229
      %s232 = sphi 0, %s231
      %s246 = sphi 0, %s232
      %s252 = sphi 0, %s254
      %s255 = sphi 0, %s252
      %s256 = sphi 0, %s255
      %s272 = sphi 0, %s256
    $region4: #{conditional_discriminator.1} parent=1 // loop_header_branch
      %25 = sbr.rel (%p23) target = $region8
    $region5: #{conditional_discriminator.1} parent=1 // loop_body
      %s27 = ssub.s32 %s22, 1
      %s28 = ssub.s32 %s22, 2
      %s29 = sadd.s32 %s22, 1
      %s30 = ssub.s32 %s22, %s29
      %p31 = scmp.eq.s32.totalorder %s30, 0
      %s33 = sadd.s32 %s32, 1
      %s34 = scalar_select %p31, %s32, %s33
      %p37 = pneg %p31
      %p38 = scmp.eq.s32.totalorder %s22, 1
      %p39 = por %p37, %p38
      %p40 = scmp.ne.s32.totalorder %s32, %s35
      %p41 = scmp.eq.s32.totalorder %s22, 0
      %p42 = por %p40, %p41
      %p43 = scmp.ne.s32.totalorder %s32, %s35
      %p44 = scmp.eq.s32.totalorder %s27, 1
      %p45 = por %p43, %p44
      %p46 = scmp.ne.s32.totalorder %s35, %s36
      %p47 = scmp.eq.s32.totalorder %s27, 0
      %p48 = por %p46, %p47
      %p49 = scmp.ne.s32.totalorder %s35, %s36
      %p50 = scmp.eq.s32.totalorder %s28, 1
      %p51 = por %p49, %p50
      %p53 = scmp.ne.s32.totalorder %s36, %s52
      %p54 = scmp.eq.s32.totalorder %s28, 0
      %p55 = por %p53, %p54
      %s56 = ssub.s32 %s22, %s29
      %p57 = scmp.eq.s32.totalorder %s56, 0
      %s59 = sadd.s32 %s58, 1
      %s60 = scalar_select %p57, %s58, %s59
      %p63 = pneg %p57
      %p64 = scmp.eq.s32.totalorder %s22, 1
      %p65 = por %p63, %p64
      %p66 = scmp.ne.s32.totalorder %s58, %s61
      %p67 = scmp.eq.s32.totalorder %s22, 0
      %p68 = por %p66, %p67
      %p69 = scmp.ne.s32.totalorder %s58, %s61
      %p70 = scmp.eq.s32.totalorder %s27, 1
      %p71 = por %p69, %p70
      %p72 = scmp.ne.s32.totalorder %s61, %s62
      %p73 = scmp.eq.s32.totalorder %s27, 0
      %p74 = por %p72, %p73
      %p75 = scmp.ne.s32.totalorder %s61, %s62
      %p76 = scmp.eq.s32.totalorder %s28, 1
      %p77 = por %p75, %p76
      %p79 = scmp.ne.s32.totalorder %s62, %s78
      %p80 = scmp.eq.s32.totalorder %s28, 0
      %p81 = por %p79, %p80
      %s83 = sadd.s32 %s82, 1
      %p86 = scmp.eq.s32.totalorder %s22, 1
      %p87 = scmp.ne.s32.totalorder %s82, %s84
      %p88 = scmp.eq.s32.totalorder %s22, 0
      %p89 = por %p87, %p88
      %p90 = scmp.ne.s32.totalorder %s82, %s84
      %p91 = scmp.eq.s32.totalorder %s27, 1
      %p92 = por %p90, %p91
      %p93 = scmp.ne.s32.totalorder %s84, %s85
      %p94 = scmp.eq.s32.totalorder %s27, 0
      %p95 = por %p93, %p94
      %p96 = scmp.ne.s32.totalorder %s84, %s85
      %p97 = scmp.eq.s32.totalorder %s28, 1
      %p98 = por %p96, %p97
      %p100 = scmp.ne.s32.totalorder %s85, %s99
      %p101 = scmp.eq.s32.totalorder %s28, 0
      %p102 = por %p100, %p101
      %s104 = sadd.s32 %s103, 1
      %p107 = scmp.eq.s32.totalorder %s22, 1
      %p108 = scmp.ne.s32.totalorder %s103, %s105
      %p109 = scmp.eq.s32.totalorder %s22, 0
      %p110 = por %p108, %p109
      %p111 = scmp.ne.s32.totalorder %s103, %s105
      %p112 = scmp.eq.s32.totalorder %s27, 1
      %p113 = por %p111, %p112
      %p114 = scmp.ne.s32.totalorder %s105, %s106
      %p115 = scmp.eq.s32.totalorder %s27, 0
      %p116 = por %p114, %p115
      %p117 = scmp.ne.s32.totalorder %s105, %s106
      %p118 = scmp.eq.s32.totalorder %s28, 1
      %p119 = por %p117, %p118
      %p121 = scmp.ne.s32.totalorder %s106, %s120
      %p122 = scmp.eq.s32.totalorder %s28, 0
      %p123 = por %p121, %p122
      %s125 = sadd.s32 %s124, 1
      %p128 = scmp.eq.s32.totalorder %s22, 1
      %p129 = scmp.ne.s32.totalorder %s124, %s126
      %p130 = scmp.eq.s32.totalorder %s22, 0
      %p131 = por %p129, %p130
      %p132 = scmp.ne.s32.totalorder %s124, %s126
      %p133 = scmp.eq.s32.totalorder %s27, 1
      %p134 = por %p132, %p133
      %p135 = scmp.ne.s32.totalorder %s126, %s127
      %p136 = scmp.eq.s32.totalorder %s27, 0
      %p137 = por %p135, %p136
      %p138 = scmp.ne.s32.totalorder %s126, %s127
      %p139 = scmp.eq.s32.totalorder %s28, 1
      %p140 = por %p138, %p139
      %p142 = scmp.ne.s32.totalorder %s127, %s141
      %p143 = scmp.eq.s32.totalorder %s28, 0
      %p144 = por %p142, %p143
      %s146 = sadd.s32 %s145, 1
      %p149 = scmp.eq.s32.totalorder %s22, 1
      %p150 = scmp.ne.s32.totalorder %s145, %s147
      %p151 = scmp.eq.s32.totalorder %s22, 0
      %p152 = por %p150, %p151
      %p153 = scmp.ne.s32.totalorder %s145, %s147
      %p154 = scmp.eq.s32.totalorder %s27, 1
      %p155 = por %p153, %p154
      %p156 = scmp.ne.s32.totalorder %s147, %s148
      %p157 = scmp.eq.s32.totalorder %s27, 0
      %p158 = por %p156, %p157
      %p159 = scmp.ne.s32.totalorder %s147, %s148
      %p160 = scmp.eq.s32.totalorder %s28, 1
      %p161 = por %p159, %p160
      %p163 = scmp.ne.s32.totalorder %s148, %s162
      %p164 = scmp.eq.s32.totalorder %s28, 0
      %p165 = por %p163, %p164
      %s167 = sadd.s32 %s166, 1
      %p170 = scmp.eq.s32.totalorder %s22, 1
      %p171 = scmp.ne.s32.totalorder %s166, %s168
      %p172 = scmp.eq.s32.totalorder %s22, 0
      %p173 = por %p171, %p172
      %p174 = scmp.ne.s32.totalorder %s166, %s168
      %p175 = scmp.eq.s32.totalorder %s27, 1
      %p176 = por %p174, %p175
      %p177 = scmp.ne.s32.totalorder %s168, %s169
      %p178 = scmp.eq.s32.totalorder %s27, 0
      %p179 = por %p177, %p178
      %p180 = scmp.ne.s32.totalorder %s168, %s169
      %p181 = scmp.eq.s32.totalorder %s28, 1
      %p182 = por %p180, %p181
      %p184 = scmp.ne.s32.totalorder %s169, %s183
      %p185 = scmp.eq.s32.totalorder %s28, 0
      %p186 = por %p184, %p185
      %s188 = sadd.s32 %s187, 1
      %p191 = scmp.eq.s32.totalorder %s22, 1
      %p192 = scmp.ne.s32.totalorder %s187, %s189
      %p193 = scmp.eq.s32.totalorder %s22, 0
      %p194 = por %p192, %p193
      %p195 = scmp.ne.s32.totalorder %s187, %s189
      %p196 = scmp.eq.s32.totalorder %s27, 1
      %p197 = por %p195, %p196
      %p198 = scmp.ne.s32.totalorder %s189, %s190
      %p199 = scmp.eq.s32.totalorder %s27, 0
      %p200 = por %p198, %p199
      %p201 = scmp.ne.s32.totalorder %s189, %s190
      %p202 = scmp.eq.s32.totalorder %s28, 1
      %p203 = por %p201, %p202
      %p205 = scmp.ne.s32.totalorder %s190, %s204
      %p206 = scmp.eq.s32.totalorder %s28, 0
      %p207 = por %p205, %p206
      %s209 = sadd.s32 %s208, 1
      %p212 = scmp.eq.s32.totalorder %s22, 1
      %p213 = scmp.ne.s32.totalorder %s208, %s210
      %p214 = scmp.eq.s32.totalorder %s22, 0
      %p215 = por %p213, %p214
      %p216 = scmp.ne.s32.totalorder %s208, %s210
      %p217 = scmp.eq.s32.totalorder %s27, 1
      %p218 = por %p216, %p217
      %p219 = scmp.ne.s32.totalorder %s210, %s211
      %p220 = scmp.eq.s32.totalorder %s27, 0
      %p221 = por %p219, %p220
      %p222 = scmp.ne.s32.totalorder %s210, %s211
      %p223 = scmp.eq.s32.totalorder %s28, 1
      %p224 = por %p222, %p223
      %p226 = scmp.ne.s32.totalorder %s211, %s225
      %p227 = scmp.eq.s32.totalorder %s28, 0
      %p228 = por %p226, %p227
      %s230 = sadd.s32 %s229, 1
      %p233 = scmp.eq.s32.totalorder %s22, 1
      %p234 = scmp.ne.s32.totalorder %s229, %s231
      %p235 = scmp.eq.s32.totalorder %s22, 0
      %p236 = por %p234, %p235
      %p237 = scmp.ne.s32.totalorder %s229, %s231
      %p238 = scmp.eq.s32.totalorder %s27, 1
      %p239 = por %p237, %p238
      %p240 = scmp.ne.s32.totalorder %s231, %s232
      %p241 = scmp.eq.s32.totalorder %s27, 0
      %p242 = por %p240, %p241
      %p243 = scmp.ne.s32.totalorder %s231, %s232
      %p244 = scmp.eq.s32.totalorder %s28, 1
      %p245 = por %p243, %p244
      %p247 = scmp.ne.s32.totalorder %s232, %s246
      %p248 = scmp.eq.s32.totalorder %s28, 0
      %p249 = por %p247, %p248
      %s250 = ssub.s32 %s22, %s29
      %p251 = scmp.eq.s32.totalorder %s250, 0
      %s253 = sadd.s32 %s252, 1
      %s254 = scalar_select %p251, %s252, %s253
      %p257 = pneg %p251
      %p258 = scmp.eq.s32.totalorder %s22, 1
      %p259 = por %p257, %p258
      %p260 = scmp.ne.s32.totalorder %s252, %s255
      %p261 = scmp.eq.s32.totalorder %s22, 0
      %p262 = por %p260, %p261
      %p263 = scmp.ne.s32.totalorder %s252, %s255
      %p264 = scmp.eq.s32.totalorder %s27, 1
      %p265 = por %p263, %p264
      %p266 = scmp.ne.s32.totalorder %s255, %s256
      %p267 = scmp.eq.s32.totalorder %s27, 0
      %p268 = por %p266, %p267
      %p269 = scmp.ne.s32.totalorder %s255, %s256
      %p270 = scmp.eq.s32.totalorder %s28, 1
      %p271 = por %p269, %p270
      %p273 = scmp.ne.s32.totalorder %s256, %s272
      %p274 = scmp.eq.s32.totalorder %s28, 0
      %p275 = por %p273, %p274
      %p276 = scmp.le.s32.totalorder 1, %s22
      %p277 = scmp.lt.s32.totalorder %s22, 3
      %p278 = pnand %p276, %p277
      %p279 = pneg %p278
      // Predicated region
      $region9: #{conditional_discriminator.1} parent=5 // pred_check
        _
      $region10: #{conditional_discriminator.1} parent=5 // pred_check_branch
        %281 = sbr.rel (%p278) target = $region12
      $region11: #{conditional_discriminator.1} parent=5 // pred_region
        %s282 = ssub.s32 %s22, 1
        // Predicated region
        $region13: #{conditional_discriminator.1} parent=11 // pred_check
          %p283 = pneg %p95
        $region14: #{conditional_discriminator.1} parent=11 // pred_check_branch
          %285 = sbr.rel (%p283) target = $region16
        $region15: #{conditional_discriminator.1} parent=11 // pred_region
          _
        $region16: #{conditional_discriminator.1} parent=11 // pred_fallthru
          _
        // Predicated region
        $region17: #{conditional_discriminator.1} parent=11 // pred_check
          %p286 = pneg %p116
        $region18: #{conditional_discriminator.1} parent=11 // pred_check_branch
          %288 = sbr.rel (%p286) target = $region20
        $region19: #{conditional_discriminator.1} parent=11 // pred_region
          _
        $region20: #{conditional_discriminator.1} parent=11 // pred_fallthru
          _
        // Predicated region
        $region21: #{conditional_discriminator.1} parent=11 // pred_check
          %p289 = pneg %p137
        $region22: #{conditional_discriminator.1} parent=11 // pred_check_branch
          %291 = sbr.rel (%p289) target = $region24
        $region23: #{conditional_discriminator.1} parent=11 // pred_region
          %s293 = ssub.s32 32768, 32768
          %294 = vsyncadd [#allocation4], %s293
          %s295 = sshll.u32 [#allocation3], 4
          %s296 = int_to_ptr.vmem [resolvable:$true] %s295
          %301 = dma.hbm_to_vmem [thread:$0]  %s4, 32768, %s296, [#allocation4], 256, 256, 16
        $region24: #{conditional_discriminator.1} parent=11 // pred_fallthru
          _
        // Predicated region
        $region25: #{conditional_discriminator.1} parent=11 // pred_check
          %p302 = pneg %p158
        $region26: #{conditional_discriminator.1} parent=11 // pred_check_branch
          %304 = sbr.rel (%p302) target = $region28
        $region27: #{conditional_discriminator.1} parent=11 // pred_region
          _
        $region28: #{conditional_discriminator.1} parent=11 // pred_fallthru
          _
        // Predicated region
        $region29: #{conditional_discriminator.1} parent=11 // pred_check
          %p305 = pneg %p179
        $region30: #{conditional_discriminator.1} parent=11 // pred_check_branch
          %307 = sbr.rel (%p305) target = $region32
        $region31: #{conditional_discriminator.1} parent=11 // pred_region
          _
        $region32: #{conditional_discriminator.1} parent=11 // pred_fallthru
          _
        // Predicated region
        $region33: #{conditional_discriminator.1} parent=11 // pred_check
          %p308 = pneg %p200
        $region34: #{conditional_discriminator.1} parent=11 // pred_check_branch
          %310 = sbr.rel (%p308) target = $region36
        $region35: #{conditional_discriminator.1} parent=11 // pred_region
          _
        $region36: #{conditional_discriminator.1} parent=11 // pred_fallthru
          _
        // Predicated region
        $region37: #{conditional_discriminator.1} parent=11 // pred_check
          %p311 = pneg %p221
        $region38: #{conditional_discriminator.1} parent=11 // pred_check_branch
          %313 = sbr.rel (%p311) target = $region40
        $region39: #{conditional_discriminator.1} parent=11 // pred_region
          _
        $region40: #{conditional_discriminator.1} parent=11 // pred_fallthru
          _
        // Predicated region
        $region41: #{conditional_discriminator.1} parent=11 // pred_check
          %p314 = pneg %p242
        $region42: #{conditional_discriminator.1} parent=11 // pred_check_branch
          %316 = sbr.rel (%p314) target = $region44
        $region43: #{conditional_discriminator.1} parent=11 // pred_region
          _
        $region44: #{conditional_discriminator.1} parent=11 // pred_fallthru
          _
      $region12: #{conditional_discriminator.1} parent=5 // pred_fallthru
        _
      %p317 = scmp.lt.s32.totalorder %s22, 2
      // Predicated region
      $region45: #{conditional_discriminator.1} parent=5 // pred_check
        %p318 = pneg %p317
      $region46: #{conditional_discriminator.1} parent=5 // pred_check_branch
        %320 = sbr.rel (%p318) target = $region48
      $region47: #{conditional_discriminator.1} parent=5 // pred_region
        // Predicated region
        $region49: #{conditional_discriminator.1} parent=47 // pred_check
          %p321 = pneg %p42
        $region50: #{conditional_discriminator.1} parent=47 // pred_check_branch
          %323 = sbr.rel (%p321) target = $region52
        $region51: #{conditional_discriminator.1} parent=47 // pred_region
          %s324 = smul.u32 16, %s22
          %p325 = scmp.lt.s32.totalorder %s324, 31
          %s326 = scalar_select %p325, %s324, 31
          %s327 = smul.addr %s326, 7
          %s328 = smul.addr %s327, 4
          %s329 = scalar_lea.vmem %s0, %s328
          %s330 = smul.u32 16, %s22
        $region52: #{conditional_discriminator.1} parent=47 // pred_fallthru
          _
        // Predicated region
        $region53: #{conditional_discriminator.1} parent=47 // pred_check
          %p331 = pneg %p68
        $region54: #{conditional_discriminator.1} parent=47 // pred_check_branch
          %333 = sbr.rel (%p331) target = $region56
        $region55: #{conditional_discriminator.1} parent=47 // pred_region
          %s334 = smul.u32 16, %s22
          %p335 = scmp.lt.s32.totalorder %s334, 31
          %s336 = scalar_select %p335, %s334, 31
          %s337 = smul.addr %s336, 8
          %s338 = scalar_lea.vmem %s1, %s337
          %s339 = smul.u32 16, %s22
        $region56: #{conditional_discriminator.1} parent=47 // pred_fallthru
          _
      $region48: #{conditional_discriminator.1} parent=5 // pred_fallthru
        _
      %p340 = scmp.le.s32.totalorder 1, %s22
      %p341 = scmp.lt.s32.totalorder %s22, 3
      %p342 = pnand %p340, %p341
      %p343 = pneg %p342
      // Predicated region
      $region57: #{conditional_discriminator.1} parent=5 // pred_check
        _
      $region58: #{conditional_discriminator.1} parent=5 // pred_check_branch
        %345 = sbr.rel (%p342) target = $region60
      $region59: #{conditional_discriminator.1} parent=5 // pred_region
        %s346 = ssub.s32 %s22, 1
        // Predicated region
        $region61: #{conditional_discriminator.1} parent=59 // pred_check
          %p347 = pneg %p137
        $region62: #{conditional_discriminator.1} parent=59 // pred_check_branch
          %349 = sbr.rel (%p347) target = $region64
        $region63: #{conditional_discriminator.1} parent=59 // pred_region
          %350 = dma.done [#allocation4], 32768
        $region64: #{conditional_discriminator.1} parent=59 // pred_fallthru
          _
        %s351 = smul.u32 16, %s27
        %p352 = scmp.lt.s32.totalorder %s351, 31
        %s353 = scalar_select %p352, %s351, 31
        %s354 = smul.addr %s353, 7
        %s355 = smul.addr %s354, 4
        %s356 = scalar_lea.vmem %s0, %s355
        %p357 = pneg %p48
        %p358 = pneg %p45
        %s359 = smul.u32 16, %s27
        %p360 = scmp.lt.s32.totalorder %s359, 31
        %s361 = scalar_select %p360, %s359, 31
        %s362 = smul.addr %s361, 8
        %s363 = scalar_lea.vmem %s1, %s362
        %p364 = pneg %p74
        %p365 = pneg %p71
        %p366 = pneg %p95
        %p367 = pneg %p92
        %p368 = pneg %p116
        %p369 = pneg %p113
        %p370 = pneg %p137
        %p371 = pneg %p134
        %p372 = pneg %p158
        %p373 = pneg %p155
        %p374 = pneg %p179
        %p375 = pneg %p176
        %p376 = pneg %p200
        %p377 = pneg %p197
        %p378 = pneg %p221
        %p379 = pneg %p218
        %p380 = pneg %p242
        %p381 = pneg %p239
        %p382 = pneg %p268
        %p383 = pneg %p265
        %s384 = sand.u32 %s255, 1
        %s385 = scalar_lea.sflag [#allocation5], %s384
        %s386 = sand.u32 %s255, 1
        %s387 = scalar_lea.vmem [#allocation6], %s386
        %s388 = smul.u32 16, %s27
        %p389 = scmp.lt.s32.totalorder %s388, 31
        %s390 = scalar_select %p389, %s388, 31
        %s391 = smul.addr %s390, 7
        %s392 = smul.addr %s391, 4
        %s393 = scalar_lea.vmem %s0, %s392
        %s394 = smul.u32 16, %s27
        %s395 = smul.u32 16, %s27
        %p396 = scmp.lt.s32.totalorder %s395, 31
        %s397 = scalar_select %p396, %s395, 31
        %s398 = smul.addr %s397, 8
        %s399 = scalar_lea.vmem %s1, %s398
        %s400 = smul.u32 16, %s27
        %v402 = vld [vmem:[%s393] sm:$0xff]
        %v403 = vld [vmem:[%s393 + $0x8] sm:$0xff]
        %v404 = vld [vmem:[%s393 + $0x10] sm:$0xff]
        %v405 = vld [vmem:[%s393 + $0x18] sm:$0xf]
        %v406 = vld [vmem:[%s393 + $0x1c] sm:$0xff]
        %v407 = vld [vmem:[%s393 + $0x24] sm:$0xff]
        %v408 = vld [vmem:[%s393 + $0x2c] sm:$0xff]
        %v409 = vld [vmem:[%s393 + $0x34] sm:$0xf]
        %v410 = vld [vmem:[%s393 + $0x38] sm:$0xff]
        %v411 = vld [vmem:[%s393 + $0x40] sm:$0xff]
        %v412 = vld [vmem:[%s393 + $0x48] sm:$0xff]
        %v413 = vld [vmem:[%s393 + $0x50] sm:$0xf]
        %v414 = vld [vmem:[%s393 + $0x54] sm:$0xff]
        %v415 = vld [vmem:[%s393 + $0x5c] sm:$0xff]
        %v416 = vld [vmem:[%s393 + $0x64] sm:$0xff]
        %v417 = vld [vmem:[%s393 + $0x6c] sm:$0xf]
        %v418 = vld [vmem:[%s393 + $0x70] sm:$0xff]
        %v419 = vld [vmem:[%s393 + $0x78] sm:$0xff]
        %v420 = vld [vmem:[%s393 + $0x80] sm:$0xff]
        %v421 = vld [vmem:[%s393 + $0x88] sm:$0xf]
        %v422 = vld [vmem:[%s393 + $0x8c] sm:$0xff]
        %v423 = vld [vmem:[%s393 + $0x94] sm:$0xff]
        %v424 = vld [vmem:[%s393 + $0x9c] sm:$0xff]
        %v425 = vld [vmem:[%s393 + $0xa4] sm:$0xf]
        %v426 = vld [vmem:[%s393 + $0xa8] sm:$0xff]
        %v427 = vld [vmem:[%s393 + $0xb0] sm:$0xff]
        %v428 = vld [vmem:[%s393 + $0xb8] sm:$0xff]
        %v429 = vld [vmem:[%s393 + $0xc0] sm:$0xf]
        %v430 = vld [vmem:[%s393 + $0xc4] sm:$0xff]
        %v431 = vld [vmem:[%s393 + $0xcc] sm:$0xff]
        %v432 = vld [vmem:[%s393 + $0xd4] sm:$0xff]
        %v433 = vld [vmem:[%s393 + $0xdc] sm:$0xf]
        %v434 = vld [vmem:[%s393 + $0xe0] sm:$0xff]
        %v435 = vld [vmem:[%s393 + $0xe8] sm:$0xff]
        %v436 = vld [vmem:[%s393 + $0xf0] sm:$0xff]
        %v437 = vld [vmem:[%s393 + $0xf8] sm:$0xf]
        %v438 = vld [vmem:[%s393 + $0xfc] sm:$0xff]
        %v439 = vld [vmem:[%s393 + $0x104] sm:$0xff]
        %v440 = vld [vmem:[%s393 + $0x10c] sm:$0xff]
        %v441 = vld [vmem:[%s393 + $0x114] sm:$0xf]
        %v442 = vld [vmem:[%s393 + $0x118] sm:$0xff]
        %v443 = vld [vmem:[%s393 + $0x120] sm:$0xff]
        %v444 = vld [vmem:[%s393 + $0x128] sm:$0xff]
        %v445 = vld [vmem:[%s393 + $0x130] sm:$0xf]
        %v446 = vld [vmem:[%s393 + $0x134] sm:$0xff]
        %v447 = vld [vmem:[%s393 + $0x13c] sm:$0xff]
        %v448 = vld [vmem:[%s393 + $0x144] sm:$0xff]
        %v449 = vld [vmem:[%s393 + $0x14c] sm:$0xf]
        %v450 = vld [vmem:[%s393 + $0x150] sm:$0xff]
        %v451 = vld [vmem:[%s393 + $0x158] sm:$0xff]
        %v452 = vld [vmem:[%s393 + $0x160] sm:$0xff]
        %v453 = vld [vmem:[%s393 + $0x168] sm:$0xf]
        %v454 = vld [vmem:[%s393 + $0x16c] sm:$0xff]
        %v455 = vld [vmem:[%s393 + $0x174] sm:$0xff]
        %v456 = vld [vmem:[%s393 + $0x17c] sm:$0xff]
        %v457 = vld [vmem:[%s393 + $0x184] sm:$0xf]
        %v458 = vld [vmem:[%s393 + $0x188] sm:$0xff]
        %v459 = vld [vmem:[%s393 + $0x190] sm:$0xff]
        %v460 = vld [vmem:[%s393 + $0x198] sm:$0xff]
        %v461 = vld [vmem:[%s393 + $0x1a0] sm:$0xf]
        %v462 = vld [vmem:[%s393 + $0x1a4] sm:$0xff]
        %v463 = vld [vmem:[%s393 + $0x1ac] sm:$0xff]
        %v464 = vld [vmem:[%s393 + $0x1b4] sm:$0xff]
        %v465 = vld [vmem:[%s393 + $0x1bc] sm:$0xf]
        %v466 = vld [vmem:[%s399] sm:$0xff]
        %v467 = vld [vmem:[%s399 + $0x8] sm:$0xff]
        %v468 = vld [vmem:[%s399 + $0x10] sm:$0xff]
        %v469 = vld [vmem:[%s399 + $0x18] sm:$0xff]
        %v470 = vld [vmem:[%s399 + $0x20] sm:$0xff]
        %v471 = vld [vmem:[%s399 + $0x28] sm:$0xff]
        %v472 = vld [vmem:[%s399 + $0x30] sm:$0xff]
        %v473 = vld [vmem:[%s399 + $0x38] sm:$0xff]
        %v474 = vld [vmem:[%s399 + $0x40] sm:$0xff]
        %v475 = vld [vmem:[%s399 + $0x48] sm:$0xff]
        %v476 = vld [vmem:[%s399 + $0x50] sm:$0xff]
        %v477 = vld [vmem:[%s399 + $0x58] sm:$0xff]
        %v478 = vld [vmem:[%s399 + $0x60] sm:$0xff]
        %v479 = vld [vmem:[%s399 + $0x68] sm:$0xff]
        %v480 = vld [vmem:[%s399 + $0x70] sm:$0xff]
        %v481 = vld [vmem:[%s399 + $0x78] sm:$0xff]
        %v482 = vlaneseq
        %v483 = vand.u32 %v482, 127
        %484 = vset.pattern.permute.xlu0 0
        %485 = vperm.xlu0 %484, %v466
        %v486 = vpop.permute.xlu0 %485
        %487 = vset.pattern.permute.xlu0 0
        %488 = vperm.xlu0 %487, %v467
        %v489 = vpop.permute.xlu0 %488
        %490 = vset.pattern.permute.xlu0 0
        %491 = vperm.xlu0 %490, %v468
        %v492 = vpop.permute.xlu0 %491
        %493 = vset.pattern.permute.xlu0 0
        %494 = vperm.xlu0 %493, %v469
        %v495 = vpop.permute.xlu0 %494
        %496 = vset.pattern.permute.xlu0 0
        %497 = vperm.xlu0 %496, %v470
        %v498 = vpop.permute.xlu0 %497
        %499 = vset.pattern.permute.xlu0 0
        %500 = vperm.xlu0 %499, %v471
        %v501 = vpop.permute.xlu0 %500
        %502 = vset.pattern.permute.xlu0 0
        %503 = vperm.xlu0 %502, %v472
        %v504 = vpop.permute.xlu0 %503
        %505 = vset.pattern.permute.xlu0 0
        %506 = vperm.xlu0 %505, %v473
        %v507 = vpop.permute.xlu0 %506
        %508 = vset.pattern.permute.xlu0 0
        %509 = vperm.xlu0 %508, %v474
        %v510 = vpop.permute.xlu0 %509
        %511 = vset.pattern.permute.xlu0 0
        %512 = vperm.xlu0 %511, %v475
        %v513 = vpop.permute.xlu0 %512
        %514 = vset.pattern.permute.xlu0 0
        %515 = vperm.xlu0 %514, %v476
        %v516 = vpop.permute.xlu0 %515
        %517 = vset.pattern.permute.xlu0 0
        %518 = vperm.xlu0 %517, %v477
        %v519 = vpop.permute.xlu0 %518
        %520 = vset.pattern.permute.xlu0 0
        %521 = vperm.xlu0 %520, %v478
        %v522 = vpop.permute.xlu0 %521
        %523 = vset.pattern.permute.xlu0 0
        %524 = vperm.xlu0 %523, %v479
        %v525 = vpop.permute.xlu0 %524
        %526 = vset.pattern.permute.xlu0 0
        %527 = vperm.xlu0 %526, %v480
        %v528 = vpop.permute.xlu0 %527
        %529 = vset.pattern.permute.xlu0 0
        %530 = vperm.xlu0 %529, %v481
        %v531 = vpop.permute.xlu0 %530
        %vm532 = vcmp.eq.s32.totalorder %v486, %v483
        %vm533 = vcmp.eq.s32.totalorder %v489, %v483
        %vm534 = vcmp.eq.s32.totalorder %v492, %v483
        %vm535 = vcmp.eq.s32.totalorder %v495, %v483
        %vm536 = vcmp.eq.s32.totalorder %v498, %v483
        %vm537 = vcmp.eq.s32.totalorder %v501, %v483
        %vm538 = vcmp.eq.s32.totalorder %v504, %v483
        %vm539 = vcmp.eq.s32.totalorder %v507, %v483
        %vm540 = vcmp.eq.s32.totalorder %v510, %v483
        %vm541 = vcmp.eq.s32.totalorder %v513, %v483
        %vm542 = vcmp.eq.s32.totalorder %v516, %v483
        %vm543 = vcmp.eq.s32.totalorder %v519, %v483
        %vm544 = vcmp.eq.s32.totalorder %v522, %v483
        %vm545 = vcmp.eq.s32.totalorder %v525, %v483
        %vm546 = vcmp.eq.s32.totalorder %v528, %v483
        %vm547 = vcmp.eq.s32.totalorder %v531, %v483
        %v548 = vsel %vm532, 1, 0
        %v549 = vsel %vm533, 1, 0
        %v550 = vsel %vm534, 1, 0
        %v551 = vsel %vm535, 1, 0
        %v552 = vsel %vm536, 1, 0
        %v553 = vsel %vm537, 1, 0
        %v554 = vsel %vm538, 1, 0
        %v555 = vsel %vm539, 1, 0
        %v556 = vsel %vm540, 1, 0
        %v557 = vsel %vm541, 1, 0
        %v558 = vsel %vm542, 1, 0
        %v559 = vsel %vm543, 1, 0
        %v560 = vsel %vm544, 1, 0
        %v561 = vsel %vm545, 1, 0
        %v562 = vsel %vm546, 1, 0
        %v563 = vsel %vm547, 1, 0
        %v564 = vcvt.s32.f32 %v548
        %v565 = vcvt.s32.f32 %v549
        %v566 = vcvt.s32.f32 %v550
        %v567 = vcvt.s32.f32 %v551
        %v568 = vcvt.s32.f32 %v552
        %v569 = vcvt.s32.f32 %v553
        %v570 = vcvt.s32.f32 %v554
        %v571 = vcvt.s32.f32 %v555
        %v572 = vcvt.s32.f32 %v556
        %v573 = vcvt.s32.f32 %v557
        %v574 = vcvt.s32.f32 %v558
        %v575 = vcvt.s32.f32 %v559
        %v576 = vcvt.s32.f32 %v560
        %v577 = vcvt.s32.f32 %v561
        %v578 = vcvt.s32.f32 %v562
        %v579 = vcvt.s32.f32 %v563
        %v580 = vld [vmem:[%s2] sm:$0xff]
        %v581 = vld [vmem:[%s2 + $0x8] sm:$0xff]
        %v582 = vld [vmem:[%s2 + $0x10] sm:$0xff]
        %v583 = vld [vmem:[%s2 + $0x18] sm:$0xff]
        %v584 = vld [vmem:[%s2 + $0x20] sm:$0xff]
        %v585 = vld [vmem:[%s2 + $0x28] sm:$0xff]
        %v586 = vld [vmem:[%s2 + $0x30] sm:$0xff]
        %v587 = vld [vmem:[%s2 + $0x38] sm:$0xff]
        %v588 = vld [vmem:[%s2 + $0x40] sm:$0xff]
        %v589 = vld [vmem:[%s2 + $0x48] sm:$0xff]
        %v590 = vld [vmem:[%s2 + $0x50] sm:$0xff]
        %v591 = vld [vmem:[%s2 + $0x58] sm:$0xff]
        %v592 = vld [vmem:[%s2 + $0x60] sm:$0xff]
        %v593 = vld [vmem:[%s2 + $0x68] sm:$0xff]
        %v594 = vld [vmem:[%s2 + $0x70] sm:$0xff]
        %v595 = vld [vmem:[%s2 + $0x78] sm:$0xff]
        %v596 = vld [vmem:[%s2 + $0x80] sm:$0xff]
        %v597 = vld [vmem:[%s2 + $0x88] sm:$0xff]
        %v598 = vld [vmem:[%s2 + $0x90] sm:$0xff]
        %v599 = vld [vmem:[%s2 + $0x98] sm:$0xff]
        %v600 = vld [vmem:[%s2 + $0xa0] sm:$0xff]
        %v601 = vld [vmem:[%s2 + $0xa8] sm:$0xff]
        %v602 = vld [vmem:[%s2 + $0xb0] sm:$0xff]
        %v603 = vld [vmem:[%s2 + $0xb8] sm:$0xff]
        %v604 = vld [vmem:[%s2 + $0xc0] sm:$0xff]
        %v605 = vld [vmem:[%s2 + $0xc8] sm:$0xff]
        %v606 = vld [vmem:[%s2 + $0xd0] sm:$0xff]
        %v607 = vld [vmem:[%s2 + $0xd8] sm:$0xff]
        %v608 = vld [vmem:[%s2 + $0xe0] sm:$0xff]
        %v609 = vld [vmem:[%s2 + $0xe8] sm:$0xff]
        %v610 = vld [vmem:[%s2 + $0xf0] sm:$0xff]
        %v611 = vld [vmem:[%s2 + $0xf8] sm:$0xff]
        %v612 = vld [vmem:[%s2 + $0x100] sm:$0xff]
        %v613 = vld [vmem:[%s2 + $0x108] sm:$0xff]
        %v614 = vld [vmem:[%s2 + $0x110] sm:$0xff]
        %v615 = vld [vmem:[%s2 + $0x118] sm:$0xff]
        %v616 = vld [vmem:[%s2 + $0x120] sm:$0xff]
        %v617 = vld [vmem:[%s2 + $0x128] sm:$0xff]
        %v618 = vld [vmem:[%s2 + $0x130] sm:$0xff]
        %v619 = vld [vmem:[%s2 + $0x138] sm:$0xff]
        %v620 = vld [vmem:[%s2 + $0x140] sm:$0xff]
        %v621 = vld [vmem:[%s2 + $0x148] sm:$0xff]
        %v622 = vld [vmem:[%s2 + $0x150] sm:$0xff]
        %v623 = vld [vmem:[%s2 + $0x158] sm:$0xff]
        %v624 = vld [vmem:[%s2 + $0x160] sm:$0xff]
        %v625 = vld [vmem:[%s2 + $0x168] sm:$0xff]
        %v626 = vld [vmem:[%s2 + $0x170] sm:$0xff]
        %v627 = vld [vmem:[%s2 + $0x178] sm:$0xff]
        %v628 = vld [vmem:[%s2 + $0x180] sm:$0xff]
        %v629 = vld [vmem:[%s2 + $0x188] sm:$0xff]
        %v630 = vld [vmem:[%s2 + $0x190] sm:$0xff]
        %v631 = vld [vmem:[%s2 + $0x198] sm:$0xff]
        %v632 = vld [vmem:[%s2 + $0x1a0] sm:$0xff]
        %v633 = vld [vmem:[%s2 + $0x1a8] sm:$0xff]
        %v634 = vld [vmem:[%s2 + $0x1b0] sm:$0xff]
        %v635 = vld [vmem:[%s2 + $0x1b8] sm:$0xff]
        %v636 = vld [vmem:[%s2 + $0x1c0] sm:$0xff]
        %v637 = vld [vmem:[%s2 + $0x1c8] sm:$0xff]
        %v638 = vld [vmem:[%s2 + $0x1d0] sm:$0xff]
        %v639 = vld [vmem:[%s2 + $0x1d8] sm:$0xff]
        %v640 = vld [vmem:[%s2 + $0x1e0] sm:$0xff]
        %v641 = vld [vmem:[%s2 + $0x1e8] sm:$0xff]
        %v642 = vld [vmem:[%s2 + $0x1f0] sm:$0xff]
        %v643 = vld [vmem:[%s2 + $0x1f8] sm:$0xff]
        %v644 = vld [vmem:[%s2 + $0x200] sm:$0xff]
        %v645 = vld [vmem:[%s2 + $0x208] sm:$0xff]
        %v646 = vld [vmem:[%s2 + $0x210] sm:$0xff]
        %v647 = vld [vmem:[%s2 + $0x218] sm:$0xff]
        %v648 = vld [vmem:[%s2 + $0x220] sm:$0xff]
        %v649 = vld [vmem:[%s2 + $0x228] sm:$0xff]
        %v650 = vld [vmem:[%s2 + $0x230] sm:$0xff]
        %v651 = vld [vmem:[%s2 + $0x238] sm:$0xff]
        %v652 = vld [vmem:[%s2 + $0x240] sm:$0xff]
        %v653 = vld [vmem:[%s2 + $0x248] sm:$0xff]
        %v654 = vld [vmem:[%s2 + $0x250] sm:$0xff]
        %v655 = vld [vmem:[%s2 + $0x258] sm:$0xff]
        %v656 = vld [vmem:[%s2 + $0x260] sm:$0xff]
        %v657 = vld [vmem:[%s2 + $0x268] sm:$0xff]
        %v658 = vld [vmem:[%s2 + $0x270] sm:$0xff]
        %v659 = vld [vmem:[%s2 + $0x278] sm:$0xff]
        %v660 = vld [vmem:[%s2 + $0x280] sm:$0xff]
        %v661 = vld [vmem:[%s2 + $0x288] sm:$0xff]
        %v662 = vld [vmem:[%s2 + $0x290] sm:$0xff]
        %v663 = vld [vmem:[%s2 + $0x298] sm:$0xff]
        %v664 = vld [vmem:[%s2 + $0x2a0] sm:$0xff]
        %v665 = vld [vmem:[%s2 + $0x2a8] sm:$0xff]
        %v666 = vld [vmem:[%s2 + $0x2b0] sm:$0xff]
        %v667 = vld [vmem:[%s2 + $0x2b8] sm:$0xff]
        %v668 = vld [vmem:[%s2 + $0x2c0] sm:$0xff]
        %v669 = vld [vmem:[%s2 + $0x2c8] sm:$0xff]
        %v670 = vld [vmem:[%s2 + $0x2d0] sm:$0xff]
        %v671 = vld [vmem:[%s2 + $0x2d8] sm:$0xff]
        %v672 = vld [vmem:[%s2 + $0x2e0] sm:$0xff]
        %v673 = vld [vmem:[%s2 + $0x2e8] sm:$0xff]
        %v674 = vld [vmem:[%s2 + $0x2f0] sm:$0xff]
        %v675 = vld [vmem:[%s2 + $0x2f8] sm:$0xff]
        %v676 = vld [vmem:[%s2 + $0x300] sm:$0xff]
        %v677 = vld [vmem:[%s2 + $0x308] sm:$0xff]
        %v678 = vld [vmem:[%s2 + $0x310] sm:$0xff]
        %v679 = vld [vmem:[%s2 + $0x318] sm:$0xff]
        %v680 = vld [vmem:[%s2 + $0x320] sm:$0xff]
        %v681 = vld [vmem:[%s2 + $0x328] sm:$0xff]
        %v682 = vld [vmem:[%s2 + $0x330] sm:$0xff]
        %v683 = vld [vmem:[%s2 + $0x338] sm:$0xff]
        %v684 = vld [vmem:[%s2 + $0x340] sm:$0xff]
        %v685 = vld [vmem:[%s2 + $0x348] sm:$0xff]
        %v686 = vld [vmem:[%s2 + $0x350] sm:$0xff]
        %v687 = vld [vmem:[%s2 + $0x358] sm:$0xff]
        %v688 = vld [vmem:[%s2 + $0x360] sm:$0xff]
        %v689 = vld [vmem:[%s2 + $0x368] sm:$0xff]
        %v690 = vld [vmem:[%s2 + $0x370] sm:$0xff]
        %v691 = vld [vmem:[%s2 + $0x378] sm:$0xff]
        %v692 = vld [vmem:[%s2 + $0x380] sm:$0xff]
        %v693 = vld [vmem:[%s2 + $0x388] sm:$0xff]
        %v694 = vld [vmem:[%s2 + $0x390] sm:$0xff]
        %v695 = vld [vmem:[%s2 + $0x398] sm:$0xff]
        %v696 = vld [vmem:[%s2 + $0x3a0] sm:$0xff]
        %v697 = vld [vmem:[%s2 + $0x3a8] sm:$0xff]
        %v698 = vld [vmem:[%s2 + $0x3b0] sm:$0xff]
        %v699 = vld [vmem:[%s2 + $0x3b8] sm:$0xff]
        %v700 = vld [vmem:[%s2 + $0x3c0] sm:$0xff]
        %v701 = vld [vmem:[%s2 + $0x3c8] sm:$0xff]
        %v702 = vld [vmem:[%s2 + $0x3d0] sm:$0xff]
        %v703 = vld [vmem:[%s2 + $0x3d8] sm:$0xff]
        %v704 = vld [vmem:[%s2 + $0x3e0] sm:$0xff]
        %v705 = vld [vmem:[%s2 + $0x3e8] sm:$0xff]
        %v706 = vld [vmem:[%s2 + $0x3f0] sm:$0xff]
        %v707 = vld [vmem:[%s2 + $0x3f8] sm:$0xff]
        %v708 = vld [vmem:[%s2 + $0x400] sm:$0xff]
        %v709 = vld [vmem:[%s2 + $0x408] sm:$0xff]
        %v710 = vld [vmem:[%s2 + $0x410] sm:$0xff]
        %v711 = vld [vmem:[%s2 + $0x418] sm:$0xff]
        %v712 = vld [vmem:[%s2 + $0x420] sm:$0xff]
        %v713 = vld [vmem:[%s2 + $0x428] sm:$0xff]
        %v714 = vld [vmem:[%s2 + $0x430] sm:$0xff]
        %v715 = vld [vmem:[%s2 + $0x438] sm:$0xff]
        %v716 = vld [vmem:[%s2 + $0x440] sm:$0xff]
        %v717 = vld [vmem:[%s2 + $0x448] sm:$0xff]
        %v718 = vld [vmem:[%s2 + $0x450] sm:$0xff]
        %v719 = vld [vmem:[%s2 + $0x458] sm:$0xff]
        %v720 = vld [vmem:[%s2 + $0x460] sm:$0xff]
        %v721 = vld [vmem:[%s2 + $0x468] sm:$0xff]
        %v722 = vld [vmem:[%s2 + $0x470] sm:$0xff]
        %v723 = vld [vmem:[%s2 + $0x478] sm:$0xff]
        %v724 = vld [vmem:[%s2 + $0x480] sm:$0xff]
        %v725 = vld [vmem:[%s2 + $0x488] sm:$0xff]
        %v726 = vld [vmem:[%s2 + $0x490] sm:$0xff]
        %v727 = vld [vmem:[%s2 + $0x498] sm:$0xff]
        %v728 = vld [vmem:[%s2 + $0x4a0] sm:$0xff]
        %v729 = vld [vmem:[%s2 + $0x4a8] sm:$0xff]
        %v730 = vld [vmem:[%s2 + $0x4b0] sm:$0xff]
        %v731 = vld [vmem:[%s2 + $0x4b8] sm:$0xff]
        %v732 = vld [vmem:[%s2 + $0x4c0] sm:$0xff]
        %v733 = vld [vmem:[%s2 + $0x4c8] sm:$0xff]
        %v734 = vld [vmem:[%s2 + $0x4d0] sm:$0xff]
        %v735 = vld [vmem:[%s2 + $0x4d8] sm:$0xff]
        %v736 = vld [vmem:[%s2 + $0x4e0] sm:$0xff]
        %v737 = vld [vmem:[%s2 + $0x4e8] sm:$0xff]
        %v738 = vld [vmem:[%s2 + $0x4f0] sm:$0xff]
        %v739 = vld [vmem:[%s2 + $0x4f8] sm:$0xff]
        %v740 = vld [vmem:[%s2 + $0x500] sm:$0xff]
        %v741 = vld [vmem:[%s2 + $0x508] sm:$0xff]
        %v742 = vld [vmem:[%s2 + $0x510] sm:$0xff]
        %v743 = vld [vmem:[%s2 + $0x518] sm:$0xff]
        %v744 = vld [vmem:[%s2 + $0x520] sm:$0xff]
        %v745 = vld [vmem:[%s2 + $0x528] sm:$0xff]
        %v746 = vld [vmem:[%s2 + $0x530] sm:$0xff]
        %v747 = vld [vmem:[%s2 + $0x538] sm:$0xff]
        %v748 = vld [vmem:[%s2 + $0x540] sm:$0xff]
        %v749 = vld [vmem:[%s2 + $0x548] sm:$0xff]
        %v750 = vld [vmem:[%s2 + $0x550] sm:$0xff]
        %v751 = vld [vmem:[%s2 + $0x558] sm:$0xff]
        %v752 = vld [vmem:[%s2 + $0x560] sm:$0xff]
        %v753 = vld [vmem:[%s2 + $0x568] sm:$0xff]
        %v754 = vld [vmem:[%s2 + $0x570] sm:$0xff]
        %v755 = vld [vmem:[%s2 + $0x578] sm:$0xff]
        %v756 = vld [vmem:[%s2 + $0x580] sm:$0xff]
        %v757 = vld [vmem:[%s2 + $0x588] sm:$0xff]
        %v758 = vld [vmem:[%s2 + $0x590] sm:$0xff]
        %v759 = vld [vmem:[%s2 + $0x598] sm:$0xff]
        %v760 = vld [vmem:[%s2 + $0x5a0] sm:$0xff]
        %v761 = vld [vmem:[%s2 + $0x5a8] sm:$0xff]
        %v762 = vld [vmem:[%s2 + $0x5b0] sm:$0xff]
        %v763 = vld [vmem:[%s2 + $0x5b8] sm:$0xff]
        %v764 = vld [vmem:[%s2 + $0x5c0] sm:$0xff]
        %v765 = vld [vmem:[%s2 + $0x5c8] sm:$0xff]
        %v766 = vld [vmem:[%s2 + $0x5d0] sm:$0xff]
        %v767 = vld [vmem:[%s2 + $0x5d8] sm:$0xff]
        %v768 = vld [vmem:[%s2 + $0x5e0] sm:$0xff]
        %v769 = vld [vmem:[%s2 + $0x5e8] sm:$0xff]
        %v770 = vld [vmem:[%s2 + $0x5f0] sm:$0xff]
        %v771 = vld [vmem:[%s2 + $0x5f8] sm:$0xff]
        %v772 = vld [vmem:[%s2 + $0x600] sm:$0xff]
        %v773 = vld [vmem:[%s2 + $0x608] sm:$0xff]
        %v774 = vld [vmem:[%s2 + $0x610] sm:$0xff]
        %v775 = vld [vmem:[%s2 + $0x618] sm:$0xff]
        %v776 = vld [vmem:[%s2 + $0x620] sm:$0xff]
        %v777 = vld [vmem:[%s2 + $0x628] sm:$0xff]
        %v778 = vld [vmem:[%s2 + $0x630] sm:$0xff]
        %v779 = vld [vmem:[%s2 + $0x638] sm:$0xff]
        %v780 = vld [vmem:[%s2 + $0x640] sm:$0xff]
        %v781 = vld [vmem:[%s2 + $0x648] sm:$0xff]
        %v782 = vld [vmem:[%s2 + $0x650] sm:$0xff]
        %v783 = vld [vmem:[%s2 + $0x658] sm:$0xff]
        %v784 = vld [vmem:[%s2 + $0x660] sm:$0xff]
        %v785 = vld [vmem:[%s2 + $0x668] sm:$0xff]
        %v786 = vld [vmem:[%s2 + $0x670] sm:$0xff]
        %v787 = vld [vmem:[%s2 + $0x678] sm:$0xff]
        %v788 = vld [vmem:[%s2 + $0x680] sm:$0xff]
        %v789 = vld [vmem:[%s2 + $0x688] sm:$0xff]
        %v790 = vld [vmem:[%s2 + $0x690] sm:$0xff]
        %v791 = vld [vmem:[%s2 + $0x698] sm:$0xff]
        %v792 = vld [vmem:[%s2 + $0x6a0] sm:$0xff]
        %v793 = vld [vmem:[%s2 + $0x6a8] sm:$0xff]
        %v794 = vld [vmem:[%s2 + $0x6b0] sm:$0xff]
        %v795 = vld [vmem:[%s2 + $0x6b8] sm:$0xff]
        %v796 = vld [vmem:[%s2 + $0x6c0] sm:$0xff]
        %v797 = vld [vmem:[%s2 + $0x6c8] sm:$0xff]
        %v798 = vld [vmem:[%s2 + $0x6d0] sm:$0xff]
        %v799 = vld [vmem:[%s2 + $0x6d8] sm:$0xff]
        %v800 = vld [vmem:[%s2 + $0x6e0] sm:$0xff]
        %v801 = vld [vmem:[%s2 + $0x6e8] sm:$0xff]
        %v802 = vld [vmem:[%s2 + $0x6f0] sm:$0xff]
        %v803 = vld [vmem:[%s2 + $0x6f8] sm:$0xff]
        %v804 = vld [vmem:[%s2 + $0x700] sm:$0xff]
        %v805 = vld [vmem:[%s2 + $0x708] sm:$0xff]
        %v806 = vld [vmem:[%s2 + $0x710] sm:$0xff]
        %v807 = vld [vmem:[%s2 + $0x718] sm:$0xff]
        %v808 = vld [vmem:[%s2 + $0x720] sm:$0xff]
        %v809 = vld [vmem:[%s2 + $0x728] sm:$0xff]
        %v810 = vld [vmem:[%s2 + $0x730] sm:$0xff]
        %v811 = vld [vmem:[%s2 + $0x738] sm:$0xff]
        %v812 = vld [vmem:[%s2 + $0x740] sm:$0xff]
        %v813 = vld [vmem:[%s2 + $0x748] sm:$0xff]
        %v814 = vld [vmem:[%s2 + $0x750] sm:$0xff]
        %v815 = vld [vmem:[%s2 + $0x758] sm:$0xff]
        %v816 = vld [vmem:[%s2 + $0x760] sm:$0xff]
        %v817 = vld [vmem:[%s2 + $0x768] sm:$0xff]
        %v818 = vld [vmem:[%s2 + $0x770] sm:$0xff]
        %v819 = vld [vmem:[%s2 + $0x778] sm:$0xff]
        %v820 = vld [vmem:[%s2 + $0x780] sm:$0xff]
        %v821 = vld [vmem:[%s2 + $0x788] sm:$0xff]
        %v822 = vld [vmem:[%s2 + $0x790] sm:$0xff]
        %v823 = vld [vmem:[%s2 + $0x798] sm:$0xff]
        %v824 = vld [vmem:[%s2 + $0x7a0] sm:$0xff]
        %v825 = vld [vmem:[%s2 + $0x7a8] sm:$0xff]
        %v826 = vld [vmem:[%s2 + $0x7b0] sm:$0xff]
        %v827 = vld [vmem:[%s2 + $0x7b8] sm:$0xff]
        %v828 = vld [vmem:[%s2 + $0x7c0] sm:$0xff]
        %v829 = vld [vmem:[%s2 + $0x7c8] sm:$0xff]
        %v830 = vld [vmem:[%s2 + $0x7d0] sm:$0xff]
        %v831 = vld [vmem:[%s2 + $0x7d8] sm:$0xff]
        %v832 = vld [vmem:[%s2 + $0x7e0] sm:$0xff]
        %v833 = vld [vmem:[%s2 + $0x7e8] sm:$0xff]
        %v834 = vld [vmem:[%s2 + $0x7f0] sm:$0xff]
        %v835 = vld [vmem:[%s2 + $0x7f8] sm:$0xff]
        %v836 = vld [vmem:[%s2 + $0x800] sm:$0xff]
        %v837 = vld [vmem:[%s2 + $0x808] sm:$0xff]
        %v838 = vld [vmem:[%s2 + $0x810] sm:$0xff]
        %v839 = vld [vmem:[%s2 + $0x818] sm:$0xff]
        %v840 = vld [vmem:[%s2 + $0x820] sm:$0xff]
        %v841 = vld [vmem:[%s2 + $0x828] sm:$0xff]
        %v842 = vld [vmem:[%s2 + $0x830] sm:$0xff]
        %v843 = vld [vmem:[%s2 + $0x838] sm:$0xff]
        %v844 = vld [vmem:[%s2 + $0x840] sm:$0xff]
        %v845 = vld [vmem:[%s2 + $0x848] sm:$0xff]
        %v846 = vld [vmem:[%s2 + $0x850] sm:$0xff]
        %v847 = vld [vmem:[%s2 + $0x858] sm:$0xff]
        %v848 = vld [vmem:[%s2 + $0x860] sm:$0xff]
        %v849 = vld [vmem:[%s2 + $0x868] sm:$0xff]
        %v850 = vld [vmem:[%s2 + $0x870] sm:$0xff]
        %v851 = vld [vmem:[%s2 + $0x878] sm:$0xff]
        %v852 = vld [vmem:[%s2 + $0x880] sm:$0xff]
        %v853 = vld [vmem:[%s2 + $0x888] sm:$0xff]
        %v854 = vld [vmem:[%s2 + $0x890] sm:$0xff]
        %v855 = vld [vmem:[%s2 + $0x898] sm:$0xff]
        %v856 = vld [vmem:[%s2 + $0x8a0] sm:$0xff]
        %v857 = vld [vmem:[%s2 + $0x8a8] sm:$0xff]
        %v858 = vld [vmem:[%s2 + $0x8b0] sm:$0xff]
        %v859 = vld [vmem:[%s2 + $0x8b8] sm:$0xff]
        %v860 = vld [vmem:[%s2 + $0x8c0] sm:$0xff]
        %v861 = vld [vmem:[%s2 + $0x8c8] sm:$0xff]
        %v862 = vld [vmem:[%s2 + $0x8d0] sm:$0xff]
        %v863 = vld [vmem:[%s2 + $0x8d8] sm:$0xff]
        %v864 = vld [vmem:[%s2 + $0x8e0] sm:$0xff]
        %v865 = vld [vmem:[%s2 + $0x8e8] sm:$0xff]
        %v866 = vld [vmem:[%s2 + $0x8f0] sm:$0xff]
        %v867 = vld [vmem:[%s2 + $0x8f8] sm:$0xff]
        %v868 = vld [vmem:[%s2 + $0x900] sm:$0xff]
        %v869 = vld [vmem:[%s2 + $0x908] sm:$0xff]
        %v870 = vld [vmem:[%s2 + $0x910] sm:$0xff]
        %v871 = vld [vmem:[%s2 + $0x918] sm:$0xff]
        %v872 = vld [vmem:[%s2 + $0x920] sm:$0xff]
        %v873 = vld [vmem:[%s2 + $0x928] sm:$0xff]
        %v874 = vld [vmem:[%s2 + $0x930] sm:$0xff]
        %v875 = vld [vmem:[%s2 + $0x938] sm:$0xff]
        %v876 = vld [vmem:[%s2 + $0x940] sm:$0xff]
        %v877 = vld [vmem:[%s2 + $0x948] sm:$0xff]
        %v878 = vld [vmem:[%s2 + $0x950] sm:$0xff]
        %v879 = vld [vmem:[%s2 + $0x958] sm:$0xff]
        %v880 = vld [vmem:[%s2 + $0x960] sm:$0xff]
        %v881 = vld [vmem:[%s2 + $0x968] sm:$0xff]
        %v882 = vld [vmem:[%s2 + $0x970] sm:$0xff]
        %v883 = vld [vmem:[%s2 + $0x978] sm:$0xff]
        %v884 = vld [vmem:[%s2 + $0x980] sm:$0xff]
        %v885 = vld [vmem:[%s2 + $0x988] sm:$0xff]
        %v886 = vld [vmem:[%s2 + $0x990] sm:$0xff]
        %v887 = vld [vmem:[%s2 + $0x998] sm:$0xff]
        %v888 = vld [vmem:[%s2 + $0x9a0] sm:$0xff]
        %v889 = vld [vmem:[%s2 + $0x9a8] sm:$0xff]
        %v890 = vld [vmem:[%s2 + $0x9b0] sm:$0xff]
        %v891 = vld [vmem:[%s2 + $0x9b8] sm:$0xff]
        %v892 = vld [vmem:[%s2 + $0x9c0] sm:$0xff]
        %v893 = vld [vmem:[%s2 + $0x9c8] sm:$0xff]
        %v894 = vld [vmem:[%s2 + $0x9d0] sm:$0xff]
        %v895 = vld [vmem:[%s2 + $0x9d8] sm:$0xff]
        %v896 = vld [vmem:[%s2 + $0x9e0] sm:$0xff]
        %v897 = vld [vmem:[%s2 + $0x9e8] sm:$0xff]
        %v898 = vld [vmem:[%s2 + $0x9f0] sm:$0xff]
        %v899 = vld [vmem:[%s2 + $0x9f8] sm:$0xff]
        %v900 = vld [vmem:[%s2 + $0xa00] sm:$0xff]
        %v901 = vld [vmem:[%s2 + $0xa08] sm:$0xff]
        %v902 = vld [vmem:[%s2 + $0xa10] sm:$0xff]
        %v903 = vld [vmem:[%s2 + $0xa18] sm:$0xff]
        %v904 = vld [vmem:[%s2 + $0xa20] sm:$0xff]
        %v905 = vld [vmem:[%s2 + $0xa28] sm:$0xff]
        %v906 = vld [vmem:[%s2 + $0xa30] sm:$0xff]
        %v907 = vld [vmem:[%s2 + $0xa38] sm:$0xff]
        %v908 = vld [vmem:[%s2 + $0xa40] sm:$0xff]
        %v909 = vld [vmem:[%s2 + $0xa48] sm:$0xff]
        %v910 = vld [vmem:[%s2 + $0xa50] sm:$0xff]
        %v911 = vld [vmem:[%s2 + $0xa58] sm:$0xff]
        %v912 = vld [vmem:[%s2 + $0xa60] sm:$0xff]
        %v913 = vld [vmem:[%s2 + $0xa68] sm:$0xff]
        %v914 = vld [vmem:[%s2 + $0xa70] sm:$0xff]
        %v915 = vld [vmem:[%s2 + $0xa78] sm:$0xff]
        %v916 = vld [vmem:[%s2 + $0xa80] sm:$0xff]
        %v917 = vld [vmem:[%s2 + $0xa88] sm:$0xff]
        %v918 = vld [vmem:[%s2 + $0xa90] sm:$0xff]
        %v919 = vld [vmem:[%s2 + $0xa98] sm:$0xff]
        %v920 = vld [vmem:[%s2 + $0xaa0] sm:$0xff]
        %v921 = vld [vmem:[%s2 + $0xaa8] sm:$0xff]
        %v922 = vld [vmem:[%s2 + $0xab0] sm:$0xff]
        %v923 = vld [vmem:[%s2 + $0xab8] sm:$0xff]
        %v924 = vld [vmem:[%s2 + $0xac0] sm:$0xff]
        %v925 = vld [vmem:[%s2 + $0xac8] sm:$0xff]
        %v926 = vld [vmem:[%s2 + $0xad0] sm:$0xff]
        %v927 = vld [vmem:[%s2 + $0xad8] sm:$0xff]
        %v928 = vld [vmem:[%s2 + $0xae0] sm:$0xff]
        %v929 = vld [vmem:[%s2 + $0xae8] sm:$0xff]
        %v930 = vld [vmem:[%s2 + $0xaf0] sm:$0xff]
        %v931 = vld [vmem:[%s2 + $0xaf8] sm:$0xff]
        %v932 = vld [vmem:[%s2 + $0xb00] sm:$0xff]
        %v933 = vld [vmem:[%s2 + $0xb08] sm:$0xff]
        %v934 = vld [vmem:[%s2 + $0xb10] sm:$0xff]
        %v935 = vld [vmem:[%s2 + $0xb18] sm:$0xff]
        %v936 = vld [vmem:[%s2 + $0xb20] sm:$0xff]
        %v937 = vld [vmem:[%s2 + $0xb28] sm:$0xff]
        %v938 = vld [vmem:[%s2 + $0xb30] sm:$0xff]
        %v939 = vld [vmem:[%s2 + $0xb38] sm:$0xff]
        %v940 = vld [vmem:[%s2 + $0xb40] sm:$0xff]
        %v941 = vld [vmem:[%s2 + $0xb48] sm:$0xff]
        %v942 = vld [vmem:[%s2 + $0xb50] sm:$0xff]
        %v943 = vld [vmem:[%s2 + $0xb58] sm:$0xff]
        %v944 = vld [vmem:[%s2 + $0xb60] sm:$0xff]
        %v945 = vld [vmem:[%s2 + $0xb68] sm:$0xff]
        %v946 = vld [vmem:[%s2 + $0xb70] sm:$0xff]
        %v947 = vld [vmem:[%s2 + $0xb78] sm:$0xff]
        %v948 = vld [vmem:[%s2 + $0xb80] sm:$0xff]
        %v949 = vld [vmem:[%s2 + $0xb88] sm:$0xff]
        %v950 = vld [vmem:[%s2 + $0xb90] sm:$0xff]
        %v951 = vld [vmem:[%s2 + $0xb98] sm:$0xff]
        %v952 = vld [vmem:[%s2 + $0xba0] sm:$0xff]
        %v953 = vld [vmem:[%s2 + $0xba8] sm:$0xff]
        %v954 = vld [vmem:[%s2 + $0xbb0] sm:$0xff]
        %v955 = vld [vmem:[%s2 + $0xbb8] sm:$0xff]
        %v956 = vld [vmem:[%s2 + $0xbc0] sm:$0xff]
        %v957 = vld [vmem:[%s2 + $0xbc8] sm:$0xff]
        %v958 = vld [vmem:[%s2 + $0xbd0] sm:$0xff]
        %v959 = vld [vmem:[%s2 + $0xbd8] sm:$0xff]
        %v960 = vld [vmem:[%s2 + $0xbe0] sm:$0xff]
        %v961 = vld [vmem:[%s2 + $0xbe8] sm:$0xff]
        %v962 = vld [vmem:[%s2 + $0xbf0] sm:$0xff]
        %v963 = vld [vmem:[%s2 + $0xbf8] sm:$0xff]
        %v964 = vld [vmem:[%s2 + $0xc00] sm:$0xff]
        %v965 = vld [vmem:[%s2 + $0xc08] sm:$0xff]
        %v966 = vld [vmem:[%s2 + $0xc10] sm:$0xff]
        %v967 = vld [vmem:[%s2 + $0xc18] sm:$0xff]
        %v968 = vld [vmem:[%s2 + $0xc20] sm:$0xff]
        %v969 = vld [vmem:[%s2 + $0xc28] sm:$0xff]
        %v970 = vld [vmem:[%s2 + $0xc30] sm:$0xff]
        %v971 = vld [vmem:[%s2 + $0xc38] sm:$0xff]
        %v972 = vld [vmem:[%s3] sm:$0xff]
        %v973 = vld [vmem:[%s3 + $0x8] sm:$0xff]
        %v974 = vld [vmem:[%s3 + $0x10] sm:$0xff]
        %v975 = vld [vmem:[%s3 + $0x18] sm:$0xff]
        %v976 = vld [vmem:[%s3 + $0x20] sm:$0xff]
        %v977 = vld [vmem:[%s3 + $0x28] sm:$0xff]
        %v978 = vld [vmem:[%s3 + $0x30] sm:$0xff]
        %v979 = vld [vmem:[%s3 + $0x38] sm:$0xff]
        %v980 = vld [vmem:[%s3 + $0x40] sm:$0x3]
        %v981 = vld [vmem:[%s3 + $0x48] sm:$0x3]
        %v982 = vld [vmem:[%s3 + $0x50] sm:$0x3]
        %v983 = vld [vmem:[%s3 + $0x58] sm:$0x3]
        %v984 = vld [vmem:[%s3 + $0x60] sm:$0x3]
        %v985 = vld [vmem:[%s3 + $0x68] sm:$0x3]
        %v986 = vld [vmem:[%s3 + $0x70] sm:$0x3]
        %v987 = vld [vmem:[%s3 + $0x78] sm:$0x3]
        %vm988 = vcmask 80896
        %v990 = vsel %vm988, %v564, 0
        %v993 = vsel %vm988, %v565, 0
        %v996 = vsel %vm988, %v566, 0
        %v999 = vsel %vm988, %v567, 0
        %v1002 = vsel %vm988, %v568, 0
        %v1005 = vsel %vm988, %v569, 0
        %v1008 = vsel %vm988, %v570, 0
        %v1011 = vsel %vm988, %v571, 0
        %v1014 = vsel %vm988, %v572, 0
        %v1017 = vsel %vm988, %v573, 0
        %v1020 = vsel %vm988, %v574, 0
        %v1023 = vsel %vm988, %v575, 0
        %v1026 = vsel %vm988, %v576, 0
        %v1029 = vsel %vm988, %v577, 0
        %v1032 = vsel %vm988, %v578, 0
        %v1035 = vsel %vm988, %v579, 0
        %vm1037 = vcmask 1041408
        %v1039 = vsel %vm1037, %v980, 0
        %v1042 = vsel %vm1037, %v981, 0
        %v1045 = vsel %vm1037, %v982, 0
        %v1048 = vsel %vm1037, %v983, 0
        %v1051 = vsel %vm1037, %v984, 0
        %v1054 = vsel %vm1037, %v985, 0
        %v1057 = vsel %vm1037, %v986, 0
        %v1060 = vsel %vm1037, %v987, 0
        %1062 = vmatprep.subr.mxu0 0.0
        %1063 = vmatpush1.msra.mxu0 0.0
        %1064 = vmatprep.subr.mxu0 0.0
        %1065 = vmatpush1.msra.mxu0 0.0
        %1066 = vmatprep.subr.mxu0 0.0
        %1067 = vmatpush1.msra.mxu0 0.0
        %1068 = vmatprep.subr.mxu0 0.0
        %1069 = vmatpush1.msra.mxu0 0.0
        %1070 = vmatprep.subr.mxu0 0.0
        %1071 = vmatpush1.msra.mxu0 0.0
        %1072 = vmatprep.subr.mxu0 0.0
        %1073 = vmatpush1.msra.mxu0 0.0
        %1074 = vmatprep.subr.mxu0 0.0
        %1075 = vmatpush1.msra.mxu0 0.0
        %1076 = vmatprep.subr.mxu0 0.0
        %1077 = vmatpush1.msra.mxu0 0.0
        %1078 = vmatprep.subr.mxu0 0.0
        %1079 = vmatpush1.msra.mxu0 0.0
        %1080 = vmatprep.subr.mxu0 0.0
        %1081 = vmatpush1.msra.mxu0 0.0
        %1082 = vmatprep.subr.mxu0 0.0
        %1083 = vmatpush1.msra.mxu0 0.0
        %1084 = vmatprep.subr.mxu0 0.0
        %1085 = vmatpush1.msra.mxu0 0.0
        %1086 = vmatprep.subr.mxu0 0.0
        %1087 = vmatpush1.msra.mxu0 0.0
        %1088 = vmatprep.subr.mxu0 0.0
        %1089 = vmatpush1.msra.mxu0 0.0
        %1090 = vmatprep.subr.mxu0 %v1042
        %1091 = vmatpush1.msra.mxu0 %v1039
        %1092 = vmatprep.subr.mxu0 %v973
        %1093 = vmatpush1.msra.mxu0 %v972
        %1094 = vmatprep.subr.mxu0 0.0
        %1095 = vmatpush2.msra.mxu0 0.0
        %1096 = vmatprep.subr.mxu0 0.0
        %1097 = vmatpush2.msra.mxu0 0.0
        %1098 = vmatprep.subr.mxu0 0.0
        %1099 = vmatpush2.msra.mxu0 0.0
        %1100 = vmatprep.subr.mxu0 0.0
        %1101 = vmatpush2.msra.mxu0 0.0
        %1102 = vmatprep.subr.mxu0 0.0
        %1103 = vmatpush2.msra.mxu0 0.0
        %1104 = vmatprep.subr.mxu0 0.0
        %1105 = vmatpush2.msra.mxu0 0.0
        %1106 = vmatprep.subr.mxu0 0.0
        %1107 = vmatpush2.msra.mxu0 0.0
        %1108 = vmatprep.subr.mxu0 0.0
        %1109 = vmatpush2.msra.mxu0 0.0
        %1110 = vmatprep.subr.mxu0 0.0
        %1111 = vmatpush2.msra.mxu0 0.0
        %1112 = vmatprep.subr.mxu0 0.0
        %1113 = vmatpush2.msra.mxu0 0.0
        %1114 = vmatprep.subr.mxu0 0.0
        %1115 = vmatpush2.msra.mxu0 0.0
        %1116 = vmatprep.subr.mxu0 0.0
        %1117 = vmatpush2.msra.mxu0 0.0
        %1118 = vmatprep.subr.mxu0 0.0
        %1119 = vmatpush2.msra.mxu0 0.0
        %1120 = vmatprep.subr.mxu0 0.0
        %1121 = vmatpush2.msra.mxu0 0.0
        %1122 = vmatprep.subr.mxu0 0.0
        %1123 = vmatpush2.msra.mxu0 0.0
        %1124 = vmatprep.subr.mxu0 0.0
        %1125 = vmatpush2.msra.mxu0 0.0
        %1126 = vmatprep.mubr.f32.mxu0 0.0
        %1127 = vmatmul.mubr.f32.gmra.mxu0 %v990
        %v1128 = vpop.f32.mrf.mxu0
        %v1129 = vadd.f32 0.0, %v1128
        %v1130 = vpop.f32.mrf.mxu0
        %v1131 = vadd.f32 0.0, %v1130
        %1132 = vmatprep.mubr.f32.mxu0 0.0
        %1133 = vmatmul.mubr.f32.gmra.mxu0 %v993
        %v1134 = vpop.f32.mrf.mxu0
        %v1135 = vadd.f32 0.0, %v1134
        %v1136 = vpop.f32.mrf.mxu0
        %v1137 = vadd.f32 0.0, %v1136
        %1138 = vmatprep.mubr.f32.mxu0 0.0
        %1139 = vmatmul.mubr.f32.gmra.mxu0 %v996
        %v1140 = vpop.f32.mrf.mxu0
        %v1141 = vadd.f32 0.0, %v1140
        %v1142 = vpop.f32.mrf.mxu0
        %v1143 = vadd.f32 0.0, %v1142
        %1144 = vmatprep.mubr.f32.mxu0 0.0
        %1145 = vmatmul.mubr.f32.gmra.mxu0 %v999
        %v1146 = vpop.f32.mrf.mxu0
        %v1147 = vadd.f32 0.0, %v1146
        %v1148 = vpop.f32.mrf.mxu0
        %v1149 = vadd.f32 0.0, %v1148
        %1150 = vmatprep.mubr.f32.mxu0 0.0
        %1151 = vmatmul.mubr.f32.gmra.mxu0 %v1002
        %v1152 = vpop.f32.mrf.mxu0
        %v1153 = vadd.f32 0.0, %v1152
        %v1154 = vpop.f32.mrf.mxu0
        %v1155 = vadd.f32 0.0, %v1154
        %1156 = vmatprep.mubr.f32.mxu0 0.0
        %1157 = vmatmul.mubr.f32.gmra.mxu0 %v1005
        %v1158 = vpop.f32.mrf.mxu0
        %v1159 = vadd.f32 0.0, %v1158
        %v1160 = vpop.f32.mrf.mxu0
        %v1161 = vadd.f32 0.0, %v1160
        %1162 = vmatprep.mubr.f32.mxu0 0.0
        %1163 = vmatmul.mubr.f32.gmra.mxu0 %v1008
        %v1164 = vpop.f32.mrf.mxu0
        %v1165 = vadd.f32 0.0, %v1164
        %v1166 = vpop.f32.mrf.mxu0
        %v1167 = vadd.f32 0.0, %v1166
        %1168 = vmatprep.mubr.f32.mxu0 0.0
        %1169 = vmatmul.mubr.f32.gmra.mxu0 %v1011
        %v1170 = vpop.f32.mrf.mxu0
        %v1171 = vadd.f32 0.0, %v1170
        %v1172 = vpop.f32.mrf.mxu0
        %v1173 = vadd.f32 0.0, %v1172
        %1174 = vmatprep.mubr.f32.mxu0 0.0
        %1175 = vmatmul.mubr.f32.gmra.mxu0 %v1014
        %v1176 = vpop.f32.mrf.mxu0
        %v1177 = vadd.f32 0.0, %v1176
        %v1178 = vpop.f32.mrf.mxu0
        %v1179 = vadd.f32 0.0, %v1178
        %1180 = vmatprep.mubr.f32.mxu0 0.0
        %1181 = vmatmul.mubr.f32.gmra.mxu0 %v1017
        %v1182 = vpop.f32.mrf.mxu0
        %v1183 = vadd.f32 0.0, %v1182
        %v1184 = vpop.f32.mrf.mxu0
        %v1185 = vadd.f32 0.0, %v1184
        %1186 = vmatprep.mubr.f32.mxu0 0.0
        %1187 = vmatmul.mubr.f32.gmra.mxu0 %v1020
        %v1188 = vpop.f32.mrf.mxu0
        %v1189 = vadd.f32 0.0, %v1188
        %v1190 = vpop.f32.mrf.mxu0
        %v1191 = vadd.f32 0.0, %v1190
        %1192 = vmatprep.mubr.f32.mxu0 0.0
        %1193 = vmatmul.mubr.f32.gmra.mxu0 %v1023
        %v1194 = vpop.f32.mrf.mxu0
        %v1195 = vadd.f32 0.0, %v1194
        %v1196 = vpop.f32.mrf.mxu0
        %v1197 = vadd.f32 0.0, %v1196
        %1198 = vmatprep.mubr.f32.mxu0 0.0
        %1199 = vmatmul.mubr.f32.gmra.mxu0 %v1026
        %v1200 = vpop.f32.mrf.mxu0
        %v1201 = vadd.f32 0.0, %v1200
        %v1202 = vpop.f32.mrf.mxu0
        %v1203 = vadd.f32 0.0, %v1202
        %1204 = vmatprep.mubr.f32.mxu0 0.0
        %1205 = vmatmul.mubr.f32.gmra.mxu0 %v1029
        %v1206 = vpop.f32.mrf.mxu0
        %v1207 = vadd.f32 0.0, %v1206
        %v1208 = vpop.f32.mrf.mxu0
        %v1209 = vadd.f32 0.0, %v1208
        %1210 = vmatprep.mubr.f32.mxu0 0.0
        %1211 = vmatmul.mubr.f32.gmra.mxu0 %v1032
        %v1212 = vpop.f32.mrf.mxu0
        %v1213 = vadd.f32 0.0, %v1212
        %v1214 = vpop.f32.mrf.mxu0
        %v1215 = vadd.f32 0.0, %v1214
        %1216 = vmatprep.mubr.f32.mxu0 0.0
        %1217 = vmatmul.mubr.f32.gmra.mxu0 %v1035
        %v1218 = vpop.f32.mrf.mxu0
        %v1219 = vadd.f32 0.0, %v1218
        %v1220 = vpop.f32.mrf.mxu0
        %v1221 = vadd.f32 0.0, %v1220
        %1222 = vdwg.mxu0
        %1223 = vmatprep.subr.mxu0 0.0
        %1224 = vmatpush1.msra.mxu0 0.0
        %1225 = vmatprep.subr.mxu0 0.0
        %1226 = vmatpush1.msra.mxu0 0.0
        %1227 = vmatprep.subr.mxu0 0.0
        %1228 = vmatpush1.msra.mxu0 0.0
        %1229 = vmatprep.subr.mxu0 0.0
        %1230 = vmatpush1.msra.mxu0 0.0
        %1231 = vmatprep.subr.mxu0 0.0
        %1232 = vmatpush1.msra.mxu0 0.0
        %1233 = vmatprep.subr.mxu0 0.0
        %1234 = vmatpush1.msra.mxu0 0.0
        %1235 = vmatprep.subr.mxu0 0.0
        %1236 = vmatpush1.msra.mxu0 0.0
        %1237 = vmatprep.subr.mxu0 0.0
        %1238 = vmatpush1.msra.mxu0 0.0
        %1239 = vmatprep.subr.mxu0 0.0
        %1240 = vmatpush1.msra.mxu0 0.0
        %1241 = vmatprep.subr.mxu0 0.0
        %1242 = vmatpush1.msra.mxu0 0.0
        %1243 = vmatprep.subr.mxu0 0.0
        %1244 = vmatpush1.msra.mxu0 0.0
        %1245 = vmatprep.subr.mxu0 0.0
        %1246 = vmatpush1.msra.mxu0 0.0
        %1247 = vmatprep.subr.mxu0 0.0
        %1248 = vmatpush1.msra.mxu0 0.0
        %1249 = vmatprep.subr.mxu0 0.0
        %1250 = vmatpush1.msra.mxu0 0.0
        %1251 = vmatprep.subr.mxu0 %v1048
        %1252 = vmatpush1.msra.mxu0 %v1045
        %1253 = vmatprep.subr.mxu0 %v975
        %1254 = vmatpush1.msra.mxu0 %v974
        %1255 = vmatprep.subr.mxu0 0.0
        %1256 = vmatpush2.msra.mxu0 0.0
        %1257 = vmatprep.subr.mxu0 0.0
        %1258 = vmatpush2.msra.mxu0 0.0
        %1259 = vmatprep.subr.mxu0 0.0
        %1260 = vmatpush2.msra.mxu0 0.0
        %1261 = vmatprep.subr.mxu0 0.0
        %1262 = vmatpush2.msra.mxu0 0.0
        %1263 = vmatprep.subr.mxu0 0.0
        %1264 = vmatpush2.msra.mxu0 0.0
        %1265 = vmatprep.subr.mxu0 0.0
        %1266 = vmatpush2.msra.mxu0 0.0
        %1267 = vmatprep.subr.mxu0 0.0
        %1268 = vmatpush2.msra.mxu0 0.0
        %1269 = vmatprep.subr.mxu0 0.0
        %1270 = vmatpush2.msra.mxu0 0.0
        %1271 = vmatprep.subr.mxu0 0.0
        %1272 = vmatpush2.msra.mxu0 0.0
        %1273 = vmatprep.subr.mxu0 0.0
        %1274 = vmatpush2.msra.mxu0 0.0
        %1275 = vmatprep.subr.mxu0 0.0
        %1276 = vmatpush2.msra.mxu0 0.0
        %1277 = vmatprep.subr.mxu0 0.0
        %1278 = vmatpush2.msra.mxu0 0.0
        %1279 = vmatprep.subr.mxu0 0.0
        %1280 = vmatpush2.msra.mxu0 0.0
        %1281 = vmatprep.subr.mxu0 0.0
        %1282 = vmatpush2.msra.mxu0 0.0
        %1283 = vmatprep.subr.mxu0 0.0
        %1284 = vmatpush2.msra.mxu0 0.0
        %1285 = vmatprep.subr.mxu0 0.0
        %1286 = vmatpush2.msra.mxu0 0.0
        %1287 = vmatprep.mubr.f32.mxu0 0.0
        %1288 = vmatmul.mubr.f32.gmra.mxu0 %v990
        %v1289 = vpop.f32.mrf.mxu0
        %v1290 = vadd.f32 0.0, %v1289
        %v1291 = vpop.f32.mrf.mxu0
        %v1292 = vadd.f32 0.0, %v1291
        %1293 = vmatprep.mubr.f32.mxu0 0.0
        %1294 = vmatmul.mubr.f32.gmra.mxu0 %v993
        %v1295 = vpop.f32.mrf.mxu0
        %v1296 = vadd.f32 0.0, %v1295
        %v1297 = vpop.f32.mrf.mxu0
        %v1298 = vadd.f32 0.0, %v1297
        %1299 = vmatprep.mubr.f32.mxu0 0.0
        %1300 = vmatmul.mubr.f32.gmra.mxu0 %v996
        %v1301 = vpop.f32.mrf.mxu0
        %v1302 = vadd.f32 0.0, %v1301
        %v1303 = vpop.f32.mrf.mxu0
        %v1304 = vadd.f32 0.0, %v1303
        %1305 = vmatprep.mubr.f32.mxu0 0.0
        %1306 = vmatmul.mubr.f32.gmra.mxu0 %v999
        %v1307 = vpop.f32.mrf.mxu0
        %v1308 = vadd.f32 0.0, %v1307
        %v1309 = vpop.f32.mrf.mxu0
        %v1310 = vadd.f32 0.0, %v1309
        %1311 = vmatprep.mubr.f32.mxu0 0.0
        %1312 = vmatmul.mubr.f32.gmra.mxu0 %v1002
        %v1313 = vpop.f32.mrf.mxu0
        %v1314 = vadd.f32 0.0, %v1313
        %v1315 = vpop.f32.mrf.mxu0
        %v1316 = vadd.f32 0.0, %v1315
        %1317 = vmatprep.mubr.f32.mxu0 0.0
        %1318 = vmatmul.mubr.f32.gmra.mxu0 %v1005
        %v1319 = vpop.f32.mrf.mxu0
        %v1320 = vadd.f32 0.0, %v1319
        %v1321 = vpop.f32.mrf.mxu0
        %v1322 = vadd.f32 0.0, %v1321
        %1323 = vmatprep.mubr.f32.mxu0 0.0
        %1324 = vmatmul.mubr.f32.gmra.mxu0 %v1008
        %v1325 = vpop.f32.mrf.mxu0
        %v1326 = vadd.f32 0.0, %v1325
        %v1327 = vpop.f32.mrf.mxu0
        %v1328 = vadd.f32 0.0, %v1327
        %1329 = vmatprep.mubr.f32.mxu0 0.0
        %1330 = vmatmul.mubr.f32.gmra.mxu0 %v1011
        %v1331 = vpop.f32.mrf.mxu0
        %v1332 = vadd.f32 0.0, %v1331
        %v1333 = vpop.f32.mrf.mxu0
        %v1334 = vadd.f32 0.0, %v1333
        %1335 = vmatprep.mubr.f32.mxu0 0.0
        %1336 = vmatmul.mubr.f32.gmra.mxu0 %v1014
        %v1337 = vpop.f32.mrf.mxu0
        %v1338 = vadd.f32 0.0, %v1337
        %v1339 = vpop.f32.mrf.mxu0
        %v1340 = vadd.f32 0.0, %v1339
        %1341 = vmatprep.mubr.f32.mxu0 0.0
        %1342 = vmatmul.mubr.f32.gmra.mxu0 %v1017
        %v1343 = vpop.f32.mrf.mxu0
        %v1344 = vadd.f32 0.0, %v1343
        %v1345 = vpop.f32.mrf.mxu0
        %v1346 = vadd.f32 0.0, %v1345
        %1347 = vmatprep.mubr.f32.mxu0 0.0
        %1348 = vmatmul.mubr.f32.gmra.mxu0 %v1020
        %v1349 = vpop.f32.mrf.mxu0
        %v1350 = vadd.f32 0.0, %v1349
        %v1351 = vpop.f32.mrf.mxu0
        %v1352 = vadd.f32 0.0, %v1351
        %1353 = vmatprep.mubr.f32.mxu0 0.0
        %1354 = vmatmul.mubr.f32.gmra.mxu0 %v1023
        %v1355 = vpop.f32.mrf.mxu0
        %v1356 = vadd.f32 0.0, %v1355
        %v1357 = vpop.f32.mrf.mxu0
        %v1358 = vadd.f32 0.0, %v1357
        %1359 = vmatprep.mubr.f32.mxu0 0.0
        %1360 = vmatmul.mubr.f32.gmra.mxu0 %v1026
        %v1361 = vpop.f32.mrf.mxu0
        %v1362 = vadd.f32 0.0, %v1361
        %v1363 = vpop.f32.mrf.mxu0
        %v1364 = vadd.f32 0.0, %v1363
        %1365 = vmatprep.mubr.f32.mxu0 0.0
        %1366 = vmatmul.mubr.f32.gmra.mxu0 %v1029
        %v1367 = vpop.f32.mrf.mxu0
        %v1368 = vadd.f32 0.0, %v1367
        %v1369 = vpop.f32.mrf.mxu0
        %v1370 = vadd.f32 0.0, %v1369
        %1371 = vmatprep.mubr.f32.mxu0 0.0
        %1372 = vmatmul.mubr.f32.gmra.mxu0 %v1032
        %v1373 = vpop.f32.mrf.mxu0
        %v1374 = vadd.f32 0.0, %v1373
        %v1375 = vpop.f32.mrf.mxu0
        %v1376 = vadd.f32 0.0, %v1375
        %1377 = vmatprep.mubr.f32.mxu0 0.0
        %1378 = vmatmul.mubr.f32.gmra.mxu0 %v1035
        %v1379 = vpop.f32.mrf.mxu0
        %v1380 = vadd.f32 0.0, %v1379
        %v1381 = vpop.f32.mrf.mxu0
        %v1382 = vadd.f32 0.0, %v1381
        %1383 = vdwg.mxu0
        %1384 = vmatprep.subr.mxu0 0.0
        %1385 = vmatpush1.msra.mxu0 0.0
        %1386 = vmatprep.subr.mxu0 0.0
        %1387 = vmatpush1.msra.mxu0 0.0
        %1388 = vmatprep.subr.mxu0 0.0
        %1389 = vmatpush1.msra.mxu0 0.0
        %1390 = vmatprep.subr.mxu0 0.0
        %1391 = vmatpush1.msra.mxu0 0.0
        %1392 = vmatprep.subr.mxu0 0.0
        %1393 = vmatpush1.msra.mxu0 0.0
        %1394 = vmatprep.subr.mxu0 0.0
        %1395 = vmatpush1.msra.mxu0 0.0
        %1396 = vmatprep.subr.mxu0 0.0
        %1397 = vmatpush1.msra.mxu0 0.0
        %1398 = vmatprep.subr.mxu0 0.0
        %1399 = vmatpush1.msra.mxu0 0.0
        %1400 = vmatprep.subr.mxu0 0.0
        %1401 = vmatpush1.msra.mxu0 0.0
        %1402 = vmatprep.subr.mxu0 0.0
        %1403 = vmatpush1.msra.mxu0 0.0
        %1404 = vmatprep.subr.mxu0 0.0
        %1405 = vmatpush1.msra.mxu0 0.0
        %1406 = vmatprep.subr.mxu0 0.0
        %1407 = vmatpush1.msra.mxu0 0.0
        %1408 = vmatprep.subr.mxu0 0.0
        %1409 = vmatpush1.msra.mxu0 0.0
        %1410 = vmatprep.subr.mxu0 0.0
        %1411 = vmatpush1.msra.mxu0 0.0
        %1412 = vmatprep.subr.mxu0 %v1054
        %1413 = vmatpush1.msra.mxu0 %v1051
        %1414 = vmatprep.subr.mxu0 %v977
        %1415 = vmatpush1.msra.mxu0 %v976
        %1416 = vmatprep.subr.mxu0 0.0
        %1417 = vmatpush2.msra.mxu0 0.0
        %1418 = vmatprep.subr.mxu0 0.0
        %1419 = vmatpush2.msra.mxu0 0.0
        %1420 = vmatprep.subr.mxu0 0.0
        %1421 = vmatpush2.msra.mxu0 0.0
        %1422 = vmatprep.subr.mxu0 0.0
        %1423 = vmatpush2.msra.mxu0 0.0
        %1424 = vmatprep.subr.mxu0 0.0
        %1425 = vmatpush2.msra.mxu0 0.0
        %1426 = vmatprep.subr.mxu0 0.0
        %1427 = vmatpush2.msra.mxu0 0.0
        %1428 = vmatprep.subr.mxu0 0.0
        %1429 = vmatpush2.msra.mxu0 0.0
        %1430 = vmatprep.subr.mxu0 0.0
        %1431 = vmatpush2.msra.mxu0 0.0
        %1432 = vmatprep.subr.mxu0 0.0
        %1433 = vmatpush2.msra.mxu0 0.0
        %1434 = vmatprep.subr.mxu0 0.0
        %1435 = vmatpush2.msra.mxu0 0.0
        %1436 = vmatprep.subr.mxu0 0.0
        %1437 = vmatpush2.msra.mxu0 0.0
        %1438 = vmatprep.subr.mxu0 0.0
        %1439 = vmatpush2.msra.mxu0 0.0
        %1440 = vmatprep.subr.mxu0 0.0
        %1441 = vmatpush2.msra.mxu0 0.0
        %1442 = vmatprep.subr.mxu0 0.0
        %1443 = vmatpush2.msra.mxu0 0.0
        %1444 = vmatprep.subr.mxu0 0.0
        %1445 = vmatpush2.msra.mxu0 0.0
        %1446 = vmatprep.subr.mxu0 0.0
        %1447 = vmatpush2.msra.mxu0 0.0
        %1448 = vmatprep.mubr.f32.mxu0 0.0
        %1449 = vmatmul.mubr.f32.gmra.mxu0 %v990
        %v1450 = vpop.f32.mrf.mxu0
        %v1451 = vadd.f32 0.0, %v1450
        %v1452 = vpop.f32.mrf.mxu0
        %v1453 = vadd.f32 0.0, %v1452
        %1454 = vmatprep.mubr.f32.mxu0 0.0
        %1455 = vmatmul.mubr.f32.gmra.mxu0 %v993
        %v1456 = vpop.f32.mrf.mxu0
        %v1457 = vadd.f32 0.0, %v1456
        %v1458 = vpop.f32.mrf.mxu0
        %v1459 = vadd.f32 0.0, %v1458
        %1460 = vmatprep.mubr.f32.mxu0 0.0
        %1461 = vmatmul.mubr.f32.gmra.mxu0 %v996
        %v1462 = vpop.f32.mrf.mxu0
        %v1463 = vadd.f32 0.0, %v1462
        %v1464 = vpop.f32.mrf.mxu0
        %v1465 = vadd.f32 0.0, %v1464
        %1466 = vmatprep.mubr.f32.mxu0 0.0
        %1467 = vmatmul.mubr.f32.gmra.mxu0 %v999
        %v1468 = vpop.f32.mrf.mxu0
        %v1469 = vadd.f32 0.0, %v1468
        %v1470 = vpop.f32.mrf.mxu0
        %v1471 = vadd.f32 0.0, %v1470
        %1472 = vmatprep.mubr.f32.mxu0 0.0
        %1473 = vmatmul.mubr.f32.gmra.mxu0 %v1002
        %v1474 = vpop.f32.mrf.mxu0
        %v1475 = vadd.f32 0.0, %v1474
        %v1476 = vpop.f32.mrf.mxu0
        %v1477 = vadd.f32 0.0, %v1476
        %1478 = vmatprep.mubr.f32.mxu0 0.0
        %1479 = vmatmul.mubr.f32.gmra.mxu0 %v1005
        %v1480 = vpop.f32.mrf.mxu0
        %v1481 = vadd.f32 0.0, %v1480
        %v1482 = vpop.f32.mrf.mxu0
        %v1483 = vadd.f32 0.0, %v1482
        %1484 = vmatprep.mubr.f32.mxu0 0.0
        %1485 = vmatmul.mubr.f32.gmra.mxu0 %v1008
        %v1486 = vpop.f32.mrf.mxu0
        %v1487 = vadd.f32 0.0, %v1486
        %v1488 = vpop.f32.mrf.mxu0
        %v1489 = vadd.f32 0.0, %v1488
        %1490 = vmatprep.mubr.f32.mxu0 0.0
        %1491 = vmatmul.mubr.f32.gmra.mxu0 %v1011
        %v1492 = vpop.f32.mrf.mxu0
        %v1493 = vadd.f32 0.0, %v1492
        %v1494 = vpop.f32.mrf.mxu0
        %v1495 = vadd.f32 0.0, %v1494
        %1496 = vmatprep.mubr.f32.mxu0 0.0
        %1497 = vmatmul.mubr.f32.gmra.mxu0 %v1014
        %v1498 = vpop.f32.mrf.mxu0
        %v1499 = vadd.f32 0.0, %v1498
        %v1500 = vpop.f32.mrf.mxu0
        %v1501 = vadd.f32 0.0, %v1500
        %1502 = vmatprep.mubr.f32.mxu0 0.0
        %1503 = vmatmul.mubr.f32.gmra.mxu0 %v1017
        %v1504 = vpop.f32.mrf.mxu0
        %v1505 = vadd.f32 0.0, %v1504
        %v1506 = vpop.f32.mrf.mxu0
        %v1507 = vadd.f32 0.0, %v1506
        %1508 = vmatprep.mubr.f32.mxu0 0.0
        %1509 = vmatmul.mubr.f32.gmra.mxu0 %v1020
        %v1510 = vpop.f32.mrf.mxu0
        %v1511 = vadd.f32 0.0, %v1510
        %v1512 = vpop.f32.mrf.mxu0
        %v1513 = vadd.f32 0.0, %v1512
        %1514 = vmatprep.mubr.f32.mxu0 0.0
        %1515 = vmatmul.mubr.f32.gmra.mxu0 %v1023
        %v1516 = vpop.f32.mrf.mxu0
        %v1517 = vadd.f32 0.0, %v1516
        %v1518 = vpop.f32.mrf.mxu0
        %v1519 = vadd.f32 0.0, %v1518
        %1520 = vmatprep.mubr.f32.mxu0 0.0
        %1521 = vmatmul.mubr.f32.gmra.mxu0 %v1026
        %v1522 = vpop.f32.mrf.mxu0
        %v1523 = vadd.f32 0.0, %v1522
        %v1524 = vpop.f32.mrf.mxu0
        %v1525 = vadd.f32 0.0, %v1524
        %1526 = vmatprep.mubr.f32.mxu0 0.0
        %1527 = vmatmul.mubr.f32.gmra.mxu0 %v1029
        %v1528 = vpop.f32.mrf.mxu0
        %v1529 = vadd.f32 0.0, %v1528
        %v1530 = vpop.f32.mrf.mxu0
        %v1531 = vadd.f32 0.0, %v1530
        %1532 = vmatprep.mubr.f32.mxu0 0.0
        %1533 = vmatmul.mubr.f32.gmra.mxu0 %v1032
        %v1534 = vpop.f32.mrf.mxu0
        %v1535 = vadd.f32 0.0, %v1534
        %v1536 = vpop.f32.mrf.mxu0
        %v1537 = vadd.f32 0.0, %v1536
        %1538 = vmatprep.mubr.f32.mxu0 0.0
        %1539 = vmatmul.mubr.f32.gmra.mxu0 %v1035
        %v1540 = vpop.f32.mrf.mxu0
        %v1541 = vadd.f32 0.0, %v1540
        %v1542 = vpop.f32.mrf.mxu0
        %v1543 = vadd.f32 0.0, %v1542
        %1544 = vdwg.mxu0
        %1545 = vmatprep.subr.mxu0 0.0
        %1546 = vmatpush1.msra.mxu0 0.0
        %1547 = vmatprep.subr.mxu0 0.0
        %1548 = vmatpush1.msra.mxu0 0.0
        %1549 = vmatprep.subr.mxu0 0.0
        %1550 = vmatpush1.msra.mxu0 0.0
        %1551 = vmatprep.subr.mxu0 0.0
        %1552 = vmatpush1.msra.mxu0 0.0
        %1553 = vmatprep.subr.mxu0 0.0
        %1554 = vmatpush1.msra.mxu0 0.0
        %1555 = vmatprep.subr.mxu0 0.0
        %1556 = vmatpush1.msra.mxu0 0.0
        %1557 = vmatprep.subr.mxu0 0.0
        %1558 = vmatpush1.msra.mxu0 0.0
        %1559 = vmatprep.subr.mxu0 0.0
        %1560 = vmatpush1.msra.mxu0 0.0
        %1561 = vmatprep.subr.mxu0 0.0
        %1562 = vmatpush1.msra.mxu0 0.0
        %1563 = vmatprep.subr.mxu0 0.0
        %1564 = vmatpush1.msra.mxu0 0.0
        %1565 = vmatprep.subr.mxu0 0.0
        %1566 = vmatpush1.msra.mxu0 0.0
        %1567 = vmatprep.subr.mxu0 0.0
        %1568 = vmatpush1.msra.mxu0 0.0
        %1569 = vmatprep.subr.mxu0 0.0
        %1570 = vmatpush1.msra.mxu0 0.0
        %1571 = vmatprep.subr.mxu0 0.0
        %1572 = vmatpush1.msra.mxu0 0.0
        %1573 = vmatprep.subr.mxu0 %v1060
        %1574 = vmatpush1.msra.mxu0 %v1057
        %1575 = vmatprep.subr.mxu0 %v979
        %1576 = vmatpush1.msra.mxu0 %v978
        %1577 = vmatprep.subr.mxu0 0.0
        %1578 = vmatpush2.msra.mxu0 0.0
        %1579 = vmatprep.subr.mxu0 0.0
        %1580 = vmatpush2.msra.mxu0 0.0
        %1581 = vmatprep.subr.mxu0 0.0
        %1582 = vmatpush2.msra.mxu0 0.0
        %1583 = vmatprep.subr.mxu0 0.0
        %1584 = vmatpush2.msra.mxu0 0.0
        %1585 = vmatprep.subr.mxu0 0.0
        %1586 = vmatpush2.msra.mxu0 0.0
        %1587 = vmatprep.subr.mxu0 0.0
        %1588 = vmatpush2.msra.mxu0 0.0
        %1589 = vmatprep.subr.mxu0 0.0
        %1590 = vmatpush2.msra.mxu0 0.0
        %1591 = vmatprep.subr.mxu0 0.0
        %1592 = vmatpush2.msra.mxu0 0.0
        %1593 = vmatprep.subr.mxu0 0.0
        %1594 = vmatpush2.msra.mxu0 0.0
        %1595 = vmatprep.subr.mxu0 0.0
        %1596 = vmatpush2.msra.mxu0 0.0
        %1597 = vmatprep.subr.mxu0 0.0
        %1598 = vmatpush2.msra.mxu0 0.0
        %1599 = vmatprep.subr.mxu0 0.0
        %1600 = vmatpush2.msra.mxu0 0.0
        %1601 = vmatprep.subr.mxu0 0.0
        %1602 = vmatpush2.msra.mxu0 0.0
        %1603 = vmatprep.subr.mxu0 0.0
        %1604 = vmatpush2.msra.mxu0 0.0
        %1605 = vmatprep.subr.mxu0 0.0
        %1606 = vmatpush2.msra.mxu0 0.0
        %1607 = vmatprep.subr.mxu0 0.0
        %1608 = vmatpush2.msra.mxu0 0.0
        %1609 = vmatprep.mubr.f32.mxu0 0.0
        %1610 = vmatmul.mubr.f32.gmra.mxu0 %v990
        %v1611 = vpop.f32.mrf.mxu0
        %v1612 = vadd.f32 0.0, %v1611
        %v1613 = vpop.f32.mrf.mxu0
        %v1614 = vadd.f32 0.0, %v1613
        %1615 = vmatprep.mubr.f32.mxu0 0.0
        %1616 = vmatmul.mubr.f32.gmra.mxu0 %v993
        %v1617 = vpop.f32.mrf.mxu0
        %v1618 = vadd.f32 0.0, %v1617
        %v1619 = vpop.f32.mrf.mxu0
        %v1620 = vadd.f32 0.0, %v1619
        %1621 = vmatprep.mubr.f32.mxu0 0.0
        %1622 = vmatmul.mubr.f32.gmra.mxu0 %v996
        %v1623 = vpop.f32.mrf.mxu0
        %v1624 = vadd.f32 0.0, %v1623
        %v1625 = vpop.f32.mrf.mxu0
        %v1626 = vadd.f32 0.0, %v1625
        %1627 = vmatprep.mubr.f32.mxu0 0.0
        %1628 = vmatmul.mubr.f32.gmra.mxu0 %v999
        %v1629 = vpop.f32.mrf.mxu0
        %v1630 = vadd.f32 0.0, %v1629
        %v1631 = vpop.f32.mrf.mxu0
        %v1632 = vadd.f32 0.0, %v1631
        %1633 = vmatprep.mubr.f32.mxu0 0.0
        %1634 = vmatmul.mubr.f32.gmra.mxu0 %v1002
        %v1635 = vpop.f32.mrf.mxu0
        %v1636 = vadd.f32 0.0, %v1635
        %v1637 = vpop.f32.mrf.mxu0
        %v1638 = vadd.f32 0.0, %v1637
        %1639 = vmatprep.mubr.f32.mxu0 0.0
        %1640 = vmatmul.mubr.f32.gmra.mxu0 %v1005
        %v1641 = vpop.f32.mrf.mxu0
        %v1642 = vadd.f32 0.0, %v1641
        %v1643 = vpop.f32.mrf.mxu0
        %v1644 = vadd.f32 0.0, %v1643
        %1645 = vmatprep.mubr.f32.mxu0 0.0
        %1646 = vmatmul.mubr.f32.gmra.mxu0 %v1008
        %v1647 = vpop.f32.mrf.mxu0
        %v1648 = vadd.f32 0.0, %v1647
        %v1649 = vpop.f32.mrf.mxu0
        %v1650 = vadd.f32 0.0, %v1649
        %1651 = vmatprep.mubr.f32.mxu0 0.0
        %1652 = vmatmul.mubr.f32.gmra.mxu0 %v1011
        %v1653 = vpop.f32.mrf.mxu0
        %v1654 = vadd.f32 0.0, %v1653
        %v1655 = vpop.f32.mrf.mxu0
        %v1656 = vadd.f32 0.0, %v1655
        %1657 = vmatprep.mubr.f32.mxu0 0.0
        %1658 = vmatmul.mubr.f32.gmra.mxu0 %v1014
        %v1659 = vpop.f32.mrf.mxu0
        %v1660 = vadd.f32 0.0, %v1659
        %v1661 = vpop.f32.mrf.mxu0
        %v1662 = vadd.f32 0.0, %v1661
        %1663 = vmatprep.mubr.f32.mxu0 0.0
        %1664 = vmatmul.mubr.f32.gmra.mxu0 %v1017
        %v1665 = vpop.f32.mrf.mxu0
        %v1666 = vadd.f32 0.0, %v1665
        %v1667 = vpop.f32.mrf.mxu0
        %v1668 = vadd.f32 0.0, %v1667
        %1669 = vmatprep.mubr.f32.mxu0 0.0
        %1670 = vmatmul.mubr.f32.gmra.mxu0 %v1020
        %v1671 = vpop.f32.mrf.mxu0
        %v1672 = vadd.f32 0.0, %v1671
        %v1673 = vpop.f32.mrf.mxu0
        %v1674 = vadd.f32 0.0, %v1673
        %1675 = vmatprep.mubr.f32.mxu0 0.0
        %1676 = vmatmul.mubr.f32.gmra.mxu0 %v1023
        %v1677 = vpop.f32.mrf.mxu0
        %v1678 = vadd.f32 0.0, %v1677
        %v1679 = vpop.f32.mrf.mxu0
        %v1680 = vadd.f32 0.0, %v1679
        %1681 = vmatprep.mubr.f32.mxu0 0.0
        %1682 = vmatmul.mubr.f32.gmra.mxu0 %v1026
        %v1683 = vpop.f32.mrf.mxu0
        %v1684 = vadd.f32 0.0, %v1683
        %v1685 = vpop.f32.mrf.mxu0
        %v1686 = vadd.f32 0.0, %v1685
        %1687 = vmatprep.mubr.f32.mxu0 0.0
        %1688 = vmatmul.mubr.f32.gmra.mxu0 %v1029
        %v1689 = vpop.f32.mrf.mxu0
        %v1690 = vadd.f32 0.0, %v1689
        %v1691 = vpop.f32.mrf.mxu0
        %v1692 = vadd.f32 0.0, %v1691
        %1693 = vmatprep.mubr.f32.mxu0 0.0
        %1694 = vmatmul.mubr.f32.gmra.mxu0 %v1032
        %v1695 = vpop.f32.mrf.mxu0
        %v1696 = vadd.f32 0.0, %v1695
        %v1697 = vpop.f32.mrf.mxu0
        %v1698 = vadd.f32 0.0, %v1697
        %1699 = vmatprep.mubr.f32.mxu0 0.0
        %1700 = vmatmul.mubr.f32.gmra.mxu0 %v1035
        %v1701 = vpop.f32.mrf.mxu0
        %v1702 = vadd.f32 0.0, %v1701
        %v1703 = vpop.f32.mrf.mxu0
        %v1704 = vadd.f32 0.0, %v1703
        %1705 = vdwg.mxu0
        %v1770 = vunpack.c.l.b16 %v402
        %v1771 = vunpack.c.h.b16 %v402
        %v1772 = vunpack.c.l.b16 %v403
        %v1773 = vunpack.c.h.b16 %v403
        %v1774 = vunpack.c.l.b16 %v404
        %v1775 = vunpack.c.h.b16 %v404
        %v1776 = vunpack.c.l.b16 %v405
        %v1777 = vunpack.c.l.b16 %v406
        %v1778 = vunpack.c.h.b16 %v406
        %v1779 = vunpack.c.l.b16 %v407
        %v1780 = vunpack.c.h.b16 %v407
        %v1781 = vunpack.c.l.b16 %v408
        %v1782 = vunpack.c.h.b16 %v408
        %v1783 = vunpack.c.l.b16 %v409
        %v1784 = vunpack.c.l.b16 %v410
        %v1785 = vunpack.c.h.b16 %v410
        %v1786 = vunpack.c.l.b16 %v411
        %v1787 = vunpack.c.h.b16 %v411
        %v1788 = vunpack.c.l.b16 %v412
        %v1789 = vunpack.c.h.b16 %v412
        %v1790 = vunpack.c.l.b16 %v413
        %v1791 = vunpack.c.l.b16 %v414
        %v1792 = vunpack.c.h.b16 %v414
        %v1793 = vunpack.c.l.b16 %v415
        %v1794 = vunpack.c.h.b16 %v415
        %v1795 = vunpack.c.l.b16 %v416
        %v1796 = vunpack.c.h.b16 %v416
        %v1797 = vunpack.c.l.b16 %v417
        %v1798 = vunpack.c.l.b16 %v418
        %v1799 = vunpack.c.h.b16 %v418
        %v1800 = vunpack.c.l.b16 %v419
        %v1801 = vunpack.c.h.b16 %v419
        %v1802 = vunpack.c.l.b16 %v420
        %v1803 = vunpack.c.h.b16 %v420
        %v1804 = vunpack.c.l.b16 %v421
        %v1805 = vunpack.c.l.b16 %v422
        %v1806 = vunpack.c.h.b16 %v422
        %v1807 = vunpack.c.l.b16 %v423
        %v1808 = vunpack.c.h.b16 %v423
        %v1809 = vunpack.c.l.b16 %v424
        %v1810 = vunpack.c.h.b16 %v424
        %v1811 = vunpack.c.l.b16 %v425
        %v1812 = vunpack.c.l.b16 %v426
        %v1813 = vunpack.c.h.b16 %v426
        %v1814 = vunpack.c.l.b16 %v427
        %v1815 = vunpack.c.h.b16 %v427
        %v1816 = vunpack.c.l.b16 %v428
        %v1817 = vunpack.c.h.b16 %v428
        %v1818 = vunpack.c.l.b16 %v429
        %v1819 = vunpack.c.l.b16 %v430
        %v1820 = vunpack.c.h.b16 %v430
        %v1821 = vunpack.c.l.b16 %v431
        %v1822 = vunpack.c.h.b16 %v431
        %v1823 = vunpack.c.l.b16 %v432
        %v1824 = vunpack.c.h.b16 %v432
        %v1825 = vunpack.c.l.b16 %v433
        %v1826 = vunpack.c.l.b16 %v434
        %v1827 = vunpack.c.h.b16 %v434
        %v1828 = vunpack.c.l.b16 %v435
        %v1829 = vunpack.c.h.b16 %v435
        %v1830 = vunpack.c.l.b16 %v436
        %v1831 = vunpack.c.h.b16 %v436
        %v1832 = vunpack.c.l.b16 %v437
        %v1833 = vunpack.c.l.b16 %v438
        %v1834 = vunpack.c.h.b16 %v438
        %v1835 = vunpack.c.l.b16 %v439
        %v1836 = vunpack.c.h.b16 %v439
        %v1837 = vunpack.c.l.b16 %v440
        %v1838 = vunpack.c.h.b16 %v440
        %v1839 = vunpack.c.l.b16 %v441
        %v1840 = vunpack.c.l.b16 %v442
        %v1841 = vunpack.c.h.b16 %v442
        %v1842 = vunpack.c.l.b16 %v443
        %v1843 = vunpack.c.h.b16 %v443
        %v1844 = vunpack.c.l.b16 %v444
        %v1845 = vunpack.c.h.b16 %v444
        %v1846 = vunpack.c.l.b16 %v445
        %v1847 = vunpack.c.l.b16 %v446
        %v1848 = vunpack.c.h.b16 %v446
        %v1849 = vunpack.c.l.b16 %v447
        %v1850 = vunpack.c.h.b16 %v447
        %v1851 = vunpack.c.l.b16 %v448
        %v1852 = vunpack.c.h.b16 %v448
        %v1853 = vunpack.c.l.b16 %v449
        %v1854 = vunpack.c.l.b16 %v450
        %v1855 = vunpack.c.h.b16 %v450
        %v1856 = vunpack.c.l.b16 %v451
        %v1857 = vunpack.c.h.b16 %v451
        %v1858 = vunpack.c.l.b16 %v452
        %v1859 = vunpack.c.h.b16 %v452
        %v1860 = vunpack.c.l.b16 %v453
        %v1861 = vunpack.c.l.b16 %v454
        %v1862 = vunpack.c.h.b16 %v454
        %v1863 = vunpack.c.l.b16 %v455
        %v1864 = vunpack.c.h.b16 %v455
        %v1865 = vunpack.c.l.b16 %v456
        %v1866 = vunpack.c.h.b16 %v456
        %v1867 = vunpack.c.l.b16 %v457
        %v1868 = vunpack.c.l.b16 %v458
        %v1869 = vunpack.c.h.b16 %v458
        %v1870 = vunpack.c.l.b16 %v459
        %v1871 = vunpack.c.h.b16 %v459
        %v1872 = vunpack.c.l.b16 %v460
        %v1873 = vunpack.c.h.b16 %v460
        %v1874 = vunpack.c.l.b16 %v461
        %v1875 = vunpack.c.l.b16 %v462
        %v1876 = vunpack.c.h.b16 %v462
        %v1877 = vunpack.c.l.b16 %v463
        %v1878 = vunpack.c.h.b16 %v463
        %v1879 = vunpack.c.l.b16 %v464
        %v1880 = vunpack.c.h.b16 %v464
        %v1881 = vunpack.c.l.b16 %v465
        %v1882 = vpack.c.b16 %v1777, %v1770
        %v1883 = vpack.c.b16 %v1778, %v1771
        %v1884 = vpack.c.b16 %v1779, %v1772
        %v1885 = vpack.c.b16 %v1780, %v1773
        %v1886 = vpack.c.b16 %v1781, %v1774
        %v1887 = vpack.c.b16 %v1782, %v1775
        %v1888 = vpack.c.b16 %v1783, %v1776
        %v1889 = vpack.c.b16 %v1791, %v1784
        %v1890 = vpack.c.b16 %v1792, %v1785
        %v1891 = vpack.c.b16 %v1793, %v1786
        %v1892 = vpack.c.b16 %v1794, %v1787
        %v1893 = vpack.c.b16 %v1795, %v1788
        %v1894 = vpack.c.b16 %v1796, %v1789
        %v1895 = vpack.c.b16 %v1797, %v1790
        %v1896 = vpack.c.b16 %v1805, %v1798
        %v1897 = vpack.c.b16 %v1806, %v1799
        %v1898 = vpack.c.b16 %v1807, %v1800
        %v1899 = vpack.c.b16 %v1808, %v1801
        %v1900 = vpack.c.b16 %v1809, %v1802
        %v1901 = vpack.c.b16 %v1810, %v1803
        %v1902 = vpack.c.b16 %v1811, %v1804
        %v1903 = vpack.c.b16 %v1819, %v1812
        %v1904 = vpack.c.b16 %v1820, %v1813
        %v1905 = vpack.c.b16 %v1821, %v1814
        %v1906 = vpack.c.b16 %v1822, %v1815
        %v1907 = vpack.c.b16 %v1823, %v1816
        %v1908 = vpack.c.b16 %v1824, %v1817
        %v1909 = vpack.c.b16 %v1825, %v1818
        %v1910 = vpack.c.b16 %v1833, %v1826
        %v1911 = vpack.c.b16 %v1834, %v1827
        %v1912 = vpack.c.b16 %v1835, %v1828
        %v1913 = vpack.c.b16 %v1836, %v1829
        %v1914 = vpack.c.b16 %v1837, %v1830
        %v1915 = vpack.c.b16 %v1838, %v1831
        %v1916 = vpack.c.b16 %v1839, %v1832
        %v1917 = vpack.c.b16 %v1847, %v1840
        %v1918 = vpack.c.b16 %v1848, %v1841
        %v1919 = vpack.c.b16 %v1849, %v1842
        %v1920 = vpack.c.b16 %v1850, %v1843
        %v1921 = vpack.c.b16 %v1851, %v1844
        %v1922 = vpack.c.b16 %v1852, %v1845
        %v1923 = vpack.c.b16 %v1853, %v1846
        %v1924 = vpack.c.b16 %v1861, %v1854
        %v1925 = vpack.c.b16 %v1862, %v1855
        %v1926 = vpack.c.b16 %v1863, %v1856
        %v1927 = vpack.c.b16 %v1864, %v1857
        %v1928 = vpack.c.b16 %v1865, %v1858
        %v1929 = vpack.c.b16 %v1866, %v1859
        %v1930 = vpack.c.b16 %v1867, %v1860
        %v1931 = vpack.c.b16 %v1875, %v1868
        %v1932 = vpack.c.b16 %v1876, %v1869
        %v1933 = vpack.c.b16 %v1877, %v1870
        %v1934 = vpack.c.b16 %v1878, %v1871
        %v1935 = vpack.c.b16 %v1879, %v1872
        %v1936 = vpack.c.b16 %v1880, %v1873
        %v1937 = vpack.c.b16 %v1881, %v1874
        %v2378 = vunpack.c.l.b16 %v580
        %v2379 = vunpack.c.h.b16 %v580
        %v2380 = vunpack.c.l.b16 %v581
        %v2381 = vunpack.c.h.b16 %v581
        %v2382 = vunpack.c.l.b16 %v582
        %v2383 = vunpack.c.h.b16 %v582
        %v2384 = vunpack.c.l.b16 %v583
        %v2385 = vunpack.c.h.b16 %v583
        %v2386 = vunpack.c.l.b16 %v584
        %v2387 = vunpack.c.h.b16 %v584
        %v2388 = vunpack.c.l.b16 %v585
        %v2389 = vunpack.c.h.b16 %v585
        %v2390 = vunpack.c.l.b16 %v586
        %v2391 = vunpack.c.h.b16 %v586
        %v2392 = vunpack.c.l.b16 %v587
        %v2393 = vunpack.c.h.b16 %v587
        %v2394 = vunpack.c.l.b16 %v588
        %v2395 = vunpack.c.h.b16 %v588
        %v2396 = vunpack.c.l.b16 %v589
        %v2397 = vunpack.c.h.b16 %v589
        %v2398 = vunpack.c.l.b16 %v590
        %v2399 = vunpack.c.h.b16 %v590
        %v2400 = vunpack.c.l.b16 %v591
        %v2401 = vunpack.c.h.b16 %v591
        %v2402 = vunpack.c.l.b16 %v592
        %v2403 = vunpack.c.h.b16 %v592
        %v2404 = vunpack.c.l.b16 %v593
        %v2405 = vunpack.c.h.b16 %v593
        %v2406 = vunpack.c.l.b16 %v594
        %v2407 = vunpack.c.h.b16 %v594
        %v2408 = vunpack.c.l.b16 %v595
        %v2409 = vunpack.c.h.b16 %v595
        %v2410 = vunpack.c.l.b16 %v596
        %v2411 = vunpack.c.h.b16 %v596
        %v2412 = vunpack.c.l.b16 %v597
        %v2413 = vunpack.c.h.b16 %v597
        %v2414 = vunpack.c.l.b16 %v598
        %v2415 = vunpack.c.h.b16 %v598
        %v2416 = vunpack.c.l.b16 %v599
        %v2417 = vunpack.c.h.b16 %v599
        %v2418 = vunpack.c.l.b16 %v600
        %v2419 = vunpack.c.h.b16 %v600
        %v2420 = vunpack.c.l.b16 %v601
        %v2421 = vunpack.c.h.b16 %v601
        %v2422 = vunpack.c.l.b16 %v602
        %v2423 = vunpack.c.h.b16 %v602
        %v2424 = vunpack.c.l.b16 %v603
        %v2425 = vunpack.c.h.b16 %v603
        %v2426 = vunpack.c.l.b16 %v604
        %v2427 = vunpack.c.h.b16 %v604
        %v2428 = vunpack.c.l.b16 %v605
        %v2429 = vunpack.c.h.b16 %v605
        %v2430 = vunpack.c.l.b16 %v606
        %v2431 = vunpack.c.h.b16 %v606
        %v2432 = vunpack.c.l.b16 %v607
        %v2433 = vunpack.c.h.b16 %v607
        %v2434 = vunpack.c.l.b16 %v608
        %v2435 = vunpack.c.h.b16 %v608
        %v2436 = vunpack.c.l.b16 %v609
        %v2437 = vunpack.c.h.b16 %v609
        %v2438 = vunpack.c.l.b16 %v610
        %v2439 = vunpack.c.h.b16 %v610
        %v2440 = vunpack.c.l.b16 %v611
        %v2441 = vunpack.c.h.b16 %v611
        %v2442 = vunpack.c.l.b16 %v612
        %v2443 = vunpack.c.h.b16 %v612
        %v2444 = vunpack.c.l.b16 %v613
        %v2445 = vunpack.c.h.b16 %v613
        %v2446 = vunpack.c.l.b16 %v614
        %v2447 = vunpack.c.h.b16 %v614
        %v2448 = vunpack.c.l.b16 %v615
        %v2449 = vunpack.c.h.b16 %v615
        %v2450 = vunpack.c.l.b16 %v616
        %v2451 = vunpack.c.h.b16 %v616
        %v2452 = vunpack.c.l.b16 %v617
        %v2453 = vunpack.c.h.b16 %v617
        %v2454 = vunpack.c.l.b16 %v618
        %v2455 = vunpack.c.h.b16 %v618
        %v2456 = vunpack.c.l.b16 %v619
        %v2457 = vunpack.c.h.b16 %v619
        %v2458 = vunpack.c.l.b16 %v620
        %v2459 = vunpack.c.h.b16 %v620
        %v2460 = vunpack.c.l.b16 %v621
        %v2461 = vunpack.c.h.b16 %v621
        %v2462 = vunpack.c.l.b16 %v622
        %v2463 = vunpack.c.h.b16 %v622
        %v2464 = vunpack.c.l.b16 %v623
        %v2465 = vunpack.c.h.b16 %v623
        %v2466 = vunpack.c.l.b16 %v624
        %v2467 = vunpack.c.h.b16 %v624
        %v2468 = vunpack.c.l.b16 %v625
        %v2469 = vunpack.c.h.b16 %v625
        %v2470 = vunpack.c.l.b16 %v626
        %v2471 = vunpack.c.h.b16 %v626
        %v2472 = vunpack.c.l.b16 %v627
        %v2473 = vunpack.c.h.b16 %v627
        %v2474 = vunpack.c.l.b16 %v628
        %v2475 = vunpack.c.h.b16 %v628
        %v2476 = vunpack.c.l.b16 %v629
        %v2477 = vunpack.c.h.b16 %v629
        %v2478 = vunpack.c.l.b16 %v630
        %v2479 = vunpack.c.h.b16 %v630
        %v2480 = vunpack.c.l.b16 %v631
        %v2481 = vunpack.c.h.b16 %v631
        %v2482 = vunpack.c.l.b16 %v632
        %v2483 = vunpack.c.h.b16 %v632
        %v2484 = vunpack.c.l.b16 %v633
        %v2485 = vunpack.c.h.b16 %v633
        %v2486 = vunpack.c.l.b16 %v634
        %v2487 = vunpack.c.h.b16 %v634
        %v2488 = vunpack.c.l.b16 %v635
        %v2489 = vunpack.c.h.b16 %v635
        %v2490 = vunpack.c.l.b16 %v636
        %v2491 = vunpack.c.h.b16 %v636
        %v2492 = vunpack.c.l.b16 %v637
        %v2493 = vunpack.c.h.b16 %v637
        %v2494 = vunpack.c.l.b16 %v638
        %v2495 = vunpack.c.h.b16 %v638
        %v2496 = vunpack.c.l.b16 %v639
        %v2497 = vunpack.c.h.b16 %v639
        %v2498 = vunpack.c.l.b16 %v640
        %v2499 = vunpack.c.h.b16 %v640
        %v2500 = vunpack.c.l.b16 %v641
        %v2501 = vunpack.c.h.b16 %v641
        %v2502 = vunpack.c.l.b16 %v642
        %v2503 = vunpack.c.h.b16 %v642
        %v2504 = vunpack.c.l.b16 %v643
        %v2505 = vunpack.c.h.b16 %v643
        %v2506 = vunpack.c.l.b16 %v644
        %v2507 = vunpack.c.h.b16 %v644
        %v2508 = vunpack.c.l.b16 %v645
        %v2509 = vunpack.c.h.b16 %v645
        %v2510 = vunpack.c.l.b16 %v646
        %v2511 = vunpack.c.h.b16 %v646
        %v2512 = vunpack.c.l.b16 %v647
        %v2513 = vunpack.c.h.b16 %v647
        %v2514 = vunpack.c.l.b16 %v648
        %v2515 = vunpack.c.h.b16 %v648
        %v2516 = vunpack.c.l.b16 %v649
        %v2517 = vunpack.c.h.b16 %v649
        %v2518 = vunpack.c.l.b16 %v650
        %v2519 = vunpack.c.h.b16 %v650
        %v2520 = vunpack.c.l.b16 %v651
        %v2521 = vunpack.c.h.b16 %v651
        %v2522 = vunpack.c.l.b16 %v652
        %v2523 = vunpack.c.h.b16 %v652
        %v2524 = vunpack.c.l.b16 %v653
        %v2525 = vunpack.c.h.b16 %v653
        %v2526 = vunpack.c.l.b16 %v654
        %v2527 = vunpack.c.h.b16 %v654
        %v2528 = vunpack.c.l.b16 %v655
        %v2529 = vunpack.c.h.b16 %v655
        %v2530 = vunpack.c.l.b16 %v656
        %v2531 = vunpack.c.h.b16 %v656
        %v2532 = vunpack.c.l.b16 %v657
        %v2533 = vunpack.c.h.b16 %v657
        %v2534 = vunpack.c.l.b16 %v658
        %v2535 = vunpack.c.h.b16 %v658
        %v2536 = vunpack.c.l.b16 %v659
        %v2537 = vunpack.c.h.b16 %v659
        %v2538 = vunpack.c.l.b16 %v660
        %v2539 = vunpack.c.h.b16 %v660
        %v2540 = vunpack.c.l.b16 %v661
        %v2541 = vunpack.c.h.b16 %v661
        %v2542 = vunpack.c.l.b16 %v662
        %v2543 = vunpack.c.h.b16 %v662
        %v2544 = vunpack.c.l.b16 %v663
        %v2545 = vunpack.c.h.b16 %v663
        %v2546 = vunpack.c.l.b16 %v664
        %v2547 = vunpack.c.h.b16 %v664
        %v2548 = vunpack.c.l.b16 %v665
        %v2549 = vunpack.c.h.b16 %v665
        %v2550 = vunpack.c.l.b16 %v666
        %v2551 = vunpack.c.h.b16 %v666
        %v2552 = vunpack.c.l.b16 %v667
        %v2553 = vunpack.c.h.b16 %v667
        %v2554 = vunpack.c.l.b16 %v668
        %v2555 = vunpack.c.h.b16 %v668
        %v2556 = vunpack.c.l.b16 %v669
        %v2557 = vunpack.c.h.b16 %v669
        %v2558 = vunpack.c.l.b16 %v670
        %v2559 = vunpack.c.h.b16 %v670
        %v2560 = vunpack.c.l.b16 %v671
        %v2561 = vunpack.c.h.b16 %v671
        %v2562 = vunpack.c.l.b16 %v672
        %v2563 = vunpack.c.h.b16 %v672
        %v2564 = vunpack.c.l.b16 %v673
        %v2565 = vunpack.c.h.b16 %v673
        %v2566 = vunpack.c.l.b16 %v674
        %v2567 = vunpack.c.h.b16 %v674
        %v2568 = vunpack.c.l.b16 %v675
        %v2569 = vunpack.c.h.b16 %v675
        %v2570 = vunpack.c.l.b16 %v676
        %v2571 = vunpack.c.h.b16 %v676
        %v2572 = vunpack.c.l.b16 %v677
        %v2573 = vunpack.c.h.b16 %v677
        %v2574 = vunpack.c.l.b16 %v678
        %v2575 = vunpack.c.h.b16 %v678
        %v2576 = vunpack.c.l.b16 %v679
        %v2577 = vunpack.c.h.b16 %v679
        %v2578 = vunpack.c.l.b16 %v680
        %v2579 = vunpack.c.h.b16 %v680
        %v2580 = vunpack.c.l.b16 %v681
        %v2581 = vunpack.c.h.b16 %v681
        %v2582 = vunpack.c.l.b16 %v682
        %v2583 = vunpack.c.h.b16 %v682
        %v2584 = vunpack.c.l.b16 %v683
        %v2585 = vunpack.c.h.b16 %v683
        %v2586 = vunpack.c.l.b16 %v684
        %v2587 = vunpack.c.h.b16 %v684
        %v2588 = vunpack.c.l.b16 %v685
        %v2589 = vunpack.c.h.b16 %v685
        %v2590 = vunpack.c.l.b16 %v686
        %v2591 = vunpack.c.h.b16 %v686
        %v2592 = vunpack.c.l.b16 %v687
        %v2593 = vunpack.c.h.b16 %v687
        %v2594 = vunpack.c.l.b16 %v688
        %v2595 = vunpack.c.h.b16 %v688
        %v2596 = vunpack.c.l.b16 %v689
        %v2597 = vunpack.c.h.b16 %v689
        %v2598 = vunpack.c.l.b16 %v690
        %v2599 = vunpack.c.h.b16 %v690
        %v2600 = vunpack.c.l.b16 %v691
        %v2601 = vunpack.c.h.b16 %v691
        %v2602 = vunpack.c.l.b16 %v692
        %v2603 = vunpack.c.h.b16 %v692
        %v2604 = vunpack.c.l.b16 %v693
        %v2605 = vunpack.c.h.b16 %v693
        %v2606 = vunpack.c.l.b16 %v694
        %v2607 = vunpack.c.h.b16 %v694
        %v2608 = vunpack.c.l.b16 %v695
        %v2609 = vunpack.c.h.b16 %v695
        %v2610 = vunpack.c.l.b16 %v696
        %v2611 = vunpack.c.h.b16 %v696
        %v2612 = vunpack.c.l.b16 %v697
        %v2613 = vunpack.c.h.b16 %v697
        %v2614 = vunpack.c.l.b16 %v698
        %v2615 = vunpack.c.h.b16 %v698
        %v2616 = vunpack.c.l.b16 %v699
        %v2617 = vunpack.c.h.b16 %v699
        %v2618 = vunpack.c.l.b16 %v700
        %v2619 = vunpack.c.h.b16 %v700
        %v2620 = vunpack.c.l.b16 %v701
        %v2621 = vunpack.c.h.b16 %v701
        %v2622 = vunpack.c.l.b16 %v702
        %v2623 = vunpack.c.h.b16 %v702
        %v2624 = vunpack.c.l.b16 %v703
        %v2625 = vunpack.c.h.b16 %v703
        %v2626 = vunpack.c.l.b16 %v704
        %v2627 = vunpack.c.h.b16 %v704
        %v2628 = vunpack.c.l.b16 %v705
        %v2629 = vunpack.c.h.b16 %v705
        %v2630 = vunpack.c.l.b16 %v706
        %v2631 = vunpack.c.h.b16 %v706
        %v2632 = vunpack.c.l.b16 %v707
        %v2633 = vunpack.c.h.b16 %v707
        %v2634 = vunpack.c.l.b16 %v708
        %v2635 = vunpack.c.h.b16 %v708
        %v2636 = vunpack.c.l.b16 %v709
        %v2637 = vunpack.c.h.b16 %v709
        %v2638 = vunpack.c.l.b16 %v710
        %v2639 = vunpack.c.h.b16 %v710
        %v2640 = vunpack.c.l.b16 %v711
        %v2641 = vunpack.c.h.b16 %v711
        %v2642 = vunpack.c.l.b16 %v712
        %v2643 = vunpack.c.h.b16 %v712
        %v2644 = vunpack.c.l.b16 %v713
        %v2645 = vunpack.c.h.b16 %v713
        %v2646 = vunpack.c.l.b16 %v714
        %v2647 = vunpack.c.h.b16 %v714
        %v2648 = vunpack.c.l.b16 %v715
        %v2649 = vunpack.c.h.b16 %v715
        %v2650 = vunpack.c.l.b16 %v716
        %v2651 = vunpack.c.h.b16 %v716
        %v2652 = vunpack.c.l.b16 %v717
        %v2653 = vunpack.c.h.b16 %v717
        %v2654 = vunpack.c.l.b16 %v718
        %v2655 = vunpack.c.h.b16 %v718
        %v2656 = vunpack.c.l.b16 %v719
        %v2657 = vunpack.c.h.b16 %v719
        %v2658 = vunpack.c.l.b16 %v720
        %v2659 = vunpack.c.h.b16 %v720
        %v2660 = vunpack.c.l.b16 %v721
        %v2661 = vunpack.c.h.b16 %v721
        %v2662 = vunpack.c.l.b16 %v722
        %v2663 = vunpack.c.h.b16 %v722
        %v2664 = vunpack.c.l.b16 %v723
        %v2665 = vunpack.c.h.b16 %v723
        %v2666 = vunpack.c.l.b16 %v724
        %v2667 = vunpack.c.h.b16 %v724
        %v2668 = vunpack.c.l.b16 %v725
        %v2669 = vunpack.c.h.b16 %v725
        %v2670 = vunpack.c.l.b16 %v726
        %v2671 = vunpack.c.h.b16 %v726
        %v2672 = vunpack.c.l.b16 %v727
        %v2673 = vunpack.c.h.b16 %v727
        %v2674 = vunpack.c.l.b16 %v728
        %v2675 = vunpack.c.h.b16 %v728
        %v2676 = vunpack.c.l.b16 %v729
        %v2677 = vunpack.c.h.b16 %v729
        %v2678 = vunpack.c.l.b16 %v730
        %v2679 = vunpack.c.h.b16 %v730
        %v2680 = vunpack.c.l.b16 %v731
        %v2681 = vunpack.c.h.b16 %v731
        %v2682 = vunpack.c.l.b16 %v732
        %v2683 = vunpack.c.h.b16 %v732
        %v2684 = vunpack.c.l.b16 %v733
        %v2685 = vunpack.c.h.b16 %v733
        %v2686 = vunpack.c.l.b16 %v734
        %v2687 = vunpack.c.h.b16 %v734
        %v2688 = vunpack.c.l.b16 %v735
        %v2689 = vunpack.c.h.b16 %v735
        %v2690 = vunpack.c.l.b16 %v736
        %v2691 = vunpack.c.h.b16 %v736
        %v2692 = vunpack.c.l.b16 %v737
        %v2693 = vunpack.c.h.b16 %v737
        %v2694 = vunpack.c.l.b16 %v738
        %v2695 = vunpack.c.h.b16 %v738
        %v2696 = vunpack.c.l.b16 %v739
        %v2697 = vunpack.c.h.b16 %v739
        %v2698 = vunpack.c.l.b16 %v740
        %v2699 = vunpack.c.h.b16 %v740
        %v2700 = vunpack.c.l.b16 %v741
        %v2701 = vunpack.c.h.b16 %v741
        %v2702 = vunpack.c.l.b16 %v742
        %v2703 = vunpack.c.h.b16 %v742
        %v2704 = vunpack.c.l.b16 %v743
        %v2705 = vunpack.c.h.b16 %v743
        %v2706 = vunpack.c.l.b16 %v744
        %v2707 = vunpack.c.h.b16 %v744
        %v2708 = vunpack.c.l.b16 %v745
        %v2709 = vunpack.c.h.b16 %v745
        %v2710 = vunpack.c.l.b16 %v746
        %v2711 = vunpack.c.h.b16 %v746
        %v2712 = vunpack.c.l.b16 %v747
        %v2713 = vunpack.c.h.b16 %v747
        %v2714 = vunpack.c.l.b16 %v748
        %v2715 = vunpack.c.h.b16 %v748
        %v2716 = vunpack.c.l.b16 %v749
        %v2717 = vunpack.c.h.b16 %v749
        %v2718 = vunpack.c.l.b16 %v750
        %v2719 = vunpack.c.h.b16 %v750
        %v2720 = vunpack.c.l.b16 %v751
        %v2721 = vunpack.c.h.b16 %v751
        %v2722 = vunpack.c.l.b16 %v752
        %v2723 = vunpack.c.h.b16 %v752
        %v2724 = vunpack.c.l.b16 %v753
        %v2725 = vunpack.c.h.b16 %v753
        %v2726 = vunpack.c.l.b16 %v754
        %v2727 = vunpack.c.h.b16 %v754
        %v2728 = vunpack.c.l.b16 %v755
        %v2729 = vunpack.c.h.b16 %v755
        %v2730 = vunpack.c.l.b16 %v756
        %v2731 = vunpack.c.h.b16 %v756
        %v2732 = vunpack.c.l.b16 %v757
        %v2733 = vunpack.c.h.b16 %v757
        %v2734 = vunpack.c.l.b16 %v758
        %v2735 = vunpack.c.h.b16 %v758
        %v2736 = vunpack.c.l.b16 %v759
        %v2737 = vunpack.c.h.b16 %v759
        %v2738 = vunpack.c.l.b16 %v760
        %v2739 = vunpack.c.h.b16 %v760
        %v2740 = vunpack.c.l.b16 %v761
        %v2741 = vunpack.c.h.b16 %v761
        %v2742 = vunpack.c.l.b16 %v762
        %v2743 = vunpack.c.h.b16 %v762
        %v2744 = vunpack.c.l.b16 %v763
        %v2745 = vunpack.c.h.b16 %v763
        %v2746 = vunpack.c.l.b16 %v764
        %v2747 = vunpack.c.h.b16 %v764
        %v2748 = vunpack.c.l.b16 %v765
        %v2749 = vunpack.c.h.b16 %v765
        %v2750 = vunpack.c.l.b16 %v766
        %v2751 = vunpack.c.h.b16 %v766
        %v2752 = vunpack.c.l.b16 %v767
        %v2753 = vunpack.c.h.b16 %v767
        %v2754 = vunpack.c.l.b16 %v768
        %v2755 = vunpack.c.h.b16 %v768
        %v2756 = vunpack.c.l.b16 %v769
        %v2757 = vunpack.c.h.b16 %v769
        %v2758 = vunpack.c.l.b16 %v770
        %v2759 = vunpack.c.h.b16 %v770
        %v2760 = vunpack.c.l.b16 %v771
        %v2761 = vunpack.c.h.b16 %v771
        %v2762 = vunpack.c.l.b16 %v772
        %v2763 = vunpack.c.h.b16 %v772
        %v2764 = vunpack.c.l.b16 %v773
        %v2765 = vunpack.c.h.b16 %v773
        %v2766 = vunpack.c.l.b16 %v774
        %v2767 = vunpack.c.h.b16 %v774
        %v2768 = vunpack.c.l.b16 %v775
        %v2769 = vunpack.c.h.b16 %v775
        %v2770 = vunpack.c.l.b16 %v776
        %v2771 = vunpack.c.h.b16 %v776
        %v2772 = vunpack.c.l.b16 %v777
        %v2773 = vunpack.c.h.b16 %v777
        %v2774 = vunpack.c.l.b16 %v778
        %v2775 = vunpack.c.h.b16 %v778
        %v2776 = vunpack.c.l.b16 %v779
        %v2777 = vunpack.c.h.b16 %v779
        %v2778 = vunpack.c.l.b16 %v780
        %v2779 = vunpack.c.h.b16 %v780
        %v2780 = vunpack.c.l.b16 %v781
        %v2781 = vunpack.c.h.b16 %v781
        %v2782 = vunpack.c.l.b16 %v782
        %v2783 = vunpack.c.h.b16 %v782
        %v2784 = vunpack.c.l.b16 %v783
        %v2785 = vunpack.c.h.b16 %v783
        %v2786 = vunpack.c.l.b16 %v784
        %v2787 = vunpack.c.h.b16 %v784
        %v2788 = vunpack.c.l.b16 %v785
        %v2789 = vunpack.c.h.b16 %v785
        %v2790 = vunpack.c.l.b16 %v786
        %v2791 = vunpack.c.h.b16 %v786
        %v2792 = vunpack.c.l.b16 %v787
        %v2793 = vunpack.c.h.b16 %v787
        %v2794 = vunpack.c.l.b16 %v788
        %v2795 = vunpack.c.h.b16 %v788
        %v2796 = vunpack.c.l.b16 %v789
        %v2797 = vunpack.c.h.b16 %v789
        %v2798 = vunpack.c.l.b16 %v790
        %v2799 = vunpack.c.h.b16 %v790
        %v2800 = vunpack.c.l.b16 %v791
        %v2801 = vunpack.c.h.b16 %v791
        %v2802 = vunpack.c.l.b16 %v792
        %v2803 = vunpack.c.h.b16 %v792
        %v2804 = vunpack.c.l.b16 %v793
        %v2805 = vunpack.c.h.b16 %v793
        %v2806 = vunpack.c.l.b16 %v794
        %v2807 = vunpack.c.h.b16 %v794
        %v2808 = vunpack.c.l.b16 %v795
        %v2809 = vunpack.c.h.b16 %v795
        %v2810 = vunpack.c.l.b16 %v796
        %v2811 = vunpack.c.h.b16 %v796
        %v2812 = vunpack.c.l.b16 %v797
        %v2813 = vunpack.c.h.b16 %v797
        %v2814 = vunpack.c.l.b16 %v798
        %v2815 = vunpack.c.h.b16 %v798
        %v2816 = vunpack.c.l.b16 %v799
        %v2817 = vunpack.c.h.b16 %v799
        %v2818 = vunpack.c.l.b16 %v800
        %v2819 = vunpack.c.h.b16 %v800
        %v2820 = vunpack.c.l.b16 %v801
        %v2821 = vunpack.c.h.b16 %v801
        %v2822 = vunpack.c.l.b16 %v802
        %v2823 = vunpack.c.h.b16 %v802
        %v2824 = vunpack.c.l.b16 %v803
        %v2825 = vunpack.c.h.b16 %v803
        %v2826 = vunpack.c.l.b16 %v804
        %v2827 = vunpack.c.h.b16 %v804
        %v2828 = vunpack.c.l.b16 %v805
        %v2829 = vunpack.c.h.b16 %v805
        %v2830 = vunpack.c.l.b16 %v806
        %v2831 = vunpack.c.h.b16 %v806
        %v2832 = vunpack.c.l.b16 %v807
        %v2833 = vunpack.c.h.b16 %v807
        %v2834 = vunpack.c.l.b16 %v808
        %v2835 = vunpack.c.h.b16 %v808
        %v2836 = vunpack.c.l.b16 %v809
        %v2837 = vunpack.c.h.b16 %v809
        %v2838 = vunpack.c.l.b16 %v810
        %v2839 = vunpack.c.h.b16 %v810
        %v2840 = vunpack.c.l.b16 %v811
        %v2841 = vunpack.c.h.b16 %v811
        %v2842 = vunpack.c.l.b16 %v812
        %v2843 = vunpack.c.h.b16 %v812
        %v2844 = vunpack.c.l.b16 %v813
        %v2845 = vunpack.c.h.b16 %v813
        %v2846 = vunpack.c.l.b16 %v814
        %v2847 = vunpack.c.h.b16 %v814
        %v2848 = vunpack.c.l.b16 %v815
        %v2849 = vunpack.c.h.b16 %v815
        %v2850 = vunpack.c.l.b16 %v816
        %v2851 = vunpack.c.h.b16 %v816
        %v2852 = vunpack.c.l.b16 %v817
        %v2853 = vunpack.c.h.b16 %v817
        %v2854 = vunpack.c.l.b16 %v818
        %v2855 = vunpack.c.h.b16 %v818
        %v2856 = vunpack.c.l.b16 %v819
        %v2857 = vunpack.c.h.b16 %v819
        %v2858 = vunpack.c.l.b16 %v820
        %v2859 = vunpack.c.h.b16 %v820
        %v2860 = vunpack.c.l.b16 %v821
        %v2861 = vunpack.c.h.b16 %v821
        %v2862 = vunpack.c.l.b16 %v822
        %v2863 = vunpack.c.h.b16 %v822
        %v2864 = vunpack.c.l.b16 %v823
        %v2865 = vunpack.c.h.b16 %v823
        %v2866 = vunpack.c.l.b16 %v824
        %v2867 = vunpack.c.h.b16 %v824
        %v2868 = vunpack.c.l.b16 %v825
        %v2869 = vunpack.c.h.b16 %v825
        %v2870 = vunpack.c.l.b16 %v826
        %v2871 = vunpack.c.h.b16 %v826
        %v2872 = vunpack.c.l.b16 %v827
        %v2873 = vunpack.c.h.b16 %v827
        %v2874 = vunpack.c.l.b16 %v828
        %v2875 = vunpack.c.h.b16 %v828
        %v2876 = vunpack.c.l.b16 %v829
        %v2877 = vunpack.c.h.b16 %v829
        %v2878 = vunpack.c.l.b16 %v830
        %v2879 = vunpack.c.h.b16 %v830
        %v2880 = vunpack.c.l.b16 %v831
        %v2881 = vunpack.c.h.b16 %v831
        %v2882 = vunpack.c.l.b16 %v832
        %v2883 = vunpack.c.h.b16 %v832
        %v2884 = vunpack.c.l.b16 %v833
        %v2885 = vunpack.c.h.b16 %v833
        %v2886 = vunpack.c.l.b16 %v834
        %v2887 = vunpack.c.h.b16 %v834
        %v2888 = vunpack.c.l.b16 %v835
        %v2889 = vunpack.c.h.b16 %v835
        %v2890 = vunpack.c.l.b16 %v836
        %v2891 = vunpack.c.h.b16 %v836
        %v2892 = vunpack.c.l.b16 %v837
        %v2893 = vunpack.c.h.b16 %v837
        %v2894 = vunpack.c.l.b16 %v838
        %v2895 = vunpack.c.h.b16 %v838
        %v2896 = vunpack.c.l.b16 %v839
        %v2897 = vunpack.c.h.b16 %v839
        %v2898 = vunpack.c.l.b16 %v840
        %v2899 = vunpack.c.h.b16 %v840
        %v2900 = vunpack.c.l.b16 %v841
        %v2901 = vunpack.c.h.b16 %v841
        %v2902 = vunpack.c.l.b16 %v842
        %v2903 = vunpack.c.h.b16 %v842
        %v2904 = vunpack.c.l.b16 %v843
        %v2905 = vunpack.c.h.b16 %v843
        %v2906 = vunpack.c.l.b16 %v844
        %v2907 = vunpack.c.h.b16 %v844
        %v2908 = vunpack.c.l.b16 %v845
        %v2909 = vunpack.c.h.b16 %v845
        %v2910 = vunpack.c.l.b16 %v846
        %v2911 = vunpack.c.h.b16 %v846
        %v2912 = vunpack.c.l.b16 %v847
        %v2913 = vunpack.c.h.b16 %v847
        %v2914 = vunpack.c.l.b16 %v848
        %v2915 = vunpack.c.h.b16 %v848
        %v2916 = vunpack.c.l.b16 %v849
        %v2917 = vunpack.c.h.b16 %v849
        %v2918 = vunpack.c.l.b16 %v850
        %v2919 = vunpack.c.h.b16 %v850
        %v2920 = vunpack.c.l.b16 %v851
        %v2921 = vunpack.c.h.b16 %v851
        %v2922 = vunpack.c.l.b16 %v852
        %v2923 = vunpack.c.h.b16 %v852
        %v2924 = vunpack.c.l.b16 %v853
        %v2925 = vunpack.c.h.b16 %v853
        %v2926 = vunpack.c.l.b16 %v854
        %v2927 = vunpack.c.h.b16 %v854
        %v2928 = vunpack.c.l.b16 %v855
        %v2929 = vunpack.c.h.b16 %v855
        %v2930 = vunpack.c.l.b16 %v856
        %v2931 = vunpack.c.h.b16 %v856
        %v2932 = vunpack.c.l.b16 %v857
        %v2933 = vunpack.c.h.b16 %v857
        %v2934 = vunpack.c.l.b16 %v858
        %v2935 = vunpack.c.h.b16 %v858
        %v2936 = vunpack.c.l.b16 %v859
        %v2937 = vunpack.c.h.b16 %v859
        %v2938 = vunpack.c.l.b16 %v860
        %v2939 = vunpack.c.h.b16 %v860
        %v2940 = vunpack.c.l.b16 %v861
        %v2941 = vunpack.c.h.b16 %v861
        %v2942 = vunpack.c.l.b16 %v862
        %v2943 = vunpack.c.h.b16 %v862
        %v2944 = vunpack.c.l.b16 %v863
        %v2945 = vunpack.c.h.b16 %v863
        %v2946 = vunpack.c.l.b16 %v864
        %v2947 = vunpack.c.h.b16 %v864
        %v2948 = vunpack.c.l.b16 %v865
        %v2949 = vunpack.c.h.b16 %v865
        %v2950 = vunpack.c.l.b16 %v866
        %v2951 = vunpack.c.h.b16 %v866
        %v2952 = vunpack.c.l.b16 %v867
        %v2953 = vunpack.c.h.b16 %v867
        %v2954 = vunpack.c.l.b16 %v868
        %v2955 = vunpack.c.h.b16 %v868
        %v2956 = vunpack.c.l.b16 %v869
        %v2957 = vunpack.c.h.b16 %v869
        %v2958 = vunpack.c.l.b16 %v870
        %v2959 = vunpack.c.h.b16 %v870
        %v2960 = vunpack.c.l.b16 %v871
        %v2961 = vunpack.c.h.b16 %v871
        %v2962 = vunpack.c.l.b16 %v872
        %v2963 = vunpack.c.h.b16 %v872
        %v2964 = vunpack.c.l.b16 %v873
        %v2965 = vunpack.c.h.b16 %v873
        %v2966 = vunpack.c.l.b16 %v874
        %v2967 = vunpack.c.h.b16 %v874
        %v2968 = vunpack.c.l.b16 %v875
        %v2969 = vunpack.c.h.b16 %v875
        %v2970 = vunpack.c.l.b16 %v876
        %v2971 = vunpack.c.h.b16 %v876
        %v2972 = vunpack.c.l.b16 %v877
        %v2973 = vunpack.c.h.b16 %v877
        %v2974 = vunpack.c.l.b16 %v878
        %v2975 = vunpack.c.h.b16 %v878
        %v2976 = vunpack.c.l.b16 %v879
        %v2977 = vunpack.c.h.b16 %v879
        %v2978 = vunpack.c.l.b16 %v880
        %v2979 = vunpack.c.h.b16 %v880
        %v2980 = vunpack.c.l.b16 %v881
        %v2981 = vunpack.c.h.b16 %v881
        %v2982 = vunpack.c.l.b16 %v882
        %v2983 = vunpack.c.h.b16 %v882
        %v2984 = vunpack.c.l.b16 %v883
        %v2985 = vunpack.c.h.b16 %v883
        %v2986 = vunpack.c.l.b16 %v884
        %v2987 = vunpack.c.h.b16 %v884
        %v2988 = vunpack.c.l.b16 %v885
        %v2989 = vunpack.c.h.b16 %v885
        %v2990 = vunpack.c.l.b16 %v886
        %v2991 = vunpack.c.h.b16 %v886
        %v2992 = vunpack.c.l.b16 %v887
        %v2993 = vunpack.c.h.b16 %v887
        %v2994 = vunpack.c.l.b16 %v888
        %v2995 = vunpack.c.h.b16 %v888
        %v2996 = vunpack.c.l.b16 %v889
        %v2997 = vunpack.c.h.b16 %v889
        %v2998 = vunpack.c.l.b16 %v890
        %v2999 = vunpack.c.h.b16 %v890
        %v3000 = vunpack.c.l.b16 %v891
        %v3001 = vunpack.c.h.b16 %v891
        %v3002 = vunpack.c.l.b16 %v892
        %v3003 = vunpack.c.h.b16 %v892
        %v3004 = vunpack.c.l.b16 %v893
        %v3005 = vunpack.c.h.b16 %v893
        %v3006 = vunpack.c.l.b16 %v894
        %v3007 = vunpack.c.h.b16 %v894
        %v3008 = vunpack.c.l.b16 %v895
        %v3009 = vunpack.c.h.b16 %v895
        %v3010 = vunpack.c.l.b16 %v896
        %v3011 = vunpack.c.h.b16 %v896
        %v3012 = vunpack.c.l.b16 %v897
        %v3013 = vunpack.c.h.b16 %v897
        %v3014 = vunpack.c.l.b16 %v898
        %v3015 = vunpack.c.h.b16 %v898
        %v3016 = vunpack.c.l.b16 %v899
        %v3017 = vunpack.c.h.b16 %v899
        %v3018 = vunpack.c.l.b16 %v900
        %v3019 = vunpack.c.h.b16 %v900
        %v3020 = vunpack.c.l.b16 %v901
        %v3021 = vunpack.c.h.b16 %v901
        %v3022 = vunpack.c.l.b16 %v902
        %v3023 = vunpack.c.h.b16 %v902
        %v3024 = vunpack.c.l.b16 %v903
        %v3025 = vunpack.c.h.b16 %v903
        %v3026 = vunpack.c.l.b16 %v904
        %v3027 = vunpack.c.h.b16 %v904
        %v3028 = vunpack.c.l.b16 %v905
        %v3029 = vunpack.c.h.b16 %v905
        %v3030 = vunpack.c.l.b16 %v906
        %v3031 = vunpack.c.h.b16 %v906
        %v3032 = vunpack.c.l.b16 %v907
        %v3033 = vunpack.c.h.b16 %v907
        %v3034 = vunpack.c.l.b16 %v908
        %v3035 = vunpack.c.h.b16 %v908
        %v3036 = vunpack.c.l.b16 %v909
        %v3037 = vunpack.c.h.b16 %v909
        %v3038 = vunpack.c.l.b16 %v910
        %v3039 = vunpack.c.h.b16 %v910
        %v3040 = vunpack.c.l.b16 %v911
        %v3041 = vunpack.c.h.b16 %v911
        %v3042 = vunpack.c.l.b16 %v912
        %v3043 = vunpack.c.h.b16 %v912
        %v3044 = vunpack.c.l.b16 %v913
        %v3045 = vunpack.c.h.b16 %v913
        %v3046 = vunpack.c.l.b16 %v914
        %v3047 = vunpack.c.h.b16 %v914
        %v3048 = vunpack.c.l.b16 %v915
        %v3049 = vunpack.c.h.b16 %v915
        %v3050 = vunpack.c.l.b16 %v916
        %v3051 = vunpack.c.h.b16 %v916
        %v3052 = vunpack.c.l.b16 %v917
        %v3053 = vunpack.c.h.b16 %v917
        %v3054 = vunpack.c.l.b16 %v918
        %v3055 = vunpack.c.h.b16 %v918
        %v3056 = vunpack.c.l.b16 %v919
        %v3057 = vunpack.c.h.b16 %v919
        %v3058 = vunpack.c.l.b16 %v920
        %v3059 = vunpack.c.h.b16 %v920
        %v3060 = vunpack.c.l.b16 %v921
        %v3061 = vunpack.c.h.b16 %v921
        %v3062 = vunpack.c.l.b16 %v922
        %v3063 = vunpack.c.h.b16 %v922
        %v3064 = vunpack.c.l.b16 %v923
        %v3065 = vunpack.c.h.b16 %v923
        %v3066 = vunpack.c.l.b16 %v924
        %v3067 = vunpack.c.h.b16 %v924
        %v3068 = vunpack.c.l.b16 %v925
        %v3069 = vunpack.c.h.b16 %v925
        %v3070 = vunpack.c.l.b16 %v926
        %v3071 = vunpack.c.h.b16 %v926
        %v3072 = vunpack.c.l.b16 %v927
        %v3073 = vunpack.c.h.b16 %v927
        %v3074 = vunpack.c.l.b16 %v928
        %v3075 = vunpack.c.h.b16 %v928
        %v3076 = vunpack.c.l.b16 %v929
        %v3077 = vunpack.c.h.b16 %v929
        %v3078 = vunpack.c.l.b16 %v930
        %v3079 = vunpack.c.h.b16 %v930
        %v3080 = vunpack.c.l.b16 %v931
        %v3081 = vunpack.c.h.b16 %v931
        %v3082 = vunpack.c.l.b16 %v932
        %v3083 = vunpack.c.h.b16 %v932
        %v3084 = vunpack.c.l.b16 %v933
        %v3085 = vunpack.c.h.b16 %v933
        %v3086 = vunpack.c.l.b16 %v934
        %v3087 = vunpack.c.h.b16 %v934
        %v3088 = vunpack.c.l.b16 %v935
        %v3089 = vunpack.c.h.b16 %v935
        %v3090 = vunpack.c.l.b16 %v936
        %v3091 = vunpack.c.h.b16 %v936
        %v3092 = vunpack.c.l.b16 %v937
        %v3093 = vunpack.c.h.b16 %v937
        %v3094 = vunpack.c.l.b16 %v938
        %v3095 = vunpack.c.h.b16 %v938
        %v3096 = vunpack.c.l.b16 %v939
        %v3097 = vunpack.c.h.b16 %v939
        %v3098 = vunpack.c.l.b16 %v940
        %v3099 = vunpack.c.h.b16 %v940
        %v3100 = vunpack.c.l.b16 %v941
        %v3101 = vunpack.c.h.b16 %v941
        %v3102 = vunpack.c.l.b16 %v942
        %v3103 = vunpack.c.h.b16 %v942
        %v3104 = vunpack.c.l.b16 %v943
        %v3105 = vunpack.c.h.b16 %v943
        %v3106 = vunpack.c.l.b16 %v944
        %v3107 = vunpack.c.h.b16 %v944
        %v3108 = vunpack.c.l.b16 %v945
        %v3109 = vunpack.c.h.b16 %v945
        %v3110 = vunpack.c.l.b16 %v946
        %v3111 = vunpack.c.h.b16 %v946
        %v3112 = vunpack.c.l.b16 %v947
        %v3113 = vunpack.c.h.b16 %v947
        %v3114 = vunpack.c.l.b16 %v948
        %v3115 = vunpack.c.h.b16 %v948
        %v3116 = vunpack.c.l.b16 %v949
        %v3117 = vunpack.c.h.b16 %v949
        %v3118 = vunpack.c.l.b16 %v950
        %v3119 = vunpack.c.h.b16 %v950
        %v3120 = vunpack.c.l.b16 %v951
        %v3121 = vunpack.c.h.b16 %v951
        %v3122 = vunpack.c.l.b16 %v952
        %v3123 = vunpack.c.h.b16 %v952
        %v3124 = vunpack.c.l.b16 %v953
        %v3125 = vunpack.c.h.b16 %v953
        %v3126 = vunpack.c.l.b16 %v954
        %v3127 = vunpack.c.h.b16 %v954
        %v3128 = vunpack.c.l.b16 %v955
        %v3129 = vunpack.c.h.b16 %v955
        %v3130 = vunpack.c.l.b16 %v956
        %v3131 = vunpack.c.h.b16 %v956
        %v3132 = vunpack.c.l.b16 %v957
        %v3133 = vunpack.c.h.b16 %v957
        %v3134 = vunpack.c.l.b16 %v958
        %v3135 = vunpack.c.h.b16 %v958
        %v3136 = vunpack.c.l.b16 %v959
        %v3137 = vunpack.c.h.b16 %v959
        %v3138 = vunpack.c.l.b16 %v960
        %v3139 = vunpack.c.h.b16 %v960
        %v3140 = vunpack.c.l.b16 %v961
        %v3141 = vunpack.c.h.b16 %v961
        %v3142 = vunpack.c.l.b16 %v962
        %v3143 = vunpack.c.h.b16 %v962
        %v3144 = vunpack.c.l.b16 %v963
        %v3145 = vunpack.c.h.b16 %v963
        %v3146 = vunpack.c.l.b16 %v964
        %v3147 = vunpack.c.h.b16 %v964
        %v3148 = vunpack.c.l.b16 %v965
        %v3149 = vunpack.c.h.b16 %v965
        %v3150 = vunpack.c.l.b16 %v966
        %v3151 = vunpack.c.h.b16 %v966
        %v3152 = vunpack.c.l.b16 %v967
        %v3153 = vunpack.c.h.b16 %v967
        %v3154 = vunpack.c.l.b16 %v968
        %v3155 = vunpack.c.h.b16 %v968
        %v3156 = vunpack.c.l.b16 %v969
        %v3157 = vunpack.c.h.b16 %v969
        %v3158 = vunpack.c.l.b16 %v970
        %v3159 = vunpack.c.h.b16 %v970
        %v3160 = vunpack.c.l.b16 %v971
        %v3161 = vunpack.c.h.b16 %v971
        %v3162 = vpack.c.b16 %v2386, %v2378
        %v3163 = vpack.c.b16 %v2387, %v2379
        %v3164 = vpack.c.b16 %v2388, %v2380
        %v3165 = vpack.c.b16 %v2389, %v2381
        %v3166 = vpack.c.b16 %v2390, %v2382
        %v3167 = vpack.c.b16 %v2391, %v2383
        %v3168 = vpack.c.b16 %v2392, %v2384
        %v3169 = vpack.c.b16 %v2393, %v2385
        %v3170 = vpack.c.b16 %v2402, %v2394
        %v3171 = vpack.c.b16 %v2403, %v2395
        %v3172 = vpack.c.b16 %v2404, %v2396
        %v3173 = vpack.c.b16 %v2405, %v2397
        %v3174 = vpack.c.b16 %v2406, %v2398
        %v3175 = vpack.c.b16 %v2407, %v2399
        %v3176 = vpack.c.b16 %v2408, %v2400
        %v3177 = vpack.c.b16 %v2409, %v2401
        %v3178 = vpack.c.b16 %v2418, %v2410
        %v3179 = vpack.c.b16 %v2419, %v2411
        %v3180 = vpack.c.b16 %v2420, %v2412
        %v3181 = vpack.c.b16 %v2421, %v2413
        %v3182 = vpack.c.b16 %v2422, %v2414
        %v3183 = vpack.c.b16 %v2423, %v2415
        %v3184 = vpack.c.b16 %v2424, %v2416
        %v3185 = vpack.c.b16 %v2425, %v2417
        %v3186 = vpack.c.b16 %v2434, %v2426
        %v3187 = vpack.c.b16 %v2435, %v2427
        %v3188 = vpack.c.b16 %v2436, %v2428
        %v3189 = vpack.c.b16 %v2437, %v2429
        %v3190 = vpack.c.b16 %v2438, %v2430
        %v3191 = vpack.c.b16 %v2439, %v2431
        %v3192 = vpack.c.b16 %v2440, %v2432
        %v3193 = vpack.c.b16 %v2441, %v2433
        %v3194 = vpack.c.b16 %v2450, %v2442
        %v3195 = vpack.c.b16 %v2451, %v2443
        %v3196 = vpack.c.b16 %v2452, %v2444
        %v3197 = vpack.c.b16 %v2453, %v2445
        %v3198 = vpack.c.b16 %v2454, %v2446
        %v3199 = vpack.c.b16 %v2455, %v2447
        %v3200 = vpack.c.b16 %v2456, %v2448
        %v3201 = vpack.c.b16 %v2457, %v2449
        %v3202 = vpack.c.b16 %v2466, %v2458
        %v3203 = vpack.c.b16 %v2467, %v2459
        %v3204 = vpack.c.b16 %v2468, %v2460
        %v3205 = vpack.c.b16 %v2469, %v2461
        %v3206 = vpack.c.b16 %v2470, %v2462
        %v3207 = vpack.c.b16 %v2471, %v2463
        %v3208 = vpack.c.b16 %v2472, %v2464
        %v3209 = vpack.c.b16 %v2473, %v2465
        %v3210 = vpack.c.b16 %v2482, %v2474
        %v3211 = vpack.c.b16 %v2483, %v2475
        %v3212 = vpack.c.b16 %v2484, %v2476
        %v3213 = vpack.c.b16 %v2485, %v2477
        %v3214 = vpack.c.b16 %v2486, %v2478
        %v3215 = vpack.c.b16 %v2487, %v2479
        %v3216 = vpack.c.b16 %v2488, %v2480
        %v3217 = vpack.c.b16 %v2489, %v2481
        %v3218 = vpack.c.b16 %v2498, %v2490
        %v3219 = vpack.c.b16 %v2499, %v2491
        %v3220 = vpack.c.b16 %v2500, %v2492
        %v3221 = vpack.c.b16 %v2501, %v2493
        %v3222 = vpack.c.b16 %v2502, %v2494
        %v3223 = vpack.c.b16 %v2503, %v2495
        %v3224 = vpack.c.b16 %v2504, %v2496
        %v3225 = vpack.c.b16 %v2505, %v2497
        %v3226 = vpack.c.b16 %v2514, %v2506
        %v3227 = vpack.c.b16 %v2515, %v2507
        %v3228 = vpack.c.b16 %v2516, %v2508
        %v3229 = vpack.c.b16 %v2517, %v2509
        %v3230 = vpack.c.b16 %v2518, %v2510
        %v3231 = vpack.c.b16 %v2519, %v2511
        %v3232 = vpack.c.b16 %v2520, %v2512
        %v3233 = vpack.c.b16 %v2521, %v2513
        %v3234 = vpack.c.b16 %v2530, %v2522
        %v3235 = vpack.c.b16 %v2531, %v2523
        %v3236 = vpack.c.b16 %v2532, %v2524
        %v3237 = vpack.c.b16 %v2533, %v2525
        %v3238 = vpack.c.b16 %v2534, %v2526
        %v3239 = vpack.c.b16 %v2535, %v2527
        %v3240 = vpack.c.b16 %v2536, %v2528
        %v3241 = vpack.c.b16 %v2537, %v2529
        %v3242 = vpack.c.b16 %v2546, %v2538
        %v3243 = vpack.c.b16 %v2547, %v2539
        %v3244 = vpack.c.b16 %v2548, %v2540
        %v3245 = vpack.c.b16 %v2549, %v2541
        %v3246 = vpack.c.b16 %v2550, %v2542
        %v3247 = vpack.c.b16 %v2551, %v2543
        %v3248 = vpack.c.b16 %v2552, %v2544
        %v3249 = vpack.c.b16 %v2553, %v2545
        %v3250 = vpack.c.b16 %v2562, %v2554
        %v3251 = vpack.c.b16 %v2563, %v2555
        %v3252 = vpack.c.b16 %v2564, %v2556
        %v3253 = vpack.c.b16 %v2565, %v2557
        %v3254 = vpack.c.b16 %v2566, %v2558
        %v3255 = vpack.c.b16 %v2567, %v2559
        %v3256 = vpack.c.b16 %v2568, %v2560
        %v3257 = vpack.c.b16 %v2569, %v2561
        %v3258 = vpack.c.b16 %v2578, %v2570
        %v3259 = vpack.c.b16 %v2579, %v2571
        %v3260 = vpack.c.b16 %v2580, %v2572
        %v3261 = vpack.c.b16 %v2581, %v2573
        %v3262 = vpack.c.b16 %v2582, %v2574
        %v3263 = vpack.c.b16 %v2583, %v2575
        %v3264 = vpack.c.b16 %v2584, %v2576
        %v3265 = vpack.c.b16 %v2585, %v2577
        %v3266 = vpack.c.b16 %v2594, %v2586
        %v3267 = vpack.c.b16 %v2595, %v2587
        %v3268 = vpack.c.b16 %v2596, %v2588
        %v3269 = vpack.c.b16 %v2597, %v2589
        %v3270 = vpack.c.b16 %v2598, %v2590
        %v3271 = vpack.c.b16 %v2599, %v2591
        %v3272 = vpack.c.b16 %v2600, %v2592
        %v3273 = vpack.c.b16 %v2601, %v2593
        %v3274 = vpack.c.b16 %v2610, %v2602
        %v3275 = vpack.c.b16 %v2611, %v2603
        %v3276 = vpack.c.b16 %v2612, %v2604
        %v3277 = vpack.c.b16 %v2613, %v2605
        %v3278 = vpack.c.b16 %v2614, %v2606
        %v3279 = vpack.c.b16 %v2615, %v2607
        %v3280 = vpack.c.b16 %v2616, %v2608
        %v3281 = vpack.c.b16 %v2617, %v2609
        %v3282 = vpack.c.b16 %v2626, %v2618
        %v3283 = vpack.c.b16 %v2627, %v2619
        %v3284 = vpack.c.b16 %v2628, %v2620
        %v3285 = vpack.c.b16 %v2629, %v2621
        %v3286 = vpack.c.b16 %v2630, %v2622
        %v3287 = vpack.c.b16 %v2631, %v2623
        %v3288 = vpack.c.b16 %v2632, %v2624
        %v3289 = vpack.c.b16 %v2633, %v2625
        %v3290 = vpack.c.b16 %v2642, %v2634
        %v3291 = vpack.c.b16 %v2643, %v2635
        %v3292 = vpack.c.b16 %v2644, %v2636
        %v3293 = vpack.c.b16 %v2645, %v2637
        %v3294 = vpack.c.b16 %v2646, %v2638
        %v3295 = vpack.c.b16 %v2647, %v2639
        %v3296 = vpack.c.b16 %v2648, %v2640
        %v3297 = vpack.c.b16 %v2649, %v2641
        %v3298 = vpack.c.b16 %v2658, %v2650
        %v3299 = vpack.c.b16 %v2659, %v2651
        %v3300 = vpack.c.b16 %v2660, %v2652
        %v3301 = vpack.c.b16 %v2661, %v2653
        %v3302 = vpack.c.b16 %v2662, %v2654
        %v3303 = vpack.c.b16 %v2663, %v2655
        %v3304 = vpack.c.b16 %v2664, %v2656
        %v3305 = vpack.c.b16 %v2665, %v2657
        %v3306 = vpack.c.b16 %v2674, %v2666
        %v3307 = vpack.c.b16 %v2675, %v2667
        %v3308 = vpack.c.b16 %v2676, %v2668
        %v3309 = vpack.c.b16 %v2677, %v2669
        %v3310 = vpack.c.b16 %v2678, %v2670
        %v3311 = vpack.c.b16 %v2679, %v2671
        %v3312 = vpack.c.b16 %v2680, %v2672
        %v3313 = vpack.c.b16 %v2681, %v2673
        %v3314 = vpack.c.b16 %v2690, %v2682
        %v3315 = vpack.c.b16 %v2691, %v2683
        %v3316 = vpack.c.b16 %v2692, %v2684
        %v3317 = vpack.c.b16 %v2693, %v2685
        %v3318 = vpack.c.b16 %v2694, %v2686
        %v3319 = vpack.c.b16 %v2695, %v2687
        %v3320 = vpack.c.b16 %v2696, %v2688
        %v3321 = vpack.c.b16 %v2697, %v2689
        %v3322 = vpack.c.b16 %v2706, %v2698
        %v3323 = vpack.c.b16 %v2707, %v2699
        %v3324 = vpack.c.b16 %v2708, %v2700
        %v3325 = vpack.c.b16 %v2709, %v2701
        %v3326 = vpack.c.b16 %v2710, %v2702
        %v3327 = vpack.c.b16 %v2711, %v2703
        %v3328 = vpack.c.b16 %v2712, %v2704
        %v3329 = vpack.c.b16 %v2713, %v2705
        %v3330 = vpack.c.b16 %v2722, %v2714
        %v3331 = vpack.c.b16 %v2723, %v2715
        %v3332 = vpack.c.b16 %v2724, %v2716
        %v3333 = vpack.c.b16 %v2725, %v2717
        %v3334 = vpack.c.b16 %v2726, %v2718
        %v3335 = vpack.c.b16 %v2727, %v2719
        %v3336 = vpack.c.b16 %v2728, %v2720
        %v3337 = vpack.c.b16 %v2729, %v2721
        %v3338 = vpack.c.b16 %v2738, %v2730
        %v3339 = vpack.c.b16 %v2739, %v2731
        %v3340 = vpack.c.b16 %v2740, %v2732
        %v3341 = vpack.c.b16 %v2741, %v2733
        %v3342 = vpack.c.b16 %v2742, %v2734
        %v3343 = vpack.c.b16 %v2743, %v2735
        %v3344 = vpack.c.b16 %v2744, %v2736
        %v3345 = vpack.c.b16 %v2745, %v2737
        %v3346 = vpack.c.b16 %v2754, %v2746
        %v3347 = vpack.c.b16 %v2755, %v2747
        %v3348 = vpack.c.b16 %v2756, %v2748
        %v3349 = vpack.c.b16 %v2757, %v2749
        %v3350 = vpack.c.b16 %v2758, %v2750
        %v3351 = vpack.c.b16 %v2759, %v2751
        %v3352 = vpack.c.b16 %v2760, %v2752
        %v3353 = vpack.c.b16 %v2761, %v2753
        %v3354 = vpack.c.b16 %v2770, %v2762
        %v3355 = vpack.c.b16 %v2771, %v2763
        %v3356 = vpack.c.b16 %v2772, %v2764
        %v3357 = vpack.c.b16 %v2773, %v2765
        %v3358 = vpack.c.b16 %v2774, %v2766
        %v3359 = vpack.c.b16 %v2775, %v2767
        %v3360 = vpack.c.b16 %v2776, %v2768
        %v3361 = vpack.c.b16 %v2777, %v2769
        %v3362 = vpack.c.b16 %v2786, %v2778
        %v3363 = vpack.c.b16 %v2787, %v2779
        %v3364 = vpack.c.b16 %v2788, %v2780
        %v3365 = vpack.c.b16 %v2789, %v2781
        %v3366 = vpack.c.b16 %v2790, %v2782
        %v3367 = vpack.c.b16 %v2791, %v2783
        %v3368 = vpack.c.b16 %v2792, %v2784
        %v3369 = vpack.c.b16 %v2793, %v2785
        %v3370 = vpack.c.b16 %v2802, %v2794
        %v3371 = vpack.c.b16 %v2803, %v2795
        %v3372 = vpack.c.b16 %v2804, %v2796
        %v3373 = vpack.c.b16 %v2805, %v2797
        %v3374 = vpack.c.b16 %v2806, %v2798
        %v3375 = vpack.c.b16 %v2807, %v2799
        %v3376 = vpack.c.b16 %v2808, %v2800
        %v3377 = vpack.c.b16 %v2809, %v2801
        %v3378 = vpack.c.b16 %v2818, %v2810
        %v3379 = vpack.c.b16 %v2819, %v2811
        %v3380 = vpack.c.b16 %v2820, %v2812
        %v3381 = vpack.c.b16 %v2821, %v2813
        %v3382 = vpack.c.b16 %v2822, %v2814
        %v3383 = vpack.c.b16 %v2823, %v2815
        %v3384 = vpack.c.b16 %v2824, %v2816
        %v3385 = vpack.c.b16 %v2825, %v2817
        %v3386 = vpack.c.b16 %v2834, %v2826
        %v3387 = vpack.c.b16 %v2835, %v2827
        %v3388 = vpack.c.b16 %v2836, %v2828
        %v3389 = vpack.c.b16 %v2837, %v2829
        %v3390 = vpack.c.b16 %v2838, %v2830
        %v3391 = vpack.c.b16 %v2839, %v2831
        %v3392 = vpack.c.b16 %v2840, %v2832
        %v3393 = vpack.c.b16 %v2841, %v2833
        %v3394 = vpack.c.b16 %v2850, %v2842
        %v3395 = vpack.c.b16 %v2851, %v2843
        %v3396 = vpack.c.b16 %v2852, %v2844
        %v3397 = vpack.c.b16 %v2853, %v2845
        %v3398 = vpack.c.b16 %v2854, %v2846
        %v3399 = vpack.c.b16 %v2855, %v2847
        %v3400 = vpack.c.b16 %v2856, %v2848
        %v3401 = vpack.c.b16 %v2857, %v2849
        %v3402 = vpack.c.b16 %v2866, %v2858
        %v3403 = vpack.c.b16 %v2867, %v2859
        %v3404 = vpack.c.b16 %v2868, %v2860
        %v3405 = vpack.c.b16 %v2869, %v2861
        %v3406 = vpack.c.b16 %v2870, %v2862
        %v3407 = vpack.c.b16 %v2871, %v2863
        %v3408 = vpack.c.b16 %v2872, %v2864
        %v3409 = vpack.c.b16 %v2873, %v2865
        %v3410 = vpack.c.b16 %v2882, %v2874
        %v3411 = vpack.c.b16 %v2883, %v2875
        %v3412 = vpack.c.b16 %v2884, %v2876
        %v3413 = vpack.c.b16 %v2885, %v2877
        %v3414 = vpack.c.b16 %v2886, %v2878
        %v3415 = vpack.c.b16 %v2887, %v2879
        %v3416 = vpack.c.b16 %v2888, %v2880
        %v3417 = vpack.c.b16 %v2889, %v2881
        %v3418 = vpack.c.b16 %v2898, %v2890
        %v3419 = vpack.c.b16 %v2899, %v2891
        %v3420 = vpack.c.b16 %v2900, %v2892
        %v3421 = vpack.c.b16 %v2901, %v2893
        %v3422 = vpack.c.b16 %v2902, %v2894
        %v3423 = vpack.c.b16 %v2903, %v2895
        %v3424 = vpack.c.b16 %v2904, %v2896
        %v3425 = vpack.c.b16 %v2905, %v2897
        %v3426 = vpack.c.b16 %v2914, %v2906
        %v3427 = vpack.c.b16 %v2915, %v2907
        %v3428 = vpack.c.b16 %v2916, %v2908
        %v3429 = vpack.c.b16 %v2917, %v2909
        %v3430 = vpack.c.b16 %v2918, %v2910
        %v3431 = vpack.c.b16 %v2919, %v2911
        %v3432 = vpack.c.b16 %v2920, %v2912
        %v3433 = vpack.c.b16 %v2921, %v2913
        %v3434 = vpack.c.b16 %v2930, %v2922
        %v3435 = vpack.c.b16 %v2931, %v2923
        %v3436 = vpack.c.b16 %v2932, %v2924
        %v3437 = vpack.c.b16 %v2933, %v2925
        %v3438 = vpack.c.b16 %v2934, %v2926
        %v3439 = vpack.c.b16 %v2935, %v2927
        %v3440 = vpack.c.b16 %v2936, %v2928
        %v3441 = vpack.c.b16 %v2937, %v2929
        %v3442 = vpack.c.b16 %v2946, %v2938
        %v3443 = vpack.c.b16 %v2947, %v2939
        %v3444 = vpack.c.b16 %v2948, %v2940
        %v3445 = vpack.c.b16 %v2949, %v2941
        %v3446 = vpack.c.b16 %v2950, %v2942
        %v3447 = vpack.c.b16 %v2951, %v2943
        %v3448 = vpack.c.b16 %v2952, %v2944
        %v3449 = vpack.c.b16 %v2953, %v2945
        %v3450 = vpack.c.b16 %v2962, %v2954
        %v3451 = vpack.c.b16 %v2963, %v2955
        %v3452 = vpack.c.b16 %v2964, %v2956
        %v3453 = vpack.c.b16 %v2965, %v2957
        %v3454 = vpack.c.b16 %v2966, %v2958
        %v3455 = vpack.c.b16 %v2967, %v2959
        %v3456 = vpack.c.b16 %v2968, %v2960
        %v3457 = vpack.c.b16 %v2969, %v2961
        %v3458 = vpack.c.b16 %v2978, %v2970
        %v3459 = vpack.c.b16 %v2979, %v2971
        %v3460 = vpack.c.b16 %v2980, %v2972
        %v3461 = vpack.c.b16 %v2981, %v2973
        %v3462 = vpack.c.b16 %v2982, %v2974
        %v3463 = vpack.c.b16 %v2983, %v2975
        %v3464 = vpack.c.b16 %v2984, %v2976
        %v3465 = vpack.c.b16 %v2985, %v2977
        %v3466 = vpack.c.b16 %v2994, %v2986
        %v3467 = vpack.c.b16 %v2995, %v2987
        %v3468 = vpack.c.b16 %v2996, %v2988
        %v3469 = vpack.c.b16 %v2997, %v2989
        %v3470 = vpack.c.b16 %v2998, %v2990
        %v3471 = vpack.c.b16 %v2999, %v2991
        %v3472 = vpack.c.b16 %v3000, %v2992
        %v3473 = vpack.c.b16 %v3001, %v2993
        %v3474 = vpack.c.b16 %v3010, %v3002
        %v3475 = vpack.c.b16 %v3011, %v3003
        %v3476 = vpack.c.b16 %v3012, %v3004
        %v3477 = vpack.c.b16 %v3013, %v3005
        %v3478 = vpack.c.b16 %v3014, %v3006
        %v3479 = vpack.c.b16 %v3015, %v3007
        %v3480 = vpack.c.b16 %v3016, %v3008
        %v3481 = vpack.c.b16 %v3017, %v3009
        %v3482 = vpack.c.b16 %v3026, %v3018
        %v3483 = vpack.c.b16 %v3027, %v3019
        %v3484 = vpack.c.b16 %v3028, %v3020
        %v3485 = vpack.c.b16 %v3029, %v3021
        %v3486 = vpack.c.b16 %v3030, %v3022
        %v3487 = vpack.c.b16 %v3031, %v3023
        %v3488 = vpack.c.b16 %v3032, %v3024
        %v3489 = vpack.c.b16 %v3033, %v3025
        %v3490 = vpack.c.b16 %v3042, %v3034
        %v3491 = vpack.c.b16 %v3043, %v3035
        %v3492 = vpack.c.b16 %v3044, %v3036
        %v3493 = vpack.c.b16 %v3045, %v3037
        %v3494 = vpack.c.b16 %v3046, %v3038
        %v3495 = vpack.c.b16 %v3047, %v3039
        %v3496 = vpack.c.b16 %v3048, %v3040
        %v3497 = vpack.c.b16 %v3049, %v3041
        %v3498 = vpack.c.b16 %v3058, %v3050
        %v3499 = vpack.c.b16 %v3059, %v3051
        %v3500 = vpack.c.b16 %v3060, %v3052
        %v3501 = vpack.c.b16 %v3061, %v3053
        %v3502 = vpack.c.b16 %v3062, %v3054
        %v3503 = vpack.c.b16 %v3063, %v3055
        %v3504 = vpack.c.b16 %v3064, %v3056
        %v3505 = vpack.c.b16 %v3065, %v3057
        %v3506 = vpack.c.b16 %v3074, %v3066
        %v3507 = vpack.c.b16 %v3075, %v3067
        %v3508 = vpack.c.b16 %v3076, %v3068
        %v3509 = vpack.c.b16 %v3077, %v3069
        %v3510 = vpack.c.b16 %v3078, %v3070
        %v3511 = vpack.c.b16 %v3079, %v3071
        %v3512 = vpack.c.b16 %v3080, %v3072
        %v3513 = vpack.c.b16 %v3081, %v3073
        %v3514 = vpack.c.b16 %v3090, %v3082
        %v3515 = vpack.c.b16 %v3091, %v3083
        %v3516 = vpack.c.b16 %v3092, %v3084
        %v3517 = vpack.c.b16 %v3093, %v3085
        %v3518 = vpack.c.b16 %v3094, %v3086
        %v3519 = vpack.c.b16 %v3095, %v3087
        %v3520 = vpack.c.b16 %v3096, %v3088
        %v3521 = vpack.c.b16 %v3097, %v3089
        %v3522 = vpack.c.b16 %v3106, %v3098
        %v3523 = vpack.c.b16 %v3107, %v3099
        %v3524 = vpack.c.b16 %v3108, %v3100
        %v3525 = vpack.c.b16 %v3109, %v3101
        %v3526 = vpack.c.b16 %v3110, %v3102
        %v3527 = vpack.c.b16 %v3111, %v3103
        %v3528 = vpack.c.b16 %v3112, %v3104
        %v3529 = vpack.c.b16 %v3113, %v3105
        %v3530 = vpack.c.b16 %v3122, %v3114
        %v3531 = vpack.c.b16 %v3123, %v3115
        %v3532 = vpack.c.b16 %v3124, %v3116
        %v3533 = vpack.c.b16 %v3125, %v3117
        %v3534 = vpack.c.b16 %v3126, %v3118
        %v3535 = vpack.c.b16 %v3127, %v3119
        %v3536 = vpack.c.b16 %v3128, %v3120
        %v3537 = vpack.c.b16 %v3129, %v3121
        %v3538 = vpack.c.b16 %v3138, %v3130
        %v3539 = vpack.c.b16 %v3139, %v3131
        %v3540 = vpack.c.b16 %v3140, %v3132
        %v3541 = vpack.c.b16 %v3141, %v3133
        %v3542 = vpack.c.b16 %v3142, %v3134
        %v3543 = vpack.c.b16 %v3143, %v3135
        %v3544 = vpack.c.b16 %v3144, %v3136
        %v3545 = vpack.c.b16 %v3145, %v3137
        %v3546 = vpack.c.b16 %v3154, %v3146
        %v3547 = vpack.c.b16 %v3155, %v3147
        %v3548 = vpack.c.b16 %v3156, %v3148
        %v3549 = vpack.c.b16 %v3157, %v3149
        %v3550 = vpack.c.b16 %v3158, %v3150
        %v3551 = vpack.c.b16 %v3159, %v3151
        %v3552 = vpack.c.b16 %v3160, %v3152
        %v3553 = vpack.c.b16 %v3161, %v3153
        %vm3946 = vcmask 130048
        %v3948 = vsel %vm3946, %v1888, 0
        %v3951 = vsel %vm3946, %v1895, 0
        %v3954 = vsel %vm3946, %v1902, 0
        %v3957 = vsel %vm3946, %v1909, 0
        %v3960 = vsel %vm3946, %v1916, 0
        %v3963 = vsel %vm3946, %v1923, 0
        %v3966 = vsel %vm3946, %v1930, 0
        %v3969 = vsel %vm3946, %v1937, 0
        %3971 = vmatprep.subr.bf16.mxu0 %v3219
        %3972 = vmatpush1.bf16.msra.mxu0 %v3218
        %3973 = vmatprep.subr.bf16.mxu0 %v3211
        %3974 = vmatpush1.bf16.msra.mxu0 %v3210
        %3975 = vmatprep.subr.bf16.mxu0 %v3203
        %3976 = vmatpush1.bf16.msra.mxu0 %v3202
        %3977 = vmatprep.subr.bf16.mxu0 %v3195
        %3978 = vmatpush1.bf16.msra.mxu0 %v3194
        %3979 = vmatprep.subr.bf16.mxu0 %v3187
        %3980 = vmatpush1.bf16.msra.mxu0 %v3186
        %3981 = vmatprep.subr.bf16.mxu0 %v3179
        %3982 = vmatpush1.bf16.msra.mxu0 %v3178
        %3983 = vmatprep.subr.bf16.mxu0 %v3171
        %3984 = vmatpush1.bf16.msra.mxu0 %v3170
        %3985 = vmatprep.subr.bf16.mxu0 %v3163
        %3986 = vmatpush1.bf16.msra.mxu0 %v3162
        %3987 = vmatprep.subr.bf16.mxu0 %v3283
        %3988 = vmatpush2.bf16.msra.mxu0 %v3282
        %3989 = vmatprep.subr.bf16.mxu0 %v3275
        %3990 = vmatpush2.bf16.msra.mxu0 %v3274
        %3991 = vmatprep.subr.bf16.mxu0 %v3267
        %3992 = vmatpush2.bf16.msra.mxu0 %v3266
        %3993 = vmatprep.subr.bf16.mxu0 %v3259
        %3994 = vmatpush2.bf16.msra.mxu0 %v3258
        %3995 = vmatprep.subr.bf16.mxu0 %v3251
        %3996 = vmatpush2.bf16.msra.mxu0 %v3250
        %3997 = vmatprep.subr.bf16.mxu0 %v3243
        %3998 = vmatpush2.bf16.msra.mxu0 %v3242
        %3999 = vmatprep.subr.bf16.mxu0 %v3235
        %4000 = vmatpush2.bf16.msra.mxu0 %v3234
        %4001 = vmatprep.subr.bf16.mxu0 %v3227
        %4002 = vmatpush2.bf16.msra.mxu0 %v3226
        %4003 = vmatprep.mubr.bf16.mxu0 %v1883
        %4004 = vmatmul.mubr.bf16.gmra.mxu0 %v1882
        %v4005 = vpop.f32.mrf.mxu0
        %v4006 = vadd.f32 %v1129, %v4005
        %v4007 = vpop.f32.mrf.mxu0
        %v4008 = vadd.f32 %v1131, %v4007
        %v4009 = vpop.f32.mrf.mxu0
        %v4010 = vadd.f32 %v1135, %v4009
        %v4011 = vpop.f32.mrf.mxu0
        %v4012 = vadd.f32 %v1137, %v4011
        %4013 = vmatprep.mubr.bf16.mxu0 %v1890
        %4014 = vmatmul.mubr.bf16.gmra.mxu0 %v1889
        %v4015 = vpop.f32.mrf.mxu0
        %v4016 = vadd.f32 %v1141, %v4015
        %v4017 = vpop.f32.mrf.mxu0
        %v4018 = vadd.f32 %v1143, %v4017
        %v4019 = vpop.f32.mrf.mxu0
        %v4020 = vadd.f32 %v1147, %v4019
        %v4021 = vpop.f32.mrf.mxu0
        %v4022 = vadd.f32 %v1149, %v4021
        %4023 = vmatprep.mubr.bf16.mxu0 %v1897
        %4024 = vmatmul.mubr.bf16.gmra.mxu0 %v1896
        %v4025 = vpop.f32.mrf.mxu0
        %v4026 = vadd.f32 %v1153, %v4025
        %v4027 = vpop.f32.mrf.mxu0
        %v4028 = vadd.f32 %v1155, %v4027
        %v4029 = vpop.f32.mrf.mxu0
        %v4030 = vadd.f32 %v1159, %v4029
        %v4031 = vpop.f32.mrf.mxu0
        %v4032 = vadd.f32 %v1161, %v4031
        %4033 = vmatprep.mubr.bf16.mxu0 %v1904
        %4034 = vmatmul.mubr.bf16.gmra.mxu0 %v1903
        %v4035 = vpop.f32.mrf.mxu0
        %v4036 = vadd.f32 %v1165, %v4035
        %v4037 = vpop.f32.mrf.mxu0
        %v4038 = vadd.f32 %v1167, %v4037
        %v4039 = vpop.f32.mrf.mxu0
        %v4040 = vadd.f32 %v1171, %v4039
        %v4041 = vpop.f32.mrf.mxu0
        %v4042 = vadd.f32 %v1173, %v4041
        %4043 = vmatprep.mubr.bf16.mxu0 %v1911
        %4044 = vmatmul.mubr.bf16.gmra.mxu0 %v1910
        %v4045 = vpop.f32.mrf.mxu0
        %v4046 = vadd.f32 %v1177, %v4045
        %v4047 = vpop.f32.mrf.mxu0
        %v4048 = vadd.f32 %v1179, %v4047
        %v4049 = vpop.f32.mrf.mxu0
        %v4050 = vadd.f32 %v1183, %v4049
        %v4051 = vpop.f32.mrf.mxu0
        %v4052 = vadd.f32 %v1185, %v4051
        %4053 = vmatprep.mubr.bf16.mxu0 %v1918
        %4054 = vmatmul.mubr.bf16.gmra.mxu0 %v1917
        %v4055 = vpop.f32.mrf.mxu0
        %v4056 = vadd.f32 %v1189, %v4055
        %v4057 = vpop.f32.mrf.mxu0
        %v4058 = vadd.f32 %v1191, %v4057
        %v4059 = vpop.f32.mrf.mxu0
        %v4060 = vadd.f32 %v1195, %v4059
        %v4061 = vpop.f32.mrf.mxu0
        %v4062 = vadd.f32 %v1197, %v4061
        %4063 = vmatprep.mubr.bf16.mxu0 %v1925
        %4064 = vmatmul.mubr.bf16.gmra.mxu0 %v1924
        %v4065 = vpop.f32.mrf.mxu0
        %v4066 = vadd.f32 %v1201, %v4065
        %v4067 = vpop.f32.mrf.mxu0
        %v4068 = vadd.f32 %v1203, %v4067
        %v4069 = vpop.f32.mrf.mxu0
        %v4070 = vadd.f32 %v1207, %v4069
        %v4071 = vpop.f32.mrf.mxu0
        %v4072 = vadd.f32 %v1209, %v4071
        %4073 = vmatprep.mubr.bf16.mxu0 %v1932
        %4074 = vmatmul.mubr.bf16.gmra.mxu0 %v1931
        %v4075 = vpop.f32.mrf.mxu0
        %v4076 = vadd.f32 %v1213, %v4075
        %v4077 = vpop.f32.mrf.mxu0
        %v4078 = vadd.f32 %v1215, %v4077
        %v4079 = vpop.f32.mrf.mxu0
        %v4080 = vadd.f32 %v1219, %v4079
        %v4081 = vpop.f32.mrf.mxu0
        %v4082 = vadd.f32 %v1221, %v4081
        %4083 = vdwg.mxu0
        %4084 = vmatprep.subr.bf16.mxu0 %v3347
        %4085 = vmatpush1.bf16.msra.mxu0 %v3346
        %4086 = vmatprep.subr.bf16.mxu0 %v3339
        %4087 = vmatpush1.bf16.msra.mxu0 %v3338
        %4088 = vmatprep.subr.bf16.mxu0 %v3331
        %4089 = vmatpush1.bf16.msra.mxu0 %v3330
        %4090 = vmatprep.subr.bf16.mxu0 %v3323
        %4091 = vmatpush1.bf16.msra.mxu0 %v3322
        %4092 = vmatprep.subr.bf16.mxu0 %v3315
        %4093 = vmatpush1.bf16.msra.mxu0 %v3314
        %4094 = vmatprep.subr.bf16.mxu0 %v3307
        %4095 = vmatpush1.bf16.msra.mxu0 %v3306
        %4096 = vmatprep.subr.bf16.mxu0 %v3299
        %4097 = vmatpush1.bf16.msra.mxu0 %v3298
        %4098 = vmatprep.subr.bf16.mxu0 %v3291
        %4099 = vmatpush1.bf16.msra.mxu0 %v3290
        %4100 = vmatprep.subr.bf16.mxu0 %v3411
        %4101 = vmatpush2.bf16.msra.mxu0 %v3410
        %4102 = vmatprep.subr.bf16.mxu0 %v3403
        %4103 = vmatpush2.bf16.msra.mxu0 %v3402
        %4104 = vmatprep.subr.bf16.mxu0 %v3395
        %4105 = vmatpush2.bf16.msra.mxu0 %v3394
        %4106 = vmatprep.subr.bf16.mxu0 %v3387
        %4107 = vmatpush2.bf16.msra.mxu0 %v3386
        %4108 = vmatprep.subr.bf16.mxu0 %v3379
        %4109 = vmatpush2.bf16.msra.mxu0 %v3378
        %4110 = vmatprep.subr.bf16.mxu0 %v3371
        %4111 = vmatpush2.bf16.msra.mxu0 %v3370
        %4112 = vmatprep.subr.bf16.mxu0 %v3363
        %4113 = vmatpush2.bf16.msra.mxu0 %v3362
        %4114 = vmatprep.subr.bf16.mxu0 %v3355
        %4115 = vmatpush2.bf16.msra.mxu0 %v3354
        %4116 = vmatprep.mubr.bf16.mxu0 %v1885
        %4117 = vmatmul.mubr.bf16.gmra.mxu0 %v1884
        %v4118 = vpop.f32.mrf.mxu0
        %v4119 = vadd.f32 %v4006, %v4118
        %v4120 = vpop.f32.mrf.mxu0
        %v4121 = vadd.f32 %v4008, %v4120
        %v4122 = vpop.f32.mrf.mxu0
        %v4123 = vadd.f32 %v4010, %v4122
        %v4124 = vpop.f32.mrf.mxu0
        %v4125 = vadd.f32 %v4012, %v4124
        %4126 = vmatprep.mubr.bf16.mxu0 %v1892
        %4127 = vmatmul.mubr.bf16.gmra.mxu0 %v1891
        %v4128 = vpop.f32.mrf.mxu0
        %v4129 = vadd.f32 %v4016, %v4128
        %v4130 = vpop.f32.mrf.mxu0
        %v4131 = vadd.f32 %v4018, %v4130
        %v4132 = vpop.f32.mrf.mxu0
        %v4133 = vadd.f32 %v4020, %v4132
        %v4134 = vpop.f32.mrf.mxu0
        %v4135 = vadd.f32 %v4022, %v4134
        %4136 = vmatprep.mubr.bf16.mxu0 %v1899
        %4137 = vmatmul.mubr.bf16.gmra.mxu0 %v1898
        %v4138 = vpop.f32.mrf.mxu0
        %v4139 = vadd.f32 %v4026, %v4138
        %v4140 = vpop.f32.mrf.mxu0
        %v4141 = vadd.f32 %v4028, %v4140
        %v4142 = vpop.f32.mrf.mxu0
        %v4143 = vadd.f32 %v4030, %v4142
        %v4144 = vpop.f32.mrf.mxu0
        %v4145 = vadd.f32 %v4032, %v4144
        %4146 = vmatprep.mubr.bf16.mxu0 %v1906
        %4147 = vmatmul.mubr.bf16.gmra.mxu0 %v1905
        %v4148 = vpop.f32.mrf.mxu0
        %v4149 = vadd.f32 %v4036, %v4148
        %v4150 = vpop.f32.mrf.mxu0
        %v4151 = vadd.f32 %v4038, %v4150
        %v4152 = vpop.f32.mrf.mxu0
        %v4153 = vadd.f32 %v4040, %v4152
        %v4154 = vpop.f32.mrf.mxu0
        %v4155 = vadd.f32 %v4042, %v4154
        %4156 = vmatprep.mubr.bf16.mxu0 %v1913
        %4157 = vmatmul.mubr.bf16.gmra.mxu0 %v1912
        %v4158 = vpop.f32.mrf.mxu0
        %v4159 = vadd.f32 %v4046, %v4158
        %v4160 = vpop.f32.mrf.mxu0
        %v4161 = vadd.f32 %v4048, %v4160
        %v4162 = vpop.f32.mrf.mxu0
        %v4163 = vadd.f32 %v4050, %v4162
        %v4164 = vpop.f32.mrf.mxu0
        %v4165 = vadd.f32 %v4052, %v4164
        %4166 = vmatprep.mubr.bf16.mxu0 %v1920
        %4167 = vmatmul.mubr.bf16.gmra.mxu0 %v1919
        %v4168 = vpop.f32.mrf.mxu0
        %v4169 = vadd.f32 %v4056, %v4168
        %v4170 = vpop.f32.mrf.mxu0
        %v4171 = vadd.f32 %v4058, %v4170
        %v4172 = vpop.f32.mrf.mxu0
        %v4173 = vadd.f32 %v4060, %v4172
        %v4174 = vpop.f32.mrf.mxu0
        %v4175 = vadd.f32 %v4062, %v4174
        %4176 = vmatprep.mubr.bf16.mxu0 %v1927
        %4177 = vmatmul.mubr.bf16.gmra.mxu0 %v1926
        %v4178 = vpop.f32.mrf.mxu0
        %v4179 = vadd.f32 %v4066, %v4178
        %v4180 = vpop.f32.mrf.mxu0
        %v4181 = vadd.f32 %v4068, %v4180
        %v4182 = vpop.f32.mrf.mxu0
        %v4183 = vadd.f32 %v4070, %v4182
        %v4184 = vpop.f32.mrf.mxu0
        %v4185 = vadd.f32 %v4072, %v4184
        %4186 = vmatprep.mubr.bf16.mxu0 %v1934
        %4187 = vmatmul.mubr.bf16.gmra.mxu0 %v1933
        %v4188 = vpop.f32.mrf.mxu0
        %v4189 = vadd.f32 %v4076, %v4188
        %v4190 = vpop.f32.mrf.mxu0
        %v4191 = vadd.f32 %v4078, %v4190
        %v4192 = vpop.f32.mrf.mxu0
        %v4193 = vadd.f32 %v4080, %v4192
        %v4194 = vpop.f32.mrf.mxu0
        %v4195 = vadd.f32 %v4082, %v4194
        %4196 = vdwg.mxu0
        %4197 = vmatprep.subr.bf16.mxu0 %v3475
        %4198 = vmatpush1.bf16.msra.mxu0 %v3474
        %4199 = vmatprep.subr.bf16.mxu0 %v3467
        %4200 = vmatpush1.bf16.msra.mxu0 %v3466
        %4201 = vmatprep.subr.bf16.mxu0 %v3459
        %4202 = vmatpush1.bf16.msra.mxu0 %v3458
        %4203 = vmatprep.subr.bf16.mxu0 %v3451
        %4204 = vmatpush1.bf16.msra.mxu0 %v3450
        %4205 = vmatprep.subr.bf16.mxu0 %v3443
        %4206 = vmatpush1.bf16.msra.mxu0 %v3442
        %4207 = vmatprep.subr.bf16.mxu0 %v3435
        %4208 = vmatpush1.bf16.msra.mxu0 %v3434
        %4209 = vmatprep.subr.bf16.mxu0 %v3427
        %4210 = vmatpush1.bf16.msra.mxu0 %v3426
        %4211 = vmatprep.subr.bf16.mxu0 %v3419
        %4212 = vmatpush1.bf16.msra.mxu0 %v3418
        %4213 = vmatprep.subr.bf16.mxu0 %v3539
        %4214 = vmatpush2.bf16.msra.mxu0 %v3538
        %4215 = vmatprep.subr.bf16.mxu0 %v3531
        %4216 = vmatpush2.bf16.msra.mxu0 %v3530
        %4217 = vmatprep.subr.bf16.mxu0 %v3523
        %4218 = vmatpush2.bf16.msra.mxu0 %v3522
        %4219 = vmatprep.subr.bf16.mxu0 %v3515
        %4220 = vmatpush2.bf16.msra.mxu0 %v3514
        %4221 = vmatprep.subr.bf16.mxu0 %v3507
        %4222 = vmatpush2.bf16.msra.mxu0 %v3506
        %4223 = vmatprep.subr.bf16.mxu0 %v3499
        %4224 = vmatpush2.bf16.msra.mxu0 %v3498
        %4225 = vmatprep.subr.bf16.mxu0 %v3491
        %4226 = vmatpush2.bf16.msra.mxu0 %v3490
        %4227 = vmatprep.subr.bf16.mxu0 %v3483
        %4228 = vmatpush2.bf16.msra.mxu0 %v3482
        %4229 = vmatprep.mubr.bf16.mxu0 %v1887
        %4230 = vmatmul.mubr.bf16.gmra.mxu0 %v1886
        %v4231 = vpop.f32.mrf.mxu0
        %v4232 = vadd.f32 %v4119, %v4231
        %v4233 = vpop.f32.mrf.mxu0
        %v4234 = vadd.f32 %v4121, %v4233
        %v4235 = vpop.f32.mrf.mxu0
        %v4236 = vadd.f32 %v4123, %v4235
        %v4237 = vpop.f32.mrf.mxu0
        %v4238 = vadd.f32 %v4125, %v4237
        %4239 = vmatprep.mubr.bf16.mxu0 %v1894
        %4240 = vmatmul.mubr.bf16.gmra.mxu0 %v1893
        %v4241 = vpop.f32.mrf.mxu0
        %v4242 = vadd.f32 %v4129, %v4241
        %v4243 = vpop.f32.mrf.mxu0
        %v4244 = vadd.f32 %v4131, %v4243
        %v4245 = vpop.f32.mrf.mxu0
        %v4246 = vadd.f32 %v4133, %v4245
        %v4247 = vpop.f32.mrf.mxu0
        %v4248 = vadd.f32 %v4135, %v4247
        %4249 = vmatprep.mubr.bf16.mxu0 %v1901
        %4250 = vmatmul.mubr.bf16.gmra.mxu0 %v1900
        %v4251 = vpop.f32.mrf.mxu0
        %v4252 = vadd.f32 %v4139, %v4251
        %v4253 = vpop.f32.mrf.mxu0
        %v4254 = vadd.f32 %v4141, %v4253
        %v4255 = vpop.f32.mrf.mxu0
        %v4256 = vadd.f32 %v4143, %v4255
        %v4257 = vpop.f32.mrf.mxu0
        %v4258 = vadd.f32 %v4145, %v4257
        %4259 = vmatprep.mubr.bf16.mxu0 %v1908
        %4260 = vmatmul.mubr.bf16.gmra.mxu0 %v1907
        %v4261 = vpop.f32.mrf.mxu0
        %v4262 = vadd.f32 %v4149, %v4261
        %v4263 = vpop.f32.mrf.mxu0
        %v4264 = vadd.f32 %v4151, %v4263
        %v4265 = vpop.f32.mrf.mxu0
        %v4266 = vadd.f32 %v4153, %v4265
        %v4267 = vpop.f32.mrf.mxu0
        %v4268 = vadd.f32 %v4155, %v4267
        %4269 = vmatprep.mubr.bf16.mxu0 %v1915
        %4270 = vmatmul.mubr.bf16.gmra.mxu0 %v1914
        %v4271 = vpop.f32.mrf.mxu0
        %v4272 = vadd.f32 %v4159, %v4271
        %v4273 = vpop.f32.mrf.mxu0
        %v4274 = vadd.f32 %v4161, %v4273
        %v4275 = vpop.f32.mrf.mxu0
        %v4276 = vadd.f32 %v4163, %v4275
        %v4277 = vpop.f32.mrf.mxu0
        %v4278 = vadd.f32 %v4165, %v4277
        %4279 = vmatprep.mubr.bf16.mxu0 %v1922
        %4280 = vmatmul.mubr.bf16.gmra.mxu0 %v1921
        %v4281 = vpop.f32.mrf.mxu0
        %v4282 = vadd.f32 %v4169, %v4281
        %v4283 = vpop.f32.mrf.mxu0
        %v4284 = vadd.f32 %v4171, %v4283
        %v4285 = vpop.f32.mrf.mxu0
        %v4286 = vadd.f32 %v4173, %v4285
        %v4287 = vpop.f32.mrf.mxu0
        %v4288 = vadd.f32 %v4175, %v4287
        %4289 = vmatprep.mubr.bf16.mxu0 %v1929
        %4290 = vmatmul.mubr.bf16.gmra.mxu0 %v1928
        %v4291 = vpop.f32.mrf.mxu0
        %v4292 = vadd.f32 %v4179, %v4291
        %v4293 = vpop.f32.mrf.mxu0
        %v4294 = vadd.f32 %v4181, %v4293
        %v4295 = vpop.f32.mrf.mxu0
        %v4296 = vadd.f32 %v4183, %v4295
        %v4297 = vpop.f32.mrf.mxu0
        %v4298 = vadd.f32 %v4185, %v4297
        %4299 = vmatprep.mubr.bf16.mxu0 %v1936
        %4300 = vmatmul.mubr.bf16.gmra.mxu0 %v1935
        %v4301 = vpop.f32.mrf.mxu0
        %v4302 = vadd.f32 %v4189, %v4301
        %v4303 = vpop.f32.mrf.mxu0
        %v4304 = vadd.f32 %v4191, %v4303
        %v4305 = vpop.f32.mrf.mxu0
        %v4306 = vadd.f32 %v4193, %v4305
        %v4307 = vpop.f32.mrf.mxu0
        %v4308 = vadd.f32 %v4195, %v4307
        %4309 = vdwg.mxu0
        %4310 = vmatprep.subr.bf16.mxu0 0
        %4311 = vmatpush1.bf16.msra.mxu0 0
        %4312 = vmatprep.subr.bf16.mxu0 0
        %4313 = vmatpush1.bf16.msra.mxu0 0
        %4314 = vmatprep.subr.bf16.mxu0 0
        %4315 = vmatpush1.bf16.msra.mxu0 0
        %4316 = vmatprep.subr.bf16.mxu0 0
        %4317 = vmatpush1.bf16.msra.mxu0 0
        %4318 = vmatprep.subr.bf16.mxu0 0
        %4319 = vmatpush1.bf16.msra.mxu0 0
        %4320 = vmatprep.subr.bf16.mxu0 0
        %4321 = vmatpush1.bf16.msra.mxu0 0
        %4322 = vmatprep.subr.bf16.mxu0 0
        %4323 = vmatpush1.bf16.msra.mxu0 0
        %4324 = vmatprep.subr.bf16.mxu0 %v3547
        %4325 = vmatpush1.bf16.msra.mxu0 %v3546
        %4326 = vmatprep.subr.bf16.mxu0 0
        %4327 = vmatpush2.bf16.msra.mxu0 0
        %4328 = vmatprep.subr.bf16.mxu0 0
        %4329 = vmatpush2.bf16.msra.mxu0 0
        %4330 = vmatprep.subr.bf16.mxu0 0
        %4331 = vmatpush2.bf16.msra.mxu0 0
        %4332 = vmatprep.subr.bf16.mxu0 0
        %4333 = vmatpush2.bf16.msra.mxu0 0
        %4334 = vmatprep.subr.bf16.mxu0 0
        %4335 = vmatpush2.bf16.msra.mxu0 0
        %4336 = vmatprep.subr.bf16.mxu0 0
        %4337 = vmatpush2.bf16.msra.mxu0 0
        %4338 = vmatprep.subr.bf16.mxu0 0
        %4339 = vmatpush2.bf16.msra.mxu0 0
        %4340 = vmatprep.subr.bf16.mxu0 0
        %4341 = vmatpush2.bf16.msra.mxu0 0
        %4342 = vmatprep.mubr.bf16.mxu0 0
        %4343 = vmatmul.mubr.bf16.gmra.mxu0 %v3948
        %v4344 = vpop.f32.mrf.mxu0
        %v4345 = vadd.f32 %v4232, %v4344
        %v4346 = vpop.f32.mrf.mxu0
        %v4347 = vadd.f32 %v4234, %v4346
        %v4348 = vpop.f32.mrf.mxu0
        %v4349 = vadd.f32 %v4236, %v4348
        %v4350 = vpop.f32.mrf.mxu0
        %v4351 = vadd.f32 %v4238, %v4350
        %4352 = vmatprep.mubr.bf16.mxu0 0
        %4353 = vmatmul.mubr.bf16.gmra.mxu0 %v3951
        %v4354 = vpop.f32.mrf.mxu0
        %v4355 = vadd.f32 %v4242, %v4354
        %v4356 = vpop.f32.mrf.mxu0
        %v4357 = vadd.f32 %v4244, %v4356
        %v4358 = vpop.f32.mrf.mxu0
        %v4359 = vadd.f32 %v4246, %v4358
        %v4360 = vpop.f32.mrf.mxu0
        %v4361 = vadd.f32 %v4248, %v4360
        %4362 = vmatprep.mubr.bf16.mxu0 0
        %4363 = vmatmul.mubr.bf16.gmra.mxu0 %v3954
        %v4364 = vpop.f32.mrf.mxu0
        %v4365 = vadd.f32 %v4252, %v4364
        %v4366 = vpop.f32.mrf.mxu0
        %v4367 = vadd.f32 %v4254, %v4366
        %v4368 = vpop.f32.mrf.mxu0
        %v4369 = vadd.f32 %v4256, %v4368
        %v4370 = vpop.f32.mrf.mxu0
        %v4371 = vadd.f32 %v4258, %v4370
        %4372 = vmatprep.mubr.bf16.mxu0 0
        %4373 = vmatmul.mubr.bf16.gmra.mxu0 %v3957
        %v4374 = vpop.f32.mrf.mxu0
        %v4375 = vadd.f32 %v4262, %v4374
        %v4376 = vpop.f32.mrf.mxu0
        %v4377 = vadd.f32 %v4264, %v4376
        %v4378 = vpop.f32.mrf.mxu0
        %v4379 = vadd.f32 %v4266, %v4378
        %v4380 = vpop.f32.mrf.mxu0
        %v4381 = vadd.f32 %v4268, %v4380
        %4382 = vmatprep.mubr.bf16.mxu0 0
        %4383 = vmatmul.mubr.bf16.gmra.mxu0 %v3960
        %v4384 = vpop.f32.mrf.mxu0
        %v4385 = vadd.f32 %v4272, %v4384
        %v4386 = vpop.f32.mrf.mxu0
        %v4387 = vadd.f32 %v4274, %v4386
        %v4388 = vpop.f32.mrf.mxu0
        %v4389 = vadd.f32 %v4276, %v4388
        %v4390 = vpop.f32.mrf.mxu0
        %v4391 = vadd.f32 %v4278, %v4390
        %4392 = vmatprep.mubr.bf16.mxu0 0
        %4393 = vmatmul.mubr.bf16.gmra.mxu0 %v3963
        %v4394 = vpop.f32.mrf.mxu0
        %v4395 = vadd.f32 %v4282, %v4394
        %v4396 = vpop.f32.mrf.mxu0
        %v4397 = vadd.f32 %v4284, %v4396
        %v4398 = vpop.f32.mrf.mxu0
        %v4399 = vadd.f32 %v4286, %v4398
        %v4400 = vpop.f32.mrf.mxu0
        %v4401 = vadd.f32 %v4288, %v4400
        %4402 = vmatprep.mubr.bf16.mxu0 0
        %4403 = vmatmul.mubr.bf16.gmra.mxu0 %v3966
        %v4404 = vpop.f32.mrf.mxu0
        %v4405 = vadd.f32 %v4292, %v4404
        %v4406 = vpop.f32.mrf.mxu0
        %v4407 = vadd.f32 %v4294, %v4406
        %v4408 = vpop.f32.mrf.mxu0
        %v4409 = vadd.f32 %v4296, %v4408
        %v4410 = vpop.f32.mrf.mxu0
        %v4411 = vadd.f32 %v4298, %v4410
        %4412 = vmatprep.mubr.bf16.mxu0 0
        %4413 = vmatmul.mubr.bf16.gmra.mxu0 %v3969
        %v4414 = vpop.f32.mrf.mxu0
        %v4415 = vadd.f32 %v4302, %v4414
        %v4416 = vpop.f32.mrf.mxu0
        %v4417 = vadd.f32 %v4304, %v4416
        %v4418 = vpop.f32.mrf.mxu0
        %v4419 = vadd.f32 %v4306, %v4418
        %v4420 = vpop.f32.mrf.mxu0
        %v4421 = vadd.f32 %v4308, %v4420
        %4422 = vdwg.mxu0
        %4423 = vmatprep.subr.bf16.mxu0 %v3221
        %4424 = vmatpush1.bf16.msra.mxu0 %v3220
        %4425 = vmatprep.subr.bf16.mxu0 %v3213
        %4426 = vmatpush1.bf16.msra.mxu0 %v3212
        %4427 = vmatprep.subr.bf16.mxu0 %v3205
        %4428 = vmatpush1.bf16.msra.mxu0 %v3204
        %4429 = vmatprep.subr.bf16.mxu0 %v3197
        %4430 = vmatpush1.bf16.msra.mxu0 %v3196
        %4431 = vmatprep.subr.bf16.mxu0 %v3189
        %4432 = vmatpush1.bf16.msra.mxu0 %v3188
        %4433 = vmatprep.subr.bf16.mxu0 %v3181
        %4434 = vmatpush1.bf16.msra.mxu0 %v3180
        %4435 = vmatprep.subr.bf16.mxu0 %v3173
        %4436 = vmatpush1.bf16.msra.mxu0 %v3172
        %4437 = vmatprep.subr.bf16.mxu0 %v3165
        %4438 = vmatpush1.bf16.msra.mxu0 %v3164
        %4439 = vmatprep.subr.bf16.mxu0 %v3285
        %4440 = vmatpush2.bf16.msra.mxu0 %v3284
        %4441 = vmatprep.subr.bf16.mxu0 %v3277
        %4442 = vmatpush2.bf16.msra.mxu0 %v3276
        %4443 = vmatprep.subr.bf16.mxu0 %v3269
        %4444 = vmatpush2.bf16.msra.mxu0 %v3268
        %4445 = vmatprep.subr.bf16.mxu0 %v3261
        %4446 = vmatpush2.bf16.msra.mxu0 %v3260
        %4447 = vmatprep.subr.bf16.mxu0 %v3253
        %4448 = vmatpush2.bf16.msra.mxu0 %v3252
        %4449 = vmatprep.subr.bf16.mxu0 %v3245
        %4450 = vmatpush2.bf16.msra.mxu0 %v3244
        %4451 = vmatprep.subr.bf16.mxu0 %v3237
        %4452 = vmatpush2.bf16.msra.mxu0 %v3236
        %4453 = vmatprep.subr.bf16.mxu0 %v3229
        %4454 = vmatpush2.bf16.msra.mxu0 %v3228
        %4455 = vmatprep.mubr.bf16.mxu0 %v1883
        %4456 = vmatmul.mubr.bf16.gmra.mxu0 %v1882
        %v4457 = vpop.f32.mrf.mxu0
        %v4458 = vadd.f32 %v1290, %v4457
        %v4459 = vpop.f32.mrf.mxu0
        %v4460 = vadd.f32 %v1292, %v4459
        %v4461 = vpop.f32.mrf.mxu0
        %v4462 = vadd.f32 %v1296, %v4461
        %v4463 = vpop.f32.mrf.mxu0
        %v4464 = vadd.f32 %v1298, %v4463
        %4465 = vmatprep.mubr.bf16.mxu0 %v1890
        %4466 = vmatmul.mubr.bf16.gmra.mxu0 %v1889
        %v4467 = vpop.f32.mrf.mxu0
        %v4468 = vadd.f32 %v1302, %v4467
        %v4469 = vpop.f32.mrf.mxu0
        %v4470 = vadd.f32 %v1304, %v4469
        %v4471 = vpop.f32.mrf.mxu0
        %v4472 = vadd.f32 %v1308, %v4471
        %v4473 = vpop.f32.mrf.mxu0
        %v4474 = vadd.f32 %v1310, %v4473
        %4475 = vmatprep.mubr.bf16.mxu0 %v1897
        %4476 = vmatmul.mubr.bf16.gmra.mxu0 %v1896
        %v4477 = vpop.f32.mrf.mxu0
        %v4478 = vadd.f32 %v1314, %v4477
        %v4479 = vpop.f32.mrf.mxu0
        %v4480 = vadd.f32 %v1316, %v4479
        %v4481 = vpop.f32.mrf.mxu0
        %v4482 = vadd.f32 %v1320, %v4481
        %v4483 = vpop.f32.mrf.mxu0
        %v4484 = vadd.f32 %v1322, %v4483
        %4485 = vmatprep.mubr.bf16.mxu0 %v1904
        %4486 = vmatmul.mubr.bf16.gmra.mxu0 %v1903
        %v4487 = vpop.f32.mrf.mxu0
        %v4488 = vadd.f32 %v1326, %v4487
        %v4489 = vpop.f32.mrf.mxu0
        %v4490 = vadd.f32 %v1328, %v4489
        %v4491 = vpop.f32.mrf.mxu0
        %v4492 = vadd.f32 %v1332, %v4491
        %v4493 = vpop.f32.mrf.mxu0
        %v4494 = vadd.f32 %v1334, %v4493
        %4495 = vmatprep.mubr.bf16.mxu0 %v1911
        %4496 = vmatmul.mubr.bf16.gmra.mxu0 %v1910
        %v4497 = vpop.f32.mrf.mxu0
        %v4498 = vadd.f32 %v1338, %v4497
        %v4499 = vpop.f32.mrf.mxu0
        %v4500 = vadd.f32 %v1340, %v4499
        %v4501 = vpop.f32.mrf.mxu0
        %v4502 = vadd.f32 %v1344, %v4501
        %v4503 = vpop.f32.mrf.mxu0
        %v4504 = vadd.f32 %v1346, %v4503
        %4505 = vmatprep.mubr.bf16.mxu0 %v1918
        %4506 = vmatmul.mubr.bf16.gmra.mxu0 %v1917
        %v4507 = vpop.f32.mrf.mxu0
        %v4508 = vadd.f32 %v1350, %v4507
        %v4509 = vpop.f32.mrf.mxu0
        %v4510 = vadd.f32 %v1352, %v4509
        %v4511 = vpop.f32.mrf.mxu0
        %v4512 = vadd.f32 %v1356, %v4511
        %v4513 = vpop.f32.mrf.mxu0
        %v4514 = vadd.f32 %v1358, %v4513
        %4515 = vmatprep.mubr.bf16.mxu0 %v1925
        %4516 = vmatmul.mubr.bf16.gmra.mxu0 %v1924
        %v4517 = vpop.f32.mrf.mxu0
        %v4518 = vadd.f32 %v1362, %v4517
        %v4519 = vpop.f32.mrf.mxu0
        %v4520 = vadd.f32 %v1364, %v4519
        %v4521 = vpop.f32.mrf.mxu0
        %v4522 = vadd.f32 %v1368, %v4521
        %v4523 = vpop.f32.mrf.mxu0
        %v4524 = vadd.f32 %v1370, %v4523
        %4525 = vmatprep.mubr.bf16.mxu0 %v1932
        %4526 = vmatmul.mubr.bf16.gmra.mxu0 %v1931
        %v4527 = vpop.f32.mrf.mxu0
        %v4528 = vadd.f32 %v1374, %v4527
        %v4529 = vpop.f32.mrf.mxu0
        %v4530 = vadd.f32 %v1376, %v4529
        %v4531 = vpop.f32.mrf.mxu0
        %v4532 = vadd.f32 %v1380, %v4531
        %v4533 = vpop.f32.mrf.mxu0
        %v4534 = vadd.f32 %v1382, %v4533
        %4535 = vdwg.mxu0
        %4536 = vmatprep.subr.bf16.mxu0 %v3349
        %4537 = vmatpush1.bf16.msra.mxu0 %v3348
        %4538 = vmatprep.subr.bf16.mxu0 %v3341
        %4539 = vmatpush1.bf16.msra.mxu0 %v3340
        %4540 = vmatprep.subr.bf16.mxu0 %v3333
        %4541 = vmatpush1.bf16.msra.mxu0 %v3332
        %4542 = vmatprep.subr.bf16.mxu0 %v3325
        %4543 = vmatpush1.bf16.msra.mxu0 %v3324
        %4544 = vmatprep.subr.bf16.mxu0 %v3317
        %4545 = vmatpush1.bf16.msra.mxu0 %v3316
        %4546 = vmatprep.subr.bf16.mxu0 %v3309
        %4547 = vmatpush1.bf16.msra.mxu0 %v3308
        %4548 = vmatprep.subr.bf16.mxu0 %v3301
        %4549 = vmatpush1.bf16.msra.mxu0 %v3300
        %4550 = vmatprep.subr.bf16.mxu0 %v3293
        %4551 = vmatpush1.bf16.msra.mxu0 %v3292
        %4552 = vmatprep.subr.bf16.mxu0 %v3413
        %4553 = vmatpush2.bf16.msra.mxu0 %v3412
        %4554 = vmatprep.subr.bf16.mxu0 %v3405
        %4555 = vmatpush2.bf16.msra.mxu0 %v3404
        %4556 = vmatprep.subr.bf16.mxu0 %v3397
        %4557 = vmatpush2.bf16.msra.mxu0 %v3396
        %4558 = vmatprep.subr.bf16.mxu0 %v3389
        %4559 = vmatpush2.bf16.msra.mxu0 %v3388
        %4560 = vmatprep.subr.bf16.mxu0 %v3381
        %4561 = vmatpush2.bf16.msra.mxu0 %v3380
        %4562 = vmatprep.subr.bf16.mxu0 %v3373
        %4563 = vmatpush2.bf16.msra.mxu0 %v3372
        %4564 = vmatprep.subr.bf16.mxu0 %v3365
        %4565 = vmatpush2.bf16.msra.mxu0 %v3364
        %4566 = vmatprep.subr.bf16.mxu0 %v3357
        %4567 = vmatpush2.bf16.msra.mxu0 %v3356
        %4568 = vmatprep.mubr.bf16.mxu0 %v1885
        %4569 = vmatmul.mubr.bf16.gmra.mxu0 %v1884
        %v4570 = vpop.f32.mrf.mxu0
        %v4571 = vadd.f32 %v4458, %v4570
        %v4572 = vpop.f32.mrf.mxu0
        %v4573 = vadd.f32 %v4460, %v4572
        %v4574 = vpop.f32.mrf.mxu0
        %v4575 = vadd.f32 %v4462, %v4574
        %v4576 = vpop.f32.mrf.mxu0
        %v4577 = vadd.f32 %v4464, %v4576
        %4578 = vmatprep.mubr.bf16.mxu0 %v1892
        %4579 = vmatmul.mubr.bf16.gmra.mxu0 %v1891
        %v4580 = vpop.f32.mrf.mxu0
        %v4581 = vadd.f32 %v4468, %v4580
        %v4582 = vpop.f32.mrf.mxu0
        %v4583 = vadd.f32 %v4470, %v4582
        %v4584 = vpop.f32.mrf.mxu0
        %v4585 = vadd.f32 %v4472, %v4584
        %v4586 = vpop.f32.mrf.mxu0
        %v4587 = vadd.f32 %v4474, %v4586
        %4588 = vmatprep.mubr.bf16.mxu0 %v1899
        %4589 = vmatmul.mubr.bf16.gmra.mxu0 %v1898
        %v4590 = vpop.f32.mrf.mxu0
        %v4591 = vadd.f32 %v4478, %v4590
        %v4592 = vpop.f32.mrf.mxu0
        %v4593 = vadd.f32 %v4480, %v4592
        %v4594 = vpop.f32.mrf.mxu0
        %v4595 = vadd.f32 %v4482, %v4594
        %v4596 = vpop.f32.mrf.mxu0
        %v4597 = vadd.f32 %v4484, %v4596
        %4598 = vmatprep.mubr.bf16.mxu0 %v1906
        %4599 = vmatmul.mubr.bf16.gmra.mxu0 %v1905
        %v4600 = vpop.f32.mrf.mxu0
        %v4601 = vadd.f32 %v4488, %v4600
        %v4602 = vpop.f32.mrf.mxu0
        %v4603 = vadd.f32 %v4490, %v4602
        %v4604 = vpop.f32.mrf.mxu0
        %v4605 = vadd.f32 %v4492, %v4604
        %v4606 = vpop.f32.mrf.mxu0
        %v4607 = vadd.f32 %v4494, %v4606
        %4608 = vmatprep.mubr.bf16.mxu0 %v1913
        %4609 = vmatmul.mubr.bf16.gmra.mxu0 %v1912
        %v4610 = vpop.f32.mrf.mxu0
        %v4611 = vadd.f32 %v4498, %v4610
        %v4612 = vpop.f32.mrf.mxu0
        %v4613 = vadd.f32 %v4500, %v4612
        %v4614 = vpop.f32.mrf.mxu0
        %v4615 = vadd.f32 %v4502, %v4614
        %v4616 = vpop.f32.mrf.mxu0
        %v4617 = vadd.f32 %v4504, %v4616
        %4618 = vmatprep.mubr.bf16.mxu0 %v1920
        %4619 = vmatmul.mubr.bf16.gmra.mxu0 %v1919
        %v4620 = vpop.f32.mrf.mxu0
        %v4621 = vadd.f32 %v4508, %v4620
        %v4622 = vpop.f32.mrf.mxu0
        %v4623 = vadd.f32 %v4510, %v4622
        %v4624 = vpop.f32.mrf.mxu0
        %v4625 = vadd.f32 %v4512, %v4624
        %v4626 = vpop.f32.mrf.mxu0
        %v4627 = vadd.f32 %v4514, %v4626
        %4628 = vmatprep.mubr.bf16.mxu0 %v1927
        %4629 = vmatmul.mubr.bf16.gmra.mxu0 %v1926
        %v4630 = vpop.f32.mrf.mxu0
        %v4631 = vadd.f32 %v4518, %v4630
        %v4632 = vpop.f32.mrf.mxu0
        %v4633 = vadd.f32 %v4520, %v4632
        %v4634 = vpop.f32.mrf.mxu0
        %v4635 = vadd.f32 %v4522, %v4634
        %v4636 = vpop.f32.mrf.mxu0
        %v4637 = vadd.f32 %v4524, %v4636
        %4638 = vmatprep.mubr.bf16.mxu0 %v1934
        %4639 = vmatmul.mubr.bf16.gmra.mxu0 %v1933
        %v4640 = vpop.f32.mrf.mxu0
        %v4641 = vadd.f32 %v4528, %v4640
        %v4642 = vpop.f32.mrf.mxu0
        %v4643 = vadd.f32 %v4530, %v4642
        %v4644 = vpop.f32.mrf.mxu0
        %v4645 = vadd.f32 %v4532, %v4644
        %v4646 = vpop.f32.mrf.mxu0
        %v4647 = vadd.f32 %v4534, %v4646
        %4648 = vdwg.mxu0
        %4649 = vmatprep.subr.bf16.mxu0 %v3477
        %4650 = vmatpush1.bf16.msra.mxu0 %v3476
        %4651 = vmatprep.subr.bf16.mxu0 %v3469
        %4652 = vmatpush1.bf16.msra.mxu0 %v3468
        %4653 = vmatprep.subr.bf16.mxu0 %v3461
        %4654 = vmatpush1.bf16.msra.mxu0 %v3460
        %4655 = vmatprep.subr.bf16.mxu0 %v3453
        %4656 = vmatpush1.bf16.msra.mxu0 %v3452
        %4657 = vmatprep.subr.bf16.mxu0 %v3445
        %4658 = vmatpush1.bf16.msra.mxu0 %v3444
        %4659 = vmatprep.subr.bf16.mxu0 %v3437
        %4660 = vmatpush1.bf16.msra.mxu0 %v3436
        %4661 = vmatprep.subr.bf16.mxu0 %v3429
        %4662 = vmatpush1.bf16.msra.mxu0 %v3428
        %4663 = vmatprep.subr.bf16.mxu0 %v3421
        %4664 = vmatpush1.bf16.msra.mxu0 %v3420
        %4665 = vmatprep.subr.bf16.mxu0 %v3541
        %4666 = vmatpush2.bf16.msra.mxu0 %v3540
        %4667 = vmatprep.subr.bf16.mxu0 %v3533
        %4668 = vmatpush2.bf16.msra.mxu0 %v3532
        %4669 = vmatprep.subr.bf16.mxu0 %v3525
        %4670 = vmatpush2.bf16.msra.mxu0 %v3524
        %4671 = vmatprep.subr.bf16.mxu0 %v3517
        %4672 = vmatpush2.bf16.msra.mxu0 %v3516
        %4673 = vmatprep.subr.bf16.mxu0 %v3509
        %4674 = vmatpush2.bf16.msra.mxu0 %v3508
        %4675 = vmatprep.subr.bf16.mxu0 %v3501
        %4676 = vmatpush2.bf16.msra.mxu0 %v3500
        %4677 = vmatprep.subr.bf16.mxu0 %v3493
        %4678 = vmatpush2.bf16.msra.mxu0 %v3492
        %4679 = vmatprep.subr.bf16.mxu0 %v3485
        %4680 = vmatpush2.bf16.msra.mxu0 %v3484
        %4681 = vmatprep.mubr.bf16.mxu0 %v1887
        %4682 = vmatmul.mubr.bf16.gmra.mxu0 %v1886
        %v4683 = vpop.f32.mrf.mxu0
        %v4684 = vadd.f32 %v4571, %v4683
        %v4685 = vpop.f32.mrf.mxu0
        %v4686 = vadd.f32 %v4573, %v4685
        %v4687 = vpop.f32.mrf.mxu0
        %v4688 = vadd.f32 %v4575, %v4687
        %v4689 = vpop.f32.mrf.mxu0
        %v4690 = vadd.f32 %v4577, %v4689
        %4691 = vmatprep.mubr.bf16.mxu0 %v1894
        %4692 = vmatmul.mubr.bf16.gmra.mxu0 %v1893
        %v4693 = vpop.f32.mrf.mxu0
        %v4694 = vadd.f32 %v4581, %v4693
        %v4695 = vpop.f32.mrf.mxu0
        %v4696 = vadd.f32 %v4583, %v4695
        %v4697 = vpop.f32.mrf.mxu0
        %v4698 = vadd.f32 %v4585, %v4697
        %v4699 = vpop.f32.mrf.mxu0
        %v4700 = vadd.f32 %v4587, %v4699
        %4701 = vmatprep.mubr.bf16.mxu0 %v1901
        %4702 = vmatmul.mubr.bf16.gmra.mxu0 %v1900
        %v4703 = vpop.f32.mrf.mxu0
        %v4704 = vadd.f32 %v4591, %v4703
        %v4705 = vpop.f32.mrf.mxu0
        %v4706 = vadd.f32 %v4593, %v4705
        %v4707 = vpop.f32.mrf.mxu0
        %v4708 = vadd.f32 %v4595, %v4707
        %v4709 = vpop.f32.mrf.mxu0
        %v4710 = vadd.f32 %v4597, %v4709
        %4711 = vmatprep.mubr.bf16.mxu0 %v1908
        %4712 = vmatmul.mubr.bf16.gmra.mxu0 %v1907
        %v4713 = vpop.f32.mrf.mxu0
        %v4714 = vadd.f32 %v4601, %v4713
        %v4715 = vpop.f32.mrf.mxu0
        %v4716 = vadd.f32 %v4603, %v4715
        %v4717 = vpop.f32.mrf.mxu0
        %v4718 = vadd.f32 %v4605, %v4717
        %v4719 = vpop.f32.mrf.mxu0
        %v4720 = vadd.f32 %v4607, %v4719
        %4721 = vmatprep.mubr.bf16.mxu0 %v1915
        %4722 = vmatmul.mubr.bf16.gmra.mxu0 %v1914
        %v4723 = vpop.f32.mrf.mxu0
        %v4724 = vadd.f32 %v4611, %v4723
        %v4725 = vpop.f32.mrf.mxu0
        %v4726 = vadd.f32 %v4613, %v4725
        %v4727 = vpop.f32.mrf.mxu0
        %v4728 = vadd.f32 %v4615, %v4727
        %v4729 = vpop.f32.mrf.mxu0
        %v4730 = vadd.f32 %v4617, %v4729
        %4731 = vmatprep.mubr.bf16.mxu0 %v1922
        %4732 = vmatmul.mubr.bf16.gmra.mxu0 %v1921
        %v4733 = vpop.f32.mrf.mxu0
        %v4734 = vadd.f32 %v4621, %v4733
        %v4735 = vpop.f32.mrf.mxu0
        %v4736 = vadd.f32 %v4623, %v4735
        %v4737 = vpop.f32.mrf.mxu0
        %v4738 = vadd.f32 %v4625, %v4737
        %v4739 = vpop.f32.mrf.mxu0
        %v4740 = vadd.f32 %v4627, %v4739
        %4741 = vmatprep.mubr.bf16.mxu0 %v1929
        %4742 = vmatmul.mubr.bf16.gmra.mxu0 %v1928
        %v4743 = vpop.f32.mrf.mxu0
        %v4744 = vadd.f32 %v4631, %v4743
        %v4745 = vpop.f32.mrf.mxu0
        %v4746 = vadd.f32 %v4633, %v4745
        %v4747 = vpop.f32.mrf.mxu0
        %v4748 = vadd.f32 %v4635, %v4747
        %v4749 = vpop.f32.mrf.mxu0
        %v4750 = vadd.f32 %v4637, %v4749
        %4751 = vmatprep.mubr.bf16.mxu0 %v1936
        %4752 = vmatmul.mubr.bf16.gmra.mxu0 %v1935
        %v4753 = vpop.f32.mrf.mxu0
        %v4754 = vadd.f32 %v4641, %v4753
        %v4755 = vpop.f32.mrf.mxu0
        %v4756 = vadd.f32 %v4643, %v4755
        %v4757 = vpop.f32.mrf.mxu0
        %v4758 = vadd.f32 %v4645, %v4757
        %v4759 = vpop.f32.mrf.mxu0
        %v4760 = vadd.f32 %v4647, %v4759
        %4761 = vdwg.mxu0
        %4762 = vmatprep.subr.bf16.mxu0 0
        %4763 = vmatpush1.bf16.msra.mxu0 0
        %4764 = vmatprep.subr.bf16.mxu0 0
        %4765 = vmatpush1.bf16.msra.mxu0 0
        %4766 = vmatprep.subr.bf16.mxu0 0
        %4767 = vmatpush1.bf16.msra.mxu0 0
        %4768 = vmatprep.subr.bf16.mxu0 0
        %4769 = vmatpush1.bf16.msra.mxu0 0
        %4770 = vmatprep.subr.bf16.mxu0 0
        %4771 = vmatpush1.bf16.msra.mxu0 0
        %4772 = vmatprep.subr.bf16.mxu0 0
        %4773 = vmatpush1.bf16.msra.mxu0 0
        %4774 = vmatprep.subr.bf16.mxu0 0
        %4775 = vmatpush1.bf16.msra.mxu0 0
        %4776 = vmatprep.subr.bf16.mxu0 %v3549
        %4777 = vmatpush1.bf16.msra.mxu0 %v3548
        %4778 = vmatprep.subr.bf16.mxu0 0
        %4779 = vmatpush2.bf16.msra.mxu0 0
        %4780 = vmatprep.subr.bf16.mxu0 0
        %4781 = vmatpush2.bf16.msra.mxu0 0
        %4782 = vmatprep.subr.bf16.mxu0 0
        %4783 = vmatpush2.bf16.msra.mxu0 0
        %4784 = vmatprep.subr.bf16.mxu0 0
        %4785 = vmatpush2.bf16.msra.mxu0 0
        %4786 = vmatprep.subr.bf16.mxu0 0
        %4787 = vmatpush2.bf16.msra.mxu0 0
        %4788 = vmatprep.subr.bf16.mxu0 0
        %4789 = vmatpush2.bf16.msra.mxu0 0
        %4790 = vmatprep.subr.bf16.mxu0 0
        %4791 = vmatpush2.bf16.msra.mxu0 0
        %4792 = vmatprep.subr.bf16.mxu0 0
        %4793 = vmatpush2.bf16.msra.mxu0 0
        %4794 = vmatprep.mubr.bf16.mxu0 0
        %4795 = vmatmul.mubr.bf16.gmra.mxu0 %v3948
        %v4796 = vpop.f32.mrf.mxu0
        %v4797 = vadd.f32 %v4684, %v4796
        %v4798 = vpop.f32.mrf.mxu0
        %v4799 = vadd.f32 %v4686, %v4798
        %v4800 = vpop.f32.mrf.mxu0
        %v4801 = vadd.f32 %v4688, %v4800
        %v4802 = vpop.f32.mrf.mxu0
        %v4803 = vadd.f32 %v4690, %v4802
        %4804 = vmatprep.mubr.bf16.mxu0 0
        %4805 = vmatmul.mubr.bf16.gmra.mxu0 %v3951
        %v4806 = vpop.f32.mrf.mxu0
        %v4807 = vadd.f32 %v4694, %v4806
        %v4808 = vpop.f32.mrf.mxu0
        %v4809 = vadd.f32 %v4696, %v4808
        %v4810 = vpop.f32.mrf.mxu0
        %v4811 = vadd.f32 %v4698, %v4810
        %v4812 = vpop.f32.mrf.mxu0
        %v4813 = vadd.f32 %v4700, %v4812
        %4814 = vmatprep.mubr.bf16.mxu0 0
        %4815 = vmatmul.mubr.bf16.gmra.mxu0 %v3954
        %v4816 = vpop.f32.mrf.mxu0
        %v4817 = vadd.f32 %v4704, %v4816
        %v4818 = vpop.f32.mrf.mxu0
        %v4819 = vadd.f32 %v4706, %v4818
        %v4820 = vpop.f32.mrf.mxu0
        %v4821 = vadd.f32 %v4708, %v4820
        %v4822 = vpop.f32.mrf.mxu0
        %v4823 = vadd.f32 %v4710, %v4822
        %4824 = vmatprep.mubr.bf16.mxu0 0
        %4825 = vmatmul.mubr.bf16.gmra.mxu0 %v3957
        %v4826 = vpop.f32.mrf.mxu0
        %v4827 = vadd.f32 %v4714, %v4826
        %v4828 = vpop.f32.mrf.mxu0
        %v4829 = vadd.f32 %v4716, %v4828
        %v4830 = vpop.f32.mrf.mxu0
        %v4831 = vadd.f32 %v4718, %v4830
        %v4832 = vpop.f32.mrf.mxu0
        %v4833 = vadd.f32 %v4720, %v4832
        %4834 = vmatprep.mubr.bf16.mxu0 0
        %4835 = vmatmul.mubr.bf16.gmra.mxu0 %v3960
        %v4836 = vpop.f32.mrf.mxu0
        %v4837 = vadd.f32 %v4724, %v4836
        %v4838 = vpop.f32.mrf.mxu0
        %v4839 = vadd.f32 %v4726, %v4838
        %v4840 = vpop.f32.mrf.mxu0
        %v4841 = vadd.f32 %v4728, %v4840
        %v4842 = vpop.f32.mrf.mxu0
        %v4843 = vadd.f32 %v4730, %v4842
        %4844 = vmatprep.mubr.bf16.mxu0 0
        %4845 = vmatmul.mubr.bf16.gmra.mxu0 %v3963
        %v4846 = vpop.f32.mrf.mxu0
        %v4847 = vadd.f32 %v4734, %v4846
        %v4848 = vpop.f32.mrf.mxu0
        %v4849 = vadd.f32 %v4736, %v4848
        %v4850 = vpop.f32.mrf.mxu0
        %v4851 = vadd.f32 %v4738, %v4850
        %v4852 = vpop.f32.mrf.mxu0
        %v4853 = vadd.f32 %v4740, %v4852
        %4854 = vmatprep.mubr.bf16.mxu0 0
        %4855 = vmatmul.mubr.bf16.gmra.mxu0 %v3966
        %v4856 = vpop.f32.mrf.mxu0
        %v4857 = vadd.f32 %v4744, %v4856
        %v4858 = vpop.f32.mrf.mxu0
        %v4859 = vadd.f32 %v4746, %v4858
        %v4860 = vpop.f32.mrf.mxu0
        %v4861 = vadd.f32 %v4748, %v4860
        %v4862 = vpop.f32.mrf.mxu0
        %v4863 = vadd.f32 %v4750, %v4862
        %4864 = vmatprep.mubr.bf16.mxu0 0
        %4865 = vmatmul.mubr.bf16.gmra.mxu0 %v3969
        %v4866 = vpop.f32.mrf.mxu0
        %v4867 = vadd.f32 %v4754, %v4866
        %v4868 = vpop.f32.mrf.mxu0
        %v4869 = vadd.f32 %v4756, %v4868
        %v4870 = vpop.f32.mrf.mxu0
        %v4871 = vadd.f32 %v4758, %v4870
        %v4872 = vpop.f32.mrf.mxu0
        %v4873 = vadd.f32 %v4760, %v4872
        %4874 = vdwg.mxu0
        %4875 = vmatprep.subr.bf16.mxu0 %v3223
        %4876 = vmatpush1.bf16.msra.mxu0 %v3222
        %4877 = vmatprep.subr.bf16.mxu0 %v3215
        %4878 = vmatpush1.bf16.msra.mxu0 %v3214
        %4879 = vmatprep.subr.bf16.mxu0 %v3207
        %4880 = vmatpush1.bf16.msra.mxu0 %v3206
        %4881 = vmatprep.subr.bf16.mxu0 %v3199
        %4882 = vmatpush1.bf16.msra.mxu0 %v3198
        %4883 = vmatprep.subr.bf16.mxu0 %v3191
        %4884 = vmatpush1.bf16.msra.mxu0 %v3190
        %4885 = vmatprep.subr.bf16.mxu0 %v3183
        %4886 = vmatpush1.bf16.msra.mxu0 %v3182
        %4887 = vmatprep.subr.bf16.mxu0 %v3175
        %4888 = vmatpush1.bf16.msra.mxu0 %v3174
        %4889 = vmatprep.subr.bf16.mxu0 %v3167
        %4890 = vmatpush1.bf16.msra.mxu0 %v3166
        %4891 = vmatprep.subr.bf16.mxu0 %v3287
        %4892 = vmatpush2.bf16.msra.mxu0 %v3286
        %4893 = vmatprep.subr.bf16.mxu0 %v3279
        %4894 = vmatpush2.bf16.msra.mxu0 %v3278
        %4895 = vmatprep.subr.bf16.mxu0 %v3271
        %4896 = vmatpush2.bf16.msra.mxu0 %v3270
        %4897 = vmatprep.subr.bf16.mxu0 %v3263
        %4898 = vmatpush2.bf16.msra.mxu0 %v3262
        %4899 = vmatprep.subr.bf16.mxu0 %v3255
        %4900 = vmatpush2.bf16.msra.mxu0 %v3254
        %4901 = vmatprep.subr.bf16.mxu0 %v3247
        %4902 = vmatpush2.bf16.msra.mxu0 %v3246
        %4903 = vmatprep.subr.bf16.mxu0 %v3239
        %4904 = vmatpush2.bf16.msra.mxu0 %v3238
        %4905 = vmatprep.subr.bf16.mxu0 %v3231
        %4906 = vmatpush2.bf16.msra.mxu0 %v3230
        %4907 = vmatprep.mubr.bf16.mxu0 %v1883
        %4908 = vmatmul.mubr.bf16.gmra.mxu0 %v1882
        %v4909 = vpop.f32.mrf.mxu0
        %v4910 = vadd.f32 %v1451, %v4909
        %v4911 = vpop.f32.mrf.mxu0
        %v4912 = vadd.f32 %v1453, %v4911
        %v4913 = vpop.f32.mrf.mxu0
        %v4914 = vadd.f32 %v1457, %v4913
        %v4915 = vpop.f32.mrf.mxu0
        %v4916 = vadd.f32 %v1459, %v4915
        %4917 = vmatprep.mubr.bf16.mxu0 %v1890
        %4918 = vmatmul.mubr.bf16.gmra.mxu0 %v1889
        %v4919 = vpop.f32.mrf.mxu0
        %v4920 = vadd.f32 %v1463, %v4919
        %v4921 = vpop.f32.mrf.mxu0
        %v4922 = vadd.f32 %v1465, %v4921
        %v4923 = vpop.f32.mrf.mxu0
        %v4924 = vadd.f32 %v1469, %v4923
        %v4925 = vpop.f32.mrf.mxu0
        %v4926 = vadd.f32 %v1471, %v4925
        %4927 = vmatprep.mubr.bf16.mxu0 %v1897
        %4928 = vmatmul.mubr.bf16.gmra.mxu0 %v1896
        %v4929 = vpop.f32.mrf.mxu0
        %v4930 = vadd.f32 %v1475, %v4929
        %v4931 = vpop.f32.mrf.mxu0
        %v4932 = vadd.f32 %v1477, %v4931
        %v4933 = vpop.f32.mrf.mxu0
        %v4934 = vadd.f32 %v1481, %v4933
        %v4935 = vpop.f32.mrf.mxu0
        %v4936 = vadd.f32 %v1483, %v4935
        %4937 = vmatprep.mubr.bf16.mxu0 %v1904
        %4938 = vmatmul.mubr.bf16.gmra.mxu0 %v1903
        %v4939 = vpop.f32.mrf.mxu0
        %v4940 = vadd.f32 %v1487, %v4939
        %v4941 = vpop.f32.mrf.mxu0
        %v4942 = vadd.f32 %v1489, %v4941
        %v4943 = vpop.f32.mrf.mxu0
        %v4944 = vadd.f32 %v1493, %v4943
        %v4945 = vpop.f32.mrf.mxu0
        %v4946 = vadd.f32 %v1495, %v4945
        %4947 = vmatprep.mubr.bf16.mxu0 %v1911
        %4948 = vmatmul.mubr.bf16.gmra.mxu0 %v1910
        %v4949 = vpop.f32.mrf.mxu0
        %v4950 = vadd.f32 %v1499, %v4949
        %v4951 = vpop.f32.mrf.mxu0
        %v4952 = vadd.f32 %v1501, %v4951
        %v4953 = vpop.f32.mrf.mxu0
        %v4954 = vadd.f32 %v1505, %v4953
        %v4955 = vpop.f32.mrf.mxu0
        %v4956 = vadd.f32 %v1507, %v4955
        %4957 = vmatprep.mubr.bf16.mxu0 %v1918
        %4958 = vmatmul.mubr.bf16.gmra.mxu0 %v1917
        %v4959 = vpop.f32.mrf.mxu0
        %v4960 = vadd.f32 %v1511, %v4959
        %v4961 = vpop.f32.mrf.mxu0
        %v4962 = vadd.f32 %v1513, %v4961
        %v4963 = vpop.f32.mrf.mxu0
        %v4964 = vadd.f32 %v1517, %v4963
        %v4965 = vpop.f32.mrf.mxu0
        %v4966 = vadd.f32 %v1519, %v4965
        %4967 = vmatprep.mubr.bf16.mxu0 %v1925
        %4968 = vmatmul.mubr.bf16.gmra.mxu0 %v1924
        %v4969 = vpop.f32.mrf.mxu0
        %v4970 = vadd.f32 %v1523, %v4969
        %v4971 = vpop.f32.mrf.mxu0
        %v4972 = vadd.f32 %v1525, %v4971
        %v4973 = vpop.f32.mrf.mxu0
        %v4974 = vadd.f32 %v1529, %v4973
        %v4975 = vpop.f32.mrf.mxu0
        %v4976 = vadd.f32 %v1531, %v4975
        %4977 = vmatprep.mubr.bf16.mxu0 %v1932
        %4978 = vmatmul.mubr.bf16.gmra.mxu0 %v1931
        %v4979 = vpop.f32.mrf.mxu0
        %v4980 = vadd.f32 %v1535, %v4979
        %v4981 = vpop.f32.mrf.mxu0
        %v4982 = vadd.f32 %v1537, %v4981
        %v4983 = vpop.f32.mrf.mxu0
        %v4984 = vadd.f32 %v1541, %v4983
        %v4985 = vpop.f32.mrf.mxu0
        %v4986 = vadd.f32 %v1543, %v4985
        %4987 = vdwg.mxu0
        %4988 = vmatprep.subr.bf16.mxu0 %v3351
        %4989 = vmatpush1.bf16.msra.mxu0 %v3350
        %4990 = vmatprep.subr.bf16.mxu0 %v3343
        %4991 = vmatpush1.bf16.msra.mxu0 %v3342
        %4992 = vmatprep.subr.bf16.mxu0 %v3335
        %4993 = vmatpush1.bf16.msra.mxu0 %v3334
        %4994 = vmatprep.subr.bf16.mxu0 %v3327
        %4995 = vmatpush1.bf16.msra.mxu0 %v3326
        %4996 = vmatprep.subr.bf16.mxu0 %v3319
        %4997 = vmatpush1.bf16.msra.mxu0 %v3318
        %4998 = vmatprep.subr.bf16.mxu0 %v3311
        %4999 = vmatpush1.bf16.msra.mxu0 %v3310
        %5000 = vmatprep.subr.bf16.mxu0 %v3303
        %5001 = vmatpush1.bf16.msra.mxu0 %v3302
        %5002 = vmatprep.subr.bf16.mxu0 %v3295
        %5003 = vmatpush1.bf16.msra.mxu0 %v3294
        %5004 = vmatprep.subr.bf16.mxu0 %v3415
        %5005 = vmatpush2.bf16.msra.mxu0 %v3414
        %5006 = vmatprep.subr.bf16.mxu0 %v3407
        %5007 = vmatpush2.bf16.msra.mxu0 %v3406
        %5008 = vmatprep.subr.bf16.mxu0 %v3399
        %5009 = vmatpush2.bf16.msra.mxu0 %v3398
        %5010 = vmatprep.subr.bf16.mxu0 %v3391
        %5011 = vmatpush2.bf16.msra.mxu0 %v3390
        %5012 = vmatprep.subr.bf16.mxu0 %v3383
        %5013 = vmatpush2.bf16.msra.mxu0 %v3382
        %5014 = vmatprep.subr.bf16.mxu0 %v3375
        %5015 = vmatpush2.bf16.msra.mxu0 %v3374
        %5016 = vmatprep.subr.bf16.mxu0 %v3367
        %5017 = vmatpush2.bf16.msra.mxu0 %v3366
        %5018 = vmatprep.subr.bf16.mxu0 %v3359
        %5019 = vmatpush2.bf16.msra.mxu0 %v3358
        %5020 = vmatprep.mubr.bf16.mxu0 %v1885
        %5021 = vmatmul.mubr.bf16.gmra.mxu0 %v1884
        %v5022 = vpop.f32.mrf.mxu0
        %v5023 = vadd.f32 %v4910, %v5022
        %v5024 = vpop.f32.mrf.mxu0
        %v5025 = vadd.f32 %v4912, %v5024
        %v5026 = vpop.f32.mrf.mxu0
        %v5027 = vadd.f32 %v4914, %v5026
        %v5028 = vpop.f32.mrf.mxu0
        %v5029 = vadd.f32 %v4916, %v5028
        %5030 = vmatprep.mubr.bf16.mxu0 %v1892
        %5031 = vmatmul.mubr.bf16.gmra.mxu0 %v1891
        %v5032 = vpop.f32.mrf.mxu0
        %v5033 = vadd.f32 %v4920, %v5032
        %v5034 = vpop.f32.mrf.mxu0
        %v5035 = vadd.f32 %v4922, %v5034
        %v5036 = vpop.f32.mrf.mxu0
        %v5037 = vadd.f32 %v4924, %v5036
        %v5038 = vpop.f32.mrf.mxu0
        %v5039 = vadd.f32 %v4926, %v5038
        %5040 = vmatprep.mubr.bf16.mxu0 %v1899
        %5041 = vmatmul.mubr.bf16.gmra.mxu0 %v1898
        %v5042 = vpop.f32.mrf.mxu0
        %v5043 = vadd.f32 %v4930, %v5042
        %v5044 = vpop.f32.mrf.mxu0
        %v5045 = vadd.f32 %v4932, %v5044
        %v5046 = vpop.f32.mrf.mxu0
        %v5047 = vadd.f32 %v4934, %v5046
        %v5048 = vpop.f32.mrf.mxu0
        %v5049 = vadd.f32 %v4936, %v5048
        %5050 = vmatprep.mubr.bf16.mxu0 %v1906
        %5051 = vmatmul.mubr.bf16.gmra.mxu0 %v1905
        %v5052 = vpop.f32.mrf.mxu0
        %v5053 = vadd.f32 %v4940, %v5052
        %v5054 = vpop.f32.mrf.mxu0
        %v5055 = vadd.f32 %v4942, %v5054
        %v5056 = vpop.f32.mrf.mxu0
        %v5057 = vadd.f32 %v4944, %v5056
        %v5058 = vpop.f32.mrf.mxu0
        %v5059 = vadd.f32 %v4946, %v5058
        %5060 = vmatprep.mubr.bf16.mxu0 %v1913
        %5061 = vmatmul.mubr.bf16.gmra.mxu0 %v1912
        %v5062 = vpop.f32.mrf.mxu0
        %v5063 = vadd.f32 %v4950, %v5062
        %v5064 = vpop.f32.mrf.mxu0
        %v5065 = vadd.f32 %v4952, %v5064
        %v5066 = vpop.f32.mrf.mxu0
        %v5067 = vadd.f32 %v4954, %v5066
        %v5068 = vpop.f32.mrf.mxu0
        %v5069 = vadd.f32 %v4956, %v5068
        %5070 = vmatprep.mubr.bf16.mxu0 %v1920
        %5071 = vmatmul.mubr.bf16.gmra.mxu0 %v1919
        %v5072 = vpop.f32.mrf.mxu0
        %v5073 = vadd.f32 %v4960, %v5072
        %v5074 = vpop.f32.mrf.mxu0
        %v5075 = vadd.f32 %v4962, %v5074
        %v5076 = vpop.f32.mrf.mxu0
        %v5077 = vadd.f32 %v4964, %v5076
        %v5078 = vpop.f32.mrf.mxu0
        %v5079 = vadd.f32 %v4966, %v5078
        %5080 = vmatprep.mubr.bf16.mxu0 %v1927
        %5081 = vmatmul.mubr.bf16.gmra.mxu0 %v1926
        %v5082 = vpop.f32.mrf.mxu0
        %v5083 = vadd.f32 %v4970, %v5082
        %v5084 = vpop.f32.mrf.mxu0
        %v5085 = vadd.f32 %v4972, %v5084
        %v5086 = vpop.f32.mrf.mxu0
        %v5087 = vadd.f32 %v4974, %v5086
        %v5088 = vpop.f32.mrf.mxu0
        %v5089 = vadd.f32 %v4976, %v5088
        %5090 = vmatprep.mubr.bf16.mxu0 %v1934
        %5091 = vmatmul.mubr.bf16.gmra.mxu0 %v1933
        %v5092 = vpop.f32.mrf.mxu0
        %v5093 = vadd.f32 %v4980, %v5092
        %v5094 = vpop.f32.mrf.mxu0
        %v5095 = vadd.f32 %v4982, %v5094
        %v5096 = vpop.f32.mrf.mxu0
        %v5097 = vadd.f32 %v4984, %v5096
        %v5098 = vpop.f32.mrf.mxu0
        %v5099 = vadd.f32 %v4986, %v5098
        %5100 = vdwg.mxu0
        %5101 = vmatprep.subr.bf16.mxu0 %v3479
        %5102 = vmatpush1.bf16.msra.mxu0 %v3478
        %5103 = vmatprep.subr.bf16.mxu0 %v3471
        %5104 = vmatpush1.bf16.msra.mxu0 %v3470
        %5105 = vmatprep.subr.bf16.mxu0 %v3463
        %5106 = vmatpush1.bf16.msra.mxu0 %v3462
        %5107 = vmatprep.subr.bf16.mxu0 %v3455
        %5108 = vmatpush1.bf16.msra.mxu0 %v3454
        %5109 = vmatprep.subr.bf16.mxu0 %v3447
        %5110 = vmatpush1.bf16.msra.mxu0 %v3446
        %5111 = vmatprep.subr.bf16.mxu0 %v3439
        %5112 = vmatpush1.bf16.msra.mxu0 %v3438
        %5113 = vmatprep.subr.bf16.mxu0 %v3431
        %5114 = vmatpush1.bf16.msra.mxu0 %v3430
        %5115 = vmatprep.subr.bf16.mxu0 %v3423
        %5116 = vmatpush1.bf16.msra.mxu0 %v3422
        %5117 = vmatprep.subr.bf16.mxu0 %v3543
        %5118 = vmatpush2.bf16.msra.mxu0 %v3542
        %5119 = vmatprep.subr.bf16.mxu0 %v3535
        %5120 = vmatpush2.bf16.msra.mxu0 %v3534
        %5121 = vmatprep.subr.bf16.mxu0 %v3527
        %5122 = vmatpush2.bf16.msra.mxu0 %v3526
        %5123 = vmatprep.subr.bf16.mxu0 %v3519
        %5124 = vmatpush2.bf16.msra.mxu0 %v3518
        %5125 = vmatprep.subr.bf16.mxu0 %v3511
        %5126 = vmatpush2.bf16.msra.mxu0 %v3510
        %5127 = vmatprep.subr.bf16.mxu0 %v3503
        %5128 = vmatpush2.bf16.msra.mxu0 %v3502
        %5129 = vmatprep.subr.bf16.mxu0 %v3495
        %5130 = vmatpush2.bf16.msra.mxu0 %v3494
        %5131 = vmatprep.subr.bf16.mxu0 %v3487
        %5132 = vmatpush2.bf16.msra.mxu0 %v3486
        %5133 = vmatprep.mubr.bf16.mxu0 %v1887
        %5134 = vmatmul.mubr.bf16.gmra.mxu0 %v1886
        %v5135 = vpop.f32.mrf.mxu0
        %v5136 = vadd.f32 %v5023, %v5135
        %v5137 = vpop.f32.mrf.mxu0
        %v5138 = vadd.f32 %v5025, %v5137
        %v5139 = vpop.f32.mrf.mxu0
        %v5140 = vadd.f32 %v5027, %v5139
        %v5141 = vpop.f32.mrf.mxu0
        %v5142 = vadd.f32 %v5029, %v5141
        %5143 = vmatprep.mubr.bf16.mxu0 %v1894
        %5144 = vmatmul.mubr.bf16.gmra.mxu0 %v1893
        %v5145 = vpop.f32.mrf.mxu0
        %v5146 = vadd.f32 %v5033, %v5145
        %v5147 = vpop.f32.mrf.mxu0
        %v5148 = vadd.f32 %v5035, %v5147
        %v5149 = vpop.f32.mrf.mxu0
        %v5150 = vadd.f32 %v5037, %v5149
        %v5151 = vpop.f32.mrf.mxu0
        %v5152 = vadd.f32 %v5039, %v5151
        %5153 = vmatprep.mubr.bf16.mxu0 %v1901
        %5154 = vmatmul.mubr.bf16.gmra.mxu0 %v1900
        %v5155 = vpop.f32.mrf.mxu0
        %v5156 = vadd.f32 %v5043, %v5155
        %v5157 = vpop.f32.mrf.mxu0
        %v5158 = vadd.f32 %v5045, %v5157
        %v5159 = vpop.f32.mrf.mxu0
        %v5160 = vadd.f32 %v5047, %v5159
        %v5161 = vpop.f32.mrf.mxu0
        %v5162 = vadd.f32 %v5049, %v5161
        %5163 = vmatprep.mubr.bf16.mxu0 %v1908
        %5164 = vmatmul.mubr.bf16.gmra.mxu0 %v1907
        %v5165 = vpop.f32.mrf.mxu0
        %v5166 = vadd.f32 %v5053, %v5165
        %v5167 = vpop.f32.mrf.mxu0
        %v5168 = vadd.f32 %v5055, %v5167
        %v5169 = vpop.f32.mrf.mxu0
        %v5170 = vadd.f32 %v5057, %v5169
        %v5171 = vpop.f32.mrf.mxu0
        %v5172 = vadd.f32 %v5059, %v5171
        %5173 = vmatprep.mubr.bf16.mxu0 %v1915
        %5174 = vmatmul.mubr.bf16.gmra.mxu0 %v1914
        %v5175 = vpop.f32.mrf.mxu0
        %v5176 = vadd.f32 %v5063, %v5175
        %v5177 = vpop.f32.mrf.mxu0
        %v5178 = vadd.f32 %v5065, %v5177
        %v5179 = vpop.f32.mrf.mxu0
        %v5180 = vadd.f32 %v5067, %v5179
        %v5181 = vpop.f32.mrf.mxu0
        %v5182 = vadd.f32 %v5069, %v5181
        %5183 = vmatprep.mubr.bf16.mxu0 %v1922
        %5184 = vmatmul.mubr.bf16.gmra.mxu0 %v1921
        %v5185 = vpop.f32.mrf.mxu0
        %v5186 = vadd.f32 %v5073, %v5185
        %v5187 = vpop.f32.mrf.mxu0
        %v5188 = vadd.f32 %v5075, %v5187
        %v5189 = vpop.f32.mrf.mxu0
        %v5190 = vadd.f32 %v5077, %v5189
        %v5191 = vpop.f32.mrf.mxu0
        %v5192 = vadd.f32 %v5079, %v5191
        %5193 = vmatprep.mubr.bf16.mxu0 %v1929
        %5194 = vmatmul.mubr.bf16.gmra.mxu0 %v1928
        %v5195 = vpop.f32.mrf.mxu0
        %v5196 = vadd.f32 %v5083, %v5195
        %v5197 = vpop.f32.mrf.mxu0
        %v5198 = vadd.f32 %v5085, %v5197
        %v5199 = vpop.f32.mrf.mxu0
        %v5200 = vadd.f32 %v5087, %v5199
        %v5201 = vpop.f32.mrf.mxu0
        %v5202 = vadd.f32 %v5089, %v5201
        %5203 = vmatprep.mubr.bf16.mxu0 %v1936
        %5204 = vmatmul.mubr.bf16.gmra.mxu0 %v1935
        %v5205 = vpop.f32.mrf.mxu0
        %v5206 = vadd.f32 %v5093, %v5205
        %v5207 = vpop.f32.mrf.mxu0
        %v5208 = vadd.f32 %v5095, %v5207
        %v5209 = vpop.f32.mrf.mxu0
        %v5210 = vadd.f32 %v5097, %v5209
        %v5211 = vpop.f32.mrf.mxu0
        %v5212 = vadd.f32 %v5099, %v5211
        %5213 = vdwg.mxu0
        %5214 = vmatprep.subr.bf16.mxu0 0
        %5215 = vmatpush1.bf16.msra.mxu0 0
        %5216 = vmatprep.subr.bf16.mxu0 0
        %5217 = vmatpush1.bf16.msra.mxu0 0
        %5218 = vmatprep.subr.bf16.mxu0 0
        %5219 = vmatpush1.bf16.msra.mxu0 0
        %5220 = vmatprep.subr.bf16.mxu0 0
        %5221 = vmatpush1.bf16.msra.mxu0 0
        %5222 = vmatprep.subr.bf16.mxu0 0
        %5223 = vmatpush1.bf16.msra.mxu0 0
        %5224 = vmatprep.subr.bf16.mxu0 0
        %5225 = vmatpush1.bf16.msra.mxu0 0
        %5226 = vmatprep.subr.bf16.mxu0 0
        %5227 = vmatpush1.bf16.msra.mxu0 0
        %5228 = vmatprep.subr.bf16.mxu0 %v3551
        %5229 = vmatpush1.bf16.msra.mxu0 %v3550
        %5230 = vmatprep.subr.bf16.mxu0 0
        %5231 = vmatpush2.bf16.msra.mxu0 0
        %5232 = vmatprep.subr.bf16.mxu0 0
        %5233 = vmatpush2.bf16.msra.mxu0 0
        %5234 = vmatprep.subr.bf16.mxu0 0
        %5235 = vmatpush2.bf16.msra.mxu0 0
        %5236 = vmatprep.subr.bf16.mxu0 0
        %5237 = vmatpush2.bf16.msra.mxu0 0
        %5238 = vmatprep.subr.bf16.mxu0 0
        %5239 = vmatpush2.bf16.msra.mxu0 0
        %5240 = vmatprep.subr.bf16.mxu0 0
        %5241 = vmatpush2.bf16.msra.mxu0 0
        %5242 = vmatprep.subr.bf16.mxu0 0
        %5243 = vmatpush2.bf16.msra.mxu0 0
        %5244 = vmatprep.subr.bf16.mxu0 0
        %5245 = vmatpush2.bf16.msra.mxu0 0
        %5246 = vmatprep.mubr.bf16.mxu0 0
        %5247 = vmatmul.mubr.bf16.gmra.mxu0 %v3948
        %v5248 = vpop.f32.mrf.mxu0
        %v5249 = vadd.f32 %v5136, %v5248
        %v5250 = vpop.f32.mrf.mxu0
        %v5251 = vadd.f32 %v5138, %v5250
        %v5252 = vpop.f32.mrf.mxu0
        %v5253 = vadd.f32 %v5140, %v5252
        %v5254 = vpop.f32.mrf.mxu0
        %v5255 = vadd.f32 %v5142, %v5254
        %5256 = vmatprep.mubr.bf16.mxu0 0
        %5257 = vmatmul.mubr.bf16.gmra.mxu0 %v3951
        %v5258 = vpop.f32.mrf.mxu0
        %v5259 = vadd.f32 %v5146, %v5258
        %v5260 = vpop.f32.mrf.mxu0
        %v5261 = vadd.f32 %v5148, %v5260
        %v5262 = vpop.f32.mrf.mxu0
        %v5263 = vadd.f32 %v5150, %v5262
        %v5264 = vpop.f32.mrf.mxu0
        %v5265 = vadd.f32 %v5152, %v5264
        %5266 = vmatprep.mubr.bf16.mxu0 0
        %5267 = vmatmul.mubr.bf16.gmra.mxu0 %v3954
        %v5268 = vpop.f32.mrf.mxu0
        %v5269 = vadd.f32 %v5156, %v5268
        %v5270 = vpop.f32.mrf.mxu0
        %v5271 = vadd.f32 %v5158, %v5270
        %v5272 = vpop.f32.mrf.mxu0
        %v5273 = vadd.f32 %v5160, %v5272
        %v5274 = vpop.f32.mrf.mxu0
        %v5275 = vadd.f32 %v5162, %v5274
        %5276 = vmatprep.mubr.bf16.mxu0 0
        %5277 = vmatmul.mubr.bf16.gmra.mxu0 %v3957
        %v5278 = vpop.f32.mrf.mxu0
        %v5279 = vadd.f32 %v5166, %v5278
        %v5280 = vpop.f32.mrf.mxu0
        %v5281 = vadd.f32 %v5168, %v5280
        %v5282 = vpop.f32.mrf.mxu0
        %v5283 = vadd.f32 %v5170, %v5282
        %v5284 = vpop.f32.mrf.mxu0
        %v5285 = vadd.f32 %v5172, %v5284
        %5286 = vmatprep.mubr.bf16.mxu0 0
        %5287 = vmatmul.mubr.bf16.gmra.mxu0 %v3960
        %v5288 = vpop.f32.mrf.mxu0
        %v5289 = vadd.f32 %v5176, %v5288
        %v5290 = vpop.f32.mrf.mxu0
        %v5291 = vadd.f32 %v5178, %v5290
        %v5292 = vpop.f32.mrf.mxu0
        %v5293 = vadd.f32 %v5180, %v5292
        %v5294 = vpop.f32.mrf.mxu0
        %v5295 = vadd.f32 %v5182, %v5294
        %5296 = vmatprep.mubr.bf16.mxu0 0
        %5297 = vmatmul.mubr.bf16.gmra.mxu0 %v3963
        %v5298 = vpop.f32.mrf.mxu0
        %v5299 = vadd.f32 %v5186, %v5298
        %v5300 = vpop.f32.mrf.mxu0
        %v5301 = vadd.f32 %v5188, %v5300
        %v5302 = vpop.f32.mrf.mxu0
        %v5303 = vadd.f32 %v5190, %v5302
        %v5304 = vpop.f32.mrf.mxu0
        %v5305 = vadd.f32 %v5192, %v5304
        %5306 = vmatprep.mubr.bf16.mxu0 0
        %5307 = vmatmul.mubr.bf16.gmra.mxu0 %v3966
        %v5308 = vpop.f32.mrf.mxu0
        %v5309 = vadd.f32 %v5196, %v5308
        %v5310 = vpop.f32.mrf.mxu0
        %v5311 = vadd.f32 %v5198, %v5310
        %v5312 = vpop.f32.mrf.mxu0
        %v5313 = vadd.f32 %v5200, %v5312
        %v5314 = vpop.f32.mrf.mxu0
        %v5315 = vadd.f32 %v5202, %v5314
        %5316 = vmatprep.mubr.bf16.mxu0 0
        %5317 = vmatmul.mubr.bf16.gmra.mxu0 %v3969
        %v5318 = vpop.f32.mrf.mxu0
        %v5319 = vadd.f32 %v5206, %v5318
        %v5320 = vpop.f32.mrf.mxu0
        %v5321 = vadd.f32 %v5208, %v5320
        %v5322 = vpop.f32.mrf.mxu0
        %v5323 = vadd.f32 %v5210, %v5322
        %v5324 = vpop.f32.mrf.mxu0
        %v5325 = vadd.f32 %v5212, %v5324
        %5326 = vdwg.mxu0
        %5327 = vmatprep.subr.bf16.mxu0 %v3225
        %5328 = vmatpush1.bf16.msra.mxu0 %v3224
        %5329 = vmatprep.subr.bf16.mxu0 %v3217
        %5330 = vmatpush1.bf16.msra.mxu0 %v3216
        %5331 = vmatprep.subr.bf16.mxu0 %v3209
        %5332 = vmatpush1.bf16.msra.mxu0 %v3208
        %5333 = vmatprep.subr.bf16.mxu0 %v3201
        %5334 = vmatpush1.bf16.msra.mxu0 %v3200
        %5335 = vmatprep.subr.bf16.mxu0 %v3193
        %5336 = vmatpush1.bf16.msra.mxu0 %v3192
        %5337 = vmatprep.subr.bf16.mxu0 %v3185
        %5338 = vmatpush1.bf16.msra.mxu0 %v3184
        %5339 = vmatprep.subr.bf16.mxu0 %v3177
        %5340 = vmatpush1.bf16.msra.mxu0 %v3176
        %5341 = vmatprep.subr.bf16.mxu0 %v3169
        %5342 = vmatpush1.bf16.msra.mxu0 %v3168
        %5343 = vmatprep.subr.bf16.mxu0 %v3289
        %5344 = vmatpush2.bf16.msra.mxu0 %v3288
        %5345 = vmatprep.subr.bf16.mxu0 %v3281
        %5346 = vmatpush2.bf16.msra.mxu0 %v3280
        %5347 = vmatprep.subr.bf16.mxu0 %v3273
        %5348 = vmatpush2.bf16.msra.mxu0 %v3272
        %5349 = vmatprep.subr.bf16.mxu0 %v3265
        %5350 = vmatpush2.bf16.msra.mxu0 %v3264
        %5351 = vmatprep.subr.bf16.mxu0 %v3257
        %5352 = vmatpush2.bf16.msra.mxu0 %v3256
        %5353 = vmatprep.subr.bf16.mxu0 %v3249
        %5354 = vmatpush2.bf16.msra.mxu0 %v3248
        %5355 = vmatprep.subr.bf16.mxu0 %v3241
        %5356 = vmatpush2.bf16.msra.mxu0 %v3240
        %5357 = vmatprep.subr.bf16.mxu0 %v3233
        %5358 = vmatpush2.bf16.msra.mxu0 %v3232
        %5359 = vmatprep.mubr.bf16.mxu0 %v1883
        %5360 = vmatmul.mubr.bf16.gmra.mxu0 %v1882
        %v5361 = vpop.f32.mrf.mxu0
        %v5362 = vadd.f32 %v1612, %v5361
        %v5363 = vpop.f32.mrf.mxu0
        %v5364 = vadd.f32 %v1614, %v5363
        %v5365 = vpop.f32.mrf.mxu0
        %v5366 = vadd.f32 %v1618, %v5365
        %v5367 = vpop.f32.mrf.mxu0
        %v5368 = vadd.f32 %v1620, %v5367
        %5369 = vmatprep.mubr.bf16.mxu0 %v1890
        %5370 = vmatmul.mubr.bf16.gmra.mxu0 %v1889
        %v5371 = vpop.f32.mrf.mxu0
        %v5372 = vadd.f32 %v1624, %v5371
        %v5373 = vpop.f32.mrf.mxu0
        %v5374 = vadd.f32 %v1626, %v5373
        %v5375 = vpop.f32.mrf.mxu0
        %v5376 = vadd.f32 %v1630, %v5375
        %v5377 = vpop.f32.mrf.mxu0
        %v5378 = vadd.f32 %v1632, %v5377
        %5379 = vmatprep.mubr.bf16.mxu0 %v1897
        %5380 = vmatmul.mubr.bf16.gmra.mxu0 %v1896
        %v5381 = vpop.f32.mrf.mxu0
        %v5382 = vadd.f32 %v1636, %v5381
        %v5383 = vpop.f32.mrf.mxu0
        %v5384 = vadd.f32 %v1638, %v5383
        %v5385 = vpop.f32.mrf.mxu0
        %v5386 = vadd.f32 %v1642, %v5385
        %v5387 = vpop.f32.mrf.mxu0
        %v5388 = vadd.f32 %v1644, %v5387
        %5389 = vmatprep.mubr.bf16.mxu0 %v1904
        %5390 = vmatmul.mubr.bf16.gmra.mxu0 %v1903
        %v5391 = vpop.f32.mrf.mxu0
        %v5392 = vadd.f32 %v1648, %v5391
        %v5393 = vpop.f32.mrf.mxu0
        %v5394 = vadd.f32 %v1650, %v5393
        %v5395 = vpop.f32.mrf.mxu0
        %v5396 = vadd.f32 %v1654, %v5395
        %v5397 = vpop.f32.mrf.mxu0
        %v5398 = vadd.f32 %v1656, %v5397
        %5399 = vmatprep.mubr.bf16.mxu0 %v1911
        %5400 = vmatmul.mubr.bf16.gmra.mxu0 %v1910
        %v5401 = vpop.f32.mrf.mxu0
        %v5402 = vadd.f32 %v1660, %v5401
        %v5403 = vpop.f32.mrf.mxu0
        %v5404 = vadd.f32 %v1662, %v5403
        %v5405 = vpop.f32.mrf.mxu0
        %v5406 = vadd.f32 %v1666, %v5405
        %v5407 = vpop.f32.mrf.mxu0
        %v5408 = vadd.f32 %v1668, %v5407
        %5409 = vmatprep.mubr.bf16.mxu0 %v1918
        %5410 = vmatmul.mubr.bf16.gmra.mxu0 %v1917
        %v5411 = vpop.f32.mrf.mxu0
        %v5412 = vadd.f32 %v1672, %v5411
        %v5413 = vpop.f32.mrf.mxu0
        %v5414 = vadd.f32 %v1674, %v5413
        %v5415 = vpop.f32.mrf.mxu0
        %v5416 = vadd.f32 %v1678, %v5415
        %v5417 = vpop.f32.mrf.mxu0
        %v5418 = vadd.f32 %v1680, %v5417
        %5419 = vmatprep.mubr.bf16.mxu0 %v1925
        %5420 = vmatmul.mubr.bf16.gmra.mxu0 %v1924
        %v5421 = vpop.f32.mrf.mxu0
        %v5422 = vadd.f32 %v1684, %v5421
        %v5423 = vpop.f32.mrf.mxu0
        %v5424 = vadd.f32 %v1686, %v5423
        %v5425 = vpop.f32.mrf.mxu0
        %v5426 = vadd.f32 %v1690, %v5425
        %v5427 = vpop.f32.mrf.mxu0
        %v5428 = vadd.f32 %v1692, %v5427
        %5429 = vmatprep.mubr.bf16.mxu0 %v1932
        %5430 = vmatmul.mubr.bf16.gmra.mxu0 %v1931
        %v5431 = vpop.f32.mrf.mxu0
        %v5432 = vadd.f32 %v1696, %v5431
        %v5433 = vpop.f32.mrf.mxu0
        %v5434 = vadd.f32 %v1698, %v5433
        %v5435 = vpop.f32.mrf.mxu0
        %v5436 = vadd.f32 %v1702, %v5435
        %v5437 = vpop.f32.mrf.mxu0
        %v5438 = vadd.f32 %v1704, %v5437
        %5439 = vdwg.mxu0
        %5440 = vmatprep.subr.bf16.mxu0 %v3353
        %5441 = vmatpush1.bf16.msra.mxu0 %v3352
        %5442 = vmatprep.subr.bf16.mxu0 %v3345
        %5443 = vmatpush1.bf16.msra.mxu0 %v3344
        %5444 = vmatprep.subr.bf16.mxu0 %v3337
        %5445 = vmatpush1.bf16.msra.mxu0 %v3336
        %5446 = vmatprep.subr.bf16.mxu0 %v3329
        %5447 = vmatpush1.bf16.msra.mxu0 %v3328
        %5448 = vmatprep.subr.bf16.mxu0 %v3321
        %5449 = vmatpush1.bf16.msra.mxu0 %v3320
        %5450 = vmatprep.subr.bf16.mxu0 %v3313
        %5451 = vmatpush1.bf16.msra.mxu0 %v3312
        %5452 = vmatprep.subr.bf16.mxu0 %v3305
        %5453 = vmatpush1.bf16.msra.mxu0 %v3304
        %5454 = vmatprep.subr.bf16.mxu0 %v3297
        %5455 = vmatpush1.bf16.msra.mxu0 %v3296
        %5456 = vmatprep.subr.bf16.mxu0 %v3417
        %5457 = vmatpush2.bf16.msra.mxu0 %v3416
        %5458 = vmatprep.subr.bf16.mxu0 %v3409
        %5459 = vmatpush2.bf16.msra.mxu0 %v3408
        %5460 = vmatprep.subr.bf16.mxu0 %v3401
        %5461 = vmatpush2.bf16.msra.mxu0 %v3400
        %5462 = vmatprep.subr.bf16.mxu0 %v3393
        %5463 = vmatpush2.bf16.msra.mxu0 %v3392
        %5464 = vmatprep.subr.bf16.mxu0 %v3385
        %5465 = vmatpush2.bf16.msra.mxu0 %v3384
        %5466 = vmatprep.subr.bf16.mxu0 %v3377
        %5467 = vmatpush2.bf16.msra.mxu0 %v3376
        %5468 = vmatprep.subr.bf16.mxu0 %v3369
        %5469 = vmatpush2.bf16.msra.mxu0 %v3368
        %5470 = vmatprep.subr.bf16.mxu0 %v3361
        %5471 = vmatpush2.bf16.msra.mxu0 %v3360
        %5472 = vmatprep.mubr.bf16.mxu0 %v1885
        %5473 = vmatmul.mubr.bf16.gmra.mxu0 %v1884
        %v5474 = vpop.f32.mrf.mxu0
        %v5475 = vadd.f32 %v5362, %v5474
        %v5476 = vpop.f32.mrf.mxu0
        %v5477 = vadd.f32 %v5364, %v5476
        %v5478 = vpop.f32.mrf.mxu0
        %v5479 = vadd.f32 %v5366, %v5478
        %v5480 = vpop.f32.mrf.mxu0
        %v5481 = vadd.f32 %v5368, %v5480
        %5482 = vmatprep.mubr.bf16.mxu0 %v1892
        %5483 = vmatmul.mubr.bf16.gmra.mxu0 %v1891
        %v5484 = vpop.f32.mrf.mxu0
        %v5485 = vadd.f32 %v5372, %v5484
        %v5486 = vpop.f32.mrf.mxu0
        %v5487 = vadd.f32 %v5374, %v5486
        %v5488 = vpop.f32.mrf.mxu0
        %v5489 = vadd.f32 %v5376, %v5488
        %v5490 = vpop.f32.mrf.mxu0
        %v5491 = vadd.f32 %v5378, %v5490
        %5492 = vmatprep.mubr.bf16.mxu0 %v1899
        %5493 = vmatmul.mubr.bf16.gmra.mxu0 %v1898
        %v5494 = vpop.f32.mrf.mxu0
        %v5495 = vadd.f32 %v5382, %v5494
        %v5496 = vpop.f32.mrf.mxu0
        %v5497 = vadd.f32 %v5384, %v5496
        %v5498 = vpop.f32.mrf.mxu0
        %v5499 = vadd.f32 %v5386, %v5498
        %v5500 = vpop.f32.mrf.mxu0
        %v5501 = vadd.f32 %v5388, %v5500
        %5502 = vmatprep.mubr.bf16.mxu0 %v1906
        %5503 = vmatmul.mubr.bf16.gmra.mxu0 %v1905
        %v5504 = vpop.f32.mrf.mxu0
        %v5505 = vadd.f32 %v5392, %v5504
        %v5506 = vpop.f32.mrf.mxu0
        %v5507 = vadd.f32 %v5394, %v5506
        %v5508 = vpop.f32.mrf.mxu0
        %v5509 = vadd.f32 %v5396, %v5508
        %v5510 = vpop.f32.mrf.mxu0
        %v5511 = vadd.f32 %v5398, %v5510
        %5512 = vmatprep.mubr.bf16.mxu0 %v1913
        %5513 = vmatmul.mubr.bf16.gmra.mxu0 %v1912
        %v5514 = vpop.f32.mrf.mxu0
        %v5515 = vadd.f32 %v5402, %v5514
        %v5516 = vpop.f32.mrf.mxu0
        %v5517 = vadd.f32 %v5404, %v5516
        %v5518 = vpop.f32.mrf.mxu0
        %v5519 = vadd.f32 %v5406, %v5518
        %v5520 = vpop.f32.mrf.mxu0
        %v5521 = vadd.f32 %v5408, %v5520
        %5522 = vmatprep.mubr.bf16.mxu0 %v1920
        %5523 = vmatmul.mubr.bf16.gmra.mxu0 %v1919
        %v5524 = vpop.f32.mrf.mxu0
        %v5525 = vadd.f32 %v5412, %v5524
        %v5526 = vpop.f32.mrf.mxu0
        %v5527 = vadd.f32 %v5414, %v5526
        %v5528 = vpop.f32.mrf.mxu0
        %v5529 = vadd.f32 %v5416, %v5528
        %v5530 = vpop.f32.mrf.mxu0
        %v5531 = vadd.f32 %v5418, %v5530
        %5532 = vmatprep.mubr.bf16.mxu0 %v1927
        %5533 = vmatmul.mubr.bf16.gmra.mxu0 %v1926
        %v5534 = vpop.f32.mrf.mxu0
        %v5535 = vadd.f32 %v5422, %v5534
        %v5536 = vpop.f32.mrf.mxu0
        %v5537 = vadd.f32 %v5424, %v5536
        %v5538 = vpop.f32.mrf.mxu0
        %v5539 = vadd.f32 %v5426, %v5538
        %v5540 = vpop.f32.mrf.mxu0
        %v5541 = vadd.f32 %v5428, %v5540
        %5542 = vmatprep.mubr.bf16.mxu0 %v1934
        %5543 = vmatmul.mubr.bf16.gmra.mxu0 %v1933
        %v5544 = vpop.f32.mrf.mxu0
        %v5545 = vadd.f32 %v5432, %v5544
        %v5546 = vpop.f32.mrf.mxu0
        %v5547 = vadd.f32 %v5434, %v5546
        %v5548 = vpop.f32.mrf.mxu0
        %v5549 = vadd.f32 %v5436, %v5548
        %v5550 = vpop.f32.mrf.mxu0
        %v5551 = vadd.f32 %v5438, %v5550
        %5552 = vdwg.mxu0
        %5553 = vmatprep.subr.bf16.mxu0 %v3481
        %5554 = vmatpush1.bf16.msra.mxu0 %v3480
        %5555 = vmatprep.subr.bf16.mxu0 %v3473
        %5556 = vmatpush1.bf16.msra.mxu0 %v3472
        %5557 = vmatprep.subr.bf16.mxu0 %v3465
        %5558 = vmatpush1.bf16.msra.mxu0 %v3464
        %5559 = vmatprep.subr.bf16.mxu0 %v3457
        %5560 = vmatpush1.bf16.msra.mxu0 %v3456
        %5561 = vmatprep.subr.bf16.mxu0 %v3449
        %5562 = vmatpush1.bf16.msra.mxu0 %v3448
        %5563 = vmatprep.subr.bf16.mxu0 %v3441
        %5564 = vmatpush1.bf16.msra.mxu0 %v3440
        %5565 = vmatprep.subr.bf16.mxu0 %v3433
        %5566 = vmatpush1.bf16.msra.mxu0 %v3432
        %5567 = vmatprep.subr.bf16.mxu0 %v3425
        %5568 = vmatpush1.bf16.msra.mxu0 %v3424
        %5569 = vmatprep.subr.bf16.mxu0 %v3545
        %5570 = vmatpush2.bf16.msra.mxu0 %v3544
        %5571 = vmatprep.subr.bf16.mxu0 %v3537
        %5572 = vmatpush2.bf16.msra.mxu0 %v3536
        %5573 = vmatprep.subr.bf16.mxu0 %v3529
        %5574 = vmatpush2.bf16.msra.mxu0 %v3528
        %5575 = vmatprep.subr.bf16.mxu0 %v3521
        %5576 = vmatpush2.bf16.msra.mxu0 %v3520
        %5577 = vmatprep.subr.bf16.mxu0 %v3513
        %5578 = vmatpush2.bf16.msra.mxu0 %v3512
        %5579 = vmatprep.subr.bf16.mxu0 %v3505
        %5580 = vmatpush2.bf16.msra.mxu0 %v3504
        %5581 = vmatprep.subr.bf16.mxu0 %v3497
        %5582 = vmatpush2.bf16.msra.mxu0 %v3496
        %5583 = vmatprep.subr.bf16.mxu0 %v3489
        %5584 = vmatpush2.bf16.msra.mxu0 %v3488
        %5585 = vmatprep.mubr.bf16.mxu0 %v1887
        %5586 = vmatmul.mubr.bf16.gmra.mxu0 %v1886
        %v5587 = vpop.f32.mrf.mxu0
        %v5588 = vadd.f32 %v5475, %v5587
        %v5589 = vpop.f32.mrf.mxu0
        %v5590 = vadd.f32 %v5477, %v5589
        %v5591 = vpop.f32.mrf.mxu0
        %v5592 = vadd.f32 %v5479, %v5591
        %v5593 = vpop.f32.mrf.mxu0
        %v5594 = vadd.f32 %v5481, %v5593
        %5595 = vmatprep.mubr.bf16.mxu0 %v1894
        %5596 = vmatmul.mubr.bf16.gmra.mxu0 %v1893
        %v5597 = vpop.f32.mrf.mxu0
        %v5598 = vadd.f32 %v5485, %v5597
        %v5599 = vpop.f32.mrf.mxu0
        %v5600 = vadd.f32 %v5487, %v5599
        %v5601 = vpop.f32.mrf.mxu0
        %v5602 = vadd.f32 %v5489, %v5601
        %v5603 = vpop.f32.mrf.mxu0
        %v5604 = vadd.f32 %v5491, %v5603
        %5605 = vmatprep.mubr.bf16.mxu0 %v1901
        %5606 = vmatmul.mubr.bf16.gmra.mxu0 %v1900
        %v5607 = vpop.f32.mrf.mxu0
        %v5608 = vadd.f32 %v5495, %v5607
        %v5609 = vpop.f32.mrf.mxu0
        %v5610 = vadd.f32 %v5497, %v5609
        %v5611 = vpop.f32.mrf.mxu0
        %v5612 = vadd.f32 %v5499, %v5611
        %v5613 = vpop.f32.mrf.mxu0
        %v5614 = vadd.f32 %v5501, %v5613
        %5615 = vmatprep.mubr.bf16.mxu0 %v1908
        %5616 = vmatmul.mubr.bf16.gmra.mxu0 %v1907
        %v5617 = vpop.f32.mrf.mxu0
        %v5618 = vadd.f32 %v5505, %v5617
        %v5619 = vpop.f32.mrf.mxu0
        %v5620 = vadd.f32 %v5507, %v5619
        %v5621 = vpop.f32.mrf.mxu0
        %v5622 = vadd.f32 %v5509, %v5621
        %v5623 = vpop.f32.mrf.mxu0
        %v5624 = vadd.f32 %v5511, %v5623
        %5625 = vmatprep.mubr.bf16.mxu0 %v1915
        %5626 = vmatmul.mubr.bf16.gmra.mxu0 %v1914
        %v5627 = vpop.f32.mrf.mxu0
        %v5628 = vadd.f32 %v5515, %v5627
        %v5629 = vpop.f32.mrf.mxu0
        %v5630 = vadd.f32 %v5517, %v5629
        %v5631 = vpop.f32.mrf.mxu0
        %v5632 = vadd.f32 %v5519, %v5631
        %v5633 = vpop.f32.mrf.mxu0
        %v5634 = vadd.f32 %v5521, %v5633
        %5635 = vmatprep.mubr.bf16.mxu0 %v1922
        %5636 = vmatmul.mubr.bf16.gmra.mxu0 %v1921
        %v5637 = vpop.f32.mrf.mxu0
        %v5638 = vadd.f32 %v5525, %v5637
        %v5639 = vpop.f32.mrf.mxu0
        %v5640 = vadd.f32 %v5527, %v5639
        %v5641 = vpop.f32.mrf.mxu0
        %v5642 = vadd.f32 %v5529, %v5641
        %v5643 = vpop.f32.mrf.mxu0
        %v5644 = vadd.f32 %v5531, %v5643
        %5645 = vmatprep.mubr.bf16.mxu0 %v1929
        %5646 = vmatmul.mubr.bf16.gmra.mxu0 %v1928
        %v5647 = vpop.f32.mrf.mxu0
        %v5648 = vadd.f32 %v5535, %v5647
        %v5649 = vpop.f32.mrf.mxu0
        %v5650 = vadd.f32 %v5537, %v5649
        %v5651 = vpop.f32.mrf.mxu0
        %v5652 = vadd.f32 %v5539, %v5651
        %v5653 = vpop.f32.mrf.mxu0
        %v5654 = vadd.f32 %v5541, %v5653
        %5655 = vmatprep.mubr.bf16.mxu0 %v1936
        %5656 = vmatmul.mubr.bf16.gmra.mxu0 %v1935
        %v5657 = vpop.f32.mrf.mxu0
        %v5658 = vadd.f32 %v5545, %v5657
        %v5659 = vpop.f32.mrf.mxu0
        %v5660 = vadd.f32 %v5547, %v5659
        %v5661 = vpop.f32.mrf.mxu0
        %v5662 = vadd.f32 %v5549, %v5661
        %v5663 = vpop.f32.mrf.mxu0
        %v5664 = vadd.f32 %v5551, %v5663
        %5665 = vdwg.mxu0
        %5666 = vmatprep.subr.bf16.mxu0 0
        %5667 = vmatpush1.bf16.msra.mxu0 0
        %5668 = vmatprep.subr.bf16.mxu0 0
        %5669 = vmatpush1.bf16.msra.mxu0 0
        %5670 = vmatprep.subr.bf16.mxu0 0
        %5671 = vmatpush1.bf16.msra.mxu0 0
        %5672 = vmatprep.subr.bf16.mxu0 0
        %5673 = vmatpush1.bf16.msra.mxu0 0
        %5674 = vmatprep.subr.bf16.mxu0 0
        %5675 = vmatpush1.bf16.msra.mxu0 0
        %5676 = vmatprep.subr.bf16.mxu0 0
        %5677 = vmatpush1.bf16.msra.mxu0 0
        %5678 = vmatprep.subr.bf16.mxu0 0
        %5679 = vmatpush1.bf16.msra.mxu0 0
        %5680 = vmatprep.subr.bf16.mxu0 %v3553
        %5681 = vmatpush1.bf16.msra.mxu0 %v3552
        %5682 = vmatprep.subr.bf16.mxu0 0
        %5683 = vmatpush2.bf16.msra.mxu0 0
        %5684 = vmatprep.subr.bf16.mxu0 0
        %5685 = vmatpush2.bf16.msra.mxu0 0
        %5686 = vmatprep.subr.bf16.mxu0 0
        %5687 = vmatpush2.bf16.msra.mxu0 0
        %5688 = vmatprep.subr.bf16.mxu0 0
        %5689 = vmatpush2.bf16.msra.mxu0 0
        %5690 = vmatprep.subr.bf16.mxu0 0
        %5691 = vmatpush2.bf16.msra.mxu0 0
        %5692 = vmatprep.subr.bf16.mxu0 0
        %5693 = vmatpush2.bf16.msra.mxu0 0
        %5694 = vmatprep.subr.bf16.mxu0 0
        %5695 = vmatpush2.bf16.msra.mxu0 0
        %5696 = vmatprep.subr.bf16.mxu0 0
        %5697 = vmatpush2.bf16.msra.mxu0 0
        %5698 = vmatprep.mubr.bf16.mxu0 0
        %5699 = vmatmul.mubr.bf16.gmra.mxu0 %v3948
        %v5700 = vpop.f32.mrf.mxu0
        %v5701 = vadd.f32 %v5588, %v5700
        %v5702 = vpop.f32.mrf.mxu0
        %v5703 = vadd.f32 %v5590, %v5702
        %v5704 = vpop.f32.mrf.mxu0
        %v5705 = vadd.f32 %v5592, %v5704
        %v5706 = vpop.f32.mrf.mxu0
        %v5707 = vadd.f32 %v5594, %v5706
        %5708 = vmatprep.mubr.bf16.mxu0 0
        %5709 = vmatmul.mubr.bf16.gmra.mxu0 %v3951
        %v5710 = vpop.f32.mrf.mxu0
        %v5711 = vadd.f32 %v5598, %v5710
        %v5712 = vpop.f32.mrf.mxu0
        %v5713 = vadd.f32 %v5600, %v5712
        %v5714 = vpop.f32.mrf.mxu0
        %v5715 = vadd.f32 %v5602, %v5714
        %v5716 = vpop.f32.mrf.mxu0
        %v5717 = vadd.f32 %v5604, %v5716
        %5718 = vmatprep.mubr.bf16.mxu0 0
        %5719 = vmatmul.mubr.bf16.gmra.mxu0 %v3954
        %v5720 = vpop.f32.mrf.mxu0
        %v5721 = vadd.f32 %v5608, %v5720
        %v5722 = vpop.f32.mrf.mxu0
        %v5723 = vadd.f32 %v5610, %v5722
        %v5724 = vpop.f32.mrf.mxu0
        %v5725 = vadd.f32 %v5612, %v5724
        %v5726 = vpop.f32.mrf.mxu0
        %v5727 = vadd.f32 %v5614, %v5726
        %5728 = vmatprep.mubr.bf16.mxu0 0
        %5729 = vmatmul.mubr.bf16.gmra.mxu0 %v3957
        %v5730 = vpop.f32.mrf.mxu0
        %v5731 = vadd.f32 %v5618, %v5730
        %v5732 = vpop.f32.mrf.mxu0
        %v5733 = vadd.f32 %v5620, %v5732
        %v5734 = vpop.f32.mrf.mxu0
        %v5735 = vadd.f32 %v5622, %v5734
        %v5736 = vpop.f32.mrf.mxu0
        %v5737 = vadd.f32 %v5624, %v5736
        %5738 = vmatprep.mubr.bf16.mxu0 0
        %5739 = vmatmul.mubr.bf16.gmra.mxu0 %v3960
        %v5740 = vpop.f32.mrf.mxu0
        %v5741 = vadd.f32 %v5628, %v5740
        %v5742 = vpop.f32.mrf.mxu0
        %v5743 = vadd.f32 %v5630, %v5742
        %v5744 = vpop.f32.mrf.mxu0
        %v5745 = vadd.f32 %v5632, %v5744
        %v5746 = vpop.f32.mrf.mxu0
        %v5747 = vadd.f32 %v5634, %v5746
        %5748 = vmatprep.mubr.bf16.mxu0 0
        %5749 = vmatmul.mubr.bf16.gmra.mxu0 %v3963
        %v5750 = vpop.f32.mrf.mxu0
        %v5751 = vadd.f32 %v5638, %v5750
        %v5752 = vpop.f32.mrf.mxu0
        %v5753 = vadd.f32 %v5640, %v5752
        %v5754 = vpop.f32.mrf.mxu0
        %v5755 = vadd.f32 %v5642, %v5754
        %v5756 = vpop.f32.mrf.mxu0
        %v5757 = vadd.f32 %v5644, %v5756
        %5758 = vmatprep.mubr.bf16.mxu0 0
        %5759 = vmatmul.mubr.bf16.gmra.mxu0 %v3966
        %v5760 = vpop.f32.mrf.mxu0
        %v5761 = vadd.f32 %v5648, %v5760
        %v5762 = vpop.f32.mrf.mxu0
        %v5763 = vadd.f32 %v5650, %v5762
        %v5764 = vpop.f32.mrf.mxu0
        %v5765 = vadd.f32 %v5652, %v5764
        %v5766 = vpop.f32.mrf.mxu0
        %v5767 = vadd.f32 %v5654, %v5766
        %5768 = vmatprep.mubr.bf16.mxu0 0
        %5769 = vmatmul.mubr.bf16.gmra.mxu0 %v3969
        %v5770 = vpop.f32.mrf.mxu0
        %v5771 = vadd.f32 %v5658, %v5770
        %v5772 = vpop.f32.mrf.mxu0
        %v5773 = vadd.f32 %v5660, %v5772
        %v5774 = vpop.f32.mrf.mxu0
        %v5775 = vadd.f32 %v5662, %v5774
        %v5776 = vpop.f32.mrf.mxu0
        %v5777 = vadd.f32 %v5664, %v5776
        %5778 = vdwg.mxu0
        %vm5779 = vcmp.gt.f32.partialorder %v4345, 0.0
        %vm5780 = vcmp.gt.f32.partialorder %v4347, 0.0
        %vm5781 = vcmp.gt.f32.partialorder %v4797, 0.0
        %vm5782 = vcmp.gt.f32.partialorder %v4799, 0.0
        %vm5783 = vcmp.gt.f32.partialorder %v5249, 0.0
        %vm5784 = vcmp.gt.f32.partialorder %v5251, 0.0
        %vm5785 = vcmp.gt.f32.partialorder %v5701, 0.0
        %vm5786 = vcmp.gt.f32.partialorder %v5703, 0.0
        %vm5787 = vcmp.gt.f32.partialorder %v4349, 0.0
        %vm5788 = vcmp.gt.f32.partialorder %v4351, 0.0
        %vm5789 = vcmp.gt.f32.partialorder %v4801, 0.0
        %vm5790 = vcmp.gt.f32.partialorder %v4803, 0.0
        %vm5791 = vcmp.gt.f32.partialorder %v5253, 0.0
        %vm5792 = vcmp.gt.f32.partialorder %v5255, 0.0
        %vm5793 = vcmp.gt.f32.partialorder %v5705, 0.0
        %vm5794 = vcmp.gt.f32.partialorder %v5707, 0.0
        %vm5795 = vcmp.gt.f32.partialorder %v4355, 0.0
        %vm5796 = vcmp.gt.f32.partialorder %v4357, 0.0
        %vm5797 = vcmp.gt.f32.partialorder %v4807, 0.0
        %vm5798 = vcmp.gt.f32.partialorder %v4809, 0.0
        %vm5799 = vcmp.gt.f32.partialorder %v5259, 0.0
        %vm5800 = vcmp.gt.f32.partialorder %v5261, 0.0
        %vm5801 = vcmp.gt.f32.partialorder %v5711, 0.0
        %vm5802 = vcmp.gt.f32.partialorder %v5713, 0.0
        %vm5803 = vcmp.gt.f32.partialorder %v4359, 0.0
        %vm5804 = vcmp.gt.f32.partialorder %v4361, 0.0
        %vm5805 = vcmp.gt.f32.partialorder %v4811, 0.0
        %vm5806 = vcmp.gt.f32.partialorder %v4813, 0.0
        %vm5807 = vcmp.gt.f32.partialorder %v5263, 0.0
        %vm5808 = vcmp.gt.f32.partialorder %v5265, 0.0
        %vm5809 = vcmp.gt.f32.partialorder %v5715, 0.0
        %vm5810 = vcmp.gt.f32.partialorder %v5717, 0.0
        %vm5811 = vcmp.gt.f32.partialorder %v4365, 0.0
        %vm5812 = vcmp.gt.f32.partialorder %v4367, 0.0
        %vm5813 = vcmp.gt.f32.partialorder %v4817, 0.0
        %vm5814 = vcmp.gt.f32.partialorder %v4819, 0.0
        %vm5815 = vcmp.gt.f32.partialorder %v5269, 0.0
        %vm5816 = vcmp.gt.f32.partialorder %v5271, 0.0
        %vm5817 = vcmp.gt.f32.partialorder %v5721, 0.0
        %vm5818 = vcmp.gt.f32.partialorder %v5723, 0.0
        %vm5819 = vcmp.gt.f32.partialorder %v4369, 0.0
        %vm5820 = vcmp.gt.f32.partialorder %v4371, 0.0
        %vm5821 = vcmp.gt.f32.partialorder %v4821, 0.0
        %vm5822 = vcmp.gt.f32.partialorder %v4823, 0.0
        %vm5823 = vcmp.gt.f32.partialorder %v5273, 0.0
        %vm5824 = vcmp.gt.f32.partialorder %v5275, 0.0
        %vm5825 = vcmp.gt.f32.partialorder %v5725, 0.0
        %vm5826 = vcmp.gt.f32.partialorder %v5727, 0.0
        %vm5827 = vcmp.gt.f32.partialorder %v4375, 0.0
        %vm5828 = vcmp.gt.f32.partialorder %v4377, 0.0
        %vm5829 = vcmp.gt.f32.partialorder %v4827, 0.0
        %vm5830 = vcmp.gt.f32.partialorder %v4829, 0.0
        %vm5831 = vcmp.gt.f32.partialorder %v5279, 0.0
        %vm5832 = vcmp.gt.f32.partialorder %v5281, 0.0
        %vm5833 = vcmp.gt.f32.partialorder %v5731, 0.0
        %vm5834 = vcmp.gt.f32.partialorder %v5733, 0.0
        %vm5835 = vcmp.gt.f32.partialorder %v4379, 0.0
        %vm5836 = vcmp.gt.f32.partialorder %v4381, 0.0
        %vm5837 = vcmp.gt.f32.partialorder %v4831, 0.0
        %vm5838 = vcmp.gt.f32.partialorder %v4833, 0.0
        %vm5839 = vcmp.gt.f32.partialorder %v5283, 0.0
        %vm5840 = vcmp.gt.f32.partialorder %v5285, 0.0
        %vm5841 = vcmp.gt.f32.partialorder %v5735, 0.0
        %vm5842 = vcmp.gt.f32.partialorder %v5737, 0.0
        %vm5843 = vcmp.gt.f32.partialorder %v4385, 0.0
        %vm5844 = vcmp.gt.f32.partialorder %v4387, 0.0
        %vm5845 = vcmp.gt.f32.partialorder %v4837, 0.0
        %vm5846 = vcmp.gt.f32.partialorder %v4839, 0.0
        %vm5847 = vcmp.gt.f32.partialorder %v5289, 0.0
        %vm5848 = vcmp.gt.f32.partialorder %v5291, 0.0
        %vm5849 = vcmp.gt.f32.partialorder %v5741, 0.0
        %vm5850 = vcmp.gt.f32.partialorder %v5743, 0.0
        %vm5851 = vcmp.gt.f32.partialorder %v4389, 0.0
        %vm5852 = vcmp.gt.f32.partialorder %v4391, 0.0
        %vm5853 = vcmp.gt.f32.partialorder %v4841, 0.0
        %vm5854 = vcmp.gt.f32.partialorder %v4843, 0.0
        %vm5855 = vcmp.gt.f32.partialorder %v5293, 0.0
        %vm5856 = vcmp.gt.f32.partialorder %v5295, 0.0
        %vm5857 = vcmp.gt.f32.partialorder %v5745, 0.0
        %vm5858 = vcmp.gt.f32.partialorder %v5747, 0.0
        %vm5859 = vcmp.gt.f32.partialorder %v4395, 0.0
        %vm5860 = vcmp.gt.f32.partialorder %v4397, 0.0
        %vm5861 = vcmp.gt.f32.partialorder %v4847, 0.0
        %vm5862 = vcmp.gt.f32.partialorder %v4849, 0.0
        %vm5863 = vcmp.gt.f32.partialorder %v5299, 0.0
        %vm5864 = vcmp.gt.f32.partialorder %v5301, 0.0
        %vm5865 = vcmp.gt.f32.partialorder %v5751, 0.0
        %vm5866 = vcmp.gt.f32.partialorder %v5753, 0.0
        %vm5867 = vcmp.gt.f32.partialorder %v4399, 0.0
        %vm5868 = vcmp.gt.f32.partialorder %v4401, 0.0
        %vm5869 = vcmp.gt.f32.partialorder %v4851, 0.0
        %vm5870 = vcmp.gt.f32.partialorder %v4853, 0.0
        %vm5871 = vcmp.gt.f32.partialorder %v5303, 0.0
        %vm5872 = vcmp.gt.f32.partialorder %v5305, 0.0
        %vm5873 = vcmp.gt.f32.partialorder %v5755, 0.0
        %vm5874 = vcmp.gt.f32.partialorder %v5757, 0.0
        %vm5875 = vcmp.gt.f32.partialorder %v4405, 0.0
        %vm5876 = vcmp.gt.f32.partialorder %v4407, 0.0
        %vm5877 = vcmp.gt.f32.partialorder %v4857, 0.0
        %vm5878 = vcmp.gt.f32.partialorder %v4859, 0.0
        %vm5879 = vcmp.gt.f32.partialorder %v5309, 0.0
        %vm5880 = vcmp.gt.f32.partialorder %v5311, 0.0
        %vm5881 = vcmp.gt.f32.partialorder %v5761, 0.0
        %vm5882 = vcmp.gt.f32.partialorder %v5763, 0.0
        %vm5883 = vcmp.gt.f32.partialorder %v4409, 0.0
        %vm5884 = vcmp.gt.f32.partialorder %v4411, 0.0
        %vm5885 = vcmp.gt.f32.partialorder %v4861, 0.0
        %vm5886 = vcmp.gt.f32.partialorder %v4863, 0.0
        %vm5887 = vcmp.gt.f32.partialorder %v5313, 0.0
        %vm5888 = vcmp.gt.f32.partialorder %v5315, 0.0
        %vm5889 = vcmp.gt.f32.partialorder %v5765, 0.0
        %vm5890 = vcmp.gt.f32.partialorder %v5767, 0.0
        %vm5891 = vcmp.gt.f32.partialorder %v4415, 0.0
        %vm5892 = vcmp.gt.f32.partialorder %v4417, 0.0
        %vm5893 = vcmp.gt.f32.partialorder %v4867, 0.0
        %vm5894 = vcmp.gt.f32.partialorder %v4869, 0.0
        %vm5895 = vcmp.gt.f32.partialorder %v5319, 0.0
        %vm5896 = vcmp.gt.f32.partialorder %v5321, 0.0
        %vm5897 = vcmp.gt.f32.partialorder %v5771, 0.0
        %vm5898 = vcmp.gt.f32.partialorder %v5773, 0.0
        %vm5899 = vcmp.gt.f32.partialorder %v4419, 0.0
        %vm5900 = vcmp.gt.f32.partialorder %v4421, 0.0
        %vm5901 = vcmp.gt.f32.partialorder %v4871, 0.0
        %vm5902 = vcmp.gt.f32.partialorder %v4873, 0.0
        %vm5903 = vcmp.gt.f32.partialorder %v5323, 0.0
        %vm5904 = vcmp.gt.f32.partialorder %v5325, 0.0
        %vm5905 = vcmp.gt.f32.partialorder %v5775, 0.0
        %vm5906 = vcmp.gt.f32.partialorder %v5777, 0.0
        %v5907 = vmul.f32 %v4345, 0.2
        %v5908 = vmul.f32 %v4347, 0.2
        %v5909 = vmul.f32 %v4797, 0.2
        %v5910 = vmul.f32 %v4799, 0.2
        %v5911 = vmul.f32 %v5249, 0.2
        %v5912 = vmul.f32 %v5251, 0.2
        %v5913 = vmul.f32 %v5701, 0.2
        %v5914 = vmul.f32 %v5703, 0.2
        %v5915 = vmul.f32 %v4349, 0.2
        %v5916 = vmul.f32 %v4351, 0.2
        %v5917 = vmul.f32 %v4801, 0.2
        %v5918 = vmul.f32 %v4803, 0.2
        %v5919 = vmul.f32 %v5253, 0.2
        %v5920 = vmul.f32 %v5255, 0.2
        %v5921 = vmul.f32 %v5705, 0.2
        %v5922 = vmul.f32 %v5707, 0.2
        %v5923 = vmul.f32 %v4355, 0.2
        %v5924 = vmul.f32 %v4357, 0.2
        %v5925 = vmul.f32 %v4807, 0.2
        %v5926 = vmul.f32 %v4809, 0.2
        %v5927 = vmul.f32 %v5259, 0.2
        %v5928 = vmul.f32 %v5261, 0.2
        %v5929 = vmul.f32 %v5711, 0.2
        %v5930 = vmul.f32 %v5713, 0.2
        %v5931 = vmul.f32 %v4359, 0.2
        %v5932 = vmul.f32 %v4361, 0.2
        %v5933 = vmul.f32 %v4811, 0.2
        %v5934 = vmul.f32 %v4813, 0.2
        %v5935 = vmul.f32 %v5263, 0.2
        %v5936 = vmul.f32 %v5265, 0.2
        %v5937 = vmul.f32 %v5715, 0.2
        %v5938 = vmul.f32 %v5717, 0.2
        %v5939 = vmul.f32 %v4365, 0.2
        %v5940 = vmul.f32 %v4367, 0.2
        %v5941 = vmul.f32 %v4817, 0.2
        %v5942 = vmul.f32 %v4819, 0.2
        %v5943 = vmul.f32 %v5269, 0.2
        %v5944 = vmul.f32 %v5271, 0.2
        %v5945 = vmul.f32 %v5721, 0.2
        %v5946 = vmul.f32 %v5723, 0.2
        %v5947 = vmul.f32 %v4369, 0.2
        %v5948 = vmul.f32 %v4371, 0.2
        %v5949 = vmul.f32 %v4821, 0.2
        %v5950 = vmul.f32 %v4823, 0.2
        %v5951 = vmul.f32 %v5273, 0.2
        %v5952 = vmul.f32 %v5275, 0.2
        %v5953 = vmul.f32 %v5725, 0.2
        %v5954 = vmul.f32 %v5727, 0.2
        %v5955 = vmul.f32 %v4375, 0.2
        %v5956 = vmul.f32 %v4377, 0.2
        %v5957 = vmul.f32 %v4827, 0.2
        %v5958 = vmul.f32 %v4829, 0.2
        %v5959 = vmul.f32 %v5279, 0.2
        %v5960 = vmul.f32 %v5281, 0.2
        %v5961 = vmul.f32 %v5731, 0.2
        %v5962 = vmul.f32 %v5733, 0.2
        %v5963 = vmul.f32 %v4379, 0.2
        %v5964 = vmul.f32 %v4381, 0.2
        %v5965 = vmul.f32 %v4831, 0.2
        %v5966 = vmul.f32 %v4833, 0.2
        %v5967 = vmul.f32 %v5283, 0.2
        %v5968 = vmul.f32 %v5285, 0.2
        %v5969 = vmul.f32 %v5735, 0.2
        %v5970 = vmul.f32 %v5737, 0.2
        %v5971 = vmul.f32 %v4385, 0.2
        %v5972 = vmul.f32 %v4387, 0.2
        %v5973 = vmul.f32 %v4837, 0.2
        %v5974 = vmul.f32 %v4839, 0.2
        %v5975 = vmul.f32 %v5289, 0.2
        %v5976 = vmul.f32 %v5291, 0.2
        %v5977 = vmul.f32 %v5741, 0.2
        %v5978 = vmul.f32 %v5743, 0.2
        %v5979 = vmul.f32 %v4389, 0.2
        %v5980 = vmul.f32 %v4391, 0.2
        %v5981 = vmul.f32 %v4841, 0.2
        %v5982 = vmul.f32 %v4843, 0.2
        %v5983 = vmul.f32 %v5293, 0.2
        %v5984 = vmul.f32 %v5295, 0.2
        %v5985 = vmul.f32 %v5745, 0.2
        %v5986 = vmul.f32 %v5747, 0.2
        %v5987 = vmul.f32 %v4395, 0.2
        %v5988 = vmul.f32 %v4397, 0.2
        %v5989 = vmul.f32 %v4847, 0.2
        %v5990 = vmul.f32 %v4849, 0.2
        %v5991 = vmul.f32 %v5299, 0.2
        %v5992 = vmul.f32 %v5301, 0.2
        %v5993 = vmul.f32 %v5751, 0.2
        %v5994 = vmul.f32 %v5753, 0.2
        %v5995 = vmul.f32 %v4399, 0.2
        %v5996 = vmul.f32 %v4401, 0.2
        %v5997 = vmul.f32 %v4851, 0.2
        %v5998 = vmul.f32 %v4853, 0.2
        %v5999 = vmul.f32 %v5303, 0.2
        %v6000 = vmul.f32 %v5305, 0.2
        %v6001 = vmul.f32 %v5755, 0.2
        %v6002 = vmul.f32 %v5757, 0.2
        %v6003 = vmul.f32 %v4405, 0.2
        %v6004 = vmul.f32 %v4407, 0.2
        %v6005 = vmul.f32 %v4857, 0.2
        %v6006 = vmul.f32 %v4859, 0.2
        %v6007 = vmul.f32 %v5309, 0.2
        %v6008 = vmul.f32 %v5311, 0.2
        %v6009 = vmul.f32 %v5761, 0.2
        %v6010 = vmul.f32 %v5763, 0.2
        %v6011 = vmul.f32 %v4409, 0.2
        %v6012 = vmul.f32 %v4411, 0.2
        %v6013 = vmul.f32 %v4861, 0.2
        %v6014 = vmul.f32 %v4863, 0.2
        %v6015 = vmul.f32 %v5313, 0.2
        %v6016 = vmul.f32 %v5315, 0.2
        %v6017 = vmul.f32 %v5765, 0.2
        %v6018 = vmul.f32 %v5767, 0.2
        %v6019 = vmul.f32 %v4415, 0.2
        %v6020 = vmul.f32 %v4417, 0.2
        %v6021 = vmul.f32 %v4867, 0.2
        %v6022 = vmul.f32 %v4869, 0.2
        %v6023 = vmul.f32 %v5319, 0.2
        %v6024 = vmul.f32 %v5321, 0.2
        %v6025 = vmul.f32 %v5771, 0.2
        %v6026 = vmul.f32 %v5773, 0.2
        %v6027 = vmul.f32 %v4419, 0.2
        %v6028 = vmul.f32 %v4421, 0.2
        %v6029 = vmul.f32 %v4871, 0.2
        %v6030 = vmul.f32 %v4873, 0.2
        %v6031 = vmul.f32 %v5323, 0.2
        %v6032 = vmul.f32 %v5325, 0.2
        %v6033 = vmul.f32 %v5775, 0.2
        %v6034 = vmul.f32 %v5777, 0.2
        %v6035 = vsel %vm5779, %v4345, %v5907
        %v6036 = vsel %vm5780, %v4347, %v5908
        %v6037 = vsel %vm5781, %v4797, %v5909
        %v6038 = vsel %vm5782, %v4799, %v5910
        %v6039 = vsel %vm5783, %v5249, %v5911
        %v6040 = vsel %vm5784, %v5251, %v5912
        %v6041 = vsel %vm5785, %v5701, %v5913
        %v6042 = vsel %vm5786, %v5703, %v5914
        %v6043 = vsel %vm5787, %v4349, %v5915
        %v6044 = vsel %vm5788, %v4351, %v5916
        %v6045 = vsel %vm5789, %v4801, %v5917
        %v6046 = vsel %vm5790, %v4803, %v5918
        %v6047 = vsel %vm5791, %v5253, %v5919
        %v6048 = vsel %vm5792, %v5255, %v5920
        %v6049 = vsel %vm5793, %v5705, %v5921
        %v6050 = vsel %vm5794, %v5707, %v5922
        %v6051 = vsel %vm5795, %v4355, %v5923
        %v6052 = vsel %vm5796, %v4357, %v5924
        %v6053 = vsel %vm5797, %v4807, %v5925
        %v6054 = vsel %vm5798, %v4809, %v5926
        %v6055 = vsel %vm5799, %v5259, %v5927
        %v6056 = vsel %vm5800, %v5261, %v5928
        %v6057 = vsel %vm5801, %v5711, %v5929
        %v6058 = vsel %vm5802, %v5713, %v5930
        %v6059 = vsel %vm5803, %v4359, %v5931
        %v6060 = vsel %vm5804, %v4361, %v5932
        %v6061 = vsel %vm5805, %v4811, %v5933
        %v6062 = vsel %vm5806, %v4813, %v5934
        %v6063 = vsel %vm5807, %v5263, %v5935
        %v6064 = vsel %vm5808, %v5265, %v5936
        %v6065 = vsel %vm5809, %v5715, %v5937
        %v6066 = vsel %vm5810, %v5717, %v5938
        %v6067 = vsel %vm5811, %v4365, %v5939
        %v6068 = vsel %vm5812, %v4367, %v5940
        %v6069 = vsel %vm5813, %v4817, %v5941
        %v6070 = vsel %vm5814, %v4819, %v5942
        %v6071 = vsel %vm5815, %v5269, %v5943
        %v6072 = vsel %vm5816, %v5271, %v5944
        %v6073 = vsel %vm5817, %v5721, %v5945
        %v6074 = vsel %vm5818, %v5723, %v5946
        %v6075 = vsel %vm5819, %v4369, %v5947
        %v6076 = vsel %vm5820, %v4371, %v5948
        %v6077 = vsel %vm5821, %v4821, %v5949
        %v6078 = vsel %vm5822, %v4823, %v5950
        %v6079 = vsel %vm5823, %v5273, %v5951
        %v6080 = vsel %vm5824, %v5275, %v5952
        %v6081 = vsel %vm5825, %v5725, %v5953
        %v6082 = vsel %vm5826, %v5727, %v5954
        %v6083 = vsel %vm5827, %v4375, %v5955
        %v6084 = vsel %vm5828, %v4377, %v5956
        %v6085 = vsel %vm5829, %v4827, %v5957
        %v6086 = vsel %vm5830, %v4829, %v5958
        %v6087 = vsel %vm5831, %v5279, %v5959
        %v6088 = vsel %vm5832, %v5281, %v5960
        %v6089 = vsel %vm5833, %v5731, %v5961
        %v6090 = vsel %vm5834, %v5733, %v5962
        %v6091 = vsel %vm5835, %v4379, %v5963
        %v6092 = vsel %vm5836, %v4381, %v5964
        %v6093 = vsel %vm5837, %v4831, %v5965
        %v6094 = vsel %vm5838, %v4833, %v5966
        %v6095 = vsel %vm5839, %v5283, %v5967
        %v6096 = vsel %vm5840, %v5285, %v5968
        %v6097 = vsel %vm5841, %v5735, %v5969
        %v6098 = vsel %vm5842, %v5737, %v5970
        %v6099 = vsel %vm5843, %v4385, %v5971
        %v6100 = vsel %vm5844, %v4387, %v5972
        %v6101 = vsel %vm5845, %v4837, %v5973
        %v6102 = vsel %vm5846, %v4839, %v5974
        %v6103 = vsel %vm5847, %v5289, %v5975
        %v6104 = vsel %vm5848, %v5291, %v5976
        %v6105 = vsel %vm5849, %v5741, %v5977
        %v6106 = vsel %vm5850, %v5743, %v5978
        %v6107 = vsel %vm5851, %v4389, %v5979
        %v6108 = vsel %vm5852, %v4391, %v5980
        %v6109 = vsel %vm5853, %v4841, %v5981
        %v6110 = vsel %vm5854, %v4843, %v5982
        %v6111 = vsel %vm5855, %v5293, %v5983
        %v6112 = vsel %vm5856, %v5295, %v5984
        %v6113 = vsel %vm5857, %v5745, %v5985
        %v6114 = vsel %vm5858, %v5747, %v5986
        %v6115 = vsel %vm5859, %v4395, %v5987
        %v6116 = vsel %vm5860, %v4397, %v5988
        %v6117 = vsel %vm5861, %v4847, %v5989
        %v6118 = vsel %vm5862, %v4849, %v5990
        %v6119 = vsel %vm5863, %v5299, %v5991
        %v6120 = vsel %vm5864, %v5301, %v5992
        %v6121 = vsel %vm5865, %v5751, %v5993
        %v6122 = vsel %vm5866, %v5753, %v5994
        %v6123 = vsel %vm5867, %v4399, %v5995
        %v6124 = vsel %vm5868, %v4401, %v5996
        %v6125 = vsel %vm5869, %v4851, %v5997
        %v6126 = vsel %vm5870, %v4853, %v5998
        %v6127 = vsel %vm5871, %v5303, %v5999
        %v6128 = vsel %vm5872, %v5305, %v6000
        %v6129 = vsel %vm5873, %v5755, %v6001
        %v6130 = vsel %vm5874, %v5757, %v6002
        %v6131 = vsel %vm5875, %v4405, %v6003
        %v6132 = vsel %vm5876, %v4407, %v6004
        %v6133 = vsel %vm5877, %v4857, %v6005
        %v6134 = vsel %vm5878, %v4859, %v6006
        %v6135 = vsel %vm5879, %v5309, %v6007
        %v6136 = vsel %vm5880, %v5311, %v6008
        %v6137 = vsel %vm5881, %v5761, %v6009
        %v6138 = vsel %vm5882, %v5763, %v6010
        %v6139 = vsel %vm5883, %v4409, %v6011
        %v6140 = vsel %vm5884, %v4411, %v6012
        %v6141 = vsel %vm5885, %v4861, %v6013
        %v6142 = vsel %vm5886, %v4863, %v6014
        %v6143 = vsel %vm5887, %v5313, %v6015
        %v6144 = vsel %vm5888, %v5315, %v6016
        %v6145 = vsel %vm5889, %v5765, %v6017
        %v6146 = vsel %vm5890, %v5767, %v6018
        %v6147 = vsel %vm5891, %v4415, %v6019
        %v6148 = vsel %vm5892, %v4417, %v6020
        %v6149 = vsel %vm5893, %v4867, %v6021
        %v6150 = vsel %vm5894, %v4869, %v6022
        %v6151 = vsel %vm5895, %v5319, %v6023
        %v6152 = vsel %vm5896, %v5321, %v6024
        %v6153 = vsel %vm5897, %v5771, %v6025
        %v6154 = vsel %vm5898, %v5773, %v6026
        %v6155 = vsel %vm5899, %v4419, %v6027
        %v6156 = vsel %vm5900, %v4421, %v6028
        %v6157 = vsel %vm5901, %v4871, %v6029
        %v6158 = vsel %vm5902, %v4873, %v6030
        %v6159 = vsel %vm5903, %v5323, %v6031
        %v6160 = vsel %vm5904, %v5325, %v6032
        %v6161 = vsel %vm5905, %v5775, %v6033
        %v6162 = vsel %vm5906, %v5777, %v6034
        %v6163 = vpack.c.bf16 %v6043, %v6035
        %v6164 = vpack.c.bf16 %v6044, %v6036
        %v6165 = vpack.c.bf16 %v6045, %v6037
        %v6166 = vpack.c.bf16 %v6046, %v6038
        %v6167 = vpack.c.bf16 %v6047, %v6039
        %v6168 = vpack.c.bf16 %v6048, %v6040
        %v6169 = vpack.c.bf16 %v6049, %v6041
        %v6170 = vpack.c.bf16 %v6050, %v6042
        %v6171 = vpack.c.bf16 %v6059, %v6051
        %v6172 = vpack.c.bf16 %v6060, %v6052
        %v6173 = vpack.c.bf16 %v6061, %v6053
        %v6174 = vpack.c.bf16 %v6062, %v6054
        %v6175 = vpack.c.bf16 %v6063, %v6055
        %v6176 = vpack.c.bf16 %v6064, %v6056
        %v6177 = vpack.c.bf16 %v6065, %v6057
        %v6178 = vpack.c.bf16 %v6066, %v6058
        %v6179 = vpack.c.bf16 %v6075, %v6067
        %v6180 = vpack.c.bf16 %v6076, %v6068
        %v6181 = vpack.c.bf16 %v6077, %v6069
        %v6182 = vpack.c.bf16 %v6078, %v6070
        %v6183 = vpack.c.bf16 %v6079, %v6071
        %v6184 = vpack.c.bf16 %v6080, %v6072
        %v6185 = vpack.c.bf16 %v6081, %v6073
        %v6186 = vpack.c.bf16 %v6082, %v6074
        %v6187 = vpack.c.bf16 %v6091, %v6083
        %v6188 = vpack.c.bf16 %v6092, %v6084
        %v6189 = vpack.c.bf16 %v6093, %v6085
        %v6190 = vpack.c.bf16 %v6094, %v6086
        %v6191 = vpack.c.bf16 %v6095, %v6087
        %v6192 = vpack.c.bf16 %v6096, %v6088
        %v6193 = vpack.c.bf16 %v6097, %v6089
        %v6194 = vpack.c.bf16 %v6098, %v6090
        %v6195 = vpack.c.bf16 %v6107, %v6099
        %v6196 = vpack.c.bf16 %v6108, %v6100
        %v6197 = vpack.c.bf16 %v6109, %v6101
        %v6198 = vpack.c.bf16 %v6110, %v6102
        %v6199 = vpack.c.bf16 %v6111, %v6103
        %v6200 = vpack.c.bf16 %v6112, %v6104
        %v6201 = vpack.c.bf16 %v6113, %v6105
        %v6202 = vpack.c.bf16 %v6114, %v6106
        %v6203 = vpack.c.bf16 %v6123, %v6115
        %v6204 = vpack.c.bf16 %v6124, %v6116
        %v6205 = vpack.c.bf16 %v6125, %v6117
        %v6206 = vpack.c.bf16 %v6126, %v6118
        %v6207 = vpack.c.bf16 %v6127, %v6119
        %v6208 = vpack.c.bf16 %v6128, %v6120
        %v6209 = vpack.c.bf16 %v6129, %v6121
        %v6210 = vpack.c.bf16 %v6130, %v6122
        %v6211 = vpack.c.bf16 %v6139, %v6131
        %v6212 = vpack.c.bf16 %v6140, %v6132
        %v6213 = vpack.c.bf16 %v6141, %v6133
        %v6214 = vpack.c.bf16 %v6142, %v6134
        %v6215 = vpack.c.bf16 %v6143, %v6135
        %v6216 = vpack.c.bf16 %v6144, %v6136
        %v6217 = vpack.c.bf16 %v6145, %v6137
        %v6218 = vpack.c.bf16 %v6146, %v6138
        %v6219 = vpack.c.bf16 %v6155, %v6147
        %v6220 = vpack.c.bf16 %v6156, %v6148
        %v6221 = vpack.c.bf16 %v6157, %v6149
        %v6222 = vpack.c.bf16 %v6158, %v6150
        %v6223 = vpack.c.bf16 %v6159, %v6151
        %v6224 = vpack.c.bf16 %v6160, %v6152
        %v6225 = vpack.c.bf16 %v6161, %v6153
        %v6226 = vpack.c.bf16 %v6162, %v6154
        %v6227 = vld [vmem:[#allocation3] sm:$0xff]
        %v6228 = vld [vmem:[#allocation3 + $0x8] sm:$0xff]
        %v6229 = vld [vmem:[#allocation3 + $0x10] sm:$0xff]
        %v6230 = vld [vmem:[#allocation3 + $0x18] sm:$0xff]
        %v6231 = vld [vmem:[#allocation3 + $0x20] sm:$0xff]
        %v6232 = vld [vmem:[#allocation3 + $0x28] sm:$0xff]
        %v6233 = vld [vmem:[#allocation3 + $0x30] sm:$0xff]
        %v6234 = vld [vmem:[#allocation3 + $0x38] sm:$0xff]
        %v6235 = vld [vmem:[#allocation3 + $0x40] sm:$0xff]
        %v6236 = vld [vmem:[#allocation3 + $0x48] sm:$0xff]
        %v6237 = vld [vmem:[#allocation3 + $0x50] sm:$0xff]
        %v6238 = vld [vmem:[#allocation3 + $0x58] sm:$0xff]
        %v6239 = vld [vmem:[#allocation3 + $0x60] sm:$0xff]
        %v6240 = vld [vmem:[#allocation3 + $0x68] sm:$0xff]
        %v6241 = vld [vmem:[#allocation3 + $0x70] sm:$0xff]
        %v6242 = vld [vmem:[#allocation3 + $0x78] sm:$0xff]
        %v6243 = vld [vmem:[#allocation3 + $0x80] sm:$0xff]
        %v6244 = vld [vmem:[#allocation3 + $0x88] sm:$0xff]
        %v6245 = vld [vmem:[#allocation3 + $0x90] sm:$0xff]
        %v6246 = vld [vmem:[#allocation3 + $0x98] sm:$0xff]
        %v6247 = vld [vmem:[#allocation3 + $0xa0] sm:$0xff]
        %v6248 = vld [vmem:[#allocation3 + $0xa8] sm:$0xff]
        %v6249 = vld [vmem:[#allocation3 + $0xb0] sm:$0xff]
        %v6250 = vld [vmem:[#allocation3 + $0xb8] sm:$0xff]
        %v6251 = vld [vmem:[#allocation3 + $0xc0] sm:$0xff]
        %v6252 = vld [vmem:[#allocation3 + $0xc8] sm:$0xff]
        %v6253 = vld [vmem:[#allocation3 + $0xd0] sm:$0xff]
        %v6254 = vld [vmem:[#allocation3 + $0xd8] sm:$0xff]
        %v6255 = vld [vmem:[#allocation3 + $0xe0] sm:$0xff]
        %v6256 = vld [vmem:[#allocation3 + $0xe8] sm:$0xff]
        %v6257 = vld [vmem:[#allocation3 + $0xf0] sm:$0xff]
        %v6258 = vld [vmem:[#allocation3 + $0xf8] sm:$0xff]
        %v6259 = vld [vmem:[#allocation3 + $0x100] sm:$0xff]
        %v6260 = vld [vmem:[#allocation3 + $0x108] sm:$0xff]
        %v6261 = vld [vmem:[#allocation3 + $0x110] sm:$0xff]
        %v6262 = vld [vmem:[#allocation3 + $0x118] sm:$0xff]
        %v6263 = vld [vmem:[#allocation3 + $0x120] sm:$0xff]
        %v6264 = vld [vmem:[#allocation3 + $0x128] sm:$0xff]
        %v6265 = vld [vmem:[#allocation3 + $0x130] sm:$0xff]
        %v6266 = vld [vmem:[#allocation3 + $0x138] sm:$0xff]
        %v6267 = vld [vmem:[#allocation3 + $0x140] sm:$0xff]
        %v6268 = vld [vmem:[#allocation3 + $0x148] sm:$0xff]
        %v6269 = vld [vmem:[#allocation3 + $0x150] sm:$0xff]
        %v6270 = vld [vmem:[#allocation3 + $0x158] sm:$0xff]
        %v6271 = vld [vmem:[#allocation3 + $0x160] sm:$0xff]
        %v6272 = vld [vmem:[#allocation3 + $0x168] sm:$0xff]
        %v6273 = vld [vmem:[#allocation3 + $0x170] sm:$0xff]
        %v6274 = vld [vmem:[#allocation3 + $0x178] sm:$0xff]
        %v6275 = vld [vmem:[#allocation3 + $0x180] sm:$0xff]
        %v6276 = vld [vmem:[#allocation3 + $0x188] sm:$0xff]
        %v6277 = vld [vmem:[#allocation3 + $0x190] sm:$0xff]
        %v6278 = vld [vmem:[#allocation3 + $0x198] sm:$0xff]
        %v6279 = vld [vmem:[#allocation3 + $0x1a0] sm:$0xff]
        %v6280 = vld [vmem:[#allocation3 + $0x1a8] sm:$0xff]
        %v6281 = vld [vmem:[#allocation3 + $0x1b0] sm:$0xff]
        %v6282 = vld [vmem:[#allocation3 + $0x1b8] sm:$0xff]
        %v6283 = vld [vmem:[#allocation3 + $0x1c0] sm:$0xff]
        %v6284 = vld [vmem:[#allocation3 + $0x1c8] sm:$0xff]
        %v6285 = vld [vmem:[#allocation3 + $0x1d0] sm:$0xff]
        %v6286 = vld [vmem:[#allocation3 + $0x1d8] sm:$0xff]
        %v6287 = vld [vmem:[#allocation3 + $0x1e0] sm:$0xff]
        %v6288 = vld [vmem:[#allocation3 + $0x1e8] sm:$0xff]
        %v6289 = vld [vmem:[#allocation3 + $0x1f0] sm:$0xff]
        %v6290 = vld [vmem:[#allocation3 + $0x1f8] sm:$0xff]
        %v6291 = vld [vmem:[#allocation3 + $0x200] sm:$0xff]
        %v6292 = vld [vmem:[#allocation3 + $0x208] sm:$0xff]
        %v6293 = vld [vmem:[#allocation3 + $0x210] sm:$0xff]
        %v6294 = vld [vmem:[#allocation3 + $0x218] sm:$0xff]
        %v6295 = vld [vmem:[#allocation3 + $0x220] sm:$0xff]
        %v6296 = vld [vmem:[#allocation3 + $0x228] sm:$0xff]
        %v6297 = vld [vmem:[#allocation3 + $0x230] sm:$0xff]
        %v6298 = vld [vmem:[#allocation3 + $0x238] sm:$0xff]
        %v6299 = vld [vmem:[#allocation3 + $0x240] sm:$0xff]
        %v6300 = vld [vmem:[#allocation3 + $0x248] sm:$0xff]
        %v6301 = vld [vmem:[#allocation3 + $0x250] sm:$0xff]
        %v6302 = vld [vmem:[#allocation3 + $0x258] sm:$0xff]
        %v6303 = vld [vmem:[#allocation3 + $0x260] sm:$0xff]
        %v6304 = vld [vmem:[#allocation3 + $0x268] sm:$0xff]
        %v6305 = vld [vmem:[#allocation3 + $0x270] sm:$0xff]
        %v6306 = vld [vmem:[#allocation3 + $0x278] sm:$0xff]
        %v6307 = vld [vmem:[#allocation3 + $0x280] sm:$0xff]
        %v6308 = vld [vmem:[#allocation3 + $0x288] sm:$0xff]
        %v6309 = vld [vmem:[#allocation3 + $0x290] sm:$0xff]
        %v6310 = vld [vmem:[#allocation3 + $0x298] sm:$0xff]
        %v6311 = vld [vmem:[#allocation3 + $0x2a0] sm:$0xff]
        %v6312 = vld [vmem:[#allocation3 + $0x2a8] sm:$0xff]
        %v6313 = vld [vmem:[#allocation3 + $0x2b0] sm:$0xff]
        %v6314 = vld [vmem:[#allocation3 + $0x2b8] sm:$0xff]
        %v6315 = vld [vmem:[#allocation3 + $0x2c0] sm:$0xff]
        %v6316 = vld [vmem:[#allocation3 + $0x2c8] sm:$0xff]
        %v6317 = vld [vmem:[#allocation3 + $0x2d0] sm:$0xff]
        %v6318 = vld [vmem:[#allocation3 + $0x2d8] sm:$0xff]
        %v6319 = vld [vmem:[#allocation3 + $0x2e0] sm:$0xff]
        %v6320 = vld [vmem:[#allocation3 + $0x2e8] sm:$0xff]
        %v6321 = vld [vmem:[#allocation3 + $0x2f0] sm:$0xff]
        %v6322 = vld [vmem:[#allocation3 + $0x2f8] sm:$0xff]
        %v6323 = vld [vmem:[#allocation3 + $0x300] sm:$0xff]
        %v6324 = vld [vmem:[#allocation3 + $0x308] sm:$0xff]
        %v6325 = vld [vmem:[#allocation3 + $0x310] sm:$0xff]
        %v6326 = vld [vmem:[#allocation3 + $0x318] sm:$0xff]
        %v6327 = vld [vmem:[#allocation3 + $0x320] sm:$0xff]
        %v6328 = vld [vmem:[#allocation3 + $0x328] sm:$0xff]
        %v6329 = vld [vmem:[#allocation3 + $0x330] sm:$0xff]
        %v6330 = vld [vmem:[#allocation3 + $0x338] sm:$0xff]
        %v6331 = vld [vmem:[#allocation3 + $0x340] sm:$0xff]
        %v6332 = vld [vmem:[#allocation3 + $0x348] sm:$0xff]
        %v6333 = vld [vmem:[#allocation3 + $0x350] sm:$0xff]
        %v6334 = vld [vmem:[#allocation3 + $0x358] sm:$0xff]
        %v6335 = vld [vmem:[#allocation3 + $0x360] sm:$0xff]
        %v6336 = vld [vmem:[#allocation3 + $0x368] sm:$0xff]
        %v6337 = vld [vmem:[#allocation3 + $0x370] sm:$0xff]
        %v6338 = vld [vmem:[#allocation3 + $0x378] sm:$0xff]
        %v6339 = vld [vmem:[#allocation3 + $0x380] sm:$0xff]
        %v6340 = vld [vmem:[#allocation3 + $0x388] sm:$0xff]
        %v6341 = vld [vmem:[#allocation3 + $0x390] sm:$0xff]
        %v6342 = vld [vmem:[#allocation3 + $0x398] sm:$0xff]
        %v6343 = vld [vmem:[#allocation3 + $0x3a0] sm:$0xff]
        %v6344 = vld [vmem:[#allocation3 + $0x3a8] sm:$0xff]
        %v6345 = vld [vmem:[#allocation3 + $0x3b0] sm:$0xff]
        %v6346 = vld [vmem:[#allocation3 + $0x3b8] sm:$0xff]
        %v6347 = vld [vmem:[#allocation3 + $0x3c0] sm:$0xff]
        %v6348 = vld [vmem:[#allocation3 + $0x3c8] sm:$0xff]
        %v6349 = vld [vmem:[#allocation3 + $0x3d0] sm:$0xff]
        %v6350 = vld [vmem:[#allocation3 + $0x3d8] sm:$0xff]
        %v6351 = vld [vmem:[#allocation3 + $0x3e0] sm:$0xff]
        %v6352 = vld [vmem:[#allocation3 + $0x3e8] sm:$0xff]
        %v6353 = vld [vmem:[#allocation3 + $0x3f0] sm:$0xff]
        %v6354 = vld [vmem:[#allocation3 + $0x3f8] sm:$0xff]
        %v6355 = vld [vmem:[#allocation3 + $0x400] sm:$0xff]
        %v6356 = vld [vmem:[#allocation3 + $0x408] sm:$0xff]
        %v6357 = vld [vmem:[#allocation3 + $0x410] sm:$0xff]
        %v6358 = vld [vmem:[#allocation3 + $0x418] sm:$0xff]
        %v6359 = vld [vmem:[#allocation3 + $0x420] sm:$0xff]
        %v6360 = vld [vmem:[#allocation3 + $0x428] sm:$0xff]
        %v6361 = vld [vmem:[#allocation3 + $0x430] sm:$0xff]
        %v6362 = vld [vmem:[#allocation3 + $0x438] sm:$0xff]
        %v6363 = vld [vmem:[#allocation3 + $0x440] sm:$0xff]
        %v6364 = vld [vmem:[#allocation3 + $0x448] sm:$0xff]
        %v6365 = vld [vmem:[#allocation3 + $0x450] sm:$0xff]
        %v6366 = vld [vmem:[#allocation3 + $0x458] sm:$0xff]
        %v6367 = vld [vmem:[#allocation3 + $0x460] sm:$0xff]
        %v6368 = vld [vmem:[#allocation3 + $0x468] sm:$0xff]
        %v6369 = vld [vmem:[#allocation3 + $0x470] sm:$0xff]
        %v6370 = vld [vmem:[#allocation3 + $0x478] sm:$0xff]
        %v6371 = vld [vmem:[#allocation3 + $0x480] sm:$0xff]
        %v6372 = vld [vmem:[#allocation3 + $0x488] sm:$0xff]
        %v6373 = vld [vmem:[#allocation3 + $0x490] sm:$0xff]
        %v6374 = vld [vmem:[#allocation3 + $0x498] sm:$0xff]
        %v6375 = vld [vmem:[#allocation3 + $0x4a0] sm:$0xff]
        %v6376 = vld [vmem:[#allocation3 + $0x4a8] sm:$0xff]
        %v6377 = vld [vmem:[#allocation3 + $0x4b0] sm:$0xff]
        %v6378 = vld [vmem:[#allocation3 + $0x4b8] sm:$0xff]
        %v6379 = vld [vmem:[#allocation3 + $0x4c0] sm:$0xff]
        %v6380 = vld [vmem:[#allocation3 + $0x4c8] sm:$0xff]
        %v6381 = vld [vmem:[#allocation3 + $0x4d0] sm:$0xff]
        %v6382 = vld [vmem:[#allocation3 + $0x4d8] sm:$0xff]
        %v6383 = vld [vmem:[#allocation3 + $0x4e0] sm:$0xff]
        %v6384 = vld [vmem:[#allocation3 + $0x4e8] sm:$0xff]
        %v6385 = vld [vmem:[#allocation3 + $0x4f0] sm:$0xff]
        %v6386 = vld [vmem:[#allocation3 + $0x4f8] sm:$0xff]
        %v6387 = vld [vmem:[#allocation3 + $0x500] sm:$0xff]
        %v6388 = vld [vmem:[#allocation3 + $0x508] sm:$0xff]
        %v6389 = vld [vmem:[#allocation3 + $0x510] sm:$0xff]
        %v6390 = vld [vmem:[#allocation3 + $0x518] sm:$0xff]
        %v6391 = vld [vmem:[#allocation3 + $0x520] sm:$0xff]
        %v6392 = vld [vmem:[#allocation3 + $0x528] sm:$0xff]
        %v6393 = vld [vmem:[#allocation3 + $0x530] sm:$0xff]
        %v6394 = vld [vmem:[#allocation3 + $0x538] sm:$0xff]
        %v6395 = vld [vmem:[#allocation3 + $0x540] sm:$0xff]
        %v6396 = vld [vmem:[#allocation3 + $0x548] sm:$0xff]
        %v6397 = vld [vmem:[#allocation3 + $0x550] sm:$0xff]
        %v6398 = vld [vmem:[#allocation3 + $0x558] sm:$0xff]
        %v6399 = vld [vmem:[#allocation3 + $0x560] sm:$0xff]
        %v6400 = vld [vmem:[#allocation3 + $0x568] sm:$0xff]
        %v6401 = vld [vmem:[#allocation3 + $0x570] sm:$0xff]
        %v6402 = vld [vmem:[#allocation3 + $0x578] sm:$0xff]
        %v6403 = vld [vmem:[#allocation3 + $0x580] sm:$0xff]
        %v6404 = vld [vmem:[#allocation3 + $0x588] sm:$0xff]
        %v6405 = vld [vmem:[#allocation3 + $0x590] sm:$0xff]
        %v6406 = vld [vmem:[#allocation3 + $0x598] sm:$0xff]
        %v6407 = vld [vmem:[#allocation3 + $0x5a0] sm:$0xff]
        %v6408 = vld [vmem:[#allocation3 + $0x5a8] sm:$0xff]
        %v6409 = vld [vmem:[#allocation3 + $0x5b0] sm:$0xff]
        %v6410 = vld [vmem:[#allocation3 + $0x5b8] sm:$0xff]
        %v6411 = vld [vmem:[#allocation3 + $0x5c0] sm:$0xff]
        %v6412 = vld [vmem:[#allocation3 + $0x5c8] sm:$0xff]
        %v6413 = vld [vmem:[#allocation3 + $0x5d0] sm:$0xff]
        %v6414 = vld [vmem:[#allocation3 + $0x5d8] sm:$0xff]
        %v6415 = vld [vmem:[#allocation3 + $0x5e0] sm:$0xff]
        %v6416 = vld [vmem:[#allocation3 + $0x5e8] sm:$0xff]
        %v6417 = vld [vmem:[#allocation3 + $0x5f0] sm:$0xff]
        %v6418 = vld [vmem:[#allocation3 + $0x5f8] sm:$0xff]
        %v6419 = vld [vmem:[#allocation3 + $0x600] sm:$0xff]
        %v6420 = vld [vmem:[#allocation3 + $0x608] sm:$0xff]
        %v6421 = vld [vmem:[#allocation3 + $0x610] sm:$0xff]
        %v6422 = vld [vmem:[#allocation3 + $0x618] sm:$0xff]
        %v6423 = vld [vmem:[#allocation3 + $0x620] sm:$0xff]
        %v6424 = vld [vmem:[#allocation3 + $0x628] sm:$0xff]
        %v6425 = vld [vmem:[#allocation3 + $0x630] sm:$0xff]
        %v6426 = vld [vmem:[#allocation3 + $0x638] sm:$0xff]
        %v6427 = vld [vmem:[#allocation3 + $0x640] sm:$0xff]
        %v6428 = vld [vmem:[#allocation3 + $0x648] sm:$0xff]
        %v6429 = vld [vmem:[#allocation3 + $0x650] sm:$0xff]
        %v6430 = vld [vmem:[#allocation3 + $0x658] sm:$0xff]
        %v6431 = vld [vmem:[#allocation3 + $0x660] sm:$0xff]
        %v6432 = vld [vmem:[#allocation3 + $0x668] sm:$0xff]
        %v6433 = vld [vmem:[#allocation3 + $0x670] sm:$0xff]
        %v6434 = vld [vmem:[#allocation3 + $0x678] sm:$0xff]
        %v6435 = vld [vmem:[#allocation3 + $0x680] sm:$0xff]
        %v6436 = vld [vmem:[#allocation3 + $0x688] sm:$0xff]
        %v6437 = vld [vmem:[#allocation3 + $0x690] sm:$0xff]
        %v6438 = vld [vmem:[#allocation3 + $0x698] sm:$0xff]
        %v6439 = vld [vmem:[#allocation3 + $0x6a0] sm:$0xff]
        %v6440 = vld [vmem:[#allocation3 + $0x6a8] sm:$0xff]
        %v6441 = vld [vmem:[#allocation3 + $0x6b0] sm:$0xff]
        %v6442 = vld [vmem:[#allocation3 + $0x6b8] sm:$0xff]
        %v6443 = vld [vmem:[#allocation3 + $0x6c0] sm:$0xff]
        %v6444 = vld [vmem:[#allocation3 + $0x6c8] sm:$0xff]
        %v6445 = vld [vmem:[#allocation3 + $0x6d0] sm:$0xff]
        %v6446 = vld [vmem:[#allocation3 + $0x6d8] sm:$0xff]
        %v6447 = vld [vmem:[#allocation3 + $0x6e0] sm:$0xff]
        %v6448 = vld [vmem:[#allocation3 + $0x6e8] sm:$0xff]
        %v6449 = vld [vmem:[#allocation3 + $0x6f0] sm:$0xff]
        %v6450 = vld [vmem:[#allocation3 + $0x6f8] sm:$0xff]
        %v6451 = vld [vmem:[#allocation3 + $0x700] sm:$0xff]
        %v6452 = vld [vmem:[#allocation3 + $0x708] sm:$0xff]
        %v6453 = vld [vmem:[#allocation3 + $0x710] sm:$0xff]
        %v6454 = vld [vmem:[#allocation3 + $0x718] sm:$0xff]
        %v6455 = vld [vmem:[#allocation3 + $0x720] sm:$0xff]
        %v6456 = vld [vmem:[#allocation3 + $0x728] sm:$0xff]
        %v6457 = vld [vmem:[#allocation3 + $0x730] sm:$0xff]
        %v6458 = vld [vmem:[#allocation3 + $0x738] sm:$0xff]
        %v6459 = vld [vmem:[#allocation3 + $0x740] sm:$0xff]
        %v6460 = vld [vmem:[#allocation3 + $0x748] sm:$0xff]
        %v6461 = vld [vmem:[#allocation3 + $0x750] sm:$0xff]
        %v6462 = vld [vmem:[#allocation3 + $0x758] sm:$0xff]
        %v6463 = vld [vmem:[#allocation3 + $0x760] sm:$0xff]
        %v6464 = vld [vmem:[#allocation3 + $0x768] sm:$0xff]
        %v6465 = vld [vmem:[#allocation3 + $0x770] sm:$0xff]
        %v6466 = vld [vmem:[#allocation3 + $0x778] sm:$0xff]
        %v6467 = vld [vmem:[#allocation3 + $0x780] sm:$0xff]
        %v6468 = vld [vmem:[#allocation3 + $0x788] sm:$0xff]
        %v6469 = vld [vmem:[#allocation3 + $0x790] sm:$0xff]
        %v6470 = vld [vmem:[#allocation3 + $0x798] sm:$0xff]
        %v6471 = vld [vmem:[#allocation3 + $0x7a0] sm:$0xff]
        %v6472 = vld [vmem:[#allocation3 + $0x7a8] sm:$0xff]
        %v6473 = vld [vmem:[#allocation3 + $0x7b0] sm:$0xff]
        %v6474 = vld [vmem:[#allocation3 + $0x7b8] sm:$0xff]
        %v6475 = vld [vmem:[#allocation3 + $0x7c0] sm:$0xff]
        %v6476 = vld [vmem:[#allocation3 + $0x7c8] sm:$0xff]
        %v6477 = vld [vmem:[#allocation3 + $0x7d0] sm:$0xff]
        %v6478 = vld [vmem:[#allocation3 + $0x7d8] sm:$0xff]
        %v6479 = vld [vmem:[#allocation3 + $0x7e0] sm:$0xff]
        %v6480 = vld [vmem:[#allocation3 + $0x7e8] sm:$0xff]
        %v6481 = vld [vmem:[#allocation3 + $0x7f0] sm:$0xff]
        %v6482 = vld [vmem:[#allocation3 + $0x7f8] sm:$0xff]
        %v6483 = vld [vmem:[%s5] sm:$0xf]
        %v6485 = vlaneseq
        %v6486 = vshrl.u32 %v6485, 7
        %v6487 = vsub.s32 0, %v6486
        %v6488 = vrot.slane %v6483, %v6487
        %v6489 = vlaneseq
        %v6490 = vshrl.u32 %v6489, 7
        %v6491 = vsub.s32 1, %v6490
        %v6492 = vrot.slane %v6483, %v6491
        %v6493 = vlaneseq
        %v6494 = vshrl.u32 %v6493, 7
        %v6495 = vsub.s32 2, %v6494
        %v6496 = vrot.slane %v6483, %v6495
        %v6497 = vlaneseq
        %v6498 = vshrl.u32 %v6497, 7
        %v6499 = vsub.s32 3, %v6498
        %v6500 = vrot.slane %v6483, %v6499
        %v6761 = vunpack.c.l.b16 %v6227
        %v6762 = vunpack.c.h.b16 %v6227
        %v6763 = vunpack.c.l.b16 %v6228
        %v6764 = vunpack.c.h.b16 %v6228
        %v6765 = vunpack.c.l.b16 %v6229
        %v6766 = vunpack.c.h.b16 %v6229
        %v6767 = vunpack.c.l.b16 %v6230
        %v6768 = vunpack.c.h.b16 %v6230
        %v6769 = vunpack.c.l.b16 %v6231
        %v6770 = vunpack.c.h.b16 %v6231
        %v6771 = vunpack.c.l.b16 %v6232
        %v6772 = vunpack.c.h.b16 %v6232
        %v6773 = vunpack.c.l.b16 %v6233
        %v6774 = vunpack.c.h.b16 %v6233
        %v6775 = vunpack.c.l.b16 %v6234
        %v6776 = vunpack.c.h.b16 %v6234
        %v6777 = vunpack.c.l.b16 %v6235
        %v6778 = vunpack.c.h.b16 %v6235
        %v6779 = vunpack.c.l.b16 %v6236
        %v6780 = vunpack.c.h.b16 %v6236
        %v6781 = vunpack.c.l.b16 %v6237
        %v6782 = vunpack.c.h.b16 %v6237
        %v6783 = vunpack.c.l.b16 %v6238
        %v6784 = vunpack.c.h.b16 %v6238
        %v6785 = vunpack.c.l.b16 %v6239
        %v6786 = vunpack.c.h.b16 %v6239
        %v6787 = vunpack.c.l.b16 %v6240
        %v6788 = vunpack.c.h.b16 %v6240
        %v6789 = vunpack.c.l.b16 %v6241
        %v6790 = vunpack.c.h.b16 %v6241
        %v6791 = vunpack.c.l.b16 %v6242
        %v6792 = vunpack.c.h.b16 %v6242
        %v6793 = vunpack.c.l.b16 %v6243
        %v6794 = vunpack.c.h.b16 %v6243
        %v6795 = vunpack.c.l.b16 %v6244
        %v6796 = vunpack.c.h.b16 %v6244
        %v6797 = vunpack.c.l.b16 %v6245
        %v6798 = vunpack.c.h.b16 %v6245
        %v6799 = vunpack.c.l.b16 %v6246
        %v6800 = vunpack.c.h.b16 %v6246
        %v6801 = vunpack.c.l.b16 %v6247
        %v6802 = vunpack.c.h.b16 %v6247
        %v6803 = vunpack.c.l.b16 %v6248
        %v6804 = vunpack.c.h.b16 %v6248
        %v6805 = vunpack.c.l.b16 %v6249
        %v6806 = vunpack.c.h.b16 %v6249
        %v6807 = vunpack.c.l.b16 %v6250
        %v6808 = vunpack.c.h.b16 %v6250
        %v6809 = vunpack.c.l.b16 %v6251
        %v6810 = vunpack.c.h.b16 %v6251
        %v6811 = vunpack.c.l.b16 %v6252
        %v6812 = vunpack.c.h.b16 %v6252
        %v6813 = vunpack.c.l.b16 %v6253
        %v6814 = vunpack.c.h.b16 %v6253
        %v6815 = vunpack.c.l.b16 %v6254
        %v6816 = vunpack.c.h.b16 %v6254
        %v6817 = vunpack.c.l.b16 %v6255
        %v6818 = vunpack.c.h.b16 %v6255
        %v6819 = vunpack.c.l.b16 %v6256
        %v6820 = vunpack.c.h.b16 %v6256
        %v6821 = vunpack.c.l.b16 %v6257
        %v6822 = vunpack.c.h.b16 %v6257
        %v6823 = vunpack.c.l.b16 %v6258
        %v6824 = vunpack.c.h.b16 %v6258
        %v6825 = vunpack.c.l.b16 %v6259
        %v6826 = vunpack.c.h.b16 %v6259
        %v6827 = vunpack.c.l.b16 %v6260
        %v6828 = vunpack.c.h.b16 %v6260
        %v6829 = vunpack.c.l.b16 %v6261
        %v6830 = vunpack.c.h.b16 %v6261
        %v6831 = vunpack.c.l.b16 %v6262
        %v6832 = vunpack.c.h.b16 %v6262
        %v6833 = vunpack.c.l.b16 %v6263
        %v6834 = vunpack.c.h.b16 %v6263
        %v6835 = vunpack.c.l.b16 %v6264
        %v6836 = vunpack.c.h.b16 %v6264
        %v6837 = vunpack.c.l.b16 %v6265
        %v6838 = vunpack.c.h.b16 %v6265
        %v6839 = vunpack.c.l.b16 %v6266
        %v6840 = vunpack.c.h.b16 %v6266
        %v6841 = vunpack.c.l.b16 %v6267
        %v6842 = vunpack.c.h.b16 %v6267
        %v6843 = vunpack.c.l.b16 %v6268
        %v6844 = vunpack.c.h.b16 %v6268
        %v6845 = vunpack.c.l.b16 %v6269
        %v6846 = vunpack.c.h.b16 %v6269
        %v6847 = vunpack.c.l.b16 %v6270
        %v6848 = vunpack.c.h.b16 %v6270
        %v6849 = vunpack.c.l.b16 %v6271
        %v6850 = vunpack.c.h.b16 %v6271
        %v6851 = vunpack.c.l.b16 %v6272
        %v6852 = vunpack.c.h.b16 %v6272
        %v6853 = vunpack.c.l.b16 %v6273
        %v6854 = vunpack.c.h.b16 %v6273
        %v6855 = vunpack.c.l.b16 %v6274
        %v6856 = vunpack.c.h.b16 %v6274
        %v6857 = vunpack.c.l.b16 %v6275
        %v6858 = vunpack.c.h.b16 %v6275
        %v6859 = vunpack.c.l.b16 %v6276
        %v6860 = vunpack.c.h.b16 %v6276
        %v6861 = vunpack.c.l.b16 %v6277
        %v6862 = vunpack.c.h.b16 %v6277
        %v6863 = vunpack.c.l.b16 %v6278
        %v6864 = vunpack.c.h.b16 %v6278
        %v6865 = vunpack.c.l.b16 %v6279
        %v6866 = vunpack.c.h.b16 %v6279
        %v6867 = vunpack.c.l.b16 %v6280
        %v6868 = vunpack.c.h.b16 %v6280
        %v6869 = vunpack.c.l.b16 %v6281
        %v6870 = vunpack.c.h.b16 %v6281
        %v6871 = vunpack.c.l.b16 %v6282
        %v6872 = vunpack.c.h.b16 %v6282
        %v6873 = vunpack.c.l.b16 %v6283
        %v6874 = vunpack.c.h.b16 %v6283
        %v6875 = vunpack.c.l.b16 %v6284
        %v6876 = vunpack.c.h.b16 %v6284
        %v6877 = vunpack.c.l.b16 %v6285
        %v6878 = vunpack.c.h.b16 %v6285
        %v6879 = vunpack.c.l.b16 %v6286
        %v6880 = vunpack.c.h.b16 %v6286
        %v6881 = vunpack.c.l.b16 %v6287
        %v6882 = vunpack.c.h.b16 %v6287
        %v6883 = vunpack.c.l.b16 %v6288
        %v6884 = vunpack.c.h.b16 %v6288
        %v6885 = vunpack.c.l.b16 %v6289
        %v6886 = vunpack.c.h.b16 %v6289
        %v6887 = vunpack.c.l.b16 %v6290
        %v6888 = vunpack.c.h.b16 %v6290
        %v6889 = vunpack.c.l.b16 %v6291
        %v6890 = vunpack.c.h.b16 %v6291
        %v6891 = vunpack.c.l.b16 %v6292
        %v6892 = vunpack.c.h.b16 %v6292
        %v6893 = vunpack.c.l.b16 %v6293
        %v6894 = vunpack.c.h.b16 %v6293
        %v6895 = vunpack.c.l.b16 %v6294
        %v6896 = vunpack.c.h.b16 %v6294
        %v6897 = vunpack.c.l.b16 %v6295
        %v6898 = vunpack.c.h.b16 %v6295
        %v6899 = vunpack.c.l.b16 %v6296
        %v6900 = vunpack.c.h.b16 %v6296
        %v6901 = vunpack.c.l.b16 %v6297
        %v6902 = vunpack.c.h.b16 %v6297
        %v6903 = vunpack.c.l.b16 %v6298
        %v6904 = vunpack.c.h.b16 %v6298
        %v6905 = vunpack.c.l.b16 %v6299
        %v6906 = vunpack.c.h.b16 %v6299
        %v6907 = vunpack.c.l.b16 %v6300
        %v6908 = vunpack.c.h.b16 %v6300
        %v6909 = vunpack.c.l.b16 %v6301
        %v6910 = vunpack.c.h.b16 %v6301
        %v6911 = vunpack.c.l.b16 %v6302
        %v6912 = vunpack.c.h.b16 %v6302
        %v6913 = vunpack.c.l.b16 %v6303
        %v6914 = vunpack.c.h.b16 %v6303
        %v6915 = vunpack.c.l.b16 %v6304
        %v6916 = vunpack.c.h.b16 %v6304
        %v6917 = vunpack.c.l.b16 %v6305
        %v6918 = vunpack.c.h.b16 %v6305
        %v6919 = vunpack.c.l.b16 %v6306
        %v6920 = vunpack.c.h.b16 %v6306
        %v6921 = vunpack.c.l.b16 %v6307
        %v6922 = vunpack.c.h.b16 %v6307
        %v6923 = vunpack.c.l.b16 %v6308
        %v6924 = vunpack.c.h.b16 %v6308
        %v6925 = vunpack.c.l.b16 %v6309
        %v6926 = vunpack.c.h.b16 %v6309
        %v6927 = vunpack.c.l.b16 %v6310
        %v6928 = vunpack.c.h.b16 %v6310
        %v6929 = vunpack.c.l.b16 %v6311
        %v6930 = vunpack.c.h.b16 %v6311
        %v6931 = vunpack.c.l.b16 %v6312
        %v6932 = vunpack.c.h.b16 %v6312
        %v6933 = vunpack.c.l.b16 %v6313
        %v6934 = vunpack.c.h.b16 %v6313
        %v6935 = vunpack.c.l.b16 %v6314
        %v6936 = vunpack.c.h.b16 %v6314
        %v6937 = vunpack.c.l.b16 %v6315
        %v6938 = vunpack.c.h.b16 %v6315
        %v6939 = vunpack.c.l.b16 %v6316
        %v6940 = vunpack.c.h.b16 %v6316
        %v6941 = vunpack.c.l.b16 %v6317
        %v6942 = vunpack.c.h.b16 %v6317
        %v6943 = vunpack.c.l.b16 %v6318
        %v6944 = vunpack.c.h.b16 %v6318
        %v6945 = vunpack.c.l.b16 %v6319
        %v6946 = vunpack.c.h.b16 %v6319
        %v6947 = vunpack.c.l.b16 %v6320
        %v6948 = vunpack.c.h.b16 %v6320
        %v6949 = vunpack.c.l.b16 %v6321
        %v6950 = vunpack.c.h.b16 %v6321
        %v6951 = vunpack.c.l.b16 %v6322
        %v6952 = vunpack.c.h.b16 %v6322
        %v6953 = vunpack.c.l.b16 %v6323
        %v6954 = vunpack.c.h.b16 %v6323
        %v6955 = vunpack.c.l.b16 %v6324
        %v6956 = vunpack.c.h.b16 %v6324
        %v6957 = vunpack.c.l.b16 %v6325
        %v6958 = vunpack.c.h.b16 %v6325
        %v6959 = vunpack.c.l.b16 %v6326
        %v6960 = vunpack.c.h.b16 %v6326
        %v6961 = vunpack.c.l.b16 %v6327
        %v6962 = vunpack.c.h.b16 %v6327
        %v6963 = vunpack.c.l.b16 %v6328
        %v6964 = vunpack.c.h.b16 %v6328
        %v6965 = vunpack.c.l.b16 %v6329
        %v6966 = vunpack.c.h.b16 %v6329
        %v6967 = vunpack.c.l.b16 %v6330
        %v6968 = vunpack.c.h.b16 %v6330
        %v6969 = vunpack.c.l.b16 %v6331
        %v6970 = vunpack.c.h.b16 %v6331
        %v6971 = vunpack.c.l.b16 %v6332
        %v6972 = vunpack.c.h.b16 %v6332
        %v6973 = vunpack.c.l.b16 %v6333
        %v6974 = vunpack.c.h.b16 %v6333
        %v6975 = vunpack.c.l.b16 %v6334
        %v6976 = vunpack.c.h.b16 %v6334
        %v6977 = vunpack.c.l.b16 %v6335
        %v6978 = vunpack.c.h.b16 %v6335
        %v6979 = vunpack.c.l.b16 %v6336
        %v6980 = vunpack.c.h.b16 %v6336
        %v6981 = vunpack.c.l.b16 %v6337
        %v6982 = vunpack.c.h.b16 %v6337
        %v6983 = vunpack.c.l.b16 %v6338
        %v6984 = vunpack.c.h.b16 %v6338
        %v6985 = vunpack.c.l.b16 %v6339
        %v6986 = vunpack.c.h.b16 %v6339
        %v6987 = vunpack.c.l.b16 %v6340
        %v6988 = vunpack.c.h.b16 %v6340
        %v6989 = vunpack.c.l.b16 %v6341
        %v6990 = vunpack.c.h.b16 %v6341
        %v6991 = vunpack.c.l.b16 %v6342
        %v6992 = vunpack.c.h.b16 %v6342
        %v6993 = vunpack.c.l.b16 %v6343
        %v6994 = vunpack.c.h.b16 %v6343
        %v6995 = vunpack.c.l.b16 %v6344
        %v6996 = vunpack.c.h.b16 %v6344
        %v6997 = vunpack.c.l.b16 %v6345
        %v6998 = vunpack.c.h.b16 %v6345
        %v6999 = vunpack.c.l.b16 %v6346
        %v7000 = vunpack.c.h.b16 %v6346
        %v7001 = vunpack.c.l.b16 %v6347
        %v7002 = vunpack.c.h.b16 %v6347
        %v7003 = vunpack.c.l.b16 %v6348
        %v7004 = vunpack.c.h.b16 %v6348
        %v7005 = vunpack.c.l.b16 %v6349
        %v7006 = vunpack.c.h.b16 %v6349
        %v7007 = vunpack.c.l.b16 %v6350
        %v7008 = vunpack.c.h.b16 %v6350
        %v7009 = vunpack.c.l.b16 %v6351
        %v7010 = vunpack.c.h.b16 %v6351
        %v7011 = vunpack.c.l.b16 %v6352
        %v7012 = vunpack.c.h.b16 %v6352
        %v7013 = vunpack.c.l.b16 %v6353
        %v7014 = vunpack.c.h.b16 %v6353
        %v7015 = vunpack.c.l.b16 %v6354
        %v7016 = vunpack.c.h.b16 %v6354
        %v7017 = vunpack.c.l.b16 %v6355
        %v7018 = vunpack.c.h.b16 %v6355
        %v7019 = vunpack.c.l.b16 %v6356
        %v7020 = vunpack.c.h.b16 %v6356
        %v7021 = vunpack.c.l.b16 %v6357
        %v7022 = vunpack.c.h.b16 %v6357
        %v7023 = vunpack.c.l.b16 %v6358
        %v7024 = vunpack.c.h.b16 %v6358
        %v7025 = vunpack.c.l.b16 %v6359
        %v7026 = vunpack.c.h.b16 %v6359
        %v7027 = vunpack.c.l.b16 %v6360
        %v7028 = vunpack.c.h.b16 %v6360
        %v7029 = vunpack.c.l.b16 %v6361
        %v7030 = vunpack.c.h.b16 %v6361
        %v7031 = vunpack.c.l.b16 %v6362
        %v7032 = vunpack.c.h.b16 %v6362
        %v7033 = vunpack.c.l.b16 %v6363
        %v7034 = vunpack.c.h.b16 %v6363
        %v7035 = vunpack.c.l.b16 %v6364
        %v7036 = vunpack.c.h.b16 %v6364
        %v7037 = vunpack.c.l.b16 %v6365
        %v7038 = vunpack.c.h.b16 %v6365
        %v7039 = vunpack.c.l.b16 %v6366
        %v7040 = vunpack.c.h.b16 %v6366
        %v7041 = vunpack.c.l.b16 %v6367
        %v7042 = vunpack.c.h.b16 %v6367
        %v7043 = vunpack.c.l.b16 %v6368
        %v7044 = vunpack.c.h.b16 %v6368
        %v7045 = vunpack.c.l.b16 %v6369
        %v7046 = vunpack.c.h.b16 %v6369
        %v7047 = vunpack.c.l.b16 %v6370
        %v7048 = vunpack.c.h.b16 %v6370
        %v7049 = vunpack.c.l.b16 %v6371
        %v7050 = vunpack.c.h.b16 %v6371
        %v7051 = vunpack.c.l.b16 %v6372
        %v7052 = vunpack.c.h.b16 %v6372
        %v7053 = vunpack.c.l.b16 %v6373
        %v7054 = vunpack.c.h.b16 %v6373
        %v7055 = vunpack.c.l.b16 %v6374
        %v7056 = vunpack.c.h.b16 %v6374
        %v7057 = vunpack.c.l.b16 %v6375
        %v7058 = vunpack.c.h.b16 %v6375
        %v7059 = vunpack.c.l.b16 %v6376
        %v7060 = vunpack.c.h.b16 %v6376
        %v7061 = vunpack.c.l.b16 %v6377
        %v7062 = vunpack.c.h.b16 %v6377
        %v7063 = vunpack.c.l.b16 %v6378
        %v7064 = vunpack.c.h.b16 %v6378
        %v7065 = vunpack.c.l.b16 %v6379
        %v7066 = vunpack.c.h.b16 %v6379
        %v7067 = vunpack.c.l.b16 %v6380
        %v7068 = vunpack.c.h.b16 %v6380
        %v7069 = vunpack.c.l.b16 %v6381
        %v7070 = vunpack.c.h.b16 %v6381
        %v7071 = vunpack.c.l.b16 %v6382
        %v7072 = vunpack.c.h.b16 %v6382
        %v7073 = vunpack.c.l.b16 %v6383
        %v7074 = vunpack.c.h.b16 %v6383
        %v7075 = vunpack.c.l.b16 %v6384
        %v7076 = vunpack.c.h.b16 %v6384
        %v7077 = vunpack.c.l.b16 %v6385
        %v7078 = vunpack.c.h.b16 %v6385
        %v7079 = vunpack.c.l.b16 %v6386
        %v7080 = vunpack.c.h.b16 %v6386
        %v7081 = vunpack.c.l.b16 %v6387
        %v7082 = vunpack.c.h.b16 %v6387
        %v7083 = vunpack.c.l.b16 %v6388
        %v7084 = vunpack.c.h.b16 %v6388
        %v7085 = vunpack.c.l.b16 %v6389
        %v7086 = vunpack.c.h.b16 %v6389
        %v7087 = vunpack.c.l.b16 %v6390
        %v7088 = vunpack.c.h.b16 %v6390
        %v7089 = vunpack.c.l.b16 %v6391
        %v7090 = vunpack.c.h.b16 %v6391
        %v7091 = vunpack.c.l.b16 %v6392
        %v7092 = vunpack.c.h.b16 %v6392
        %v7093 = vunpack.c.l.b16 %v6393
        %v7094 = vunpack.c.h.b16 %v6393
        %v7095 = vunpack.c.l.b16 %v6394
        %v7096 = vunpack.c.h.b16 %v6394
        %v7097 = vunpack.c.l.b16 %v6395
        %v7098 = vunpack.c.h.b16 %v6395
        %v7099 = vunpack.c.l.b16 %v6396
        %v7100 = vunpack.c.h.b16 %v6396
        %v7101 = vunpack.c.l.b16 %v6397
        %v7102 = vunpack.c.h.b16 %v6397
        %v7103 = vunpack.c.l.b16 %v6398
        %v7104 = vunpack.c.h.b16 %v6398
        %v7105 = vunpack.c.l.b16 %v6399
        %v7106 = vunpack.c.h.b16 %v6399
        %v7107 = vunpack.c.l.b16 %v6400
        %v7108 = vunpack.c.h.b16 %v6400
        %v7109 = vunpack.c.l.b16 %v6401
        %v7110 = vunpack.c.h.b16 %v6401
        %v7111 = vunpack.c.l.b16 %v6402
        %v7112 = vunpack.c.h.b16 %v6402
        %v7113 = vunpack.c.l.b16 %v6403
        %v7114 = vunpack.c.h.b16 %v6403
        %v7115 = vunpack.c.l.b16 %v6404
        %v7116 = vunpack.c.h.b16 %v6404
        %v7117 = vunpack.c.l.b16 %v6405
        %v7118 = vunpack.c.h.b16 %v6405
        %v7119 = vunpack.c.l.b16 %v6406
        %v7120 = vunpack.c.h.b16 %v6406
        %v7121 = vunpack.c.l.b16 %v6407
        %v7122 = vunpack.c.h.b16 %v6407
        %v7123 = vunpack.c.l.b16 %v6408
        %v7124 = vunpack.c.h.b16 %v6408
        %v7125 = vunpack.c.l.b16 %v6409
        %v7126 = vunpack.c.h.b16 %v6409
        %v7127 = vunpack.c.l.b16 %v6410
        %v7128 = vunpack.c.h.b16 %v6410
        %v7129 = vunpack.c.l.b16 %v6411
        %v7130 = vunpack.c.h.b16 %v6411
        %v7131 = vunpack.c.l.b16 %v6412
        %v7132 = vunpack.c.h.b16 %v6412
        %v7133 = vunpack.c.l.b16 %v6413
        %v7134 = vunpack.c.h.b16 %v6413
        %v7135 = vunpack.c.l.b16 %v6414
        %v7136 = vunpack.c.h.b16 %v6414
        %v7137 = vunpack.c.l.b16 %v6415
        %v7138 = vunpack.c.h.b16 %v6415
        %v7139 = vunpack.c.l.b16 %v6416
        %v7140 = vunpack.c.h.b16 %v6416
        %v7141 = vunpack.c.l.b16 %v6417
        %v7142 = vunpack.c.h.b16 %v6417
        %v7143 = vunpack.c.l.b16 %v6418
        %v7144 = vunpack.c.h.b16 %v6418
        %v7145 = vunpack.c.l.b16 %v6419
        %v7146 = vunpack.c.h.b16 %v6419
        %v7147 = vunpack.c.l.b16 %v6420
        %v7148 = vunpack.c.h.b16 %v6420
        %v7149 = vunpack.c.l.b16 %v6421
        %v7150 = vunpack.c.h.b16 %v6421
        %v7151 = vunpack.c.l.b16 %v6422
        %v7152 = vunpack.c.h.b16 %v6422
        %v7153 = vunpack.c.l.b16 %v6423
        %v7154 = vunpack.c.h.b16 %v6423
        %v7155 = vunpack.c.l.b16 %v6424
        %v7156 = vunpack.c.h.b16 %v6424
        %v7157 = vunpack.c.l.b16 %v6425
        %v7158 = vunpack.c.h.b16 %v6425
        %v7159 = vunpack.c.l.b16 %v6426
        %v7160 = vunpack.c.h.b16 %v6426
        %v7161 = vunpack.c.l.b16 %v6427
        %v7162 = vunpack.c.h.b16 %v6427
        %v7163 = vunpack.c.l.b16 %v6428
        %v7164 = vunpack.c.h.b16 %v6428
        %v7165 = vunpack.c.l.b16 %v6429
        %v7166 = vunpack.c.h.b16 %v6429
        %v7167 = vunpack.c.l.b16 %v6430
        %v7168 = vunpack.c.h.b16 %v6430
        %v7169 = vunpack.c.l.b16 %v6431
        %v7170 = vunpack.c.h.b16 %v6431
        %v7171 = vunpack.c.l.b16 %v6432
        %v7172 = vunpack.c.h.b16 %v6432
        %v7173 = vunpack.c.l.b16 %v6433
        %v7174 = vunpack.c.h.b16 %v6433
        %v7175 = vunpack.c.l.b16 %v6434
        %v7176 = vunpack.c.h.b16 %v6434
        %v7177 = vunpack.c.l.b16 %v6435
        %v7178 = vunpack.c.h.b16 %v6435
        %v7179 = vunpack.c.l.b16 %v6436
        %v7180 = vunpack.c.h.b16 %v6436
        %v7181 = vunpack.c.l.b16 %v6437
        %v7182 = vunpack.c.h.b16 %v6437
        %v7183 = vunpack.c.l.b16 %v6438
        %v7184 = vunpack.c.h.b16 %v6438
        %v7185 = vunpack.c.l.b16 %v6439
        %v7186 = vunpack.c.h.b16 %v6439
        %v7187 = vunpack.c.l.b16 %v6440
        %v7188 = vunpack.c.h.b16 %v6440
        %v7189 = vunpack.c.l.b16 %v6441
        %v7190 = vunpack.c.h.b16 %v6441
        %v7191 = vunpack.c.l.b16 %v6442
        %v7192 = vunpack.c.h.b16 %v6442
        %v7193 = vunpack.c.l.b16 %v6443
        %v7194 = vunpack.c.h.b16 %v6443
        %v7195 = vunpack.c.l.b16 %v6444
        %v7196 = vunpack.c.h.b16 %v6444
        %v7197 = vunpack.c.l.b16 %v6445
        %v7198 = vunpack.c.h.b16 %v6445
        %v7199 = vunpack.c.l.b16 %v6446
        %v7200 = vunpack.c.h.b16 %v6446
        %v7201 = vunpack.c.l.b16 %v6447
        %v7202 = vunpack.c.h.b16 %v6447
        %v7203 = vunpack.c.l.b16 %v6448
        %v7204 = vunpack.c.h.b16 %v6448
        %v7205 = vunpack.c.l.b16 %v6449
        %v7206 = vunpack.c.h.b16 %v6449
        %v7207 = vunpack.c.l.b16 %v6450
        %v7208 = vunpack.c.h.b16 %v6450
        %v7209 = vunpack.c.l.b16 %v6451
        %v7210 = vunpack.c.h.b16 %v6451
        %v7211 = vunpack.c.l.b16 %v6452
        %v7212 = vunpack.c.h.b16 %v6452
        %v7213 = vunpack.c.l.b16 %v6453
        %v7214 = vunpack.c.h.b16 %v6453
        %v7215 = vunpack.c.l.b16 %v6454
        %v7216 = vunpack.c.h.b16 %v6454
        %v7217 = vunpack.c.l.b16 %v6455
        %v7218 = vunpack.c.h.b16 %v6455
        %v7219 = vunpack.c.l.b16 %v6456
        %v7220 = vunpack.c.h.b16 %v6456
        %v7221 = vunpack.c.l.b16 %v6457
        %v7222 = vunpack.c.h.b16 %v6457
        %v7223 = vunpack.c.l.b16 %v6458
        %v7224 = vunpack.c.h.b16 %v6458
        %v7225 = vunpack.c.l.b16 %v6459
        %v7226 = vunpack.c.h.b16 %v6459
        %v7227 = vunpack.c.l.b16 %v6460
        %v7228 = vunpack.c.h.b16 %v6460
        %v7229 = vunpack.c.l.b16 %v6461
        %v7230 = vunpack.c.h.b16 %v6461
        %v7231 = vunpack.c.l.b16 %v6462
        %v7232 = vunpack.c.h.b16 %v6462
        %v7233 = vunpack.c.l.b16 %v6463
        %v7234 = vunpack.c.h.b16 %v6463
        %v7235 = vunpack.c.l.b16 %v6464
        %v7236 = vunpack.c.h.b16 %v6464
        %v7237 = vunpack.c.l.b16 %v6465
        %v7238 = vunpack.c.h.b16 %v6465
        %v7239 = vunpack.c.l.b16 %v6466
        %v7240 = vunpack.c.h.b16 %v6466
        %v7241 = vunpack.c.l.b16 %v6467
        %v7242 = vunpack.c.h.b16 %v6467
        %v7243 = vunpack.c.l.b16 %v6468
        %v7244 = vunpack.c.h.b16 %v6468
        %v7245 = vunpack.c.l.b16 %v6469
        %v7246 = vunpack.c.h.b16 %v6469
        %v7247 = vunpack.c.l.b16 %v6470
        %v7248 = vunpack.c.h.b16 %v6470
        %v7249 = vunpack.c.l.b16 %v6471
        %v7250 = vunpack.c.h.b16 %v6471
        %v7251 = vunpack.c.l.b16 %v6472
        %v7252 = vunpack.c.h.b16 %v6472
        %v7253 = vunpack.c.l.b16 %v6473
        %v7254 = vunpack.c.h.b16 %v6473
        %v7255 = vunpack.c.l.b16 %v6474
        %v7256 = vunpack.c.h.b16 %v6474
        %v7257 = vunpack.c.l.b16 %v6475
        %v7258 = vunpack.c.h.b16 %v6475
        %v7259 = vunpack.c.l.b16 %v6476
        %v7260 = vunpack.c.h.b16 %v6476
        %v7261 = vunpack.c.l.b16 %v6477
        %v7262 = vunpack.c.h.b16 %v6477
        %v7263 = vunpack.c.l.b16 %v6478
        %v7264 = vunpack.c.h.b16 %v6478
        %v7265 = vunpack.c.l.b16 %v6479
        %v7266 = vunpack.c.h.b16 %v6479
        %v7267 = vunpack.c.l.b16 %v6480
        %v7268 = vunpack.c.h.b16 %v6480
        %v7269 = vunpack.c.l.b16 %v6481
        %v7270 = vunpack.c.h.b16 %v6481
        %v7271 = vunpack.c.l.b16 %v6482
        %v7272 = vunpack.c.h.b16 %v6482
        %v7273 = vpack.c.b16 %v6765, %v6761
        %v7274 = vpack.c.b16 %v6766, %v6762
        %v7275 = vpack.c.b16 %v6767, %v6763
        %v7276 = vpack.c.b16 %v6768, %v6764
        %v7277 = vpack.c.b16 %v6773, %v6769
        %v7278 = vpack.c.b16 %v6774, %v6770
        %v7279 = vpack.c.b16 %v6775, %v6771
        %v7280 = vpack.c.b16 %v6776, %v6772
        %v7281 = vpack.c.b16 %v6781, %v6777
        %v7282 = vpack.c.b16 %v6782, %v6778
        %v7283 = vpack.c.b16 %v6783, %v6779
        %v7284 = vpack.c.b16 %v6784, %v6780
        %v7285 = vpack.c.b16 %v6789, %v6785
        %v7286 = vpack.c.b16 %v6790, %v6786
        %v7287 = vpack.c.b16 %v6791, %v6787
        %v7288 = vpack.c.b16 %v6792, %v6788
        %v7289 = vpack.c.b16 %v6797, %v6793
        %v7290 = vpack.c.b16 %v6798, %v6794
        %v7291 = vpack.c.b16 %v6799, %v6795
        %v7292 = vpack.c.b16 %v6800, %v6796
        %v7293 = vpack.c.b16 %v6805, %v6801
        %v7294 = vpack.c.b16 %v6806, %v6802
        %v7295 = vpack.c.b16 %v6807, %v6803
        %v7296 = vpack.c.b16 %v6808, %v6804
        %v7297 = vpack.c.b16 %v6813, %v6809
        %v7298 = vpack.c.b16 %v6814, %v6810
        %v7299 = vpack.c.b16 %v6815, %v6811
        %v7300 = vpack.c.b16 %v6816, %v6812
        %v7301 = vpack.c.b16 %v6821, %v6817
        %v7302 = vpack.c.b16 %v6822, %v6818
        %v7303 = vpack.c.b16 %v6823, %v6819
        %v7304 = vpack.c.b16 %v6824, %v6820
        %v7305 = vpack.c.b16 %v6829, %v6825
        %v7306 = vpack.c.b16 %v6830, %v6826
        %v7307 = vpack.c.b16 %v6831, %v6827
        %v7308 = vpack.c.b16 %v6832, %v6828
        %v7309 = vpack.c.b16 %v6837, %v6833
        %v7310 = vpack.c.b16 %v6838, %v6834
        %v7311 = vpack.c.b16 %v6839, %v6835
        %v7312 = vpack.c.b16 %v6840, %v6836
        %v7313 = vpack.c.b16 %v6845, %v6841
        %v7314 = vpack.c.b16 %v6846, %v6842
        %v7315 = vpack.c.b16 %v6847, %v6843
        %v7316 = vpack.c.b16 %v6848, %v6844
        %v7317 = vpack.c.b16 %v6853, %v6849
        %v7318 = vpack.c.b16 %v6854, %v6850
        %v7319 = vpack.c.b16 %v6855, %v6851
        %v7320 = vpack.c.b16 %v6856, %v6852
        %v7321 = vpack.c.b16 %v6861, %v6857
        %v7322 = vpack.c.b16 %v6862, %v6858
        %v7323 = vpack.c.b16 %v6863, %v6859
        %v7324 = vpack.c.b16 %v6864, %v6860
        %v7325 = vpack.c.b16 %v6869, %v6865
        %v7326 = vpack.c.b16 %v6870, %v6866
        %v7327 = vpack.c.b16 %v6871, %v6867
        %v7328 = vpack.c.b16 %v6872, %v6868
        %v7329 = vpack.c.b16 %v6877, %v6873
        %v7330 = vpack.c.b16 %v6878, %v6874
        %v7331 = vpack.c.b16 %v6879, %v6875
        %v7332 = vpack.c.b16 %v6880, %v6876
        %v7333 = vpack.c.b16 %v6885, %v6881
        %v7334 = vpack.c.b16 %v6886, %v6882
        %v7335 = vpack.c.b16 %v6887, %v6883
        %v7336 = vpack.c.b16 %v6888, %v6884
        %v7337 = vpack.c.b16 %v6893, %v6889
        %v7338 = vpack.c.b16 %v6894, %v6890
        %v7339 = vpack.c.b16 %v6895, %v6891
        %v7340 = vpack.c.b16 %v6896, %v6892
        %v7341 = vpack.c.b16 %v6901, %v6897
        %v7342 = vpack.c.b16 %v6902, %v6898
        %v7343 = vpack.c.b16 %v6903, %v6899
        %v7344 = vpack.c.b16 %v6904, %v6900
        %v7345 = vpack.c.b16 %v6909, %v6905
        %v7346 = vpack.c.b16 %v6910, %v6906
        %v7347 = vpack.c.b16 %v6911, %v6907
        %v7348 = vpack.c.b16 %v6912, %v6908
        %v7349 = vpack.c.b16 %v6917, %v6913
        %v7350 = vpack.c.b16 %v6918, %v6914
        %v7351 = vpack.c.b16 %v6919, %v6915
        %v7352 = vpack.c.b16 %v6920, %v6916
        %v7353 = vpack.c.b16 %v6925, %v6921
        %v7354 = vpack.c.b16 %v6926, %v6922
        %v7355 = vpack.c.b16 %v6927, %v6923
        %v7356 = vpack.c.b16 %v6928, %v6924
        %v7357 = vpack.c.b16 %v6933, %v6929
        %v7358 = vpack.c.b16 %v6934, %v6930
        %v7359 = vpack.c.b16 %v6935, %v6931
        %v7360 = vpack.c.b16 %v6936, %v6932
        %v7361 = vpack.c.b16 %v6941, %v6937
        %v7362 = vpack.c.b16 %v6942, %v6938
        %v7363 = vpack.c.b16 %v6943, %v6939
        %v7364 = vpack.c.b16 %v6944, %v6940
        %v7365 = vpack.c.b16 %v6949, %v6945
        %v7366 = vpack.c.b16 %v6950, %v6946
        %v7367 = vpack.c.b16 %v6951, %v6947
        %v7368 = vpack.c.b16 %v6952, %v6948
        %v7369 = vpack.c.b16 %v6957, %v6953
        %v7370 = vpack.c.b16 %v6958, %v6954
        %v7371 = vpack.c.b16 %v6959, %v6955
        %v7372 = vpack.c.b16 %v6960, %v6956
        %v7373 = vpack.c.b16 %v6965, %v6961
        %v7374 = vpack.c.b16 %v6966, %v6962
        %v7375 = vpack.c.b16 %v6967, %v6963
        %v7376 = vpack.c.b16 %v6968, %v6964
        %v7377 = vpack.c.b16 %v6973, %v6969
        %v7378 = vpack.c.b16 %v6974, %v6970
        %v7379 = vpack.c.b16 %v6975, %v6971
        %v7380 = vpack.c.b16 %v6976, %v6972
        %v7381 = vpack.c.b16 %v6981, %v6977
        %v7382 = vpack.c.b16 %v6982, %v6978
        %v7383 = vpack.c.b16 %v6983, %v6979
        %v7384 = vpack.c.b16 %v6984, %v6980
        %v7385 = vpack.c.b16 %v6989, %v6985
        %v7386 = vpack.c.b16 %v6990, %v6986
        %v7387 = vpack.c.b16 %v6991, %v6987
        %v7388 = vpack.c.b16 %v6992, %v6988
        %v7389 = vpack.c.b16 %v6997, %v6993
        %v7390 = vpack.c.b16 %v6998, %v6994
        %v7391 = vpack.c.b16 %v6999, %v6995
        %v7392 = vpack.c.b16 %v7000, %v6996
        %v7393 = vpack.c.b16 %v7005, %v7001
        %v7394 = vpack.c.b16 %v7006, %v7002
        %v7395 = vpack.c.b16 %v7007, %v7003
        %v7396 = vpack.c.b16 %v7008, %v7004
        %v7397 = vpack.c.b16 %v7013, %v7009
        %v7398 = vpack.c.b16 %v7014, %v7010
        %v7399 = vpack.c.b16 %v7015, %v7011
        %v7400 = vpack.c.b16 %v7016, %v7012
        %v7401 = vpack.c.b16 %v7021, %v7017
        %v7402 = vpack.c.b16 %v7022, %v7018
        %v7403 = vpack.c.b16 %v7023, %v7019
        %v7404 = vpack.c.b16 %v7024, %v7020
        %v7405 = vpack.c.b16 %v7029, %v7025
        %v7406 = vpack.c.b16 %v7030, %v7026
        %v7407 = vpack.c.b16 %v7031, %v7027
        %v7408 = vpack.c.b16 %v7032, %v7028
        %v7409 = vpack.c.b16 %v7037, %v7033
        %v7410 = vpack.c.b16 %v7038, %v7034
        %v7411 = vpack.c.b16 %v7039, %v7035
        %v7412 = vpack.c.b16 %v7040, %v7036
        %v7413 = vpack.c.b16 %v7045, %v7041
        %v7414 = vpack.c.b16 %v7046, %v7042
        %v7415 = vpack.c.b16 %v7047, %v7043
        %v7416 = vpack.c.b16 %v7048, %v7044
        %v7417 = vpack.c.b16 %v7053, %v7049
        %v7418 = vpack.c.b16 %v7054, %v7050
        %v7419 = vpack.c.b16 %v7055, %v7051
        %v7420 = vpack.c.b16 %v7056, %v7052
        %v7421 = vpack.c.b16 %v7061, %v7057
        %v7422 = vpack.c.b16 %v7062, %v7058
        %v7423 = vpack.c.b16 %v7063, %v7059
        %v7424 = vpack.c.b16 %v7064, %v7060
        %v7425 = vpack.c.b16 %v7069, %v7065
        %v7426 = vpack.c.b16 %v7070, %v7066
        %v7427 = vpack.c.b16 %v7071, %v7067
        %v7428 = vpack.c.b16 %v7072, %v7068
        %v7429 = vpack.c.b16 %v7077, %v7073
        %v7430 = vpack.c.b16 %v7078, %v7074
        %v7431 = vpack.c.b16 %v7079, %v7075
        %v7432 = vpack.c.b16 %v7080, %v7076
        %v7433 = vpack.c.b16 %v7085, %v7081
        %v7434 = vpack.c.b16 %v7086, %v7082
        %v7435 = vpack.c.b16 %v7087, %v7083
        %v7436 = vpack.c.b16 %v7088, %v7084
        %v7437 = vpack.c.b16 %v7093, %v7089
        %v7438 = vpack.c.b16 %v7094, %v7090
        %v7439 = vpack.c.b16 %v7095, %v7091
        %v7440 = vpack.c.b16 %v7096, %v7092
        %v7441 = vpack.c.b16 %v7101, %v7097
        %v7442 = vpack.c.b16 %v7102, %v7098
        %v7443 = vpack.c.b16 %v7103, %v7099
        %v7444 = vpack.c.b16 %v7104, %v7100
        %v7445 = vpack.c.b16 %v7109, %v7105
        %v7446 = vpack.c.b16 %v7110, %v7106
        %v7447 = vpack.c.b16 %v7111, %v7107
        %v7448 = vpack.c.b16 %v7112, %v7108
        %v7449 = vpack.c.b16 %v7117, %v7113
        %v7450 = vpack.c.b16 %v7118, %v7114
        %v7451 = vpack.c.b16 %v7119, %v7115
        %v7452 = vpack.c.b16 %v7120, %v7116
        %v7453 = vpack.c.b16 %v7125, %v7121
        %v7454 = vpack.c.b16 %v7126, %v7122
        %v7455 = vpack.c.b16 %v7127, %v7123
        %v7456 = vpack.c.b16 %v7128, %v7124
        %v7457 = vpack.c.b16 %v7133, %v7129
        %v7458 = vpack.c.b16 %v7134, %v7130
        %v7459 = vpack.c.b16 %v7135, %v7131
        %v7460 = vpack.c.b16 %v7136, %v7132
        %v7461 = vpack.c.b16 %v7141, %v7137
        %v7462 = vpack.c.b16 %v7142, %v7138
        %v7463 = vpack.c.b16 %v7143, %v7139
        %v7464 = vpack.c.b16 %v7144, %v7140
        %v7465 = vpack.c.b16 %v7149, %v7145
        %v7466 = vpack.c.b16 %v7150, %v7146
        %v7467 = vpack.c.b16 %v7151, %v7147
        %v7468 = vpack.c.b16 %v7152, %v7148
        %v7469 = vpack.c.b16 %v7157, %v7153
        %v7470 = vpack.c.b16 %v7158, %v7154
        %v7471 = vpack.c.b16 %v7159, %v7155
        %v7472 = vpack.c.b16 %v7160, %v7156
        %v7473 = vpack.c.b16 %v7165, %v7161
        %v7474 = vpack.c.b16 %v7166, %v7162
        %v7475 = vpack.c.b16 %v7167, %v7163
        %v7476 = vpack.c.b16 %v7168, %v7164
        %v7477 = vpack.c.b16 %v7173, %v7169
        %v7478 = vpack.c.b16 %v7174, %v7170
        %v7479 = vpack.c.b16 %v7175, %v7171
        %v7480 = vpack.c.b16 %v7176, %v7172
        %v7481 = vpack.c.b16 %v7181, %v7177
        %v7482 = vpack.c.b16 %v7182, %v7178
        %v7483 = vpack.c.b16 %v7183, %v7179
        %v7484 = vpack.c.b16 %v7184, %v7180
        %v7485 = vpack.c.b16 %v7189, %v7185
        %v7486 = vpack.c.b16 %v7190, %v7186
        %v7487 = vpack.c.b16 %v7191, %v7187
        %v7488 = vpack.c.b16 %v7192, %v7188
        %v7489 = vpack.c.b16 %v7197, %v7193
        %v7490 = vpack.c.b16 %v7198, %v7194
        %v7491 = vpack.c.b16 %v7199, %v7195
        %v7492 = vpack.c.b16 %v7200, %v7196
        %v7493 = vpack.c.b16 %v7205, %v7201
        %v7494 = vpack.c.b16 %v7206, %v7202
        %v7495 = vpack.c.b16 %v7207, %v7203
        %v7496 = vpack.c.b16 %v7208, %v7204
        %v7497 = vpack.c.b16 %v7213, %v7209
        %v7498 = vpack.c.b16 %v7214, %v7210
        %v7499 = vpack.c.b16 %v7215, %v7211
        %v7500 = vpack.c.b16 %v7216, %v7212
        %v7501 = vpack.c.b16 %v7221, %v7217
        %v7502 = vpack.c.b16 %v7222, %v7218
        %v7503 = vpack.c.b16 %v7223, %v7219
        %v7504 = vpack.c.b16 %v7224, %v7220
        %v7505 = vpack.c.b16 %v7229, %v7225
        %v7506 = vpack.c.b16 %v7230, %v7226
        %v7507 = vpack.c.b16 %v7231, %v7227
        %v7508 = vpack.c.b16 %v7232, %v7228
        %v7509 = vpack.c.b16 %v7237, %v7233
        %v7510 = vpack.c.b16 %v7238, %v7234
        %v7511 = vpack.c.b16 %v7239, %v7235
        %v7512 = vpack.c.b16 %v7240, %v7236
        %v7513 = vpack.c.b16 %v7245, %v7241
        %v7514 = vpack.c.b16 %v7246, %v7242
        %v7515 = vpack.c.b16 %v7247, %v7243
        %v7516 = vpack.c.b16 %v7248, %v7244
        %v7517 = vpack.c.b16 %v7253, %v7249
        %v7518 = vpack.c.b16 %v7254, %v7250
        %v7519 = vpack.c.b16 %v7255, %v7251
        %v7520 = vpack.c.b16 %v7256, %v7252
        %v7521 = vpack.c.b16 %v7261, %v7257
        %v7522 = vpack.c.b16 %v7262, %v7258
        %v7523 = vpack.c.b16 %v7263, %v7259
        %v7524 = vpack.c.b16 %v7264, %v7260
        %v7525 = vpack.c.b16 %v7269, %v7265
        %v7526 = vpack.c.b16 %v7270, %v7266
        %v7527 = vpack.c.b16 %v7271, %v7267
        %v7528 = vpack.c.b16 %v7272, %v7268
        %7785 = vmatprep.subr.bf16.mxu0 %v7302
        %7786 = vmatpush1.bf16.msra.mxu0 %v7301
        %7787 = vmatprep.subr.bf16.mxu0 %v7298
        %7788 = vmatpush1.bf16.msra.mxu0 %v7297
        %7789 = vmatprep.subr.bf16.mxu0 %v7294
        %7790 = vmatpush1.bf16.msra.mxu0 %v7293
        %7791 = vmatprep.subr.bf16.mxu0 %v7290
        %7792 = vmatpush1.bf16.msra.mxu0 %v7289
        %7793 = vmatprep.subr.bf16.mxu0 %v7286
        %7794 = vmatpush1.bf16.msra.mxu0 %v7285
        %7795 = vmatprep.subr.bf16.mxu0 %v7282
        %7796 = vmatpush1.bf16.msra.mxu0 %v7281
        %7797 = vmatprep.subr.bf16.mxu0 %v7278
        %7798 = vmatpush1.bf16.msra.mxu0 %v7277
        %7799 = vmatprep.subr.bf16.mxu0 %v7274
        %7800 = vmatpush1.bf16.msra.mxu0 %v7273
        %7801 = vmatprep.subr.bf16.mxu0 %v7334
        %7802 = vmatpush2.bf16.msra.mxu0 %v7333
        %7803 = vmatprep.subr.bf16.mxu0 %v7330
        %7804 = vmatpush2.bf16.msra.mxu0 %v7329
        %7805 = vmatprep.subr.bf16.mxu0 %v7326
        %7806 = vmatpush2.bf16.msra.mxu0 %v7325
        %7807 = vmatprep.subr.bf16.mxu0 %v7322
        %7808 = vmatpush2.bf16.msra.mxu0 %v7321
        %7809 = vmatprep.subr.bf16.mxu0 %v7318
        %7810 = vmatpush2.bf16.msra.mxu0 %v7317
        %7811 = vmatprep.subr.bf16.mxu0 %v7314
        %7812 = vmatpush2.bf16.msra.mxu0 %v7313
        %7813 = vmatprep.subr.bf16.mxu0 %v7310
        %7814 = vmatpush2.bf16.msra.mxu0 %v7309
        %7815 = vmatprep.subr.bf16.mxu0 %v7306
        %7816 = vmatpush2.bf16.msra.mxu0 %v7305
        %7817 = vmatprep.mubr.bf16.mxu0 %v6164
        %7818 = vmatmul.mubr.bf16.gmra.mxu0 %v6163
        %v7819 = vpop.f32.mrf.mxu0
        %v7820 = vadd.f32 %v6488, %v7819
        %v7821 = vpop.f32.mrf.mxu0
        %v7822 = vadd.f32 %v6492, %v7821
        %v7823 = vpop.f32.mrf.mxu0
        %v7824 = vadd.f32 %v6488, %v7823
        %v7825 = vpop.f32.mrf.mxu0
        %v7826 = vadd.f32 %v6492, %v7825
        %7827 = vmatprep.mubr.bf16.mxu0 %v6172
        %7828 = vmatmul.mubr.bf16.gmra.mxu0 %v6171
        %v7829 = vpop.f32.mrf.mxu0
        %v7830 = vadd.f32 %v6488, %v7829
        %v7831 = vpop.f32.mrf.mxu0
        %v7832 = vadd.f32 %v6492, %v7831
        %v7833 = vpop.f32.mrf.mxu0
        %v7834 = vadd.f32 %v6488, %v7833
        %v7835 = vpop.f32.mrf.mxu0
        %v7836 = vadd.f32 %v6492, %v7835
        %7837 = vmatprep.mubr.bf16.mxu0 %v6180
        %7838 = vmatmul.mubr.bf16.gmra.mxu0 %v6179
        %v7839 = vpop.f32.mrf.mxu0
        %v7840 = vadd.f32 %v6488, %v7839
        %v7841 = vpop.f32.mrf.mxu0
        %v7842 = vadd.f32 %v6492, %v7841
        %v7843 = vpop.f32.mrf.mxu0
        %v7844 = vadd.f32 %v6488, %v7843
        %v7845 = vpop.f32.mrf.mxu0
        %v7846 = vadd.f32 %v6492, %v7845
        %7847 = vmatprep.mubr.bf16.mxu0 %v6188
        %7848 = vmatmul.mubr.bf16.gmra.mxu0 %v6187
        %v7849 = vpop.f32.mrf.mxu0
        %v7850 = vadd.f32 %v6488, %v7849
        %v7851 = vpop.f32.mrf.mxu0
        %v7852 = vadd.f32 %v6492, %v7851
        %v7853 = vpop.f32.mrf.mxu0
        %v7854 = vadd.f32 %v6488, %v7853
        %v7855 = vpop.f32.mrf.mxu0
        %v7856 = vadd.f32 %v6492, %v7855
        %7857 = vmatprep.mubr.bf16.mxu0 %v6196
        %7858 = vmatmul.mubr.bf16.gmra.mxu0 %v6195
        %v7859 = vpop.f32.mrf.mxu0
        %v7860 = vadd.f32 %v6488, %v7859
        %v7861 = vpop.f32.mrf.mxu0
        %v7862 = vadd.f32 %v6492, %v7861
        %v7863 = vpop.f32.mrf.mxu0
        %v7864 = vadd.f32 %v6488, %v7863
        %v7865 = vpop.f32.mrf.mxu0
        %v7866 = vadd.f32 %v6492, %v7865
        %7867 = vmatprep.mubr.bf16.mxu0 %v6204
        %7868 = vmatmul.mubr.bf16.gmra.mxu0 %v6203
        %v7869 = vpop.f32.mrf.mxu0
        %v7870 = vadd.f32 %v6488, %v7869
        %v7871 = vpop.f32.mrf.mxu0
        %v7872 = vadd.f32 %v6492, %v7871
        %v7873 = vpop.f32.mrf.mxu0
        %v7874 = vadd.f32 %v6488, %v7873
        %v7875 = vpop.f32.mrf.mxu0
        %v7876 = vadd.f32 %v6492, %v7875
        %7877 = vmatprep.mubr.bf16.mxu0 %v6212
        %7878 = vmatmul.mubr.bf16.gmra.mxu0 %v6211
        %v7879 = vpop.f32.mrf.mxu0
        %v7880 = vadd.f32 %v6488, %v7879
        %v7881 = vpop.f32.mrf.mxu0
        %v7882 = vadd.f32 %v6492, %v7881
        %v7883 = vpop.f32.mrf.mxu0
        %v7884 = vadd.f32 %v6488, %v7883
        %v7885 = vpop.f32.mrf.mxu0
        %v7886 = vadd.f32 %v6492, %v7885
        %7887 = vmatprep.mubr.bf16.mxu0 %v6220
        %7888 = vmatmul.mubr.bf16.gmra.mxu0 %v6219
        %v7889 = vpop.f32.mrf.mxu0
        %v7890 = vadd.f32 %v6488, %v7889
        %v7891 = vpop.f32.mrf.mxu0
        %v7892 = vadd.f32 %v6492, %v7891
        %v7893 = vpop.f32.mrf.mxu0
        %v7894 = vadd.f32 %v6488, %v7893
        %v7895 = vpop.f32.mrf.mxu0
        %v7896 = vadd.f32 %v6492, %v7895
        %7897 = vdwg.mxu0
        %7898 = vmatprep.subr.bf16.mxu0 %v7366
        %7899 = vmatpush1.bf16.msra.mxu0 %v7365
        %7900 = vmatprep.subr.bf16.mxu0 %v7362
        %7901 = vmatpush1.bf16.msra.mxu0 %v7361
        %7902 = vmatprep.subr.bf16.mxu0 %v7358
        %7903 = vmatpush1.bf16.msra.mxu0 %v7357
        %7904 = vmatprep.subr.bf16.mxu0 %v7354
        %7905 = vmatpush1.bf16.msra.mxu0 %v7353
        %7906 = vmatprep.subr.bf16.mxu0 %v7350
        %7907 = vmatpush1.bf16.msra.mxu0 %v7349
        %7908 = vmatprep.subr.bf16.mxu0 %v7346
        %7909 = vmatpush1.bf16.msra.mxu0 %v7345
        %7910 = vmatprep.subr.bf16.mxu0 %v7342
        %7911 = vmatpush1.bf16.msra.mxu0 %v7341
        %7912 = vmatprep.subr.bf16.mxu0 %v7338
        %7913 = vmatpush1.bf16.msra.mxu0 %v7337
        %7914 = vmatprep.subr.bf16.mxu0 %v7398
        %7915 = vmatpush2.bf16.msra.mxu0 %v7397
        %7916 = vmatprep.subr.bf16.mxu0 %v7394
        %7917 = vmatpush2.bf16.msra.mxu0 %v7393
        %7918 = vmatprep.subr.bf16.mxu0 %v7390
        %7919 = vmatpush2.bf16.msra.mxu0 %v7389
        %7920 = vmatprep.subr.bf16.mxu0 %v7386
        %7921 = vmatpush2.bf16.msra.mxu0 %v7385
        %7922 = vmatprep.subr.bf16.mxu0 %v7382
        %7923 = vmatpush2.bf16.msra.mxu0 %v7381
        %7924 = vmatprep.subr.bf16.mxu0 %v7378
        %7925 = vmatpush2.bf16.msra.mxu0 %v7377
        %7926 = vmatprep.subr.bf16.mxu0 %v7374
        %7927 = vmatpush2.bf16.msra.mxu0 %v7373
        %7928 = vmatprep.subr.bf16.mxu0 %v7370
        %7929 = vmatpush2.bf16.msra.mxu0 %v7369
        %7930 = vmatprep.mubr.bf16.mxu0 %v6166
        %7931 = vmatmul.mubr.bf16.gmra.mxu0 %v6165
        %v7932 = vpop.f32.mrf.mxu0
        %v7933 = vadd.f32 %v7820, %v7932
        %v7934 = vpop.f32.mrf.mxu0
        %v7935 = vadd.f32 %v7822, %v7934
        %v7936 = vpop.f32.mrf.mxu0
        %v7937 = vadd.f32 %v7824, %v7936
        %v7938 = vpop.f32.mrf.mxu0
        %v7939 = vadd.f32 %v7826, %v7938
        %7940 = vmatprep.mubr.bf16.mxu0 %v6174
        %7941 = vmatmul.mubr.bf16.gmra.mxu0 %v6173
        %v7942 = vpop.f32.mrf.mxu0
        %v7943 = vadd.f32 %v7830, %v7942
        %v7944 = vpop.f32.mrf.mxu0
        %v7945 = vadd.f32 %v7832, %v7944
        %v7946 = vpop.f32.mrf.mxu0
        %v7947 = vadd.f32 %v7834, %v7946
        %v7948 = vpop.f32.mrf.mxu0
        %v7949 = vadd.f32 %v7836, %v7948
        %7950 = vmatprep.mubr.bf16.mxu0 %v6182
        %7951 = vmatmul.mubr.bf16.gmra.mxu0 %v6181
        %v7952 = vpop.f32.mrf.mxu0
        %v7953 = vadd.f32 %v7840, %v7952
        %v7954 = vpop.f32.mrf.mxu0
        %v7955 = vadd.f32 %v7842, %v7954
        %v7956 = vpop.f32.mrf.mxu0
        %v7957 = vadd.f32 %v7844, %v7956
        %v7958 = vpop.f32.mrf.mxu0
        %v7959 = vadd.f32 %v7846, %v7958
        %7960 = vmatprep.mubr.bf16.mxu0 %v6190
        %7961 = vmatmul.mubr.bf16.gmra.mxu0 %v6189
        %v7962 = vpop.f32.mrf.mxu0
        %v7963 = vadd.f32 %v7850, %v7962
        %v7964 = vpop.f32.mrf.mxu0
        %v7965 = vadd.f32 %v7852, %v7964
        %v7966 = vpop.f32.mrf.mxu0
        %v7967 = vadd.f32 %v7854, %v7966
        %v7968 = vpop.f32.mrf.mxu0
        %v7969 = vadd.f32 %v7856, %v7968
        %7970 = vmatprep.mubr.bf16.mxu0 %v6198
        %7971 = vmatmul.mubr.bf16.gmra.mxu0 %v6197
        %v7972 = vpop.f32.mrf.mxu0
        %v7973 = vadd.f32 %v7860, %v7972
        %v7974 = vpop.f32.mrf.mxu0
        %v7975 = vadd.f32 %v7862, %v7974
        %v7976 = vpop.f32.mrf.mxu0
        %v7977 = vadd.f32 %v7864, %v7976
        %v7978 = vpop.f32.mrf.mxu0
        %v7979 = vadd.f32 %v7866, %v7978
        %7980 = vmatprep.mubr.bf16.mxu0 %v6206
        %7981 = vmatmul.mubr.bf16.gmra.mxu0 %v6205
        %v7982 = vpop.f32.mrf.mxu0
        %v7983 = vadd.f32 %v7870, %v7982
        %v7984 = vpop.f32.mrf.mxu0
        %v7985 = vadd.f32 %v7872, %v7984
        %v7986 = vpop.f32.mrf.mxu0
        %v7987 = vadd.f32 %v7874, %v7986
        %v7988 = vpop.f32.mrf.mxu0
        %v7989 = vadd.f32 %v7876, %v7988
        %7990 = vmatprep.mubr.bf16.mxu0 %v6214
        %7991 = vmatmul.mubr.bf16.gmra.mxu0 %v6213
        %v7992 = vpop.f32.mrf.mxu0
        %v7993 = vadd.f32 %v7880, %v7992
        %v7994 = vpop.f32.mrf.mxu0
        %v7995 = vadd.f32 %v7882, %v7994
        %v7996 = vpop.f32.mrf.mxu0
        %v7997 = vadd.f32 %v7884, %v7996
        %v7998 = vpop.f32.mrf.mxu0
        %v7999 = vadd.f32 %v7886, %v7998
        %8000 = vmatprep.mubr.bf16.mxu0 %v6222
        %8001 = vmatmul.mubr.bf16.gmra.mxu0 %v6221
        %v8002 = vpop.f32.mrf.mxu0
        %v8003 = vadd.f32 %v7890, %v8002
        %v8004 = vpop.f32.mrf.mxu0
        %v8005 = vadd.f32 %v7892, %v8004
        %v8006 = vpop.f32.mrf.mxu0
        %v8007 = vadd.f32 %v7894, %v8006
        %v8008 = vpop.f32.mrf.mxu0
        %v8009 = vadd.f32 %v7896, %v8008
        %8010 = vdwg.mxu0
        %8011 = vmatprep.subr.bf16.mxu0 %v7430
        %8012 = vmatpush1.bf16.msra.mxu0 %v7429
        %8013 = vmatprep.subr.bf16.mxu0 %v7426
        %8014 = vmatpush1.bf16.msra.mxu0 %v7425
        %8015 = vmatprep.subr.bf16.mxu0 %v7422
        %8016 = vmatpush1.bf16.msra.mxu0 %v7421
        %8017 = vmatprep.subr.bf16.mxu0 %v7418
        %8018 = vmatpush1.bf16.msra.mxu0 %v7417
        %8019 = vmatprep.subr.bf16.mxu0 %v7414
        %8020 = vmatpush1.bf16.msra.mxu0 %v7413
        %8021 = vmatprep.subr.bf16.mxu0 %v7410
        %8022 = vmatpush1.bf16.msra.mxu0 %v7409
        %8023 = vmatprep.subr.bf16.mxu0 %v7406
        %8024 = vmatpush1.bf16.msra.mxu0 %v7405
        %8025 = vmatprep.subr.bf16.mxu0 %v7402
        %8026 = vmatpush1.bf16.msra.mxu0 %v7401
        %8027 = vmatprep.subr.bf16.mxu0 %v7462
        %8028 = vmatpush2.bf16.msra.mxu0 %v7461
        %8029 = vmatprep.subr.bf16.mxu0 %v7458
        %8030 = vmatpush2.bf16.msra.mxu0 %v7457
        %8031 = vmatprep.subr.bf16.mxu0 %v7454
        %8032 = vmatpush2.bf16.msra.mxu0 %v7453
        %8033 = vmatprep.subr.bf16.mxu0 %v7450
        %8034 = vmatpush2.bf16.msra.mxu0 %v7449
        %8035 = vmatprep.subr.bf16.mxu0 %v7446
        %8036 = vmatpush2.bf16.msra.mxu0 %v7445
        %8037 = vmatprep.subr.bf16.mxu0 %v7442
        %8038 = vmatpush2.bf16.msra.mxu0 %v7441
        %8039 = vmatprep.subr.bf16.mxu0 %v7438
        %8040 = vmatpush2.bf16.msra.mxu0 %v7437
        %8041 = vmatprep.subr.bf16.mxu0 %v7434
        %8042 = vmatpush2.bf16.msra.mxu0 %v7433
        %8043 = vmatprep.mubr.bf16.mxu0 %v6168
        %8044 = vmatmul.mubr.bf16.gmra.mxu0 %v6167
        %v8045 = vpop.f32.mrf.mxu0
        %v8046 = vadd.f32 %v7933, %v8045
        %v8047 = vpop.f32.mrf.mxu0
        %v8048 = vadd.f32 %v7935, %v8047
        %v8049 = vpop.f32.mrf.mxu0
        %v8050 = vadd.f32 %v7937, %v8049
        %v8051 = vpop.f32.mrf.mxu0
        %v8052 = vadd.f32 %v7939, %v8051
        %8053 = vmatprep.mubr.bf16.mxu0 %v6176
        %8054 = vmatmul.mubr.bf16.gmra.mxu0 %v6175
        %v8055 = vpop.f32.mrf.mxu0
        %v8056 = vadd.f32 %v7943, %v8055
        %v8057 = vpop.f32.mrf.mxu0
        %v8058 = vadd.f32 %v7945, %v8057
        %v8059 = vpop.f32.mrf.mxu0
        %v8060 = vadd.f32 %v7947, %v8059
        %v8061 = vpop.f32.mrf.mxu0
        %v8062 = vadd.f32 %v7949, %v8061
        %8063 = vmatprep.mubr.bf16.mxu0 %v6184
        %8064 = vmatmul.mubr.bf16.gmra.mxu0 %v6183
        %v8065 = vpop.f32.mrf.mxu0
        %v8066 = vadd.f32 %v7953, %v8065
        %v8067 = vpop.f32.mrf.mxu0
        %v8068 = vadd.f32 %v7955, %v8067
        %v8069 = vpop.f32.mrf.mxu0
        %v8070 = vadd.f32 %v7957, %v8069
        %v8071 = vpop.f32.mrf.mxu0
        %v8072 = vadd.f32 %v7959, %v8071
        %8073 = vmatprep.mubr.bf16.mxu0 %v6192
        %8074 = vmatmul.mubr.bf16.gmra.mxu0 %v6191
        %v8075 = vpop.f32.mrf.mxu0
        %v8076 = vadd.f32 %v7963, %v8075
        %v8077 = vpop.f32.mrf.mxu0
        %v8078 = vadd.f32 %v7965, %v8077
        %v8079 = vpop.f32.mrf.mxu0
        %v8080 = vadd.f32 %v7967, %v8079
        %v8081 = vpop.f32.mrf.mxu0
        %v8082 = vadd.f32 %v7969, %v8081
        %8083 = vmatprep.mubr.bf16.mxu0 %v6200
        %8084 = vmatmul.mubr.bf16.gmra.mxu0 %v6199
        %v8085 = vpop.f32.mrf.mxu0
        %v8086 = vadd.f32 %v7973, %v8085
        %v8087 = vpop.f32.mrf.mxu0
        %v8088 = vadd.f32 %v7975, %v8087
        %v8089 = vpop.f32.mrf.mxu0
        %v8090 = vadd.f32 %v7977, %v8089
        %v8091 = vpop.f32.mrf.mxu0
        %v8092 = vadd.f32 %v7979, %v8091
        %8093 = vmatprep.mubr.bf16.mxu0 %v6208
        %8094 = vmatmul.mubr.bf16.gmra.mxu0 %v6207
        %v8095 = vpop.f32.mrf.mxu0
        %v8096 = vadd.f32 %v7983, %v8095
        %v8097 = vpop.f32.mrf.mxu0
        %v8098 = vadd.f32 %v7985, %v8097
        %v8099 = vpop.f32.mrf.mxu0
        %v8100 = vadd.f32 %v7987, %v8099
        %v8101 = vpop.f32.mrf.mxu0
        %v8102 = vadd.f32 %v7989, %v8101
        %8103 = vmatprep.mubr.bf16.mxu0 %v6216
        %8104 = vmatmul.mubr.bf16.gmra.mxu0 %v6215
        %v8105 = vpop.f32.mrf.mxu0
        %v8106 = vadd.f32 %v7993, %v8105
        %v8107 = vpop.f32.mrf.mxu0
        %v8108 = vadd.f32 %v7995, %v8107
        %v8109 = vpop.f32.mrf.mxu0
        %v8110 = vadd.f32 %v7997, %v8109
        %v8111 = vpop.f32.mrf.mxu0
        %v8112 = vadd.f32 %v7999, %v8111
        %8113 = vmatprep.mubr.bf16.mxu0 %v6224
        %8114 = vmatmul.mubr.bf16.gmra.mxu0 %v6223
        %v8115 = vpop.f32.mrf.mxu0
        %v8116 = vadd.f32 %v8003, %v8115
        %v8117 = vpop.f32.mrf.mxu0
        %v8118 = vadd.f32 %v8005, %v8117
        %v8119 = vpop.f32.mrf.mxu0
        %v8120 = vadd.f32 %v8007, %v8119
        %v8121 = vpop.f32.mrf.mxu0
        %v8122 = vadd.f32 %v8009, %v8121
        %8123 = vdwg.mxu0
        %8124 = vmatprep.subr.bf16.mxu0 %v7494
        %8125 = vmatpush1.bf16.msra.mxu0 %v7493
        %8126 = vmatprep.subr.bf16.mxu0 %v7490
        %8127 = vmatpush1.bf16.msra.mxu0 %v7489
        %8128 = vmatprep.subr.bf16.mxu0 %v7486
        %8129 = vmatpush1.bf16.msra.mxu0 %v7485
        %8130 = vmatprep.subr.bf16.mxu0 %v7482
        %8131 = vmatpush1.bf16.msra.mxu0 %v7481
        %8132 = vmatprep.subr.bf16.mxu0 %v7478
        %8133 = vmatpush1.bf16.msra.mxu0 %v7477
        %8134 = vmatprep.subr.bf16.mxu0 %v7474
        %8135 = vmatpush1.bf16.msra.mxu0 %v7473
        %8136 = vmatprep.subr.bf16.mxu0 %v7470
        %8137 = vmatpush1.bf16.msra.mxu0 %v7469
        %8138 = vmatprep.subr.bf16.mxu0 %v7466
        %8139 = vmatpush1.bf16.msra.mxu0 %v7465
        %8140 = vmatprep.subr.bf16.mxu0 %v7526
        %8141 = vmatpush2.bf16.msra.mxu0 %v7525
        %8142 = vmatprep.subr.bf16.mxu0 %v7522
        %8143 = vmatpush2.bf16.msra.mxu0 %v7521
        %8144 = vmatprep.subr.bf16.mxu0 %v7518
        %8145 = vmatpush2.bf16.msra.mxu0 %v7517
        %8146 = vmatprep.subr.bf16.mxu0 %v7514
        %8147 = vmatpush2.bf16.msra.mxu0 %v7513
        %8148 = vmatprep.subr.bf16.mxu0 %v7510
        %8149 = vmatpush2.bf16.msra.mxu0 %v7509
        %8150 = vmatprep.subr.bf16.mxu0 %v7506
        %8151 = vmatpush2.bf16.msra.mxu0 %v7505
        %8152 = vmatprep.subr.bf16.mxu0 %v7502
        %8153 = vmatpush2.bf16.msra.mxu0 %v7501
        %8154 = vmatprep.subr.bf16.mxu0 %v7498
        %8155 = vmatpush2.bf16.msra.mxu0 %v7497
        %8156 = vmatprep.mubr.bf16.mxu0 %v6170
        %8157 = vmatmul.mubr.bf16.gmra.mxu0 %v6169
        %v8158 = vpop.f32.mrf.mxu0
        %v8159 = vadd.f32 %v8046, %v8158
        %v8160 = vpop.f32.mrf.mxu0
        %v8161 = vadd.f32 %v8048, %v8160
        %v8162 = vpop.f32.mrf.mxu0
        %v8163 = vadd.f32 %v8050, %v8162
        %v8164 = vpop.f32.mrf.mxu0
        %v8165 = vadd.f32 %v8052, %v8164
        %8166 = vmatprep.mubr.bf16.mxu0 %v6178
        %8167 = vmatmul.mubr.bf16.gmra.mxu0 %v6177
        %v8168 = vpop.f32.mrf.mxu0
        %v8169 = vadd.f32 %v8056, %v8168
        %v8170 = vpop.f32.mrf.mxu0
        %v8171 = vadd.f32 %v8058, %v8170
        %v8172 = vpop.f32.mrf.mxu0
        %v8173 = vadd.f32 %v8060, %v8172
        %v8174 = vpop.f32.mrf.mxu0
        %v8175 = vadd.f32 %v8062, %v8174
        %8176 = vmatprep.mubr.bf16.mxu0 %v6186
        %8177 = vmatmul.mubr.bf16.gmra.mxu0 %v6185
        %v8178 = vpop.f32.mrf.mxu0
        %v8179 = vadd.f32 %v8066, %v8178
        %v8180 = vpop.f32.mrf.mxu0
        %v8181 = vadd.f32 %v8068, %v8180
        %v8182 = vpop.f32.mrf.mxu0
        %v8183 = vadd.f32 %v8070, %v8182
        %v8184 = vpop.f32.mrf.mxu0
        %v8185 = vadd.f32 %v8072, %v8184
        %8186 = vmatprep.mubr.bf16.mxu0 %v6194
        %8187 = vmatmul.mubr.bf16.gmra.mxu0 %v6193
        %v8188 = vpop.f32.mrf.mxu0
        %v8189 = vadd.f32 %v8076, %v8188
        %v8190 = vpop.f32.mrf.mxu0
        %v8191 = vadd.f32 %v8078, %v8190
        %v8192 = vpop.f32.mrf.mxu0
        %v8193 = vadd.f32 %v8080, %v8192
        %v8194 = vpop.f32.mrf.mxu0
        %v8195 = vadd.f32 %v8082, %v8194
        %8196 = vmatprep.mubr.bf16.mxu0 %v6202
        %8197 = vmatmul.mubr.bf16.gmra.mxu0 %v6201
        %v8198 = vpop.f32.mrf.mxu0
        %v8199 = vadd.f32 %v8086, %v8198
        %v8200 = vpop.f32.mrf.mxu0
        %v8201 = vadd.f32 %v8088, %v8200
        %v8202 = vpop.f32.mrf.mxu0
        %v8203 = vadd.f32 %v8090, %v8202
        %v8204 = vpop.f32.mrf.mxu0
        %v8205 = vadd.f32 %v8092, %v8204
        %8206 = vmatprep.mubr.bf16.mxu0 %v6210
        %8207 = vmatmul.mubr.bf16.gmra.mxu0 %v6209
        %v8208 = vpop.f32.mrf.mxu0
        %v8209 = vadd.f32 %v8096, %v8208
        %v8210 = vpop.f32.mrf.mxu0
        %v8211 = vadd.f32 %v8098, %v8210
        %v8212 = vpop.f32.mrf.mxu0
        %v8213 = vadd.f32 %v8100, %v8212
        %v8214 = vpop.f32.mrf.mxu0
        %v8215 = vadd.f32 %v8102, %v8214
        %8216 = vmatprep.mubr.bf16.mxu0 %v6218
        %8217 = vmatmul.mubr.bf16.gmra.mxu0 %v6217
        %v8218 = vpop.f32.mrf.mxu0
        %v8219 = vadd.f32 %v8106, %v8218
        %v8220 = vpop.f32.mrf.mxu0
        %v8221 = vadd.f32 %v8108, %v8220
        %v8222 = vpop.f32.mrf.mxu0
        %v8223 = vadd.f32 %v8110, %v8222
        %v8224 = vpop.f32.mrf.mxu0
        %v8225 = vadd.f32 %v8112, %v8224
        %8226 = vmatprep.mubr.bf16.mxu0 %v6226
        %8227 = vmatmul.mubr.bf16.gmra.mxu0 %v6225
        %v8228 = vpop.f32.mrf.mxu0
        %v8229 = vadd.f32 %v8116, %v8228
        %v8230 = vpop.f32.mrf.mxu0
        %v8231 = vadd.f32 %v8118, %v8230
        %v8232 = vpop.f32.mrf.mxu0
        %v8233 = vadd.f32 %v8120, %v8232
        %v8234 = vpop.f32.mrf.mxu0
        %v8235 = vadd.f32 %v8122, %v8234
        %8236 = vdwg.mxu0
        %8237 = vmatprep.subr.bf16.mxu0 %v7304
        %8238 = vmatpush1.bf16.msra.mxu0 %v7303
        %8239 = vmatprep.subr.bf16.mxu0 %v7300
        %8240 = vmatpush1.bf16.msra.mxu0 %v7299
        %8241 = vmatprep.subr.bf16.mxu0 %v7296
        %8242 = vmatpush1.bf16.msra.mxu0 %v7295
        %8243 = vmatprep.subr.bf16.mxu0 %v7292
        %8244 = vmatpush1.bf16.msra.mxu0 %v7291
        %8245 = vmatprep.subr.bf16.mxu0 %v7288
        %8246 = vmatpush1.bf16.msra.mxu0 %v7287
        %8247 = vmatprep.subr.bf16.mxu0 %v7284
        %8248 = vmatpush1.bf16.msra.mxu0 %v7283
        %8249 = vmatprep.subr.bf16.mxu0 %v7280
        %8250 = vmatpush1.bf16.msra.mxu0 %v7279
        %8251 = vmatprep.subr.bf16.mxu0 %v7276
        %8252 = vmatpush1.bf16.msra.mxu0 %v7275
        %8253 = vmatprep.subr.bf16.mxu0 %v7336
        %8254 = vmatpush2.bf16.msra.mxu0 %v7335
        %8255 = vmatprep.subr.bf16.mxu0 %v7332
        %8256 = vmatpush2.bf16.msra.mxu0 %v7331
        %8257 = vmatprep.subr.bf16.mxu0 %v7328
        %8258 = vmatpush2.bf16.msra.mxu0 %v7327
        %8259 = vmatprep.subr.bf16.mxu0 %v7324
        %8260 = vmatpush2.bf16.msra.mxu0 %v7323
        %8261 = vmatprep.subr.bf16.mxu0 %v7320
        %8262 = vmatpush2.bf16.msra.mxu0 %v7319
        %8263 = vmatprep.subr.bf16.mxu0 %v7316
        %8264 = vmatpush2.bf16.msra.mxu0 %v7315
        %8265 = vmatprep.subr.bf16.mxu0 %v7312
        %8266 = vmatpush2.bf16.msra.mxu0 %v7311
        %8267 = vmatprep.subr.bf16.mxu0 %v7308
        %8268 = vmatpush2.bf16.msra.mxu0 %v7307
        %8269 = vmatprep.mubr.bf16.mxu0 %v6164
        %8270 = vmatmul.mubr.bf16.gmra.mxu0 %v6163
        %v8271 = vpop.f32.mrf.mxu0
        %v8272 = vadd.f32 %v6496, %v8271
        %v8273 = vpop.f32.mrf.mxu0
        %v8274 = vadd.f32 %v6500, %v8273
        %v8275 = vpop.f32.mrf.mxu0
        %v8276 = vadd.f32 %v6496, %v8275
        %v8277 = vpop.f32.mrf.mxu0
        %v8278 = vadd.f32 %v6500, %v8277
        %8279 = vmatprep.mubr.bf16.mxu0 %v6172
        %8280 = vmatmul.mubr.bf16.gmra.mxu0 %v6171
        %v8281 = vpop.f32.mrf.mxu0
        %v8282 = vadd.f32 %v6496, %v8281
        %v8283 = vpop.f32.mrf.mxu0
        %v8284 = vadd.f32 %v6500, %v8283
        %v8285 = vpop.f32.mrf.mxu0
        %v8286 = vadd.f32 %v6496, %v8285
        %v8287 = vpop.f32.mrf.mxu0
        %v8288 = vadd.f32 %v6500, %v8287
        %8289 = vmatprep.mubr.bf16.mxu0 %v6180
        %8290 = vmatmul.mubr.bf16.gmra.mxu0 %v6179
        %v8291 = vpop.f32.mrf.mxu0
        %v8292 = vadd.f32 %v6496, %v8291
        %v8293 = vpop.f32.mrf.mxu0
        %v8294 = vadd.f32 %v6500, %v8293
        %v8295 = vpop.f32.mrf.mxu0
        %v8296 = vadd.f32 %v6496, %v8295
        %v8297 = vpop.f32.mrf.mxu0
        %v8298 = vadd.f32 %v6500, %v8297
        %8299 = vmatprep.mubr.bf16.mxu0 %v6188
        %8300 = vmatmul.mubr.bf16.gmra.mxu0 %v6187
        %v8301 = vpop.f32.mrf.mxu0
        %v8302 = vadd.f32 %v6496, %v8301
        %v8303 = vpop.f32.mrf.mxu0
        %v8304 = vadd.f32 %v6500, %v8303
        %v8305 = vpop.f32.mrf.mxu0
        %v8306 = vadd.f32 %v6496, %v8305
        %v8307 = vpop.f32.mrf.mxu0
        %v8308 = vadd.f32 %v6500, %v8307
        %8309 = vmatprep.mubr.bf16.mxu0 %v6196
        %8310 = vmatmul.mubr.bf16.gmra.mxu0 %v6195
        %v8311 = vpop.f32.mrf.mxu0
        %v8312 = vadd.f32 %v6496, %v8311
        %v8313 = vpop.f32.mrf.mxu0
        %v8314 = vadd.f32 %v6500, %v8313
        %v8315 = vpop.f32.mrf.mxu0
        %v8316 = vadd.f32 %v6496, %v8315
        %v8317 = vpop.f32.mrf.mxu0
        %v8318 = vadd.f32 %v6500, %v8317
        %8319 = vmatprep.mubr.bf16.mxu0 %v6204
        %8320 = vmatmul.mubr.bf16.gmra.mxu0 %v6203
        %v8321 = vpop.f32.mrf.mxu0
        %v8322 = vadd.f32 %v6496, %v8321
        %v8323 = vpop.f32.mrf.mxu0
        %v8324 = vadd.f32 %v6500, %v8323
        %v8325 = vpop.f32.mrf.mxu0
        %v8326 = vadd.f32 %v6496, %v8325
        %v8327 = vpop.f32.mrf.mxu0
        %v8328 = vadd.f32 %v6500, %v8327
        %8329 = vmatprep.mubr.bf16.mxu0 %v6212
        %8330 = vmatmul.mubr.bf16.gmra.mxu0 %v6211
        %v8331 = vpop.f32.mrf.mxu0
        %v8332 = vadd.f32 %v6496, %v8331
        %v8333 = vpop.f32.mrf.mxu0
        %v8334 = vadd.f32 %v6500, %v8333
        %v8335 = vpop.f32.mrf.mxu0
        %v8336 = vadd.f32 %v6496, %v8335
        %v8337 = vpop.f32.mrf.mxu0
        %v8338 = vadd.f32 %v6500, %v8337
        %8339 = vmatprep.mubr.bf16.mxu0 %v6220
        %8340 = vmatmul.mubr.bf16.gmra.mxu0 %v6219
        %v8341 = vpop.f32.mrf.mxu0
        %v8342 = vadd.f32 %v6496, %v8341
        %v8343 = vpop.f32.mrf.mxu0
        %v8344 = vadd.f32 %v6500, %v8343
        %v8345 = vpop.f32.mrf.mxu0
        %v8346 = vadd.f32 %v6496, %v8345
        %v8347 = vpop.f32.mrf.mxu0
        %v8348 = vadd.f32 %v6500, %v8347
        %8349 = vdwg.mxu0
        %8350 = vmatprep.subr.bf16.mxu0 %v7368
        %8351 = vmatpush1.bf16.msra.mxu0 %v7367
        %8352 = vmatprep.subr.bf16.mxu0 %v7364
        %8353 = vmatpush1.bf16.msra.mxu0 %v7363
        %8354 = vmatprep.subr.bf16.mxu0 %v7360
        %8355 = vmatpush1.bf16.msra.mxu0 %v7359
        %8356 = vmatprep.subr.bf16.mxu0 %v7356
        %8357 = vmatpush1.bf16.msra.mxu0 %v7355
        %8358 = vmatprep.subr.bf16.mxu0 %v7352
        %8359 = vmatpush1.bf16.msra.mxu0 %v7351
        %8360 = vmatprep.subr.bf16.mxu0 %v7348
        %8361 = vmatpush1.bf16.msra.mxu0 %v7347
        %8362 = vmatprep.subr.bf16.mxu0 %v7344
        %8363 = vmatpush1.bf16.msra.mxu0 %v7343
        %8364 = vmatprep.subr.bf16.mxu0 %v7340
        %8365 = vmatpush1.bf16.msra.mxu0 %v7339
        %8366 = vmatprep.subr.bf16.mxu0 %v7400
        %8367 = vmatpush2.bf16.msra.mxu0 %v7399
        %8368 = vmatprep.subr.bf16.mxu0 %v7396
        %8369 = vmatpush2.bf16.msra.mxu0 %v7395
        %8370 = vmatprep.subr.bf16.mxu0 %v7392
        %8371 = vmatpush2.bf16.msra.mxu0 %v7391
        %8372 = vmatprep.subr.bf16.mxu0 %v7388
        %8373 = vmatpush2.bf16.msra.mxu0 %v7387
        %8374 = vmatprep.subr.bf16.mxu0 %v7384
        %8375 = vmatpush2.bf16.msra.mxu0 %v7383
        %8376 = vmatprep.subr.bf16.mxu0 %v7380
        %8377 = vmatpush2.bf16.msra.mxu0 %v7379
        %8378 = vmatprep.subr.bf16.mxu0 %v7376
        %8379 = vmatpush2.bf16.msra.mxu0 %v7375
        %8380 = vmatprep.subr.bf16.mxu0 %v7372
        %8381 = vmatpush2.bf16.msra.mxu0 %v7371
        %8382 = vmatprep.mubr.bf16.mxu0 %v6166
        %8383 = vmatmul.mubr.bf16.gmra.mxu0 %v6165
        %v8384 = vpop.f32.mrf.mxu0
        %v8385 = vadd.f32 %v8272, %v8384
        %v8386 = vpop.f32.mrf.mxu0
        %v8387 = vadd.f32 %v8274, %v8386
        %v8388 = vpop.f32.mrf.mxu0
        %v8389 = vadd.f32 %v8276, %v8388
        %v8390 = vpop.f32.mrf.mxu0
        %v8391 = vadd.f32 %v8278, %v8390
        %8392 = vmatprep.mubr.bf16.mxu0 %v6174
        %8393 = vmatmul.mubr.bf16.gmra.mxu0 %v6173
        %v8394 = vpop.f32.mrf.mxu0
        %v8395 = vadd.f32 %v8282, %v8394
        %v8396 = vpop.f32.mrf.mxu0
        %v8397 = vadd.f32 %v8284, %v8396
        %v8398 = vpop.f32.mrf.mxu0
        %v8399 = vadd.f32 %v8286, %v8398
        %v8400 = vpop.f32.mrf.mxu0
        %v8401 = vadd.f32 %v8288, %v8400
        %8402 = vmatprep.mubr.bf16.mxu0 %v6182
        %8403 = vmatmul.mubr.bf16.gmra.mxu0 %v6181
        %v8404 = vpop.f32.mrf.mxu0
        %v8405 = vadd.f32 %v8292, %v8404
        %v8406 = vpop.f32.mrf.mxu0
        %v8407 = vadd.f32 %v8294, %v8406
        %v8408 = vpop.f32.mrf.mxu0
        %v8409 = vadd.f32 %v8296, %v8408
        %v8410 = vpop.f32.mrf.mxu0
        %v8411 = vadd.f32 %v8298, %v8410
        %8412 = vmatprep.mubr.bf16.mxu0 %v6190
        %8413 = vmatmul.mubr.bf16.gmra.mxu0 %v6189
        %v8414 = vpop.f32.mrf.mxu0
        %v8415 = vadd.f32 %v8302, %v8414
        %v8416 = vpop.f32.mrf.mxu0
        %v8417 = vadd.f32 %v8304, %v8416
        %v8418 = vpop.f32.mrf.mxu0
        %v8419 = vadd.f32 %v8306, %v8418
        %v8420 = vpop.f32.mrf.mxu0
        %v8421 = vadd.f32 %v8308, %v8420
        %8422 = vmatprep.mubr.bf16.mxu0 %v6198
        %8423 = vmatmul.mubr.bf16.gmra.mxu0 %v6197
        %v8424 = vpop.f32.mrf.mxu0
        %v8425 = vadd.f32 %v8312, %v8424
        %v8426 = vpop.f32.mrf.mxu0
        %v8427 = vadd.f32 %v8314, %v8426
        %v8428 = vpop.f32.mrf.mxu0
        %v8429 = vadd.f32 %v8316, %v8428
        %v8430 = vpop.f32.mrf.mxu0
        %v8431 = vadd.f32 %v8318, %v8430
        %8432 = vmatprep.mubr.bf16.mxu0 %v6206
        %8433 = vmatmul.mubr.bf16.gmra.mxu0 %v6205
        %v8434 = vpop.f32.mrf.mxu0
        %v8435 = vadd.f32 %v8322, %v8434
        %v8436 = vpop.f32.mrf.mxu0
        %v8437 = vadd.f32 %v8324, %v8436
        %v8438 = vpop.f32.mrf.mxu0
        %v8439 = vadd.f32 %v8326, %v8438
        %v8440 = vpop.f32.mrf.mxu0
        %v8441 = vadd.f32 %v8328, %v8440
        %8442 = vmatprep.mubr.bf16.mxu0 %v6214
        %8443 = vmatmul.mubr.bf16.gmra.mxu0 %v6213
        %v8444 = vpop.f32.mrf.mxu0
        %v8445 = vadd.f32 %v8332, %v8444
        %v8446 = vpop.f32.mrf.mxu0
        %v8447 = vadd.f32 %v8334, %v8446
        %v8448 = vpop.f32.mrf.mxu0
        %v8449 = vadd.f32 %v8336, %v8448
        %v8450 = vpop.f32.mrf.mxu0
        %v8451 = vadd.f32 %v8338, %v8450
        %8452 = vmatprep.mubr.bf16.mxu0 %v6222
        %8453 = vmatmul.mubr.bf16.gmra.mxu0 %v6221
        %v8454 = vpop.f32.mrf.mxu0
        %v8455 = vadd.f32 %v8342, %v8454
        %v8456 = vpop.f32.mrf.mxu0
        %v8457 = vadd.f32 %v8344, %v8456
        %v8458 = vpop.f32.mrf.mxu0
        %v8459 = vadd.f32 %v8346, %v8458
        %v8460 = vpop.f32.mrf.mxu0
        %v8461 = vadd.f32 %v8348, %v8460
        %8462 = vdwg.mxu0
        %8463 = vmatprep.subr.bf16.mxu0 %v7432
        %8464 = vmatpush1.bf16.msra.mxu0 %v7431
        %8465 = vmatprep.subr.bf16.mxu0 %v7428
        %8466 = vmatpush1.bf16.msra.mxu0 %v7427
        %8467 = vmatprep.subr.bf16.mxu0 %v7424
        %8468 = vmatpush1.bf16.msra.mxu0 %v7423
        %8469 = vmatprep.subr.bf16.mxu0 %v7420
        %8470 = vmatpush1.bf16.msra.mxu0 %v7419
        %8471 = vmatprep.subr.bf16.mxu0 %v7416
        %8472 = vmatpush1.bf16.msra.mxu0 %v7415
        %8473 = vmatprep.subr.bf16.mxu0 %v7412
        %8474 = vmatpush1.bf16.msra.mxu0 %v7411
        %8475 = vmatprep.subr.bf16.mxu0 %v7408
        %8476 = vmatpush1.bf16.msra.mxu0 %v7407
        %8477 = vmatprep.subr.bf16.mxu0 %v7404
        %8478 = vmatpush1.bf16.msra.mxu0 %v7403
        %8479 = vmatprep.subr.bf16.mxu0 %v7464
        %8480 = vmatpush2.bf16.msra.mxu0 %v7463
        %8481 = vmatprep.subr.bf16.mxu0 %v7460
        %8482 = vmatpush2.bf16.msra.mxu0 %v7459
        %8483 = vmatprep.subr.bf16.mxu0 %v7456
        %8484 = vmatpush2.bf16.msra.mxu0 %v7455
        %8485 = vmatprep.subr.bf16.mxu0 %v7452
        %8486 = vmatpush2.bf16.msra.mxu0 %v7451
        %8487 = vmatprep.subr.bf16.mxu0 %v7448
        %8488 = vmatpush2.bf16.msra.mxu0 %v7447
        %8489 = vmatprep.subr.bf16.mxu0 %v7444
        %8490 = vmatpush2.bf16.msra.mxu0 %v7443
        %8491 = vmatprep.subr.bf16.mxu0 %v7440
        %8492 = vmatpush2.bf16.msra.mxu0 %v7439
        %8493 = vmatprep.subr.bf16.mxu0 %v7436
        %8494 = vmatpush2.bf16.msra.mxu0 %v7435
        %8495 = vmatprep.mubr.bf16.mxu0 %v6168
        %8496 = vmatmul.mubr.bf16.gmra.mxu0 %v6167
        %v8497 = vpop.f32.mrf.mxu0
        %v8498 = vadd.f32 %v8385, %v8497
        %v8499 = vpop.f32.mrf.mxu0
        %v8500 = vadd.f32 %v8387, %v8499
        %v8501 = vpop.f32.mrf.mxu0
        %v8502 = vadd.f32 %v8389, %v8501
        %v8503 = vpop.f32.mrf.mxu0
        %v8504 = vadd.f32 %v8391, %v8503
        %8505 = vmatprep.mubr.bf16.mxu0 %v6176
        %8506 = vmatmul.mubr.bf16.gmra.mxu0 %v6175
        %v8507 = vpop.f32.mrf.mxu0
        %v8508 = vadd.f32 %v8395, %v8507
        %v8509 = vpop.f32.mrf.mxu0
        %v8510 = vadd.f32 %v8397, %v8509
        %v8511 = vpop.f32.mrf.mxu0
        %v8512 = vadd.f32 %v8399, %v8511
        %v8513 = vpop.f32.mrf.mxu0
        %v8514 = vadd.f32 %v8401, %v8513
        %8515 = vmatprep.mubr.bf16.mxu0 %v6184
        %8516 = vmatmul.mubr.bf16.gmra.mxu0 %v6183
        %v8517 = vpop.f32.mrf.mxu0
        %v8518 = vadd.f32 %v8405, %v8517
        %v8519 = vpop.f32.mrf.mxu0
        %v8520 = vadd.f32 %v8407, %v8519
        %v8521 = vpop.f32.mrf.mxu0
        %v8522 = vadd.f32 %v8409, %v8521
        %v8523 = vpop.f32.mrf.mxu0
        %v8524 = vadd.f32 %v8411, %v8523
        %8525 = vmatprep.mubr.bf16.mxu0 %v6192
        %8526 = vmatmul.mubr.bf16.gmra.mxu0 %v6191
        %v8527 = vpop.f32.mrf.mxu0
        %v8528 = vadd.f32 %v8415, %v8527
        %v8529 = vpop.f32.mrf.mxu0
        %v8530 = vadd.f32 %v8417, %v8529
        %v8531 = vpop.f32.mrf.mxu0
        %v8532 = vadd.f32 %v8419, %v8531
        %v8533 = vpop.f32.mrf.mxu0
        %v8534 = vadd.f32 %v8421, %v8533
        %8535 = vmatprep.mubr.bf16.mxu0 %v6200
        %8536 = vmatmul.mubr.bf16.gmra.mxu0 %v6199
        %v8537 = vpop.f32.mrf.mxu0
        %v8538 = vadd.f32 %v8425, %v8537
        %v8539 = vpop.f32.mrf.mxu0
        %v8540 = vadd.f32 %v8427, %v8539
        %v8541 = vpop.f32.mrf.mxu0
        %v8542 = vadd.f32 %v8429, %v8541
        %v8543 = vpop.f32.mrf.mxu0
        %v8544 = vadd.f32 %v8431, %v8543
        %8545 = vmatprep.mubr.bf16.mxu0 %v6208
        %8546 = vmatmul.mubr.bf16.gmra.mxu0 %v6207
        %v8547 = vpop.f32.mrf.mxu0
        %v8548 = vadd.f32 %v8435, %v8547
        %v8549 = vpop.f32.mrf.mxu0
        %v8550 = vadd.f32 %v8437, %v8549
        %v8551 = vpop.f32.mrf.mxu0
        %v8552 = vadd.f32 %v8439, %v8551
        %v8553 = vpop.f32.mrf.mxu0
        %v8554 = vadd.f32 %v8441, %v8553
        %8555 = vmatprep.mubr.bf16.mxu0 %v6216
        %8556 = vmatmul.mubr.bf16.gmra.mxu0 %v6215
        %v8557 = vpop.f32.mrf.mxu0
        %v8558 = vadd.f32 %v8445, %v8557
        %v8559 = vpop.f32.mrf.mxu0
        %v8560 = vadd.f32 %v8447, %v8559
        %v8561 = vpop.f32.mrf.mxu0
        %v8562 = vadd.f32 %v8449, %v8561
        %v8563 = vpop.f32.mrf.mxu0
        %v8564 = vadd.f32 %v8451, %v8563
        %8565 = vmatprep.mubr.bf16.mxu0 %v6224
        %8566 = vmatmul.mubr.bf16.gmra.mxu0 %v6223
        %v8567 = vpop.f32.mrf.mxu0
        %v8568 = vadd.f32 %v8455, %v8567
        %v8569 = vpop.f32.mrf.mxu0
        %v8570 = vadd.f32 %v8457, %v8569
        %v8571 = vpop.f32.mrf.mxu0
        %v8572 = vadd.f32 %v8459, %v8571
        %v8573 = vpop.f32.mrf.mxu0
        %v8574 = vadd.f32 %v8461, %v8573
        %8575 = vdwg.mxu0
        %8576 = vmatprep.subr.bf16.mxu0 %v7496
        %8577 = vmatpush1.bf16.msra.mxu0 %v7495
        %8578 = vmatprep.subr.bf16.mxu0 %v7492
        %8579 = vmatpush1.bf16.msra.mxu0 %v7491
        %8580 = vmatprep.subr.bf16.mxu0 %v7488
        %8581 = vmatpush1.bf16.msra.mxu0 %v7487
        %8582 = vmatprep.subr.bf16.mxu0 %v7484
        %8583 = vmatpush1.bf16.msra.mxu0 %v7483
        %8584 = vmatprep.subr.bf16.mxu0 %v7480
        %8585 = vmatpush1.bf16.msra.mxu0 %v7479
        %8586 = vmatprep.subr.bf16.mxu0 %v7476
        %8587 = vmatpush1.bf16.msra.mxu0 %v7475
        %8588 = vmatprep.subr.bf16.mxu0 %v7472
        %8589 = vmatpush1.bf16.msra.mxu0 %v7471
        %8590 = vmatprep.subr.bf16.mxu0 %v7468
        %8591 = vmatpush1.bf16.msra.mxu0 %v7467
        %8592 = vmatprep.subr.bf16.mxu0 %v7528
        %8593 = vmatpush2.bf16.msra.mxu0 %v7527
        %8594 = vmatprep.subr.bf16.mxu0 %v7524
        %8595 = vmatpush2.bf16.msra.mxu0 %v7523
        %8596 = vmatprep.subr.bf16.mxu0 %v7520
        %8597 = vmatpush2.bf16.msra.mxu0 %v7519
        %8598 = vmatprep.subr.bf16.mxu0 %v7516
        %8599 = vmatpush2.bf16.msra.mxu0 %v7515
        %8600 = vmatprep.subr.bf16.mxu0 %v7512
        %8601 = vmatpush2.bf16.msra.mxu0 %v7511
        %8602 = vmatprep.subr.bf16.mxu0 %v7508
        %8603 = vmatpush2.bf16.msra.mxu0 %v7507
        %8604 = vmatprep.subr.bf16.mxu0 %v7504
        %8605 = vmatpush2.bf16.msra.mxu0 %v7503
        %8606 = vmatprep.subr.bf16.mxu0 %v7500
        %8607 = vmatpush2.bf16.msra.mxu0 %v7499
        %8608 = vmatprep.mubr.bf16.mxu0 %v6170
        %8609 = vmatmul.mubr.bf16.gmra.mxu0 %v6169
        %v8610 = vpop.f32.mrf.mxu0
        %v8611 = vadd.f32 %v8498, %v8610
        %v8612 = vpop.f32.mrf.mxu0
        %v8613 = vadd.f32 %v8500, %v8612
        %v8614 = vpop.f32.mrf.mxu0
        %v8615 = vadd.f32 %v8502, %v8614
        %v8616 = vpop.f32.mrf.mxu0
        %v8617 = vadd.f32 %v8504, %v8616
        %8618 = vmatprep.mubr.bf16.mxu0 %v6178
        %8619 = vmatmul.mubr.bf16.gmra.mxu0 %v6177
        %v8620 = vpop.f32.mrf.mxu0
        %v8621 = vadd.f32 %v8508, %v8620
        %v8622 = vpop.f32.mrf.mxu0
        %v8623 = vadd.f32 %v8510, %v8622
        %v8624 = vpop.f32.mrf.mxu0
        %v8625 = vadd.f32 %v8512, %v8624
        %v8626 = vpop.f32.mrf.mxu0
        %v8627 = vadd.f32 %v8514, %v8626
        %8628 = vmatprep.mubr.bf16.mxu0 %v6186
        %8629 = vmatmul.mubr.bf16.gmra.mxu0 %v6185
        %v8630 = vpop.f32.mrf.mxu0
        %v8631 = vadd.f32 %v8518, %v8630
        %v8632 = vpop.f32.mrf.mxu0
        %v8633 = vadd.f32 %v8520, %v8632
        %v8634 = vpop.f32.mrf.mxu0
        %v8635 = vadd.f32 %v8522, %v8634
        %v8636 = vpop.f32.mrf.mxu0
        %v8637 = vadd.f32 %v8524, %v8636
        %8638 = vmatprep.mubr.bf16.mxu0 %v6194
        %8639 = vmatmul.mubr.bf16.gmra.mxu0 %v6193
        %v8640 = vpop.f32.mrf.mxu0
        %v8641 = vadd.f32 %v8528, %v8640
        %v8642 = vpop.f32.mrf.mxu0
        %v8643 = vadd.f32 %v8530, %v8642
        %v8644 = vpop.f32.mrf.mxu0
        %v8645 = vadd.f32 %v8532, %v8644
        %v8646 = vpop.f32.mrf.mxu0
        %v8647 = vadd.f32 %v8534, %v8646
        %8648 = vmatprep.mubr.bf16.mxu0 %v6202
        %8649 = vmatmul.mubr.bf16.gmra.mxu0 %v6201
        %v8650 = vpop.f32.mrf.mxu0
        %v8651 = vadd.f32 %v8538, %v8650
        %v8652 = vpop.f32.mrf.mxu0
        %v8653 = vadd.f32 %v8540, %v8652
        %v8654 = vpop.f32.mrf.mxu0
        %v8655 = vadd.f32 %v8542, %v8654
        %v8656 = vpop.f32.mrf.mxu0
        %v8657 = vadd.f32 %v8544, %v8656
        %8658 = vmatprep.mubr.bf16.mxu0 %v6210
        %8659 = vmatmul.mubr.bf16.gmra.mxu0 %v6209
        %v8660 = vpop.f32.mrf.mxu0
        %v8661 = vadd.f32 %v8548, %v8660
        %v8662 = vpop.f32.mrf.mxu0
        %v8663 = vadd.f32 %v8550, %v8662
        %v8664 = vpop.f32.mrf.mxu0
        %v8665 = vadd.f32 %v8552, %v8664
        %v8666 = vpop.f32.mrf.mxu0
        %v8667 = vadd.f32 %v8554, %v8666
        %8668 = vmatprep.mubr.bf16.mxu0 %v6218
        %8669 = vmatmul.mubr.bf16.gmra.mxu0 %v6217
        %v8670 = vpop.f32.mrf.mxu0
        %v8671 = vadd.f32 %v8558, %v8670
        %v8672 = vpop.f32.mrf.mxu0
        %v8673 = vadd.f32 %v8560, %v8672
        %v8674 = vpop.f32.mrf.mxu0
        %v8675 = vadd.f32 %v8562, %v8674
        %v8676 = vpop.f32.mrf.mxu0
        %v8677 = vadd.f32 %v8564, %v8676
        %8678 = vmatprep.mubr.bf16.mxu0 %v6226
        %8679 = vmatmul.mubr.bf16.gmra.mxu0 %v6225
        %v8680 = vpop.f32.mrf.mxu0
        %v8681 = vadd.f32 %v8568, %v8680
        %v8682 = vpop.f32.mrf.mxu0
        %v8683 = vadd.f32 %v8570, %v8682
        %v8684 = vpop.f32.mrf.mxu0
        %v8685 = vadd.f32 %v8572, %v8684
        %v8686 = vpop.f32.mrf.mxu0
        %v8687 = vadd.f32 %v8574, %v8686
        %8688 = vdwg.mxu0
        %vm8689 = vcmp.gt.f32.partialorder %v8159, 0.0
        %vm8690 = vcmp.gt.f32.partialorder %v8161, 0.0
        %vm8691 = vcmp.gt.f32.partialorder %v8611, 0.0
        %vm8692 = vcmp.gt.f32.partialorder %v8613, 0.0
        %vm8693 = vcmp.gt.f32.partialorder %v8163, 0.0
        %vm8694 = vcmp.gt.f32.partialorder %v8165, 0.0
        %vm8695 = vcmp.gt.f32.partialorder %v8615, 0.0
        %vm8696 = vcmp.gt.f32.partialorder %v8617, 0.0
        %vm8697 = vcmp.gt.f32.partialorder %v8169, 0.0
        %vm8698 = vcmp.gt.f32.partialorder %v8171, 0.0
        %vm8699 = vcmp.gt.f32.partialorder %v8621, 0.0
        %vm8700 = vcmp.gt.f32.partialorder %v8623, 0.0
        %vm8701 = vcmp.gt.f32.partialorder %v8173, 0.0
        %vm8702 = vcmp.gt.f32.partialorder %v8175, 0.0
        %vm8703 = vcmp.gt.f32.partialorder %v8625, 0.0
        %vm8704 = vcmp.gt.f32.partialorder %v8627, 0.0
        %vm8705 = vcmp.gt.f32.partialorder %v8179, 0.0
        %vm8706 = vcmp.gt.f32.partialorder %v8181, 0.0
        %vm8707 = vcmp.gt.f32.partialorder %v8631, 0.0
        %vm8708 = vcmp.gt.f32.partialorder %v8633, 0.0
        %vm8709 = vcmp.gt.f32.partialorder %v8183, 0.0
        %vm8710 = vcmp.gt.f32.partialorder %v8185, 0.0
        %vm8711 = vcmp.gt.f32.partialorder %v8635, 0.0
        %vm8712 = vcmp.gt.f32.partialorder %v8637, 0.0
        %vm8713 = vcmp.gt.f32.partialorder %v8189, 0.0
        %vm8714 = vcmp.gt.f32.partialorder %v8191, 0.0
        %vm8715 = vcmp.gt.f32.partialorder %v8641, 0.0
        %vm8716 = vcmp.gt.f32.partialorder %v8643, 0.0
        %vm8717 = vcmp.gt.f32.partialorder %v8193, 0.0
        %vm8718 = vcmp.gt.f32.partialorder %v8195, 0.0
        %vm8719 = vcmp.gt.f32.partialorder %v8645, 0.0
        %vm8720 = vcmp.gt.f32.partialorder %v8647, 0.0
        %vm8721 = vcmp.gt.f32.partialorder %v8199, 0.0
        %vm8722 = vcmp.gt.f32.partialorder %v8201, 0.0
        %vm8723 = vcmp.gt.f32.partialorder %v8651, 0.0
        %vm8724 = vcmp.gt.f32.partialorder %v8653, 0.0
        %vm8725 = vcmp.gt.f32.partialorder %v8203, 0.0
        %vm8726 = vcmp.gt.f32.partialorder %v8205, 0.0
        %vm8727 = vcmp.gt.f32.partialorder %v8655, 0.0
        %vm8728 = vcmp.gt.f32.partialorder %v8657, 0.0
        %vm8729 = vcmp.gt.f32.partialorder %v8209, 0.0
        %vm8730 = vcmp.gt.f32.partialorder %v8211, 0.0
        %vm8731 = vcmp.gt.f32.partialorder %v8661, 0.0
        %vm8732 = vcmp.gt.f32.partialorder %v8663, 0.0
        %vm8733 = vcmp.gt.f32.partialorder %v8213, 0.0
        %vm8734 = vcmp.gt.f32.partialorder %v8215, 0.0
        %vm8735 = vcmp.gt.f32.partialorder %v8665, 0.0
        %vm8736 = vcmp.gt.f32.partialorder %v8667, 0.0
        %vm8737 = vcmp.gt.f32.partialorder %v8219, 0.0
        %vm8738 = vcmp.gt.f32.partialorder %v8221, 0.0
        %vm8739 = vcmp.gt.f32.partialorder %v8671, 0.0
        %vm8740 = vcmp.gt.f32.partialorder %v8673, 0.0
        %vm8741 = vcmp.gt.f32.partialorder %v8223, 0.0
        %vm8742 = vcmp.gt.f32.partialorder %v8225, 0.0
        %vm8743 = vcmp.gt.f32.partialorder %v8675, 0.0
        %vm8744 = vcmp.gt.f32.partialorder %v8677, 0.0
        %vm8745 = vcmp.gt.f32.partialorder %v8229, 0.0
        %vm8746 = vcmp.gt.f32.partialorder %v8231, 0.0
        %vm8747 = vcmp.gt.f32.partialorder %v8681, 0.0
        %vm8748 = vcmp.gt.f32.partialorder %v8683, 0.0
        %vm8749 = vcmp.gt.f32.partialorder %v8233, 0.0
        %vm8750 = vcmp.gt.f32.partialorder %v8235, 0.0
        %vm8751 = vcmp.gt.f32.partialorder %v8685, 0.0
        %vm8752 = vcmp.gt.f32.partialorder %v8687, 0.0
        %v8753 = vmul.f32 %v8159, 0.2
        %v8754 = vmul.f32 %v8161, 0.2
        %v8755 = vmul.f32 %v8611, 0.2
        %v8756 = vmul.f32 %v8613, 0.2
        %v8757 = vmul.f32 %v8163, 0.2
        %v8758 = vmul.f32 %v8165, 0.2
        %v8759 = vmul.f32 %v8615, 0.2
        %v8760 = vmul.f32 %v8617, 0.2
        %v8761 = vmul.f32 %v8169, 0.2
        %v8762 = vmul.f32 %v8171, 0.2
        %v8763 = vmul.f32 %v8621, 0.2
        %v8764 = vmul.f32 %v8623, 0.2
        %v8765 = vmul.f32 %v8173, 0.2
        %v8766 = vmul.f32 %v8175, 0.2
        %v8767 = vmul.f32 %v8625, 0.2
        %v8768 = vmul.f32 %v8627, 0.2
        %v8769 = vmul.f32 %v8179, 0.2
        %v8770 = vmul.f32 %v8181, 0.2
        %v8771 = vmul.f32 %v8631, 0.2
        %v8772 = vmul.f32 %v8633, 0.2
        %v8773 = vmul.f32 %v8183, 0.2
        %v8774 = vmul.f32 %v8185, 0.2
        %v8775 = vmul.f32 %v8635, 0.2
        %v8776 = vmul.f32 %v8637, 0.2
        %v8777 = vmul.f32 %v8189, 0.2
        %v8778 = vmul.f32 %v8191, 0.2
        %v8779 = vmul.f32 %v8641, 0.2
        %v8780 = vmul.f32 %v8643, 0.2
        %v8781 = vmul.f32 %v8193, 0.2
        %v8782 = vmul.f32 %v8195, 0.2
        %v8783 = vmul.f32 %v8645, 0.2
        %v8784 = vmul.f32 %v8647, 0.2
        %v8785 = vmul.f32 %v8199, 0.2
        %v8786 = vmul.f32 %v8201, 0.2
        %v8787 = vmul.f32 %v8651, 0.2
        %v8788 = vmul.f32 %v8653, 0.2
        %v8789 = vmul.f32 %v8203, 0.2
        %v8790 = vmul.f32 %v8205, 0.2
        %v8791 = vmul.f32 %v8655, 0.2
        %v8792 = vmul.f32 %v8657, 0.2
        %v8793 = vmul.f32 %v8209, 0.2
        %v8794 = vmul.f32 %v8211, 0.2
        %v8795 = vmul.f32 %v8661, 0.2
        %v8796 = vmul.f32 %v8663, 0.2
        %v8797 = vmul.f32 %v8213, 0.2
        %v8798 = vmul.f32 %v8215, 0.2
        %v8799 = vmul.f32 %v8665, 0.2
        %v8800 = vmul.f32 %v8667, 0.2
        %v8801 = vmul.f32 %v8219, 0.2
        %v8802 = vmul.f32 %v8221, 0.2
        %v8803 = vmul.f32 %v8671, 0.2
        %v8804 = vmul.f32 %v8673, 0.2
        %v8805 = vmul.f32 %v8223, 0.2
        %v8806 = vmul.f32 %v8225, 0.2
        %v8807 = vmul.f32 %v8675, 0.2
        %v8808 = vmul.f32 %v8677, 0.2
        %v8809 = vmul.f32 %v8229, 0.2
        %v8810 = vmul.f32 %v8231, 0.2
        %v8811 = vmul.f32 %v8681, 0.2
        %v8812 = vmul.f32 %v8683, 0.2
        %v8813 = vmul.f32 %v8233, 0.2
        %v8814 = vmul.f32 %v8235, 0.2
        %v8815 = vmul.f32 %v8685, 0.2
        %v8816 = vmul.f32 %v8687, 0.2
        %v8817 = vsel %vm8689, %v8159, %v8753
        %v8818 = vsel %vm8690, %v8161, %v8754
        %v8819 = vsel %vm8691, %v8611, %v8755
        %v8820 = vsel %vm8692, %v8613, %v8756
        %v8821 = vsel %vm8693, %v8163, %v8757
        %v8822 = vsel %vm8694, %v8165, %v8758
        %v8823 = vsel %vm8695, %v8615, %v8759
        %v8824 = vsel %vm8696, %v8617, %v8760
        %v8825 = vsel %vm8697, %v8169, %v8761
        %v8826 = vsel %vm8698, %v8171, %v8762
        %v8827 = vsel %vm8699, %v8621, %v8763
        %v8828 = vsel %vm8700, %v8623, %v8764
        %v8829 = vsel %vm8701, %v8173, %v8765
        %v8830 = vsel %vm8702, %v8175, %v8766
        %v8831 = vsel %vm8703, %v8625, %v8767
        %v8832 = vsel %vm8704, %v8627, %v8768
        %v8833 = vsel %vm8705, %v8179, %v8769
        %v8834 = vsel %vm8706, %v8181, %v8770
        %v8835 = vsel %vm8707, %v8631, %v8771
        %v8836 = vsel %vm8708, %v8633, %v8772
        %v8837 = vsel %vm8709, %v8183, %v8773
        %v8838 = vsel %vm8710, %v8185, %v8774
        %v8839 = vsel %vm8711, %v8635, %v8775
        %v8840 = vsel %vm8712, %v8637, %v8776
        %v8841 = vsel %vm8713, %v8189, %v8777
        %v8842 = vsel %vm8714, %v8191, %v8778
        %v8843 = vsel %vm8715, %v8641, %v8779
        %v8844 = vsel %vm8716, %v8643, %v8780
        %v8845 = vsel %vm8717, %v8193, %v8781
        %v8846 = vsel %vm8718, %v8195, %v8782
        %v8847 = vsel %vm8719, %v8645, %v8783
        %v8848 = vsel %vm8720, %v8647, %v8784
        %v8849 = vsel %vm8721, %v8199, %v8785
        %v8850 = vsel %vm8722, %v8201, %v8786
        %v8851 = vsel %vm8723, %v8651, %v8787
        %v8852 = vsel %vm8724, %v8653, %v8788
        %v8853 = vsel %vm8725, %v8203, %v8789
        %v8854 = vsel %vm8726, %v8205, %v8790
        %v8855 = vsel %vm8727, %v8655, %v8791
        %v8856 = vsel %vm8728, %v8657, %v8792
        %v8857 = vsel %vm8729, %v8209, %v8793
        %v8858 = vsel %vm8730, %v8211, %v8794
        %v8859 = vsel %vm8731, %v8661, %v8795
        %v8860 = vsel %vm8732, %v8663, %v8796
        %v8861 = vsel %vm8733, %v8213, %v8797
        %v8862 = vsel %vm8734, %v8215, %v8798
        %v8863 = vsel %vm8735, %v8665, %v8799
        %v8864 = vsel %vm8736, %v8667, %v8800
        %v8865 = vsel %vm8737, %v8219, %v8801
        %v8866 = vsel %vm8738, %v8221, %v8802
        %v8867 = vsel %vm8739, %v8671, %v8803
        %v8868 = vsel %vm8740, %v8673, %v8804
        %v8869 = vsel %vm8741, %v8223, %v8805
        %v8870 = vsel %vm8742, %v8225, %v8806
        %v8871 = vsel %vm8743, %v8675, %v8807
        %v8872 = vsel %vm8744, %v8677, %v8808
        %v8873 = vsel %vm8745, %v8229, %v8809
        %v8874 = vsel %vm8746, %v8231, %v8810
        %v8875 = vsel %vm8747, %v8681, %v8811
        %v8876 = vsel %vm8748, %v8683, %v8812
        %v8877 = vsel %vm8749, %v8233, %v8813
        %v8878 = vsel %vm8750, %v8235, %v8814
        %v8879 = vsel %vm8751, %v8685, %v8815
        %v8880 = vsel %vm8752, %v8687, %v8816
        %v8881 = vpack.c.bf16 %v8821, %v8817
        %v8882 = vpack.c.bf16 %v8822, %v8818
        %v8883 = vpack.c.bf16 %v8823, %v8819
        %v8884 = vpack.c.bf16 %v8824, %v8820
        %v8885 = vpack.c.bf16 %v8829, %v8825
        %v8886 = vpack.c.bf16 %v8830, %v8826
        %v8887 = vpack.c.bf16 %v8831, %v8827
        %v8888 = vpack.c.bf16 %v8832, %v8828
        %v8889 = vpack.c.bf16 %v8837, %v8833
        %v8890 = vpack.c.bf16 %v8838, %v8834
        %v8891 = vpack.c.bf16 %v8839, %v8835
        %v8892 = vpack.c.bf16 %v8840, %v8836
        %v8893 = vpack.c.bf16 %v8845, %v8841
        %v8894 = vpack.c.bf16 %v8846, %v8842
        %v8895 = vpack.c.bf16 %v8847, %v8843
        %v8896 = vpack.c.bf16 %v8848, %v8844
        %v8897 = vpack.c.bf16 %v8853, %v8849
        %v8898 = vpack.c.bf16 %v8854, %v8850
        %v8899 = vpack.c.bf16 %v8855, %v8851
        %v8900 = vpack.c.bf16 %v8856, %v8852
        %v8901 = vpack.c.bf16 %v8861, %v8857
        %v8902 = vpack.c.bf16 %v8862, %v8858
        %v8903 = vpack.c.bf16 %v8863, %v8859
        %v8904 = vpack.c.bf16 %v8864, %v8860
        %v8905 = vpack.c.bf16 %v8869, %v8865
        %v8906 = vpack.c.bf16 %v8870, %v8866
        %v8907 = vpack.c.bf16 %v8871, %v8867
        %v8908 = vpack.c.bf16 %v8872, %v8868
        %v8909 = vpack.c.bf16 %v8877, %v8873
        %v8910 = vpack.c.bf16 %v8878, %v8874
        %v8911 = vpack.c.bf16 %v8879, %v8875
        %v8912 = vpack.c.bf16 %v8880, %v8876
        %v8913 = vld [vmem:[%s6] sm:$0xff]
        %v8914 = vld [vmem:[%s6 + $0x8] sm:$0xff]
        %v8915 = vld [vmem:[%s6 + $0x10] sm:$0xff]
        %v8916 = vld [vmem:[%s6 + $0x18] sm:$0xff]
        %v8917 = vld [vmem:[%s6 + $0x20] sm:$0xff]
        %v8918 = vld [vmem:[%s6 + $0x28] sm:$0xff]
        %v8919 = vld [vmem:[%s6 + $0x30] sm:$0xff]
        %v8920 = vld [vmem:[%s6 + $0x38] sm:$0xff]
        %v8921 = vld [vmem:[%s6 + $0x40] sm:$0xff]
        %v8922 = vld [vmem:[%s6 + $0x48] sm:$0xff]
        %v8923 = vld [vmem:[%s6 + $0x50] sm:$0xff]
        %v8924 = vld [vmem:[%s6 + $0x58] sm:$0xff]
        %v8925 = vld [vmem:[%s6 + $0x60] sm:$0xff]
        %v8926 = vld [vmem:[%s6 + $0x68] sm:$0xff]
        %v8927 = vld [vmem:[%s6 + $0x70] sm:$0xff]
        %v8928 = vld [vmem:[%s6 + $0x78] sm:$0xff]
        %v8929 = vld [vmem:[%s6 + $0x80] sm:$0xff]
        %v8930 = vld [vmem:[%s6 + $0x88] sm:$0xff]
        %v8931 = vld [vmem:[%s6 + $0x90] sm:$0xff]
        %v8932 = vld [vmem:[%s6 + $0x98] sm:$0xff]
        %v8933 = vld [vmem:[%s6 + $0xa0] sm:$0xff]
        %v8934 = vld [vmem:[%s6 + $0xa8] sm:$0xff]
        %v8935 = vld [vmem:[%s6 + $0xb0] sm:$0xff]
        %v8936 = vld [vmem:[%s6 + $0xb8] sm:$0xff]
        %v8937 = vld [vmem:[%s6 + $0xc0] sm:$0xff]
        %v8938 = vld [vmem:[%s6 + $0xc8] sm:$0xff]
        %v8939 = vld [vmem:[%s6 + $0xd0] sm:$0xff]
        %v8940 = vld [vmem:[%s6 + $0xd8] sm:$0xff]
        %v8941 = vld [vmem:[%s6 + $0xe0] sm:$0xff]
        %v8942 = vld [vmem:[%s6 + $0xe8] sm:$0xff]
        %v8943 = vld [vmem:[%s6 + $0xf0] sm:$0xff]
        %v8944 = vld [vmem:[%s6 + $0xf8] sm:$0xff]
        %v8945 = vld [vmem:[%s6 + $0x100] sm:$0xff]
        %v8946 = vld [vmem:[%s6 + $0x108] sm:$0xff]
        %v8947 = vld [vmem:[%s6 + $0x110] sm:$0xff]
        %v8948 = vld [vmem:[%s6 + $0x118] sm:$0xff]
        %v8949 = vld [vmem:[%s6 + $0x120] sm:$0xff]
        %v8950 = vld [vmem:[%s6 + $0x128] sm:$0xff]
        %v8951 = vld [vmem:[%s6 + $0x130] sm:$0xff]
        %v8952 = vld [vmem:[%s6 + $0x138] sm:$0xff]
        %v8953 = vld [vmem:[%s6 + $0x140] sm:$0xff]
        %v8954 = vld [vmem:[%s6 + $0x148] sm:$0xff]
        %v8955 = vld [vmem:[%s6 + $0x150] sm:$0xff]
        %v8956 = vld [vmem:[%s6 + $0x158] sm:$0xff]
        %v8957 = vld [vmem:[%s6 + $0x160] sm:$0xff]
        %v8958 = vld [vmem:[%s6 + $0x168] sm:$0xff]
        %v8959 = vld [vmem:[%s6 + $0x170] sm:$0xff]
        %v8960 = vld [vmem:[%s6 + $0x178] sm:$0xff]
        %v8961 = vld [vmem:[%s6 + $0x180] sm:$0xff]
        %v8962 = vld [vmem:[%s6 + $0x188] sm:$0xff]
        %v8963 = vld [vmem:[%s6 + $0x190] sm:$0xff]
        %v8964 = vld [vmem:[%s6 + $0x198] sm:$0xff]
        %v8965 = vld [vmem:[%s6 + $0x1a0] sm:$0xff]
        %v8966 = vld [vmem:[%s6 + $0x1a8] sm:$0xff]
        %v8967 = vld [vmem:[%s6 + $0x1b0] sm:$0xff]
        %v8968 = vld [vmem:[%s6 + $0x1b8] sm:$0xff]
        %v8969 = vld [vmem:[%s6 + $0x1c0] sm:$0xff]
        %v8970 = vld [vmem:[%s6 + $0x1c8] sm:$0xff]
        %v8971 = vld [vmem:[%s6 + $0x1d0] sm:$0xff]
        %v8972 = vld [vmem:[%s6 + $0x1d8] sm:$0xff]
        %v8973 = vld [vmem:[%s6 + $0x1e0] sm:$0xff]
        %v8974 = vld [vmem:[%s6 + $0x1e8] sm:$0xff]
        %v8975 = vld [vmem:[%s6 + $0x1f0] sm:$0xff]
        %v8976 = vld [vmem:[%s6 + $0x1f8] sm:$0xff]
        %v8977 = vld [vmem:[%s7] sm:$0x3]
        %v8979 = vlaneseq
        %v8980 = vshrl.u32 %v8979, 7
        %v8981 = vsub.s32 0, %v8980
        %v8982 = vrot.slane %v8977, %v8981
        %v8983 = vlaneseq
        %v8984 = vshrl.u32 %v8983, 7
        %v8985 = vsub.s32 1, %v8984
        %v8986 = vrot.slane %v8977, %v8985
        %v9053 = vunpack.c.l.b16 %v8913
        %v9054 = vunpack.c.h.b16 %v8913
        %v9055 = vunpack.c.l.b16 %v8914
        %v9056 = vunpack.c.h.b16 %v8914
        %v9057 = vunpack.c.l.b16 %v8915
        %v9058 = vunpack.c.h.b16 %v8915
        %v9059 = vunpack.c.l.b16 %v8916
        %v9060 = vunpack.c.h.b16 %v8916
        %v9061 = vunpack.c.l.b16 %v8917
        %v9062 = vunpack.c.h.b16 %v8917
        %v9063 = vunpack.c.l.b16 %v8918
        %v9064 = vunpack.c.h.b16 %v8918
        %v9065 = vunpack.c.l.b16 %v8919
        %v9066 = vunpack.c.h.b16 %v8919
        %v9067 = vunpack.c.l.b16 %v8920
        %v9068 = vunpack.c.h.b16 %v8920
        %v9069 = vunpack.c.l.b16 %v8921
        %v9070 = vunpack.c.h.b16 %v8921
        %v9071 = vunpack.c.l.b16 %v8922
        %v9072 = vunpack.c.h.b16 %v8922
        %v9073 = vunpack.c.l.b16 %v8923
        %v9074 = vunpack.c.h.b16 %v8923
        %v9075 = vunpack.c.l.b16 %v8924
        %v9076 = vunpack.c.h.b16 %v8924
        %v9077 = vunpack.c.l.b16 %v8925
        %v9078 = vunpack.c.h.b16 %v8925
        %v9079 = vunpack.c.l.b16 %v8926
        %v9080 = vunpack.c.h.b16 %v8926
        %v9081 = vunpack.c.l.b16 %v8927
        %v9082 = vunpack.c.h.b16 %v8927
        %v9083 = vunpack.c.l.b16 %v8928
        %v9084 = vunpack.c.h.b16 %v8928
        %v9085 = vunpack.c.l.b16 %v8929
        %v9086 = vunpack.c.h.b16 %v8929
        %v9087 = vunpack.c.l.b16 %v8930
        %v9088 = vunpack.c.h.b16 %v8930
        %v9089 = vunpack.c.l.b16 %v8931
        %v9090 = vunpack.c.h.b16 %v8931
        %v9091 = vunpack.c.l.b16 %v8932
        %v9092 = vunpack.c.h.b16 %v8932
        %v9093 = vunpack.c.l.b16 %v8933
        %v9094 = vunpack.c.h.b16 %v8933
        %v9095 = vunpack.c.l.b16 %v8934
        %v9096 = vunpack.c.h.b16 %v8934
        %v9097 = vunpack.c.l.b16 %v8935
        %v9098 = vunpack.c.h.b16 %v8935
        %v9099 = vunpack.c.l.b16 %v8936
        %v9100 = vunpack.c.h.b16 %v8936
        %v9101 = vunpack.c.l.b16 %v8937
        %v9102 = vunpack.c.h.b16 %v8937
        %v9103 = vunpack.c.l.b16 %v8938
        %v9104 = vunpack.c.h.b16 %v8938
        %v9105 = vunpack.c.l.b16 %v8939
        %v9106 = vunpack.c.h.b16 %v8939
        %v9107 = vunpack.c.l.b16 %v8940
        %v9108 = vunpack.c.h.b16 %v8940
        %v9109 = vunpack.c.l.b16 %v8941
        %v9110 = vunpack.c.h.b16 %v8941
        %v9111 = vunpack.c.l.b16 %v8942
        %v9112 = vunpack.c.h.b16 %v8942
        %v9113 = vunpack.c.l.b16 %v8943
        %v9114 = vunpack.c.h.b16 %v8943
        %v9115 = vunpack.c.l.b16 %v8944
        %v9116 = vunpack.c.h.b16 %v8944
        %v9117 = vunpack.c.l.b16 %v8945
        %v9118 = vunpack.c.h.b16 %v8945
        %v9119 = vunpack.c.l.b16 %v8946
        %v9120 = vunpack.c.h.b16 %v8946
        %v9121 = vunpack.c.l.b16 %v8947
        %v9122 = vunpack.c.h.b16 %v8947
        %v9123 = vunpack.c.l.b16 %v8948
        %v9124 = vunpack.c.h.b16 %v8948
        %v9125 = vunpack.c.l.b16 %v8949
        %v9126 = vunpack.c.h.b16 %v8949
        %v9127 = vunpack.c.l.b16 %v8950
        %v9128 = vunpack.c.h.b16 %v8950
        %v9129 = vunpack.c.l.b16 %v8951
        %v9130 = vunpack.c.h.b16 %v8951
        %v9131 = vunpack.c.l.b16 %v8952
        %v9132 = vunpack.c.h.b16 %v8952
        %v9133 = vunpack.c.l.b16 %v8953
        %v9134 = vunpack.c.h.b16 %v8953
        %v9135 = vunpack.c.l.b16 %v8954
        %v9136 = vunpack.c.h.b16 %v8954
        %v9137 = vunpack.c.l.b16 %v8955
        %v9138 = vunpack.c.h.b16 %v8955
        %v9139 = vunpack.c.l.b16 %v8956
        %v9140 = vunpack.c.h.b16 %v8956
        %v9141 = vunpack.c.l.b16 %v8957
        %v9142 = vunpack.c.h.b16 %v8957
        %v9143 = vunpack.c.l.b16 %v8958
        %v9144 = vunpack.c.h.b16 %v8958
        %v9145 = vunpack.c.l.b16 %v8959
        %v9146 = vunpack.c.h.b16 %v8959
        %v9147 = vunpack.c.l.b16 %v8960
        %v9148 = vunpack.c.h.b16 %v8960
        %v9149 = vunpack.c.l.b16 %v8961
        %v9150 = vunpack.c.h.b16 %v8961
        %v9151 = vunpack.c.l.b16 %v8962
        %v9152 = vunpack.c.h.b16 %v8962
        %v9153 = vunpack.c.l.b16 %v8963
        %v9154 = vunpack.c.h.b16 %v8963
        %v9155 = vunpack.c.l.b16 %v8964
        %v9156 = vunpack.c.h.b16 %v8964
        %v9157 = vunpack.c.l.b16 %v8965
        %v9158 = vunpack.c.h.b16 %v8965
        %v9159 = vunpack.c.l.b16 %v8966
        %v9160 = vunpack.c.h.b16 %v8966
        %v9161 = vunpack.c.l.b16 %v8967
        %v9162 = vunpack.c.h.b16 %v8967
        %v9163 = vunpack.c.l.b16 %v8968
        %v9164 = vunpack.c.h.b16 %v8968
        %v9165 = vunpack.c.l.b16 %v8969
        %v9166 = vunpack.c.h.b16 %v8969
        %v9167 = vunpack.c.l.b16 %v8970
        %v9168 = vunpack.c.h.b16 %v8970
        %v9169 = vunpack.c.l.b16 %v8971
        %v9170 = vunpack.c.h.b16 %v8971
        %v9171 = vunpack.c.l.b16 %v8972
        %v9172 = vunpack.c.h.b16 %v8972
        %v9173 = vunpack.c.l.b16 %v8973
        %v9174 = vunpack.c.h.b16 %v8973
        %v9175 = vunpack.c.l.b16 %v8974
        %v9176 = vunpack.c.h.b16 %v8974
        %v9177 = vunpack.c.l.b16 %v8975
        %v9178 = vunpack.c.h.b16 %v8975
        %v9179 = vunpack.c.l.b16 %v8976
        %v9180 = vunpack.c.h.b16 %v8976
        %v9181 = vpack.c.b16 %v9055, %v9053
        %v9182 = vpack.c.b16 %v9056, %v9054
        %v9183 = vpack.c.b16 %v9059, %v9057
        %v9184 = vpack.c.b16 %v9060, %v9058
        %v9185 = vpack.c.b16 %v9063, %v9061
        %v9186 = vpack.c.b16 %v9064, %v9062
        %v9187 = vpack.c.b16 %v9067, %v9065
        %v9188 = vpack.c.b16 %v9068, %v9066
        %v9189 = vpack.c.b16 %v9071, %v9069
        %v9190 = vpack.c.b16 %v9072, %v9070
        %v9191 = vpack.c.b16 %v9075, %v9073
        %v9192 = vpack.c.b16 %v9076, %v9074
        %v9193 = vpack.c.b16 %v9079, %v9077
        %v9194 = vpack.c.b16 %v9080, %v9078
        %v9195 = vpack.c.b16 %v9083, %v9081
        %v9196 = vpack.c.b16 %v9084, %v9082
        %v9197 = vpack.c.b16 %v9087, %v9085
        %v9198 = vpack.c.b16 %v9088, %v9086
        %v9199 = vpack.c.b16 %v9091, %v9089
        %v9200 = vpack.c.b16 %v9092, %v9090
        %v9201 = vpack.c.b16 %v9095, %v9093
        %v9202 = vpack.c.b16 %v9096, %v9094
        %v9203 = vpack.c.b16 %v9099, %v9097
        %v9204 = vpack.c.b16 %v9100, %v9098
        %v9205 = vpack.c.b16 %v9103, %v9101
        %v9206 = vpack.c.b16 %v9104, %v9102
        %v9207 = vpack.c.b16 %v9107, %v9105
        %v9208 = vpack.c.b16 %v9108, %v9106
        %v9209 = vpack.c.b16 %v9111, %v9109
        %v9210 = vpack.c.b16 %v9112, %v9110
        %v9211 = vpack.c.b16 %v9115, %v9113
        %v9212 = vpack.c.b16 %v9116, %v9114
        %v9213 = vpack.c.b16 %v9119, %v9117
        %v9214 = vpack.c.b16 %v9120, %v9118
        %v9215 = vpack.c.b16 %v9123, %v9121
        %v9216 = vpack.c.b16 %v9124, %v9122
        %v9217 = vpack.c.b16 %v9127, %v9125
        %v9218 = vpack.c.b16 %v9128, %v9126
        %v9219 = vpack.c.b16 %v9131, %v9129
        %v9220 = vpack.c.b16 %v9132, %v9130
        %v9221 = vpack.c.b16 %v9135, %v9133
        %v9222 = vpack.c.b16 %v9136, %v9134
        %v9223 = vpack.c.b16 %v9139, %v9137
        %v9224 = vpack.c.b16 %v9140, %v9138
        %v9225 = vpack.c.b16 %v9143, %v9141
        %v9226 = vpack.c.b16 %v9144, %v9142
        %v9227 = vpack.c.b16 %v9147, %v9145
        %v9228 = vpack.c.b16 %v9148, %v9146
        %v9229 = vpack.c.b16 %v9151, %v9149
        %v9230 = vpack.c.b16 %v9152, %v9150
        %v9231 = vpack.c.b16 %v9155, %v9153
        %v9232 = vpack.c.b16 %v9156, %v9154
        %v9233 = vpack.c.b16 %v9159, %v9157
        %v9234 = vpack.c.b16 %v9160, %v9158
        %v9235 = vpack.c.b16 %v9163, %v9161
        %v9236 = vpack.c.b16 %v9164, %v9162
        %v9237 = vpack.c.b16 %v9167, %v9165
        %v9238 = vpack.c.b16 %v9168, %v9166
        %v9239 = vpack.c.b16 %v9171, %v9169
        %v9240 = vpack.c.b16 %v9172, %v9170
        %v9241 = vpack.c.b16 %v9175, %v9173
        %v9242 = vpack.c.b16 %v9176, %v9174
        %v9243 = vpack.c.b16 %v9179, %v9177
        %v9244 = vpack.c.b16 %v9180, %v9178
        %9309 = vmatprep.subr.bf16.mxu0 %v9196
        %9310 = vmatpush1.bf16.msra.mxu0 %v9195
        %9311 = vmatprep.subr.bf16.mxu0 %v9194
        %9312 = vmatpush1.bf16.msra.mxu0 %v9193
        %9313 = vmatprep.subr.bf16.mxu0 %v9192
        %9314 = vmatpush1.bf16.msra.mxu0 %v9191
        %9315 = vmatprep.subr.bf16.mxu0 %v9190
        %9316 = vmatpush1.bf16.msra.mxu0 %v9189
        %9317 = vmatprep.subr.bf16.mxu0 %v9188
        %9318 = vmatpush1.bf16.msra.mxu0 %v9187
        %9319 = vmatprep.subr.bf16.mxu0 %v9186
        %9320 = vmatpush1.bf16.msra.mxu0 %v9185
        %9321 = vmatprep.subr.bf16.mxu0 %v9184
        %9322 = vmatpush1.bf16.msra.mxu0 %v9183
        %9323 = vmatprep.subr.bf16.mxu0 %v9182
        %9324 = vmatpush1.bf16.msra.mxu0 %v9181
        %9325 = vmatprep.subr.bf16.mxu0 %v9212
        %9326 = vmatpush2.bf16.msra.mxu0 %v9211
        %9327 = vmatprep.subr.bf16.mxu0 %v9210
        %9328 = vmatpush2.bf16.msra.mxu0 %v9209
        %9329 = vmatprep.subr.bf16.mxu0 %v9208
        %9330 = vmatpush2.bf16.msra.mxu0 %v9207
        %9331 = vmatprep.subr.bf16.mxu0 %v9206
        %9332 = vmatpush2.bf16.msra.mxu0 %v9205
        %9333 = vmatprep.subr.bf16.mxu0 %v9204
        %9334 = vmatpush2.bf16.msra.mxu0 %v9203
        %9335 = vmatprep.subr.bf16.mxu0 %v9202
        %9336 = vmatpush2.bf16.msra.mxu0 %v9201
        %9337 = vmatprep.subr.bf16.mxu0 %v9200
        %9338 = vmatpush2.bf16.msra.mxu0 %v9199
        %9339 = vmatprep.subr.bf16.mxu0 %v9198
        %9340 = vmatpush2.bf16.msra.mxu0 %v9197
        %9341 = vmatprep.mubr.bf16.mxu0 %v8882
        %9342 = vmatmul.mubr.bf16.gmra.mxu0 %v8881
        %v9343 = vpop.f32.mrf.mxu0
        %v9344 = vadd.f32 %v8982, %v9343
        %v9345 = vpop.f32.mrf.mxu0
        %v9346 = vadd.f32 %v8986, %v9345
        %v9347 = vpop.f32.mrf.mxu0
        %v9348 = vadd.f32 %v8982, %v9347
        %v9349 = vpop.f32.mrf.mxu0
        %v9350 = vadd.f32 %v8986, %v9349
        %9351 = vmatprep.mubr.bf16.mxu0 %v8886
        %9352 = vmatmul.mubr.bf16.gmra.mxu0 %v8885
        %v9353 = vpop.f32.mrf.mxu0
        %v9354 = vadd.f32 %v8982, %v9353
        %v9355 = vpop.f32.mrf.mxu0
        %v9356 = vadd.f32 %v8986, %v9355
        %v9357 = vpop.f32.mrf.mxu0
        %v9358 = vadd.f32 %v8982, %v9357
        %v9359 = vpop.f32.mrf.mxu0
        %v9360 = vadd.f32 %v8986, %v9359
        %9361 = vmatprep.mubr.bf16.mxu0 %v8890
        %9362 = vmatmul.mubr.bf16.gmra.mxu0 %v8889
        %v9363 = vpop.f32.mrf.mxu0
        %v9364 = vadd.f32 %v8982, %v9363
        %v9365 = vpop.f32.mrf.mxu0
        %v9366 = vadd.f32 %v8986, %v9365
        %v9367 = vpop.f32.mrf.mxu0
        %v9368 = vadd.f32 %v8982, %v9367
        %v9369 = vpop.f32.mrf.mxu0
        %v9370 = vadd.f32 %v8986, %v9369
        %9371 = vmatprep.mubr.bf16.mxu0 %v8894
        %9372 = vmatmul.mubr.bf16.gmra.mxu0 %v8893
        %v9373 = vpop.f32.mrf.mxu0
        %v9374 = vadd.f32 %v8982, %v9373
        %v9375 = vpop.f32.mrf.mxu0
        %v9376 = vadd.f32 %v8986, %v9375
        %v9377 = vpop.f32.mrf.mxu0
        %v9378 = vadd.f32 %v8982, %v9377
        %v9379 = vpop.f32.mrf.mxu0
        %v9380 = vadd.f32 %v8986, %v9379
        %9381 = vmatprep.mubr.bf16.mxu0 %v8898
        %9382 = vmatmul.mubr.bf16.gmra.mxu0 %v8897
        %v9383 = vpop.f32.mrf.mxu0
        %v9384 = vadd.f32 %v8982, %v9383
        %v9385 = vpop.f32.mrf.mxu0
        %v9386 = vadd.f32 %v8986, %v9385
        %v9387 = vpop.f32.mrf.mxu0
        %v9388 = vadd.f32 %v8982, %v9387
        %v9389 = vpop.f32.mrf.mxu0
        %v9390 = vadd.f32 %v8986, %v9389
        %9391 = vmatprep.mubr.bf16.mxu0 %v8902
        %9392 = vmatmul.mubr.bf16.gmra.mxu0 %v8901
        %v9393 = vpop.f32.mrf.mxu0
        %v9394 = vadd.f32 %v8982, %v9393
        %v9395 = vpop.f32.mrf.mxu0
        %v9396 = vadd.f32 %v8986, %v9395
        %v9397 = vpop.f32.mrf.mxu0
        %v9398 = vadd.f32 %v8982, %v9397
        %v9399 = vpop.f32.mrf.mxu0
        %v9400 = vadd.f32 %v8986, %v9399
        %9401 = vmatprep.mubr.bf16.mxu0 %v8906
        %9402 = vmatmul.mubr.bf16.gmra.mxu0 %v8905
        %v9403 = vpop.f32.mrf.mxu0
        %v9404 = vadd.f32 %v8982, %v9403
        %v9405 = vpop.f32.mrf.mxu0
        %v9406 = vadd.f32 %v8986, %v9405
        %v9407 = vpop.f32.mrf.mxu0
        %v9408 = vadd.f32 %v8982, %v9407
        %v9409 = vpop.f32.mrf.mxu0
        %v9410 = vadd.f32 %v8986, %v9409
        %9411 = vmatprep.mubr.bf16.mxu0 %v8910
        %9412 = vmatmul.mubr.bf16.gmra.mxu0 %v8909
        %v9413 = vpop.f32.mrf.mxu0
        %v9414 = vadd.f32 %v8982, %v9413
        %v9415 = vpop.f32.mrf.mxu0
        %v9416 = vadd.f32 %v8986, %v9415
        %v9417 = vpop.f32.mrf.mxu0
        %v9418 = vadd.f32 %v8982, %v9417
        %v9419 = vpop.f32.mrf.mxu0
        %v9420 = vadd.f32 %v8986, %v9419
        %9421 = vdwg.mxu0
        %9422 = vmatprep.subr.bf16.mxu0 %v9228
        %9423 = vmatpush1.bf16.msra.mxu0 %v9227
        %9424 = vmatprep.subr.bf16.mxu0 %v9226
        %9425 = vmatpush1.bf16.msra.mxu0 %v9225
        %9426 = vmatprep.subr.bf16.mxu0 %v9224
        %9427 = vmatpush1.bf16.msra.mxu0 %v9223
        %9428 = vmatprep.subr.bf16.mxu0 %v9222
        %9429 = vmatpush1.bf16.msra.mxu0 %v9221
        %9430 = vmatprep.subr.bf16.mxu0 %v9220
        %9431 = vmatpush1.bf16.msra.mxu0 %v9219
        %9432 = vmatprep.subr.bf16.mxu0 %v9218
        %9433 = vmatpush1.bf16.msra.mxu0 %v9217
        %9434 = vmatprep.subr.bf16.mxu0 %v9216
        %9435 = vmatpush1.bf16.msra.mxu0 %v9215
        %9436 = vmatprep.subr.bf16.mxu0 %v9214
        %9437 = vmatpush1.bf16.msra.mxu0 %v9213
        %9438 = vmatprep.subr.bf16.mxu0 %v9244
        %9439 = vmatpush2.bf16.msra.mxu0 %v9243
        %9440 = vmatprep.subr.bf16.mxu0 %v9242
        %9441 = vmatpush2.bf16.msra.mxu0 %v9241
        %9442 = vmatprep.subr.bf16.mxu0 %v9240
        %9443 = vmatpush2.bf16.msra.mxu0 %v9239
        %9444 = vmatprep.subr.bf16.mxu0 %v9238
        %9445 = vmatpush2.bf16.msra.mxu0 %v9237
        %9446 = vmatprep.subr.bf16.mxu0 %v9236
        %9447 = vmatpush2.bf16.msra.mxu0 %v9235
        %9448 = vmatprep.subr.bf16.mxu0 %v9234
        %9449 = vmatpush2.bf16.msra.mxu0 %v9233
        %9450 = vmatprep.subr.bf16.mxu0 %v9232
        %9451 = vmatpush2.bf16.msra.mxu0 %v9231
        %9452 = vmatprep.subr.bf16.mxu0 %v9230
        %9453 = vmatpush2.bf16.msra.mxu0 %v9229
        %9454 = vmatprep.mubr.bf16.mxu0 %v8884
        %9455 = vmatmul.mubr.bf16.gmra.mxu0 %v8883
        %v9456 = vpop.f32.mrf.mxu0
        %v9457 = vadd.f32 %v9344, %v9456
        %v9458 = vpop.f32.mrf.mxu0
        %v9459 = vadd.f32 %v9346, %v9458
        %v9460 = vpop.f32.mrf.mxu0
        %v9461 = vadd.f32 %v9348, %v9460
        %v9462 = vpop.f32.mrf.mxu0
        %v9463 = vadd.f32 %v9350, %v9462
        %9464 = vmatprep.mubr.bf16.mxu0 %v8888
        %9465 = vmatmul.mubr.bf16.gmra.mxu0 %v8887
        %v9466 = vpop.f32.mrf.mxu0
        %v9467 = vadd.f32 %v9354, %v9466
        %v9468 = vpop.f32.mrf.mxu0
        %v9469 = vadd.f32 %v9356, %v9468
        %v9470 = vpop.f32.mrf.mxu0
        %v9471 = vadd.f32 %v9358, %v9470
        %v9472 = vpop.f32.mrf.mxu0
        %v9473 = vadd.f32 %v9360, %v9472
        %9474 = vmatprep.mubr.bf16.mxu0 %v8892
        %9475 = vmatmul.mubr.bf16.gmra.mxu0 %v8891
        %v9476 = vpop.f32.mrf.mxu0
        %v9477 = vadd.f32 %v9364, %v9476
        %v9478 = vpop.f32.mrf.mxu0
        %v9479 = vadd.f32 %v9366, %v9478
        %v9480 = vpop.f32.mrf.mxu0
        %v9481 = vadd.f32 %v9368, %v9480
        %v9482 = vpop.f32.mrf.mxu0
        %v9483 = vadd.f32 %v9370, %v9482
        %9484 = vmatprep.mubr.bf16.mxu0 %v8896
        %9485 = vmatmul.mubr.bf16.gmra.mxu0 %v8895
        %v9486 = vpop.f32.mrf.mxu0
        %v9487 = vadd.f32 %v9374, %v9486
        %v9488 = vpop.f32.mrf.mxu0
        %v9489 = vadd.f32 %v9376, %v9488
        %v9490 = vpop.f32.mrf.mxu0
        %v9491 = vadd.f32 %v9378, %v9490
        %v9492 = vpop.f32.mrf.mxu0
        %v9493 = vadd.f32 %v9380, %v9492
        %9494 = vmatprep.mubr.bf16.mxu0 %v8900
        %9495 = vmatmul.mubr.bf16.gmra.mxu0 %v8899
        %v9496 = vpop.f32.mrf.mxu0
        %v9497 = vadd.f32 %v9384, %v9496
        %v9498 = vpop.f32.mrf.mxu0
        %v9499 = vadd.f32 %v9386, %v9498
        %v9500 = vpop.f32.mrf.mxu0
        %v9501 = vadd.f32 %v9388, %v9500
        %v9502 = vpop.f32.mrf.mxu0
        %v9503 = vadd.f32 %v9390, %v9502
        %9504 = vmatprep.mubr.bf16.mxu0 %v8904
        %9505 = vmatmul.mubr.bf16.gmra.mxu0 %v8903
        %v9506 = vpop.f32.mrf.mxu0
        %v9507 = vadd.f32 %v9394, %v9506
        %v9508 = vpop.f32.mrf.mxu0
        %v9509 = vadd.f32 %v9396, %v9508
        %v9510 = vpop.f32.mrf.mxu0
        %v9511 = vadd.f32 %v9398, %v9510
        %v9512 = vpop.f32.mrf.mxu0
        %v9513 = vadd.f32 %v9400, %v9512
        %9514 = vmatprep.mubr.bf16.mxu0 %v8908
        %9515 = vmatmul.mubr.bf16.gmra.mxu0 %v8907
        %v9516 = vpop.f32.mrf.mxu0
        %v9517 = vadd.f32 %v9404, %v9516
        %v9518 = vpop.f32.mrf.mxu0
        %v9519 = vadd.f32 %v9406, %v9518
        %v9520 = vpop.f32.mrf.mxu0
        %v9521 = vadd.f32 %v9408, %v9520
        %v9522 = vpop.f32.mrf.mxu0
        %v9523 = vadd.f32 %v9410, %v9522
        %9524 = vmatprep.mubr.bf16.mxu0 %v8912
        %9525 = vmatmul.mubr.bf16.gmra.mxu0 %v8911
        %v9526 = vpop.f32.mrf.mxu0
        %v9527 = vadd.f32 %v9414, %v9526
        %v9528 = vpop.f32.mrf.mxu0
        %v9529 = vadd.f32 %v9416, %v9528
        %v9530 = vpop.f32.mrf.mxu0
        %v9531 = vadd.f32 %v9418, %v9530
        %v9532 = vpop.f32.mrf.mxu0
        %v9533 = vadd.f32 %v9420, %v9532
        %9534 = vdwg.mxu0
        %vm9535 = vcmp.gt.f32.partialorder %v9457, 0.0
        %vm9536 = vcmp.gt.f32.partialorder %v9459, 0.0
        %vm9537 = vcmp.gt.f32.partialorder %v9461, 0.0
        %vm9538 = vcmp.gt.f32.partialorder %v9463, 0.0
        %vm9539 = vcmp.gt.f32.partialorder %v9467, 0.0
        %vm9540 = vcmp.gt.f32.partialorder %v9469, 0.0
        %vm9541 = vcmp.gt.f32.partialorder %v9471, 0.0
        %vm9542 = vcmp.gt.f32.partialorder %v9473, 0.0
        %vm9543 = vcmp.gt.f32.partialorder %v9477, 0.0
        %vm9544 = vcmp.gt.f32.partialorder %v9479, 0.0
        %vm9545 = vcmp.gt.f32.partialorder %v9481, 0.0
        %vm9546 = vcmp.gt.f32.partialorder %v9483, 0.0
        %vm9547 = vcmp.gt.f32.partialorder %v9487, 0.0
        %vm9548 = vcmp.gt.f32.partialorder %v9489, 0.0
        %vm9549 = vcmp.gt.f32.partialorder %v9491, 0.0
        %vm9550 = vcmp.gt.f32.partialorder %v9493, 0.0
        %vm9551 = vcmp.gt.f32.partialorder %v9497, 0.0
        %vm9552 = vcmp.gt.f32.partialorder %v9499, 0.0
        %vm9553 = vcmp.gt.f32.partialorder %v9501, 0.0
        %vm9554 = vcmp.gt.f32.partialorder %v9503, 0.0
        %vm9555 = vcmp.gt.f32.partialorder %v9507, 0.0
        %vm9556 = vcmp.gt.f32.partialorder %v9509, 0.0
        %vm9557 = vcmp.gt.f32.partialorder %v9511, 0.0
        %vm9558 = vcmp.gt.f32.partialorder %v9513, 0.0
        %vm9559 = vcmp.gt.f32.partialorder %v9517, 0.0
        %vm9560 = vcmp.gt.f32.partialorder %v9519, 0.0
        %vm9561 = vcmp.gt.f32.partialorder %v9521, 0.0
        %vm9562 = vcmp.gt.f32.partialorder %v9523, 0.0
        %vm9563 = vcmp.gt.f32.partialorder %v9527, 0.0
        %vm9564 = vcmp.gt.f32.partialorder %v9529, 0.0
        %vm9565 = vcmp.gt.f32.partialorder %v9531, 0.0
        %vm9566 = vcmp.gt.f32.partialorder %v9533, 0.0
        %v9567 = vmul.f32 %v9457, 0.2
        %v9568 = vmul.f32 %v9459, 0.2
        %v9569 = vmul.f32 %v9461, 0.2
        %v9570 = vmul.f32 %v9463, 0.2
        %v9571 = vmul.f32 %v9467, 0.2
        %v9572 = vmul.f32 %v9469, 0.2
        %v9573 = vmul.f32 %v9471, 0.2
        %v9574 = vmul.f32 %v9473, 0.2
        %v9575 = vmul.f32 %v9477, 0.2
        %v9576 = vmul.f32 %v9479, 0.2
        %v9577 = vmul.f32 %v9481, 0.2
        %v9578 = vmul.f32 %v9483, 0.2
        %v9579 = vmul.f32 %v9487, 0.2
        %v9580 = vmul.f32 %v9489, 0.2
        %v9581 = vmul.f32 %v9491, 0.2
        %v9582 = vmul.f32 %v9493, 0.2
        %v9583 = vmul.f32 %v9497, 0.2
        %v9584 = vmul.f32 %v9499, 0.2
        %v9585 = vmul.f32 %v9501, 0.2
        %v9586 = vmul.f32 %v9503, 0.2
        %v9587 = vmul.f32 %v9507, 0.2
        %v9588 = vmul.f32 %v9509, 0.2
        %v9589 = vmul.f32 %v9511, 0.2
        %v9590 = vmul.f32 %v9513, 0.2
        %v9591 = vmul.f32 %v9517, 0.2
        %v9592 = vmul.f32 %v9519, 0.2
        %v9593 = vmul.f32 %v9521, 0.2
        %v9594 = vmul.f32 %v9523, 0.2
        %v9595 = vmul.f32 %v9527, 0.2
        %v9596 = vmul.f32 %v9529, 0.2
        %v9597 = vmul.f32 %v9531, 0.2
        %v9598 = vmul.f32 %v9533, 0.2
        %v9599 = vsel %vm9535, %v9457, %v9567
        %v9600 = vsel %vm9536, %v9459, %v9568
        %v9601 = vsel %vm9537, %v9461, %v9569
        %v9602 = vsel %vm9538, %v9463, %v9570
        %v9603 = vsel %vm9539, %v9467, %v9571
        %v9604 = vsel %vm9540, %v9469, %v9572
        %v9605 = vsel %vm9541, %v9471, %v9573
        %v9606 = vsel %vm9542, %v9473, %v9574
        %v9607 = vsel %vm9543, %v9477, %v9575
        %v9608 = vsel %vm9544, %v9479, %v9576
        %v9609 = vsel %vm9545, %v9481, %v9577
        %v9610 = vsel %vm9546, %v9483, %v9578
        %v9611 = vsel %vm9547, %v9487, %v9579
        %v9612 = vsel %vm9548, %v9489, %v9580
        %v9613 = vsel %vm9549, %v9491, %v9581
        %v9614 = vsel %vm9550, %v9493, %v9582
        %v9615 = vsel %vm9551, %v9497, %v9583
        %v9616 = vsel %vm9552, %v9499, %v9584
        %v9617 = vsel %vm9553, %v9501, %v9585
        %v9618 = vsel %vm9554, %v9503, %v9586
        %v9619 = vsel %vm9555, %v9507, %v9587
        %v9620 = vsel %vm9556, %v9509, %v9588
        %v9621 = vsel %vm9557, %v9511, %v9589
        %v9622 = vsel %vm9558, %v9513, %v9590
        %v9623 = vsel %vm9559, %v9517, %v9591
        %v9624 = vsel %vm9560, %v9519, %v9592
        %v9625 = vsel %vm9561, %v9521, %v9593
        %v9626 = vsel %vm9562, %v9523, %v9594
        %v9627 = vsel %vm9563, %v9527, %v9595
        %v9628 = vsel %vm9564, %v9529, %v9596
        %v9629 = vsel %vm9565, %v9531, %v9597
        %v9630 = vsel %vm9566, %v9533, %v9598
        %9631 = vxpose.xlu0.b32.start [1/16] %v9599, 128
        %9632 = vxpose.xlu0.b32.cont [2/16] %v9601, 128
        %9633 = vxpose.xlu0.b32.cont [3/16] %v9603, 128
        %9634 = vxpose.xlu0.b32.cont [4/16] %v9605, 128
        %9635 = vxpose.xlu0.b32.cont [5/16] %v9607, 128
        %9636 = vxpose.xlu0.b32.cont [6/16] %v9609, 128
        %9637 = vxpose.xlu0.b32.cont [7/16] %v9611, 128
        %9638 = vxpose.xlu0.b32.cont [8/16] %v9613, 128
        %9639 = vxpose.xlu0.b32.cont [9/16] %v9615, 128
        %9640 = vxpose.xlu0.b32.cont [10/16] %v9617, 128
        %9641 = vxpose.xlu0.b32.cont [11/16] %v9619, 128
        %9642 = vxpose.xlu0.b32.cont [12/16] %v9621, 128
        %9643 = vxpose.xlu0.b32.cont [13/16] %v9623, 128
        %9644 = vxpose.xlu0.b32.cont [14/16] %v9625, 128
        %9645 = vxpose.xlu0.b32.cont [15/16] %v9627, 128
        %9646 = vxpose.xlu0.b32.end [16/16] %v9629, 128
        %v9647 = vpop.trf.xlu0
        %v9648 = vpop.trf.xlu0
        %v9649 = vpop.trf.xlu0
        %v9650 = vpop.trf.xlu0
        %v9651 = vpop.trf.xlu0
        %v9652 = vpop.trf.xlu0
        %v9653 = vpop.trf.xlu0
        %v9654 = vpop.trf.xlu0
        %v9655 = vpop.trf.xlu0
        %v9656 = vpop.trf.xlu0
        %v9657 = vpop.trf.xlu0
        %v9658 = vpop.trf.xlu0
        %v9659 = vpop.trf.xlu0
        %v9660 = vpop.trf.xlu0
        %v9661 = vpop.trf.xlu0
        %v9662 = vpop.trf.xlu0
        %9663 = vxpose.xlu0.b32.start [1/16] %v9600, 128
        %9664 = vxpose.xlu0.b32.cont [2/16] %v9602, 128
        %9665 = vxpose.xlu0.b32.cont [3/16] %v9604, 128
        %9666 = vxpose.xlu0.b32.cont [4/16] %v9606, 128
        %9667 = vxpose.xlu0.b32.cont [5/16] %v9608, 128
        %9668 = vxpose.xlu0.b32.cont [6/16] %v9610, 128
        %9669 = vxpose.xlu0.b32.cont [7/16] %v9612, 128
        %9670 = vxpose.xlu0.b32.cont [8/16] %v9614, 128
        %9671 = vxpose.xlu0.b32.cont [9/16] %v9616, 128
        %9672 = vxpose.xlu0.b32.cont [10/16] %v9618, 128
        %9673 = vxpose.xlu0.b32.cont [11/16] %v9620, 128
        %9674 = vxpose.xlu0.b32.cont [12/16] %v9622, 128
        %9675 = vxpose.xlu0.b32.cont [13/16] %v9624, 128
        %9676 = vxpose.xlu0.b32.cont [14/16] %v9626, 128
        %9677 = vxpose.xlu0.b32.cont [15/16] %v9628, 128
        %9678 = vxpose.xlu0.b32.end [16/16] %v9630, 128
        %v9679 = vpop.trf.xlu0
        %v9680 = vpop.trf.xlu0
        %v9681 = vpop.trf.xlu0
        %v9682 = vpop.trf.xlu0
        %v9683 = vpop.trf.xlu0
        %v9684 = vpop.trf.xlu0
        %v9685 = vpop.trf.xlu0
        %v9686 = vpop.trf.xlu0
        %v9687 = vpop.trf.xlu0
        %v9688 = vpop.trf.xlu0
        %v9689 = vpop.trf.xlu0
        %v9690 = vpop.trf.xlu0
        %v9691 = vpop.trf.xlu0
        %v9692 = vpop.trf.xlu0
        %v9693 = vpop.trf.xlu0
        %v9694 = vpop.trf.xlu0
        %v9695 = vpack.c.bf16 %v9648, %v9647
        %v9696 = vpack.c.bf16 %v9650, %v9649
        %v9697 = vpack.c.bf16 %v9652, %v9651
        %v9698 = vpack.c.bf16 %v9654, %v9653
        %v9699 = vpack.c.bf16 %v9656, %v9655
        %v9700 = vpack.c.bf16 %v9658, %v9657
        %v9701 = vpack.c.bf16 %v9660, %v9659
        %v9702 = vpack.c.bf16 %v9662, %v9661
        %v9703 = vpack.c.bf16 %v9680, %v9679
        %v9704 = vpack.c.bf16 %v9682, %v9681
        %v9705 = vpack.c.bf16 %v9684, %v9683
        %v9706 = vpack.c.bf16 %v9686, %v9685
        %v9707 = vpack.c.bf16 %v9688, %v9687
        %v9708 = vpack.c.bf16 %v9690, %v9689
        %v9709 = vpack.c.bf16 %v9692, %v9691
        %v9710 = vpack.c.bf16 %v9694, %v9693
        %v9711 = vld [vmem:[%s8] sm:$0x3]
        %v9712 = vld [vmem:[#allocation2] sm:$0x1]
        %9714 = vset.pattern.permute.xlu0 0
        %9715 = vperm.xlu0 %9714, %v9712
        %v9716 = vpop.permute.xlu0 %9715
        %v9718 = vlaneseq
        %v9719 = vshrl.u32 %v9718, 7
        %v9720 = vsub.s32 0, %v9719
        %v9721 = vrot.slane %v9716, %v9720
        %v9724 = vunpack.c.l.s4 1966171168
        %v9725 = vunpack.c.0.s8 %v9724
        %v9726 = vlaneseq
        %v9727 = vshrl.u32 %v9726, 7
        %v9728 = vsub.s32 %v9725, %v9727
        %v9729 = vrot.slane %v9711, %v9728
        %v9730 = vcombine.high %v9729, %v9729
        %v9732 = vunpack.c.l.s4 1966171168
        %v9733 = vunpack.c.0.s8 %v9732
        %v9734 = vlaneseq
        %v9735 = vshrl.u32 %v9734, 7
        %v9736 = vsub.s32 %v9733, %v9735
        %v9737 = vrot.slane %v9729, %v9736
        %v9739 = vunpack.c.l.s4 1966171168
        %v9740 = vunpack.c.0.s8 %v9739
        %v9741 = vlaneseq
        %v9742 = vshrl.u32 %v9741, 7
        %v9743 = vsub.s32 %v9740, %v9742
        %v9744 = vrot.slane %v9730, %v9743
        %9747 = vmatprep.subr.bf16.mxu0 0
        %9748 = vmatpush1.bf16.msra.mxu0 %v9702
        %9749 = vmatprep.subr.bf16.mxu0 0
        %9750 = vmatpush1.bf16.msra.mxu0 %v9701
        %9751 = vmatprep.subr.bf16.mxu0 0
        %9752 = vmatpush1.bf16.msra.mxu0 %v9700
        %9753 = vmatprep.subr.bf16.mxu0 0
        %9754 = vmatpush1.bf16.msra.mxu0 %v9699
        %9755 = vmatprep.subr.bf16.mxu0 0
        %9756 = vmatpush1.bf16.msra.mxu0 %v9698
        %9757 = vmatprep.subr.bf16.mxu0 0
        %9758 = vmatpush1.bf16.msra.mxu0 %v9697
        %9759 = vmatprep.subr.bf16.mxu0 0
        %9760 = vmatpush1.bf16.msra.mxu0 %v9696
        %9761 = vmatprep.subr.bf16.mxu0 0
        %9762 = vmatpush1.bf16.msra.mxu0 %v9695
        %9763 = vmatprep.subr.bf16.mxu0 0
        %9764 = vmatpush2.bf16.msra.mxu0 %v9710
        %9765 = vmatprep.subr.bf16.mxu0 0
        %9766 = vmatpush2.bf16.msra.mxu0 %v9709
        %9767 = vmatprep.subr.bf16.mxu0 0
        %9768 = vmatpush2.bf16.msra.mxu0 %v9708
        %9769 = vmatprep.subr.bf16.mxu0 0
        %9770 = vmatpush2.bf16.msra.mxu0 %v9707
        %9771 = vmatprep.subr.bf16.mxu0 0
        %9772 = vmatpush2.bf16.msra.mxu0 %v9706
        %9773 = vmatprep.subr.bf16.mxu0 0
        %9774 = vmatpush2.bf16.msra.mxu0 %v9705
        %9775 = vmatprep.subr.bf16.mxu0 0
        %9776 = vmatpush2.bf16.msra.mxu0 %v9704
        %9777 = vmatprep.subr.bf16.mxu0 0
        %9778 = vmatpush2.bf16.msra.mxu0 %v9703
        %9779 = vmatprep.mubr.bf16.mxu0 %v9744
        %9780 = vmatmul.mubr.bf16.gmra.mxu0 %v9737
        %v9781 = vpop.f32.mrf.mxu0
        %v9782 = vadd.f32 %v9721, %v9781
        %v9783 = vpop.f32.mrf.mxu0
        %v9784 = vpop.f32.mrf.mxu0
        %v9785 = vpop.f32.mrf.mxu0
        %9786 = vdwg.mxu0
        %v9787 = vxor.u32 %v9782, 2147483648
        %v9788 = vmul.f32 %v9787, 1.442695
        %v9789 = vpow.pop %v9788
        %v9790 = vadd.f32 %v9789, 1.0
        %v9791 = vrcp.pop %v9790
        %v9792 = vmul.f32 1.0, %v9791
        %9793 = vst [vmem:[%s387] sm:$0x1] %v9792
        %s9794 = sand.u32 %s255, 1
        %s9795 = scalar_lea.sflag [#allocation5], %s9794
        %s9796 = sand.u32 %s255, 1
        %s9797 = scalar_lea.vmem [#allocation6], %s9796
        // Predicated region
        $region65: #{conditional_discriminator.1} parent=59 // pred_check
          %p9798 = pneg %p265
        $region66: #{conditional_discriminator.1} parent=59 // pred_check_branch
          %9800 = sbr.rel (%p9798) target = $region68
        $region67: #{conditional_discriminator.1} parent=59 // pred_region
          %s9802 = ssub.s32 16, 16
          %9803 = vsyncadd %s9795, %s9802
          %s9804 = smul.addr %s27, 16
          %s9805 = scalar_lea.hbm %s10, %s9804
          %s9807 = sshll.u32 %s9797, 4
          %s9808 = int_to_ptr.vmem [resolvable:$true] %s9807
          %9810 = dma.vmem_to_hbm [thread:$0]  %s9808, 16, %s9805, %s9795
        $region68: #{conditional_discriminator.1} parent=59 // pred_fallthru
          _
      $region60: #{conditional_discriminator.1} parent=5 // pred_fallthru
        _
      %p9811 = scmp.le.s32.totalorder 2, %s22
      // Predicated region
      $region69: #{conditional_discriminator.1} parent=5 // pred_check
        %p9812 = pneg %p9811
      $region70: #{conditional_discriminator.1} parent=5 // pred_check_branch
        %9814 = sbr.rel (%p9812) target = $region72
      $region71: #{conditional_discriminator.1} parent=5 // pred_region
        %s9815 = ssub.s32 %s22, 2
        // Predicated region
        $region73: #{conditional_discriminator.1} parent=71 // pred_check
          %p9816 = pneg %p271
        $region74: #{conditional_discriminator.1} parent=71 // pred_check_branch
          %9818 = sbr.rel (%p9816) target = $region76
        $region75: #{conditional_discriminator.1} parent=71 // pred_region
          %s9819 = sand.u32 %s256, 1
          %s9820 = scalar_lea.sflag [#allocation5], %s9819
          %s9821 = sand.u32 %s256, 1
          %s9822 = scalar_lea.vmem [#allocation6], %s9821
          %9823 = dma.done %s9820, 16
        $region76: #{conditional_discriminator.1} parent=71 // pred_fallthru
          _
      $region72: #{conditional_discriminator.1} parent=5 // pred_fallthru
        _
    $region6: #{conditional_discriminator.1} parent=1 // loop_footer
      %s26 = sadd.s32 1, %s22
    $region7: #{conditional_discriminator.1} parent=1 // loop_footer_branch
      %21 = sbr.rel target = $region3
    $region8: #{conditional_discriminator.1} parent=1 // loop_exit
      _
    %9824 = vsyncpa [#allocation4], 1
    %s9825 = scalar_lea.sflag [#allocation4], 1
    %9826 = vsyncpa %s9825, 1
    %9827 = vsyncpa [#allocation5], 1
    %s9828 = scalar_lea.sflag [#allocation5], 1
    %9829 = vsyncpa %s9828, 1

</llo_original>
